<compile_context>
chip_gen: v5e
topology: v5e:2x2
jax: 0.10.0
libtpu: 0.0.40
codegen_flags: <defaults>
</compile_context>

<pallas_src>
import functools

import jax
import jax.numpy as jnp
from jax.experimental import pallas as pl
from jax.experimental.pallas import tpu as pltpu


_LEAKY_SLOPE = 0.01
_VMEM_LIMIT = 32 * 1024 * 1024


# ----------------------------------------------------------------------------
# Pallas kernels
# ----------------------------------------------------------------------------

def _conv_mm_kernel(w_ref, b_ref, cols_ref, o_ref, *, slope):
    """o[:, tile] = leaky_relu(W2d @ colsT[:, tile] + b)  -- lane-dense output."""
    y = jnp.dot(w_ref[...], cols_ref[...], preferred_element_type=jnp.float32)
    y = y + b_ref[...]                                  # (outC, 1) broadcasts over lanes
    y = jnp.where(y > 0, y, slope * y)
    o_ref[...] = y.astype(o_ref.dtype)


def _tail_kernel(a2_ref, w3_ref, b3_ref, w4_ref, b4_ref,
                 w1_ref, b1_ref, w2_ref, b2_ref, r_ref, *, tf, slope):
    """Fused conv3 + conv4 + fc1 + fc2 for `tf` frames, all activations resident.

    conv2's output is laid out as one 128-lane slot per frame (121 valid spatial
    positions, flat index y*11 + x, plus 7 zero pad lanes).  The stride-1 3x3
    convs then become 9 shifted matmuls over the whole frame slab: output flat
    index m reads input flat index m + dy*11 + dx.  "Wide" garbage columns (x>=7
    after conv4, x>=9 after conv3, pad lanes) never feed a valid output, and fc1's
    weights are zero at those positions.
    """
    RS = 11                 # per-frame flat row stride
    L3 = 101                # per-frame conv3 wide length (>= 77 + max shift 24)
    L4 = 77                 # per-frame conv4 wide length (7 rows x stride 11)
    SLOT = 128              # per-frame lane slot in the conv2 output
    W3 = (tf - 1) * SLOT + L3
    W4 = (tf - 1) * SLOT + L4

    a2 = a2_ref[...]                                    # (16, tf*128) bf16

    # conv3: 9 shifted per-tap matmuls over all frames at once
    acc3 = jnp.zeros((16, W3), jnp.float32)
    for t in range(9):
        dy, dx = divmod(t, 3)
        sh = dy * RS + dx
        acc3 = acc3 + jnp.dot(w3_ref[t], a2[:, sh:sh + W3],
                              preferred_element_type=jnp.float32)
    a3 = acc3 + b3_ref[...]
    a3 = jnp.where(a3 > 0, a3, slope * a3).astype(jnp.bfloat16)

    # conv4
    acc4 = jnp.zeros((16, W4), jnp.float32)
    for t in range(9):
        dy, dx = divmod(t, 3)
        sh = dy * RS + dx
        acc4 = acc4 + jnp.dot(w4_ref[t], a3[:, sh:sh + W4],
                              preferred_element_type=jnp.float32)
    a4 = acc4 + b4_ref[...]
    a4 = jnp.where(a4 > 0, a4, slope * a4).astype(jnp.bfloat16)

    # fc1 + fc2 per frame; rewards packed into a lane-dense (1, 128) row
    lane = jax.lax.broadcasted_iota(jnp.int32, (1, SLOT), 1)
    row = jnp.zeros((1, SLOT), jnp.float32)
    for f in range(tf):
        a4f = a4[:, f * SLOT:f * SLOT + L4]             # (16, 77)
        h = jnp.zeros((1, 64), jnp.float32)
        for c in range(16):                              # fc1 as 16 (1,77)@(77,64) dots
            h = h + jnp.dot(a4f[c:c + 1, :], w1_ref[c],
                            preferred_element_type=jnp.float32)
        h = h + b1_ref[...]
        h = jnp.where(h > 0, h, slope * h)
        # fc2 (64 -> 1) off the MXU: VPU multiply + lane reduction
        r = jnp.sum(h * w2_ref[...], axis=-1, keepdims=True) + b2_ref[...]
        row = jnp.where(lane == f, r, row)
    r_ref[...] = row


# ----------------------------------------------------------------------------
# pallas_call wrappers
# ----------------------------------------------------------------------------

def _pick_tm(M, cap):
    """Largest lane tile <= cap that still gives >= 2 grid steps (v7x megacore),
    multiple of 128."""
    if M <= 256:
        return M
    half = -(-M // 2)
    return max(128, min(cap, -(-half // 128) * 128))


def conv_matmul_T(w2d, b_col, cols, *, slope=_LEAKY_SLOPE, tm_cap=2048):
    """leaky_relu(w2d @ cols + b).  cols: [K, M] -> out [outC, M] bf16, tiled over M."""
    outC, K = w2d.shape
    M = cols.shape[1]
    tm = _pick_tm(M, tm_cap)
    grid = (pl.cdiv(M, tm),)
    return pl.pallas_call(
        functools.partial(_conv_mm_kernel, slope=slope),
        out_shape=jax.ShapeDtypeStruct((outC, M), jnp.bfloat16),
        grid=grid,
        in_specs=[
            pl.BlockSpec((outC, K), lambda m: (0, 0)),   # weights: resident
            pl.BlockSpec((outC, 1), lambda m: (0, 0)),   # bias:    resident
            pl.BlockSpec((K, tm), lambda m: (0, m)),     # cols tile: pipelined
        ],
        out_specs=pl.BlockSpec((outC, tm), lambda m: (0, m)),
        compiler_params=pltpu.CompilerParams(
            dimension_semantics=("parallel",),
            vmem_limit_bytes=_VMEM_LIMIT),
    )(w2d, b_col, cols)


def tail_rewards(a2, pp, num_frames):
    """Fused conv3+conv4+fc head.  a2: [16, F*128] bf16 -> per-frame rewards [F]."""
    tf = max(1, min(8, pl.cdiv(num_frames, 2)))          # >= 2 grid steps when F >= 2
    grid_n = pl.cdiv(num_frames, tf)
    out = pl.pallas_call(
        functools.partial(_tail_kernel, tf=tf, slope=_LEAKY_SLOPE),
        out_shape=jax.ShapeDtypeStruct((1, grid_n * 128), jnp.float32),
        grid=(grid_n,),
        in_specs=[
            pl.BlockSpec((16, tf * 128), lambda i: (0, i)),      # frame slab
            pl.BlockSpec((9, 16, 16), lambda i: (0, 0, 0)),      # conv3 taps
            pl.BlockSpec((16, 1), lambda i: (0, 0)),
            pl.BlockSpec((9, 16, 16), lambda i: (0, 0, 0)),      # conv4 taps
            pl.BlockSpec((16, 1), lambda i: (0, 0)),
            pl.BlockSpec((16, 77, 64), lambda i: (0, 0, 0)),     # fc1 (wide layout)
            pl.BlockSpec((1, 64), lambda i: (0, 0)),
            pl.BlockSpec((1, 64), lambda i: (0, 0)),             # fc2 weight row
            pl.BlockSpec((1, 1), lambda i: (0, 0)),
        ],
        out_specs=pl.BlockSpec((1, 128), lambda i: (0, i)),      # lane-dense rewards
        compiler_params=pltpu.CompilerParams(
            dimension_semantics=("parallel",),
            vmem_limit_bytes=_VMEM_LIMIT),
    )(a2, pp["conv3_wt"], pp["conv3_b"], pp["conv4_wt"], pp["conv4_b"],
      pp["fc1_wt"], pp["fc1_b"], pp["fc2_w"], pp["fc2_b"])
    # garbage lanes (pad frames / lanes >= tf) are dropped here, so no masking
    # is needed inside the kernel
    return out.reshape(grid_n, 128)[:, :tf].reshape(grid_n * tf)[:num_frames]


# ----------------------------------------------------------------------------
# im2col glue (plain XLA: strided slices only, no gather, bf16)
# ----------------------------------------------------------------------------

def _im2col_nhwc_T(x, k, s):
    """x: [F, H, W, C] -> cols [k*k*C, F*o*o], K ordered (dy, dx, c), M=(f, oy, ox)."""
    F, H, W, C = x.shape
    o = (H - k) // s + 1
    end = s * (o - 1) + 1
    pats = [x[:, dy:dy + end:s, dx:dx + end:s, :]
            for dy in range(k) for dx in range(k)]
    p = jnp.stack(pats, axis=0)                      # (k*k, F, o, o, C)
    p = jnp.transpose(p, (0, 4, 1, 2, 3))            # (k*k, C, F, o, o)
    return p.reshape(k * k * C, F * o * o), o


def _im2col_cfhw_T(a, k, s):
    """a: [C, F, H, W] -> cols [k*k*C, F, o*o], K ordered (dy, dx, c)."""
    C, F, H, W = a.shape
    o = (H - k) // s + 1
    end = s * (o - 1) + 1
    pats = [a[:, :, dy:dy + end:s, dx:dx + end:s]
            for dy in range(k) for dx in range(k)]
    p = jnp.stack(pats, axis=0)                      # (k*k, C, F, o, o)
    return p.reshape(k * k * C, F, o * o), o


# ----------------------------------------------------------------------------
# Net: parameters + forward
# ----------------------------------------------------------------------------

def init_params(key):
    """PyTorch-layout parameters (same shapes as the nn.Module)."""
    ks = jax.random.split(key, 12)
    scale = 0.05

    def w(k, shape):
        return (scale * jax.random.normal(k, shape)).astype(jnp.float32)

    return {
        "conv1_w": w(ks[0], (32, 4, 7, 7)),  "conv1_b": w(ks[1], (32,)),
        "conv2_w": w(ks[2], (16, 32, 5, 5)), "conv2_b": w(ks[3], (16,)),
        "conv3_w": w(ks[4], (16, 16, 3, 3)), "conv3_b": w(ks[5], (16,)),
        "conv4_w": w(ks[6], (16, 16, 3, 3)), "conv4_b": w(ks[7], (16,)),
        "fc1_w":   w(ks[8], (64, 784)),      "fc1_b":   w(ks[9], (64,)),
        "fc2_w":   w(ks[10], (1, 64)),       "fc2_b":   w(ks[11], (1,)),
    }


def prepare_params(params):
    """One-time layout prep: store weights exactly as the kernels consume them."""
    f32, bf16 = jnp.float32, jnp.bfloat16
    pp = {}
    # conv1/conv2: 2-D weights, K ordered (dy, dx, c) so cols come straight from
    # NHWC frames / CFHW activations without a data transpose.
    w1 = params["conv1_w"]                                               # (32,4,7,7)
    pp["conv1_w2d"] = jnp.transpose(w1, (0, 2, 3, 1)).reshape(32, 196).astype(bf16)
    pp["conv1_b"] = params["conv1_b"].reshape(32, 1).astype(f32)
    w2 = params["conv2_w"]                                               # (16,32,5,5)
    pp["conv2_w2d"] = jnp.transpose(w2, (0, 2, 3, 1)).reshape(16, 800).astype(bf16)
    pp["conv2_b"] = params["conv2_b"].reshape(16, 1).astype(f32)
    # conv3/conv4: per-tap (9, outC, inC) for the fused tail kernel
    for i in (3, 4):
        w = params[f"conv{i}_w"]                                         # (16,16,3,3)
        pp[f"conv{i}_wt"] = jnp.transpose(w, (2, 3, 0, 1)).reshape(9, 16, 16).astype(bf16)
        pp[f"conv{i}_b"] = params[f"conv{i}_b"].reshape(16, 1).astype(f32)
    # fc1 remapped onto the conv4 "wide" flat layout (row stride 11, zeros at the
    # garbage columns x in [7, 11)) so the fused kernel needs no feature relayout.
    W1 = params["fc1_w"].reshape(64, 16, 7, 7)
    W1 = jnp.pad(W1, ((0, 0), (0, 0), (0, 0), (0, 4)))                   # (64,16,7,11)
    pp["fc1_wt"] = jnp.transpose(W1.reshape(64, 16, 77), (1, 2, 0)).astype(bf16)
    pp["fc1_b"] = params["fc1_b"].reshape(1, 64).astype(f32)
    pp["fc2_w"] = params["fc2_w"].reshape(1, 64).astype(f32)
    pp["fc2_b"] = params["fc2_b"].reshape(1, 1).astype(f32)
    return jax.tree_util.tree_map(jnp.asarray, pp)


def _rewards_per_frame(pp, frames_nhwc):
    """frames: [F, 84, 84, 4] float32 -> per-frame reward r: [F]."""
    F = frames_nhwc.shape[0]
    fb = frames_nhwc.astype(jnp.bfloat16)

    # conv1: cols straight from NHWC (no input transpose), Pallas matmul kernel
    cols1, o1 = _im2col_nhwc_T(fb, 7, 3)                     # (196, F*676)
    a1 = conv_matmul_T(pp["conv1_w2d"], pp["conv1_b"], cols1, tm_cap=2048)

    # conv2: cols from conv1's [32, F, 26, 26] view (pure reshape + slices)
    a1r = a1.reshape(32, F, o1, o1)
    cols2, o2 = _im2col_cfhw_T(a1r, 5, 2)                    # (800, F, 121)
    cols2 = jnp.pad(cols2, ((0, 0), (0, 0), (0, 128 - o2 * o2)))
    a2 = conv_matmul_T(pp["conv2_w2d"], pp["conv2_b"],
                       cols2.reshape(800, F * 128), tm_cap=1024)  # (16, F*128)

    # conv3 + conv4 + fc1 + fc2 fused, gridded over frames (im2col fully in-kernel)
    return tail_rewards(a2, pp, F)


@jax.jit
def net_forward(pp, traj_i, traj_j):
    """Returns (logits[2], sum_abs_rewards) — same semantics as Net.forward."""
    bi = traj_i.shape[0]
    frames = jnp.concatenate([traj_i, traj_j], axis=0)       # one pass over both trajs
    r = _rewards_per_frame(pp, frames)
    cum_i = jnp.sum(r[:bi])
    cum_j = jnp.sum(r[bi:])
    abs_sum = jnp.sum(jnp.abs(r))
    return jnp.stack([cum_i, cum_j], axis=0), abs_sum


# ----------------------------------------------------------------------------
# pure-JAX reference (numerical sanity check only)
# ----------------------------------------------------------------------------

def _leaky(v):
    return jnp.where(v > 0, v, _LEAKY_SLOPE * v)


def _reference_cum_return(params, traj):
    x = jnp.transpose(traj, (0, 3, 1, 2))

    def conv(x, w, b, s):
        y = jax.lax.conv_general_dilated(
            x, w, window_strides=(s, s), padding="VALID",
            dimension_numbers=("NCHW", "OIHW", "NCHW"))
        return y + b[None, :, None, None]

    x = _leaky(conv(x, params["conv1_w"], params["conv1_b"], 3))
    x = _leaky(conv(x, params["conv2_w"], params["conv2_b"], 2))
    x = _leaky(conv(x, params["conv3_w"], params["conv3_b"], 1))
    x = _leaky(conv(x, params["conv4_w"], params["conv4_b"], 1))
    x = x.reshape(-1, 784)
    x = _leaky(x @ params["fc1_w"].T + params["fc1_b"][None, :])
    r = x @ params["fc2_w"].T + params["fc2_b"][None, :]
    return jnp.sum(r), jnp.sum(jnp.abs(r))


def _reference_forward(params, traj_i, traj_j):
    ci, ai = _reference_cum_return(params, traj_i)
    cj, aj = _reference_cum_return(params, traj_j)
    return jnp.stack([ci, cj]), ai + aj


# ----------------------------------------------------------------------------
# main
# ----------------------------------------------------------------------------

if __name__ == "__main__":
    key = jax.random.PRNGKey(0)
    kp, ki, kj = jax.random.split(key, 3)

    params = init_params(kp)
    pp = prepare_params(params)

    # Spatial 84x84x4 is fixed by the architecture (fc1 expects 16*7*7 = 784).
    B = 2
    traj_i = jax.random.uniform(ki, (B, 84, 84, 4), dtype=jnp.float32)
    traj_j = jax.random.uniform(kj, (B, 84, 84, 4), dtype=jnp.float32)

    logits, abs_sum = net_forward(pp, traj_i, traj_j)
    jax.block_until_ready((logits, abs_sum))
    assert logits.shape == (2,) and abs_sum.shape == ()

    # numerical sanity check against a plain-XLA f32 reference of the PyTorch module
    # (kernel path uses bf16 operands with f32 accumulation)
    ref_logits, ref_abs = _reference_forward(params, traj_i, traj_j)
    assert jnp.allclose(logits, ref_logits, rtol=2e-2, atol=2e-3), (logits, ref_logits)
    assert jnp.allclose(abs_sum, ref_abs, rtol=2e-2, atol=2e-3), (abs_sum, ref_abs)

    print("KERNEL_OK")
</pallas_src>

<mosaic_0001>
module attributes {stable_mosaic.version = 11 : i64} {
  func.func @_conv_mm_kernel(%arg0: i32, %arg1: memref<32x196xbf16, #tpu.memory_space<vmem>>, %arg2: memref<32x1xf32, #tpu.memory_space<vmem>>, %arg3: memref<196x1408xbf16, #tpu.memory_space<vmem>>, %arg4: memref<32x1408xbf16, #tpu.memory_space<vmem>>) attributes {dimension_semantics = [#tpu.dimension_semantics<parallel>], iteration_bounds = array<i64: 2>, scalar_prefetch = 0 : i64, scratch_operands = 0 : i64, tpu.core_type = #tpu.core_type<tc>, window_params = [{pipeline_mode = #tpu.pipeline_mode<synchronous>, transform_indices = @transform_0, window_bounds = array<i64: 32, 196>}, {pipeline_mode = #tpu.pipeline_mode<synchronous>, transform_indices = @transform_1, window_bounds = array<i64: 32, 1>}, {transform_indices = @transform_2, window_bounds = array<i64: 196, 1408>}, {transform_indices = @transform_3, window_bounds = array<i64: 32, 1408>}]} {
    %c0 = arith.constant 0 : index
    %c0_0 = arith.constant 0 : index
    %0 = vector.load %arg1[%c0, %c0_0] : memref<32x196xbf16, #tpu.memory_space<vmem>>, vector<32x196xbf16>
    %c0_1 = arith.constant 0 : index
    %c0_2 = arith.constant 0 : index
    %1 = vector.load %arg3[%c0_1, %c0_2] : memref<196x1408xbf16, #tpu.memory_space<vmem>>, vector<196x1408xbf16>
    %cst = arith.constant dense<0.000000e+00> : vector<32x1408xf32>
    %2 = tpu.matmul %0, %1, %cst {dimension_numbers = #tpu.dot_dimension_numbers<[1], [0], [0], [1], [0, 0, 1, 1], [], []>} : vector<32x196xbf16>, vector<196x1408xbf16>, vector<32x1408xf32> -> vector<32x1408xf32>
    %c0_3 = arith.constant 0 : index
    %c0_4 = arith.constant 0 : index
    %3 = vector.load %arg2[%c0_3, %c0_4] : memref<32x1xf32, #tpu.memory_space<vmem>>, vector<32x1xf32>
    %4 = vector.broadcast %3 : vector<32x1xf32> to vector<32x1408xf32>
    %5 = arith.addf %2, %4 : vector<32x1408xf32>
    %cst_5 = arith.constant 0.000000e+00 : f32
    %6 = vector.broadcast %cst_5 : f32 to vector<32x1408xf32>
    %7 = arith.cmpf ogt, %5, %6 : vector<32x1408xf32>
    %cst_6 = arith.constant 0.00999999977 : f32
    %8 = vector.broadcast %cst_6 : f32 to vector<32x1408xf32>
    %9 = arith.mulf %8, %5 : vector<32x1408xf32>
    %10 = arith.select %7, %5, %9 : vector<32x1408xi1>, vector<32x1408xf32>
    %11 = arith.truncf %10 : vector<32x1408xf32> to vector<32x1408xbf16>
    %c0_7 = arith.constant 0 : index
    %c0_8 = arith.constant 0 : index
    %12 = vector.load %arg4[%c0_7, %c0_8] : memref<32x1408xbf16, #tpu.memory_space<vmem>>, vector<32x1408xbf16>
    tpu.vector_store %arg4[%c0_7, %c0_8], %11 {strides = array<i32>} : memref<32x1408xbf16, #tpu.memory_space<vmem>>, vector<32x1408xbf16>,
    return
  }
  func.func @transform_0(%arg0: i32) -> (i32, i32) {
    %c0_i32 = arith.constant 0 : i32
    %c0_i32_0 = arith.constant 0 : i32
    %c0_i32_1 = arith.constant 0 : i32
    return %c0_i32, %c0_i32_0 : i32, i32
  }
  func.func @transform_1(%arg0: i32) -> (i32, i32) {
    %c0_i32 = arith.constant 0 : i32
    %c0_i32_0 = arith.constant 0 : i32
    %c0_i32_1 = arith.constant 0 : i32
    return %c0_i32, %c0_i32_0 : i32, i32
  }
  func.func @transform_2(%arg0: i32) -> (i32, i32) {
    %c0_i32 = arith.constant 0 : i32
    %c0_i32_0 = arith.constant 0 : i32
    return %c0_i32, %arg0 : i32, i32
  }
  func.func @transform_3(%arg0: i32) -> (i32, i32) {
    %c0_i32 = arith.constant 0 : i32
    %c0_i32_0 = arith.constant 0 : i32
    return %c0_i32, %arg0 : i32, i32
  }
}

module attributes {stable_mosaic.version = 11 : i64} {
  func.func @_conv_mm_kernel(%arg0: i32, %arg1: memref<16x800xbf16, #tpu.memory_space<vmem>>, %arg2: memref<16x1xf32, #tpu.memory_space<vmem>>, %arg3: memref<800x256xbf16, #tpu.memory_space<vmem>>, %arg4: memref<16x256xbf16, #tpu.memory_space<vmem>>) attributes {dimension_semantics = [#tpu.dimension_semantics<parallel>], iteration_bounds = array<i64: 2>, scalar_prefetch = 0 : i64, scratch_operands = 0 : i64, tpu.core_type = #tpu.core_type<tc>, window_params = [{pipeline_mode = #tpu.pipeline_mode<synchronous>, transform_indices = @transform_0, window_bounds = array<i64: 16, 800>}, {pipeline_mode = #tpu.pipeline_mode<synchronous>, transform_indices = @transform_1, window_bounds = array<i64: 16, 1>}, {transform_indices = @transform_2, window_bounds = array<i64: 800, 256>}, {transform_indices = @transform_3, window_bounds = array<i64: 16, 256>}]} {
    %c0 = arith.constant 0 : index
    %c0_0 = arith.constant 0 : index
    %0 = vector.load %arg1[%c0, %c0_0] : memref<16x800xbf16, #tpu.memory_space<vmem>>, vector<16x800xbf16>
    %c0_1 = arith.constant 0 : index
    %c0_2 = arith.constant 0 : index
    %1 = vector.load %arg3[%c0_1, %c0_2] : memref<800x256xbf16, #tpu.memory_space<vmem>>, vector<800x256xbf16>
    %cst = arith.constant dense<0.000000e+00> : vector<16x256xf32>
    %2 = tpu.matmul %0, %1, %cst {dimension_numbers = #tpu.dot_dimension_numbers<[1], [0], [0], [1], [0, 0, 1, 1], [], []>} : vector<16x800xbf16>, vector<800x256xbf16>, vector<16x256xf32> -> vector<16x256xf32>
    %c0_3 = arith.constant 0 : index
    %c0_4 = arith.constant 0 : index
    %3 = vector.load %arg2[%c0_3, %c0_4] : memref<16x1xf32, #tpu.memory_space<vmem>>, vector<16x1xf32>
    %4 = vector.broadcast %3 : vector<16x1xf32> to vector<16x256xf32>
    %5 = arith.addf %2, %4 : vector<16x256xf32>
    %cst_5 = arith.constant 0.000000e+00 : f32
    %6 = vector.broadcast %cst_5 : f32 to vector<16x256xf32>
    %7 = arith.cmpf ogt, %5, %6 : vector<16x256xf32>
    %cst_6 = arith.constant 0.00999999977 : f32
    %8 = vector.broadcast %cst_6 : f32 to vector<16x256xf32>
    %9 = arith.mulf %8, %5 : vector<16x256xf32>
    %10 = arith.select %7, %5, %9 : vector<16x256xi1>, vector<16x256xf32>
    %11 = arith.truncf %10 : vector<16x256xf32> to vector<16x256xbf16>
    %c0_7 = arith.constant 0 : index
    %c0_8 = arith.constant 0 : index
    %12 = vector.load %arg4[%c0_7, %c0_8] : memref<16x256xbf16, #tpu.memory_space<vmem>>, vector<16x256xbf16>
    tpu.vector_store %arg4[%c0_7, %c0_8], %11 {strides = array<i32>} : memref<16x256xbf16, #tpu.memory_space<vmem>>, vector<16x256xbf16>,
    return
  }
  func.func @transform_0(%arg0: i32) -> (i32, i32) {
    %c0_i32 = arith.constant 0 : i32
    %c0_i32_0 = arith.constant 0 : i32
    %c0_i32_1 = arith.constant 0 : i32
    return %c0_i32, %c0_i32_0 : i32, i32
  }
  func.func @transform_1(%arg0: i32) -> (i32, i32) {
    %c0_i32 = arith.constant 0 : i32
    %c0_i32_0 = arith.constant 0 : i32
    %c0_i32_1 = arith.constant 0 : i32
    return %c0_i32, %c0_i32_0 : i32, i32
  }
  func.func @transform_2(%arg0: i32) -> (i32, i32) {
    %c0_i32 = arith.constant 0 : i32
    %c0_i32_0 = arith.constant 0 : i32
    return %c0_i32, %arg0 : i32, i32
  }
  func.func @transform_3(%arg0: i32) -> (i32, i32) {
    %c0_i32 = arith.constant 0 : i32
    %c0_i32_0 = arith.constant 0 : i32
    return %c0_i32, %arg0 : i32, i32
  }
}

module attributes {stable_mosaic.version = 11 : i64} {
  func.func @_tail_kernel(%arg0: i32, %arg1: memref<16x256xbf16, #tpu.memory_space<vmem>>, %arg2: memref<9x16x16xbf16, #tpu.memory_space<vmem>>, %arg3: memref<16x1xf32, #tpu.memory_space<vmem>>, %arg4: memref<9x16x16xbf16, #tpu.memory_space<vmem>>, %arg5: memref<16x1xf32, #tpu.memory_space<vmem>>, %arg6: memref<16x77x64xbf16, #tpu.memory_space<vmem>>, %arg7: memref<1x64xf32, #tpu.memory_space<vmem>>, %arg8: memref<1x64xf32, #tpu.memory_space<vmem>>, %arg9: memref<1x1xf32, #tpu.memory_space<vmem>>, %arg10: memref<1x128xf32, #tpu.memory_space<vmem>>) attributes {dimension_semantics = [#tpu.dimension_semantics<parallel>], iteration_bounds = array<i64: 2>, scalar_prefetch = 0 : i64, scratch_operands = 0 : i64, tpu.core_type = #tpu.core_type<tc>, window_params = [{transform_indices = @transform_0, window_bounds = array<i64: 16, 256>}, {pipeline_mode = #tpu.pipeline_mode<synchronous>, transform_indices = @transform_1, window_bounds = array<i64: 9, 16, 16>}, {pipeline_mode = #tpu.pipeline_mode<synchronous>, transform_indices = @transform_2, window_bounds = array<i64: 16, 1>}, {pipeline_mode = #tpu.pipeline_mode<synchronous>, transform_indices = @transform_3, window_bounds = array<i64: 9, 16, 16>}, {pipeline_mode = #tpu.pipeline_mode<synchronous>, transform_indices = @transform_4, window_bounds = array<i64: 16, 1>}, {pipeline_mode = #tpu.pipeline_mode<synchronous>, transform_indices = @transform_5, window_bounds = array<i64: 16, 77, 64>}, {pipeline_mode = #tpu.pipeline_mode<synchronous>, transform_indices = @transform_6, window_bounds = array<i64: 1, 64>}, {pipeline_mode = #tpu.pipeline_mode<synchronous>, transform_indices = @transform_7, window_bounds = array<i64: 1, 64>}, {pipeline_mode = #tpu.pipeline_mode<synchronous>, transform_indices = @transform_8, window_bounds = array<i64: 1, 1>}, {transform_indices = @transform_9, window_bounds = array<i64: 1, 128>}]} {
    %c0 = arith.constant 0 : index
    %c0_0 = arith.constant 0 : index
    %0 = vector.load %arg1[%c0, %c0_0] : memref<16x256xbf16, #tpu.memory_space<vmem>>, vector<16x256xbf16>
    %cst = arith.constant 0.000000e+00 : f32
    %1 = vector.broadcast %cst : f32 to vector<16x229xf32>
    %c0_1 = arith.constant 0 : index
    %c0_2 = arith.constant 0 : index
    %c0_3 = arith.constant 0 : index
    %2 = vector.load %arg2[%c0_1, %c0_2, %c0_3] : memref<9x16x16xbf16, #tpu.memory_space<vmem>>, vector<1x16x16xbf16>
    %3 = vector.shape_cast %2 : vector<1x16x16xbf16> to vector<16x16xbf16>
    %4 = vector.extract_strided_slice %0 {offsets = [0, 0], sizes = [16, 229], strides = [1, 1]} : vector<16x256xbf16> to vector<16x229xbf16>
    %cst_4 = arith.constant dense<0.000000e+00> : vector<16x229xf32>
    %5 = tpu.matmul %3, %4, %cst_4 {dimension_numbers = #tpu.dot_dimension_numbers<[1], [0], [0], [1], [0, 0, 1, 1], [], []>} : vector<16x16xbf16>, vector<16x229xbf16>, vector<16x229xf32> -> vector<16x229xf32>
    %6 = arith.addf %1, %5 : vector<16x229xf32>
    %c1 = arith.constant 1 : index
    %c0_5 = arith.constant 0 : index
    %c0_6 = arith.constant 0 : index
    %7 = vector.load %arg2[%c1, %c0_5, %c0_6] : memref<9x16x16xbf16, #tpu.memory_space<vmem>>, vector<1x16x16xbf16>
    %8 = vector.shape_cast %7 : vector<1x16x16xbf16> to vector<16x16xbf16>
    %9 = vector.extract_strided_slice %0 {offsets = [0, 1], sizes = [16, 229], strides = [1, 1]} : vector<16x256xbf16> to vector<16x229xbf16>
    %cst_7 = arith.constant dense<0.000000e+00> : vector<16x229xf32>
    %10 = tpu.matmul %8, %9, %cst_7 {dimension_numbers = #tpu.dot_dimension_numbers<[1], [0], [0], [1], [0, 0, 1, 1], [], []>} : vector<16x16xbf16>, vector<16x229xbf16>, vector<16x229xf32> -> vector<16x229xf32>
    %11 = arith.addf %6, %10 : vector<16x229xf32>
    %c2 = arith.constant 2 : index
    %c0_8 = arith.constant 0 : index
    %c0_9 = arith.constant 0 : index
    %12 = vector.load %arg2[%c2, %c0_8, %c0_9] : memref<9x16x16xbf16, #tpu.memory_space<vmem>>, vector<1x16x16xbf16>
    %13 = vector.shape_cast %12 : vector<1x16x16xbf16> to vector<16x16xbf16>
    %14 = vector.extract_strided_slice %0 {offsets = [0, 2], sizes = [16, 229], strides = [1, 1]} : vector<16x256xbf16> to vector<16x229xbf16>
    %cst_10 = arith.constant dense<0.000000e+00> : vector<16x229xf32>
    %15 = tpu.matmul %13, %14, %cst_10 {dimension_numbers = #tpu.dot_dimension_numbers<[1], [0], [0], [1], [0, 0, 1, 1], [], []>} : vector<16x16xbf16>, vector<16x229xbf16>, vector<16x229xf32> -> vector<16x229xf32>
    %16 = arith.addf %11, %15 : vector<16x229xf32>
    %c3 = arith.constant 3 : index
    %c0_11 = arith.constant 0 : index
    %c0_12 = arith.constant 0 : index
    %17 = vector.load %arg2[%c3, %c0_11, %c0_12] : memref<9x16x16xbf16, #tpu.memory_space<vmem>>, vector<1x16x16xbf16>
    %18 = vector.shape_cast %17 : vector<1x16x16xbf16> to vector<16x16xbf16>
    %19 = vector.extract_strided_slice %0 {offsets = [0, 11], sizes = [16, 229], strides = [1, 1]} : vector<16x256xbf16> to vector<16x229xbf16>
    %cst_13 = arith.constant dense<0.000000e+00> : vector<16x229xf32>
    %20 = tpu.matmul %18, %19, %cst_13 {dimension_numbers = #tpu.dot_dimension_numbers<[1], [0], [0], [1], [0, 0, 1, 1], [], []>} : vector<16x16xbf16>, vector<16x229xbf16>, vector<16x229xf32> -> vector<16x229xf32>
    %21 = arith.addf %16, %20 : vector<16x229xf32>
    %c4 = arith.constant 4 : index
    %c0_14 = arith.constant 0 : index
    %c0_15 = arith.constant 0 : index
    %22 = vector.load %arg2[%c4, %c0_14, %c0_15] : memref<9x16x16xbf16, #tpu.memory_space<vmem>>, vector<1x16x16xbf16>
    %23 = vector.shape_cast %22 : vector<1x16x16xbf16> to vector<16x16xbf16>
    %24 = vector.extract_strided_slice %0 {offsets = [0, 12], sizes = [16, 229], strides = [1, 1]} : vector<16x256xbf16> to vector<16x229xbf16>
    %cst_16 = arith.constant dense<0.000000e+00> : vector<16x229xf32>
    %25 = tpu.matmul %23, %24, %cst_16 {dimension_numbers = #tpu.dot_dimension_numbers<[1], [0], [0], [1], [0, 0, 1, 1], [], []>} : vector<16x16xbf16>, vector<16x229xbf16>, vector<16x229xf32> -> vector<16x229xf32>
    %26 = arith.addf %21, %25 : vector<16x229xf32>
    %c5 = arith.constant 5 : index
    %c0_17 = arith.constant 0 : index
    %c0_18 = arith.constant 0 : index
    %27 = vector.load %arg2[%c5, %c0_17, %c0_18] : memref<9x16x16xbf16, #tpu.memory_space<vmem>>, vector<1x16x16xbf16>
    %28 = vector.shape_cast %27 : vector<1x16x16xbf16> to vector<16x16xbf16>
    %29 = vector.extract_strided_slice %0 {offsets = [0, 13], sizes = [16, 229], strides = [1, 1]} : vector<16x256xbf16> to vector<16x229xbf16>
    %cst_19 = arith.constant dense<0.000000e+00> : vector<16x229xf32>
    %30 = tpu.matmul %28, %29, %cst_19 {dimension_numbers = #tpu.dot_dimension_numbers<[1], [0], [0], [1], [0, 0, 1, 1], [], []>} : vector<16x16xbf16>, vector<16x229xbf16>, vector<16x229xf32> -> vector<16x229xf32>
    %31 = arith.addf %26, %30 : vector<16x229xf32>
    %c6 = arith.constant 6 : index
    %c0_20 = arith.constant 0 : index
    %c0_21 = arith.constant 0 : index
    %32 = vector.load %arg2[%c6, %c0_20, %c0_21] : memref<9x16x16xbf16, #tpu.memory_space<vmem>>, vector<1x16x16xbf16>
    %33 = vector.shape_cast %32 : vector<1x16x16xbf16> to vector<16x16xbf16>
    %34 = vector.extract_strided_slice %0 {offsets = [0, 22], sizes = [16, 229], strides = [1, 1]} : vector<16x256xbf16> to vector<16x229xbf16>
    %cst_22 = arith.constant dense<0.000000e+00> : vector<16x229xf32>
    %35 = tpu.matmul %33, %34, %cst_22 {dimension_numbers = #tpu.dot_dimension_numbers<[1], [0], [0], [1], [0, 0, 1, 1], [], []>} : vector<16x16xbf16>, vector<16x229xbf16>, vector<16x229xf32> -> vector<16x229xf32>
    %36 = arith.addf %31, %35 : vector<16x229xf32>
    %c7 = arith.constant 7 : index
    %c0_23 = arith.constant 0 : index
    %c0_24 = arith.constant 0 : index
    %37 = vector.load %arg2[%c7, %c0_23, %c0_24] : memref<9x16x16xbf16, #tpu.memory_space<vmem>>, vector<1x16x16xbf16>
    %38 = vector.shape_cast %37 : vector<1x16x16xbf16> to vector<16x16xbf16>
    %39 = vector.extract_strided_slice %0 {offsets = [0, 23], sizes = [16, 229], strides = [1, 1]} : vector<16x256xbf16> to vector<16x229xbf16>
    %cst_25 = arith.constant dense<0.000000e+00> : vector<16x229xf32>
    %40 = tpu.matmul %38, %39, %cst_25 {dimension_numbers = #tpu.dot_dimension_numbers<[1], [0], [0], [1], [0, 0, 1, 1], [], []>} : vector<16x16xbf16>, vector<16x229xbf16>, vector<16x229xf32> -> vector<16x229xf32>
    %41 = arith.addf %36, %40 : vector<16x229xf32>
    %c8 = arith.constant 8 : index
    %c0_26 = arith.constant 0 : index
    %c0_27 = arith.constant 0 : index
    %42 = vector.load %arg2[%c8, %c0_26, %c0_27] : memref<9x16x16xbf16, #tpu.memory_space<vmem>>, vector<1x16x16xbf16>
    %43 = vector.shape_cast %42 : vector<1x16x16xbf16> to vector<16x16xbf16>
    %44 = vector.extract_strided_slice %0 {offsets = [0, 24], sizes = [16, 229], strides = [1, 1]} : vector<16x256xbf16> to vector<16x229xbf16>
    %cst_28 = arith.constant dense<0.000000e+00> : vector<16x229xf32>
    %45 = tpu.matmul %43, %44, %cst_28 {dimension_numbers = #tpu.dot_dimension_numbers<[1], [0], [0], [1], [0, 0, 1, 1], [], []>} : vector<16x16xbf16>, vector<16x229xbf16>, vector<16x229xf32> -> vector<16x229xf32>
    %46 = arith.addf %41, %45 : vector<16x229xf32>
    %c0_29 = arith.constant 0 : index
    %c0_30 = arith.constant 0 : index
    %47 = vector.load %arg3[%c0_29, %c0_30] : memref<16x1xf32, #tpu.memory_space<vmem>>, vector<16x1xf32>
    %48 = vector.broadcast %47 : vector<16x1xf32> to vector<16x229xf32>
    %49 = arith.addf %46, %48 : vector<16x229xf32>
    %cst_31 = arith.constant 0.000000e+00 : f32
    %50 = vector.broadcast %cst_31 : f32 to vector<16x229xf32>
    %51 = arith.cmpf ogt, %49, %50 : vector<16x229xf32>
    %cst_32 = arith.constant 0.00999999977 : f32
    %52 = vector.broadcast %cst_32 : f32 to vector<16x229xf32>
    %53 = arith.mulf %52, %49 : vector<16x229xf32>
    %54 = arith.select %51, %49, %53 : vector<16x229xi1>, vector<16x229xf32>
    %55 = arith.truncf %54 : vector<16x229xf32> to vector<16x229xbf16>
    %cst_33 = arith.constant 0.000000e+00 : f32
    %56 = vector.broadcast %cst_33 : f32 to vector<16x205xf32>
    %c0_34 = arith.constant 0 : index
    %c0_35 = arith.constant 0 : index
    %c0_36 = arith.constant 0 : index
    %57 = vector.load %arg4[%c0_34, %c0_35, %c0_36] : memref<9x16x16xbf16, #tpu.memory_space<vmem>>, vector<1x16x16xbf16>
    %58 = vector.shape_cast %57 : vector<1x16x16xbf16> to vector<16x16xbf16>
    %59 = vector.extract_strided_slice %55 {offsets = [0, 0], sizes = [16, 205], strides = [1, 1]} : vector<16x229xbf16> to vector<16x205xbf16>
    %cst_37 = arith.constant dense<0.000000e+00> : vector<16x205xf32>
    %60 = tpu.matmul %58, %59, %cst_37 {dimension_numbers = #tpu.dot_dimension_numbers<[1], [0], [0], [1], [0, 0, 1, 1], [], []>} : vector<16x16xbf16>, vector<16x205xbf16>, vector<16x205xf32> -> vector<16x205xf32>
    %61 = arith.addf %56, %60 : vector<16x205xf32>
    %c1_38 = arith.constant 1 : index
    %c0_39 = arith.constant 0 : index
    %c0_40 = arith.constant 0 : index
    %62 = vector.load %arg4[%c1_38, %c0_39, %c0_40] : memref<9x16x16xbf16, #tpu.memory_space<vmem>>, vector<1x16x16xbf16>
    %63 = vector.shape_cast %62 : vector<1x16x16xbf16> to vector<16x16xbf16>
    %64 = vector.extract_strided_slice %55 {offsets = [0, 1], sizes = [16, 205], strides = [1, 1]} : vector<16x229xbf16> to vector<16x205xbf16>
    %cst_41 = arith.constant dense<0.000000e+00> : vector<16x205xf32>
    %65 = tpu.matmul %63, %64, %cst_41 {dimension_numbers = #tpu.dot_dimension_numbers<[1], [0], [0], [1], [0, 0, 1, 1], [], []>} : vector<16x16xbf16>, vector<16x205xbf16>, vector<16x205xf32> -> vector<16x205xf32>
    %66 = arith.addf %61, %65 : vector<16x205xf32>
    %c2_42 = arith.constant 2 : index
    %c0_43 = arith.constant 0 : index
    %c0_44 = arith.constant 0 : index
    %67 = vector.load %arg4[%c2_42, %c0_43, %c0_44] : memref<9x16x16xbf16, #tpu.memory_space<vmem>>, vector<1x16x16xbf16>
    %68 = vector.shape_cast %67 : vector<1x16x16xbf16> to vector<16x16xbf16>
    %69 = vector.extract_strided_slice %55 {offsets = [0, 2], sizes = [16, 205], strides = [1, 1]} : vector<16x229xbf16> to vector<16x205xbf16>
    %cst_45 = arith.constant dense<0.000000e+00> : vector<16x205xf32>
    %70 = tpu.matmul %68, %69, %cst_45 {dimension_numbers = #tpu.dot_dimension_numbers<[1], [0], [0], [1], [0, 0, 1, 1], [], []>} : vector<16x16xbf16>, vector<16x205xbf16>, vector<16x205xf32> -> vector<16x205xf32>
    %71 = arith.addf %66, %70 : vector<16x205xf32>
    %c3_46 = arith.constant 3 : index
    %c0_47 = arith.constant 0 : index
    %c0_48 = arith.constant 0 : index
    %72 = vector.load %arg4[%c3_46, %c0_47, %c0_48] : memref<9x16x16xbf16, #tpu.memory_space<vmem>>, vector<1x16x16xbf16>
    %73 = vector.shape_cast %72 : vector<1x16x16xbf16> to vector<16x16xbf16>
    %74 = vector.extract_strided_slice %55 {offsets = [0, 11], sizes = [16, 205], strides = [1, 1]} : vector<16x229xbf16> to vector<16x205xbf16>
    %cst_49 = arith.constant dense<0.000000e+00> : vector<16x205xf32>
    %75 = tpu.matmul %73, %74, %cst_49 {dimension_numbers = #tpu.dot_dimension_numbers<[1], [0], [0], [1], [0, 0, 1, 1], [], []>} : vector<16x16xbf16>, vector<16x205xbf16>, vector<16x205xf32> -> vector<16x205xf32>
    %76 = arith.addf %71, %75 : vector<16x205xf32>
    %c4_50 = arith.constant 4 : index
    %c0_51 = arith.constant 0 : index
    %c0_52 = arith.constant 0 : index
    %77 = vector.load %arg4[%c4_50, %c0_51, %c0_52] : memref<9x16x16xbf16, #tpu.memory_space<vmem>>, vector<1x16x16xbf16>
    %78 = vector.shape_cast %77 : vector<1x16x16xbf16> to vector<16x16xbf16>
    %79 = vector.extract_strided_slice %55 {offsets = [0, 12], sizes = [16, 205], strides = [1, 1]} : vector<16x229xbf16> to vector<16x205xbf16>
    %cst_53 = arith.constant dense<0.000000e+00> : vector<16x205xf32>
    %80 = tpu.matmul %78, %79, %cst_53 {dimension_numbers = #tpu.dot_dimension_numbers<[1], [0], [0], [1], [0, 0, 1, 1], [], []>} : vector<16x16xbf16>, vector<16x205xbf16>, vector<16x205xf32> -> vector<16x205xf32>
    %81 = arith.addf %76, %80 : vector<16x205xf32>
    %c5_54 = arith.constant 5 : index
    %c0_55 = arith.constant 0 : index
    %c0_56 = arith.constant 0 : index
    %82 = vector.load %arg4[%c5_54, %c0_55, %c0_56] : memref<9x16x16xbf16, #tpu.memory_space<vmem>>, vector<1x16x16xbf16>
    %83 = vector.shape_cast %82 : vector<1x16x16xbf16> to vector<16x16xbf16>
    %84 = vector.extract_strided_slice %55 {offsets = [0, 13], sizes = [16, 205], strides = [1, 1]} : vector<16x229xbf16> to vector<16x205xbf16>
    %cst_57 = arith.constant dense<0.000000e+00> : vector<16x205xf32>
    %85 = tpu.matmul %83, %84, %cst_57 {dimension_numbers = #tpu.dot_dimension_numbers<[1], [0], [0], [1], [0, 0, 1, 1], [], []>} : vector<16x16xbf16>, vector<16x205xbf16>, vector<16x205xf32> -> vector<16x205xf32>
    %86 = arith.addf %81, %85 : vector<16x205xf32>
    %c6_58 = arith.constant 6 : index
    %c0_59 = arith.constant 0 : index
    %c0_60 = arith.constant 0 : index
    %87 = vector.load %arg4[%c6_58, %c0_59, %c0_60] : memref<9x16x16xbf16, #tpu.memory_space<vmem>>, vector<1x16x16xbf16>
    %88 = vector.shape_cast %87 : vector<1x16x16xbf16> to vector<16x16xbf16>
    %89 = vector.extract_strided_slice %55 {offsets = [0, 22], sizes = [16, 205], strides = [1, 1]} : vector<16x229xbf16> to vector<16x205xbf16>
    %cst_61 = arith.constant dense<0.000000e+00> : vector<16x205xf32>
    %90 = tpu.matmul %88, %89, %cst_61 {dimension_numbers = #tpu.dot_dimension_numbers<[1], [0], [0], [1], [0, 0, 1, 1], [], []>} : vector<16x16xbf16>, vector<16x205xbf16>, vector<16x205xf32> -> vector<16x205xf32>
    %91 = arith.addf %86, %90 : vector<16x205xf32>
    %c7_62 = arith.constant 7 : index
    %c0_63 = arith.constant 0 : index
    %c0_64 = arith.constant 0 : index
    %92 = vector.load %arg4[%c7_62, %c0_63, %c0_64] : memref<9x16x16xbf16, #tpu.memory_space<vmem>>, vector<1x16x16xbf16>
    %93 = vector.shape_cast %92 : vector<1x16x16xbf16> to vector<16x16xbf16>
    %94 = vector.extract_strided_slice %55 {offsets = [0, 23], sizes = [16, 205], strides = [1, 1]} : vector<16x229xbf16> to vector<16x205xbf16>
    %cst_65 = arith.constant dense<0.000000e+00> : vector<16x205xf32>
    %95 = tpu.matmul %93, %94, %cst_65 {dimension_numbers = #tpu.dot_dimension_numbers<[1], [0], [0], [1], [0, 0, 1, 1], [], []>} : vector<16x16xbf16>, vector<16x205xbf16>, vector<16x205xf32> -> vector<16x205xf32>
    %96 = arith.addf %91, %95 : vector<16x205xf32>
    %c8_66 = arith.constant 8 : index
    %c0_67 = arith.constant 0 : index
    %c0_68 = arith.constant 0 : index
    %97 = vector.load %arg4[%c8_66, %c0_67, %c0_68] : memref<9x16x16xbf16, #tpu.memory_space<vmem>>, vector<1x16x16xbf16>
    %98 = vector.shape_cast %97 : vector<1x16x16xbf16> to vector<16x16xbf16>
    %99 = vector.extract_strided_slice %55 {offsets = [0, 24], sizes = [16, 205], strides = [1, 1]} : vector<16x229xbf16> to vector<16x205xbf16>
    %cst_69 = arith.constant dense<0.000000e+00> : vector<16x205xf32>
    %100 = tpu.matmul %98, %99, %cst_69 {dimension_numbers = #tpu.dot_dimension_numbers<[1], [0], [0], [1], [0, 0, 1, 1], [], []>} : vector<16x16xbf16>, vector<16x205xbf16>, vector<16x205xf32> -> vector<16x205xf32>
    %101 = arith.addf %96, %100 : vector<16x205xf32>
    %c0_70 = arith.constant 0 : index
    %c0_71 = arith.constant 0 : index
    %102 = vector.load %arg5[%c0_70, %c0_71] : memref<16x1xf32, #tpu.memory_space<vmem>>, vector<16x1xf32>
    %103 = vector.broadcast %102 : vector<16x1xf32> to vector<16x205xf32>
    %104 = arith.addf %101, %103 : vector<16x205xf32>
    %cst_72 = arith.constant 0.000000e+00 : f32
    %105 = vector.broadcast %cst_72 : f32 to vector<16x205xf32>
    %106 = arith.cmpf ogt, %104, %105 : vector<16x205xf32>
    %cst_73 = arith.constant 0.00999999977 : f32
    %107 = vector.broadcast %cst_73 : f32 to vector<16x205xf32>
    %108 = arith.mulf %107, %104 : vector<16x205xf32>
    %109 = arith.select %106, %104, %108 : vector<16x205xi1>, vector<16x205xf32>
    %110 = arith.truncf %109 : vector<16x205xf32> to vector<16x205xbf16>
    %111 = tpu.iota {dimensions = array<i32: 1>} : vector<1x128xi32>
    %cst_74 = arith.constant 0.000000e+00 : f32
    %112 = vector.broadcast %cst_74 : f32 to vector<1x128xf32>
    %113 = vector.extract_strided_slice %110 {offsets = [0, 0], sizes = [16, 77], strides = [1, 1]} : vector<16x205xbf16> to vector<16x77xbf16>
    %cst_75 = arith.constant 0.000000e+00 : f32
    %114 = vector.broadcast %cst_75 : f32 to vector<1x64xf32>
    %115 = vector.extract_strided_slice %113 {offsets = [0, 0], sizes = [1, 77], strides = [1, 1]} : vector<16x77xbf16> to vector<1x77xbf16>
    %c0_76 = arith.constant 0 : index
    %c0_77 = arith.constant 0 : index
    %c0_78 = arith.constant 0 : index
    %116 = vector.load %arg6[%c0_76, %c0_77, %c0_78] : memref<16x77x64xbf16, #tpu.memory_space<vmem>>, vector<1x77x64xbf16>
    %117 = vector.shape_cast %116 : vector<1x77x64xbf16> to vector<77x64xbf16>
    %cst_79 = arith.constant dense<0.000000e+00> : vector<1x64xf32>
    %118 = tpu.matmul %115, %117, %cst_79 {dimension_numbers = #tpu.dot_dimension_numbers<[1], [0], [0], [1], [0, 0, 1, 1], [], []>} : vector<1x77xbf16>, vector<77x64xbf16>, vector<1x64xf32> -> vector<1x64xf32>
    %119 = arith.addf %114, %118 : vector<1x64xf32>
    %120 = vector.extract_strided_slice %113 {offsets = [1, 0], sizes = [1, 77], strides = [1, 1]} : vector<16x77xbf16> to vector<1x77xbf16>
    %c1_80 = arith.constant 1 : index
    %c0_81 = arith.constant 0 : index
    %c0_82 = arith.constant 0 : index
    %121 = vector.load %arg6[%c1_80, %c0_81, %c0_82] : memref<16x77x64xbf16, #tpu.memory_space<vmem>>, vector<1x77x64xbf16>
    %122 = vector.shape_cast %121 : vector<1x77x64xbf16> to vector<77x64xbf16>
    %cst_83 = arith.constant dense<0.000000e+00> : vector<1x64xf32>
    %123 = tpu.matmul %120, %122, %cst_83 {dimension_numbers = #tpu.dot_dimension_numbers<[1], [0], [0], [1], [0, 0, 1, 1], [], []>} : vector<1x77xbf16>, vector<77x64xbf16>, vector<1x64xf32> -> vector<1x64xf32>
    %124 = arith.addf %119, %123 : vector<1x64xf32>
    %125 = vector.extract_strided_slice %113 {offsets = [2, 0], sizes = [1, 77], strides = [1, 1]} : vector<16x77xbf16> to vector<1x77xbf16>
    %c2_84 = arith.constant 2 : index
    %c0_85 = arith.constant 0 : index
    %c0_86 = arith.constant 0 : index
    %126 = vector.load %arg6[%c2_84, %c0_85, %c0_86] : memref<16x77x64xbf16, #tpu.memory_space<vmem>>, vector<1x77x64xbf16>
    %127 = vector.shape_cast %126 : vector<1x77x64xbf16> to vector<77x64xbf16>
    %cst_87 = arith.constant dense<0.000000e+00> : vector<1x64xf32>
    %128 = tpu.matmul %125, %127, %cst_87 {dimension_numbers = #tpu.dot_dimension_numbers<[1], [0], [0], [1], [0, 0, 1, 1], [], []>} : vector<1x77xbf16>, vector<77x64xbf16>, vector<1x64xf32> -> vector<1x64xf32>
    %129 = arith.addf %124, %128 : vector<1x64xf32>
    %130 = vector.extract_strided_slice %113 {offsets = [3, 0], sizes = [1, 77], strides = [1, 1]} : vector<16x77xbf16> to vector<1x77xbf16>
    %c3_88 = arith.constant 3 : index
    %c0_89 = arith.constant 0 : index
    %c0_90 = arith.constant 0 : index
    %131 = vector.load %arg6[%c3_88, %c0_89, %c0_90] : memref<16x77x64xbf16, #tpu.memory_space<vmem>>, vector<1x77x64xbf16>
    %132 = vector.shape_cast %131 : vector<1x77x64xbf16> to vector<77x64xbf16>
    %cst_91 = arith.constant dense<0.000000e+00> : vector<1x64xf32>
    %133 = tpu.matmul %130, %132, %cst_91 {dimension_numbers = #tpu.dot_dimension_numbers<[1], [0], [0], [1], [0, 0, 1, 1], [], []>} : vector<1x77xbf16>, vector<77x64xbf16>, vector<1x64xf32> -> vector<1x64xf32>
    %134 = arith.addf %129, %133 : vector<1x64xf32>
    %135 = vector.extract_strided_slice %113 {offsets = [4, 0], sizes = [1, 77], strides = [1, 1]} : vector<16x77xbf16> to vector<1x77xbf16>
    %c4_92 = arith.constant 4 : index
    %c0_93 = arith.constant 0 : index
    %c0_94 = arith.constant 0 : index
    %136 = vector.load %arg6[%c4_92, %c0_93, %c0_94] : memref<16x77x64xbf16, #tpu.memory_space<vmem>>, vector<1x77x64xbf16>
    %137 = vector.shape_cast %136 : vector<1x77x64xbf16> to vector<77x64xbf16>
    %cst_95 = arith.constant dense<0.000000e+00> : vector<1x64xf32>
    %138 = tpu.matmul %135, %137, %cst_95 {dimension_numbers = #tpu.dot_dimension_numbers<[1], [0], [0], [1], [0, 0, 1, 1], [], []>} : vector<1x77xbf16>, vector<77x64xbf16>, vector<1x64xf32> -> vector<1x64xf32>
    %139 = arith.addf %134, %138 : vector<1x64xf32>
    %140 = vector.extract_strided_slice %113 {offsets = [5, 0], sizes = [1, 77], strides = [1, 1]} : vector<16x77xbf16> to vector<1x77xbf16>
    %c5_96 = arith.constant 5 : index
    %c0_97 = arith.constant 0 : index
    %c0_98 = arith.constant 0 : index
    %141 = vector.load %arg6[%c5_96, %c0_97, %c0_98] : memref<16x77x64xbf16, #tpu.memory_space<vmem>>, vector<1x77x64xbf16>
    %142 = vector.shape_cast %141 : vector<1x77x64xbf16> to vector<77x64xbf16>
    %cst_99 = arith.constant dense<0.000000e+00> : vector<1x64xf32>
    %143 = tpu.matmul %140, %142, %cst_99 {dimension_numbers = #tpu.dot_dimension_numbers<[1], [0], [0], [1], [0, 0, 1, 1], [], []>} : vector<1x77xbf16>, vector<77x64xbf16>, vector<1x64xf32> -> vector<1x64xf32>
    %144 = arith.addf %139, %143 : vector<1x64xf32>
    %145 = vector.extract_strided_slice %113 {offsets = [6, 0], sizes = [1, 77], strides = [1, 1]} : vector<16x77xbf16> to vector<1x77xbf16>
    %c6_100 = arith.constant 6 : index
    %c0_101 = arith.constant 0 : index
    %c0_102 = arith.constant 0 : index
    %146 = vector.load %arg6[%c6_100, %c0_101, %c0_102] : memref<16x77x64xbf16, #tpu.memory_space<vmem>>, vector<1x77x64xbf16>
    %147 = vector.shape_cast %146 : vector<1x77x64xbf16> to vector<77x64xbf16>
    %cst_103 = arith.constant dense<0.000000e+00> : vector<1x64xf32>
    %148 = tpu.matmul %145, %147, %cst_103 {dimension_numbers = #tpu.dot_dimension_numbers<[1], [0], [0], [1], [0, 0, 1, 1], [], []>} : vector<1x77xbf16>, vector<77x64xbf16>, vector<1x64xf32> -> vector<1x64xf32>
    %149 = arith.addf %144, %148 : vector<1x64xf32>
    %150 = vector.extract_strided_slice %113 {offsets = [7, 0], sizes = [1, 77], strides = [1, 1]} : vector<16x77xbf16> to vector<1x77xbf16>
    %c7_104 = arith.constant 7 : index
    %c0_105 = arith.constant 0 : index
    %c0_106 = arith.constant 0 : index
    %151 = vector.load %arg6[%c7_104, %c0_105, %c0_106] : memref<16x77x64xbf16, #tpu.memory_space<vmem>>, vector<1x77x64xbf16>
    %152 = vector.shape_cast %151 : vector<1x77x64xbf16> to vector<77x64xbf16>
    %cst_107 = arith.constant dense<0.000000e+00> : vector<1x64xf32>
    %153 = tpu.matmul %150, %152, %cst_107 {dimension_numbers = #tpu.dot_dimension_numbers<[1], [0], [0], [1], [0, 0, 1, 1], [], []>} : vector<1x77xbf16>, vector<77x64xbf16>, vector<1x64xf32> -> vector<1x64xf32>
    %154 = arith.addf %149, %153 : vector<1x64xf32>
    %155 = vector.extract_strided_slice %113 {offsets = [8, 0], sizes = [1, 77], strides = [1, 1]} : vector<16x77xbf16> to vector<1x77xbf16>
    %c8_108 = arith.constant 8 : index
    %c0_109 = arith.constant 0 : index
    %c0_110 = arith.constant 0 : index
    %156 = vector.load %arg6[%c8_108, %c0_109, %c0_110] : memref<16x77x64xbf16, #tpu.memory_space<vmem>>, vector<1x77x64xbf16>
    %157 = vector.shape_cast %156 : vector<1x77x64xbf16> to vector<77x64xbf16>
    %cst_111 = arith.constant dense<0.000000e+00> : vector<1x64xf32>
    %158 = tpu.matmul %155, %157, %cst_111 {dimension_numbers = #tpu.dot_dimension_numbers<[1], [0], [0], [1], [0, 0, 1, 1], [], []>} : vector<1x77xbf16>, vector<77x64xbf16>, vector<1x64xf32> -> vector<1x64xf32>
    %159 = arith.addf %154, %158 : vector<1x64xf32>
    %160 = vector.extract_strided_slice %113 {offsets = [9, 0], sizes = [1, 77], strides = [1, 1]} : vector<16x77xbf16> to vector<1x77xbf16>
    %c9 = arith.constant 9 : index
    %c0_112 = arith.constant 0 : index
    %c0_113 = arith.constant 0 : index
    %161 = vector.load %arg6[%c9, %c0_112, %c0_113] : memref<16x77x64xbf16, #tpu.memory_space<vmem>>, vector<1x77x64xbf16>
    %162 = vector.shape_cast %161 : vector<1x77x64xbf16> to vector<77x64xbf16>
    %cst_114 = arith.constant dense<0.000000e+00> : vector<1x64xf32>
    %163 = tpu.matmul %160, %162, %cst_114 {dimension_numbers = #tpu.dot_dimension_numbers<[1], [0], [0], [1], [0, 0, 1, 1], [], []>} : vector<1x77xbf16>, vector<77x64xbf16>, vector<1x64xf32> -> vector<1x64xf32>
    %164 = arith.addf %159, %163 : vector<1x64xf32>
    %165 = vector.extract_strided_slice %113 {offsets = [10, 0], sizes = [1, 77], strides = [1, 1]} : vector<16x77xbf16> to vector<1x77xbf16>
    %c10 = arith.constant 10 : index
    %c0_115 = arith.constant 0 : index
    %c0_116 = arith.constant 0 : index
    %166 = vector.load %arg6[%c10, %c0_115, %c0_116] : memref<16x77x64xbf16, #tpu.memory_space<vmem>>, vector<1x77x64xbf16>
    %167 = vector.shape_cast %166 : vector<1x77x64xbf16> to vector<77x64xbf16>
    %cst_117 = arith.constant dense<0.000000e+00> : vector<1x64xf32>
    %168 = tpu.matmul %165, %167, %cst_117 {dimension_numbers = #tpu.dot_dimension_numbers<[1], [0], [0], [1], [0, 0, 1, 1], [], []>} : vector<1x77xbf16>, vector<77x64xbf16>, vector<1x64xf32> -> vector<1x64xf32>
    %169 = arith.addf %164, %168 : vector<1x64xf32>
    %170 = vector.extract_strided_slice %113 {offsets = [11, 0], sizes = [1, 77], strides = [1, 1]} : vector<16x77xbf16> to vector<1x77xbf16>
    %c11 = arith.constant 11 : index
    %c0_118 = arith.constant 0 : index
    %c0_119 = arith.constant 0 : index
    %171 = vector.load %arg6[%c11, %c0_118, %c0_119] : memref<16x77x64xbf16, #tpu.memory_space<vmem>>, vector<1x77x64xbf16>
    %172 = vector.shape_cast %171 : vector<1x77x64xbf16> to vector<77x64xbf16>
    %cst_120 = arith.constant dense<0.000000e+00> : vector<1x64xf32>
    %173 = tpu.matmul %170, %172, %cst_120 {dimension_numbers = #tpu.dot_dimension_numbers<[1], [0], [0], [1], [0, 0, 1, 1], [], []>} : vector<1x77xbf16>, vector<77x64xbf16>, vector<1x64xf32> -> vector<1x64xf32>
    %174 = arith.addf %169, %173 : vector<1x64xf32>
    %175 = vector.extract_strided_slice %113 {offsets = [12, 0], sizes = [1, 77], strides = [1, 1]} : vector<16x77xbf16> to vector<1x77xbf16>
    %c12 = arith.constant 12 : index
    %c0_121 = arith.constant 0 : index
    %c0_122 = arith.constant 0 : index
    %176 = vector.load %arg6[%c12, %c0_121, %c0_122] : memref<16x77x64xbf16, #tpu.memory_space<vmem>>, vector<1x77x64xbf16>
    %177 = vector.shape_cast %176 : vector<1x77x64xbf16> to vector<77x64xbf16>
    %cst_123 = arith.constant dense<0.000000e+00> : vector<1x64xf32>
    %178 = tpu.matmul %175, %177, %cst_123 {dimension_numbers = #tpu.dot_dimension_numbers<[1], [0], [0], [1], [0, 0, 1, 1], [], []>} : vector<1x77xbf16>, vector<77x64xbf16>, vector<1x64xf32> -> vector<1x64xf32>
    %179 = arith.addf %174, %178 : vector<1x64xf32>
    %180 = vector.extract_strided_slice %113 {offsets = [13, 0], sizes = [1, 77], strides = [1, 1]} : vector<16x77xbf16> to vector<1x77xbf16>
    %c13 = arith.constant 13 : index
    %c0_124 = arith.constant 0 : index
    %c0_125 = arith.constant 0 : index
    %181 = vector.load %arg6[%c13, %c0_124, %c0_125] : memref<16x77x64xbf16, #tpu.memory_space<vmem>>, vector<1x77x64xbf16>
    %182 = vector.shape_cast %181 : vector<1x77x64xbf16> to vector<77x64xbf16>
    %cst_126 = arith.constant dense<0.000000e+00> : vector<1x64xf32>
    %183 = tpu.matmul %180, %182, %cst_126 {dimension_numbers = #tpu.dot_dimension_numbers<[1], [0], [0], [1], [0, 0, 1, 1], [], []>} : vector<1x77xbf16>, vector<77x64xbf16>, vector<1x64xf32> -> vector<1x64xf32>
    %184 = arith.addf %179, %183 : vector<1x64xf32>
    %185 = vector.extract_strided_slice %113 {offsets = [14, 0], sizes = [1, 77], strides = [1, 1]} : vector<16x77xbf16> to vector<1x77xbf16>
    %c14 = arith.constant 14 : index
    %c0_127 = arith.constant 0 : index
    %c0_128 = arith.constant 0 : index
    %186 = vector.load %arg6[%c14, %c0_127, %c0_128] : memref<16x77x64xbf16, #tpu.memory_space<vmem>>, vector<1x77x64xbf16>
    %187 = vector.shape_cast %186 : vector<1x77x64xbf16> to vector<77x64xbf16>
    %cst_129 = arith.constant dense<0.000000e+00> : vector<1x64xf32>
    %188 = tpu.matmul %185, %187, %cst_129 {dimension_numbers = #tpu.dot_dimension_numbers<[1], [0], [0], [1], [0, 0, 1, 1], [], []>} : vector<1x77xbf16>, vector<77x64xbf16>, vector<1x64xf32> -> vector<1x64xf32>
    %189 = arith.addf %184, %188 : vector<1x64xf32>
    %190 = vector.extract_strided_slice %113 {offsets = [15, 0], sizes = [1, 77], strides = [1, 1]} : vector<16x77xbf16> to vector<1x77xbf16>
    %c15 = arith.constant 15 : index
    %c0_130 = arith.constant 0 : index
    %c0_131 = arith.constant 0 : index
    %191 = vector.load %arg6[%c15, %c0_130, %c0_131] : memref<16x77x64xbf16, #tpu.memory_space<vmem>>, vector<1x77x64xbf16>
    %192 = vector.shape_cast %191 : vector<1x77x64xbf16> to vector<77x64xbf16>
    %cst_132 = arith.constant dense<0.000000e+00> : vector<1x64xf32>
    %193 = tpu.matmul %190, %192, %cst_132 {dimension_numbers = #tpu.dot_dimension_numbers<[1], [0], [0], [1], [0, 0, 1, 1], [], []>} : vector<1x77xbf16>, vector<77x64xbf16>, vector<1x64xf32> -> vector<1x64xf32>
    %194 = arith.addf %189, %193 : vector<1x64xf32>
    %c0_133 = arith.constant 0 : index
    %c0_134 = arith.constant 0 : index
    %195 = vector.load %arg7[%c0_133, %c0_134] : memref<1x64xf32, #tpu.memory_space<vmem>>, vector<1x64xf32>
    %196 = arith.addf %194, %195 : vector<1x64xf32>
    %cst_135 = arith.constant 0.000000e+00 : f32
    %197 = vector.broadcast %cst_135 : f32 to vector<1x64xf32>
    %198 = arith.cmpf ogt, %196, %197 : vector<1x64xf32>
    %cst_136 = arith.constant 0.00999999977 : f32
    %199 = vector.broadcast %cst_136 : f32 to vector<1x64xf32>
    %200 = arith.mulf %199, %196 : vector<1x64xf32>
    %201 = arith.select %198, %196, %200 : vector<1x64xi1>, vector<1x64xf32>
    %c0_137 = arith.constant 0 : index
    %c0_138 = arith.constant 0 : index
    %202 = vector.load %arg8[%c0_137, %c0_138] : memref<1x64xf32, #tpu.memory_space<vmem>>, vector<1x64xf32>
    %203 = arith.mulf %201, %202 : vector<1x64xf32>
    %cst_139 = arith.constant dense<0.000000e+00> : vector<1xf32>
    %204 = vector.multi_reduction <add>, %203, %cst_139 [1] : vector<1x64xf32> to vector<1xf32>
    %205 = vector.shape_cast %204 : vector<1xf32> to vector<1x1xf32>
    %c0_140 = arith.constant 0 : index
    %c0_141 = arith.constant 0 : index
    %206 = vector.load %arg9[%c0_140, %c0_141] : memref<1x1xf32, #tpu.memory_space<vmem>>, vector<1x1xf32>
    %207 = arith.addf %205, %206 : vector<1x1xf32>
    %c0_i32 = arith.constant 0 : i32
    %208 = vector.broadcast %c0_i32 : i32 to vector<1x128xi32>
    %209 = arith.cmpi eq, %111, %208 : vector<1x128xi32>
    %210 = vector.shape_cast %207 : vector<1x1xf32> to vector<1x1xf32>
    %211 = vector.broadcast %210 : vector<1x1xf32> to vector<1x128xf32>
    %212 = arith.select %209, %211, %112 : vector<1x128xi1>, vector<1x128xf32>
    %213 = vector.extract_strided_slice %110 {offsets = [0, 128], sizes = [16, 77], strides = [1, 1]} : vector<16x205xbf16> to vector<16x77xbf16>
    %cst_142 = arith.constant 0.000000e+00 : f32
    %214 = vector.broadcast %cst_142 : f32 to vector<1x64xf32>
    %215 = vector.extract_strided_slice %213 {offsets = [0, 0], sizes = [1, 77], strides = [1, 1]} : vector<16x77xbf16> to vector<1x77xbf16>
    %c0_143 = arith.constant 0 : index
    %c0_144 = arith.constant 0 : index
    %c0_145 = arith.constant 0 : index
    %216 = vector.load %arg6[%c0_143, %c0_144, %c0_145] : memref<16x77x64xbf16, #tpu.memory_space<vmem>>, vector<1x77x64xbf16>
    %217 = vector.shape_cast %216 : vector<1x77x64xbf16> to vector<77x64xbf16>
    %cst_146 = arith.constant dense<0.000000e+00> : vector<1x64xf32>
    %218 = tpu.matmul %215, %217, %cst_146 {dimension_numbers = #tpu.dot_dimension_numbers<[1], [0], [0], [1], [0, 0, 1, 1], [], []>} : vector<1x77xbf16>, vector<77x64xbf16>, vector<1x64xf32> -> vector<1x64xf32>
    %219 = arith.addf %214, %218 : vector<1x64xf32>
    %220 = vector.extract_strided_slice %213 {offsets = [1, 0], sizes = [1, 77], strides = [1, 1]} : vector<16x77xbf16> to vector<1x77xbf16>
    %c1_147 = arith.constant 1 : index
    %c0_148 = arith.constant 0 : index
    %c0_149 = arith.constant 0 : index
    %221 = vector.load %arg6[%c1_147, %c0_148, %c0_149] : memref<16x77x64xbf16, #tpu.memory_space<vmem>>, vector<1x77x64xbf16>
    %222 = vector.shape_cast %221 : vector<1x77x64xbf16> to vector<77x64xbf16>
    %cst_150 = arith.constant dense<0.000000e+00> : vector<1x64xf32>
    %223 = tpu.matmul %220, %222, %cst_150 {dimension_numbers = #tpu.dot_dimension_numbers<[1], [0], [0], [1], [0, 0, 1, 1], [], []>} : vector<1x77xbf16>, vector<77x64xbf16>, vector<1x64xf32> -> vector<1x64xf32>
    %224 = arith.addf %219, %223 : vector<1x64xf32>
    %225 = vector.extract_strided_slice %213 {offsets = [2, 0], sizes = [1, 77], strides = [1, 1]} : vector<16x77xbf16> to vector<1x77xbf16>
    %c2_151 = arith.constant 2 : index
    %c0_152 = arith.constant 0 : index
    %c0_153 = arith.constant 0 : index
    %226 = vector.load %arg6[%c2_151, %c0_152, %c0_153] : memref<16x77x64xbf16, #tpu.memory_space<vmem>>, vector<1x77x64xbf16>
    %227 = vector.shape_cast %226 : vector<1x77x64xbf16> to vector<77x64xbf16>
    %cst_154 = arith.constant dense<0.000000e+00> : vector<1x64xf32>
    %228 = tpu.matmul %225, %227, %cst_154 {dimension_numbers = #tpu.dot_dimension_numbers<[1], [0], [0], [1], [0, 0, 1, 1], [], []>} : vector<1x77xbf16>, vector<77x64xbf16>, vector<1x64xf32> -> vector<1x64xf32>
    %229 = arith.addf %224, %228 : vector<1x64xf32>
    %230 = vector.extract_strided_slice %213 {offsets = [3, 0], sizes = [1, 77], strides = [1, 1]} : vector<16x77xbf16> to vector<1x77xbf16>
    %c3_155 = arith.constant 3 : index
    %c0_156 = arith.constant 0 : index
    %c0_157 = arith.constant 0 : index
    %231 = vector.load %arg6[%c3_155, %c0_156, %c0_157] : memref<16x77x64xbf16, #tpu.memory_space<vmem>>, vector<1x77x64xbf16>
    %232 = vector.shape_cast %231 : vector<1x77x64xbf16> to vector<77x64xbf16>
    %cst_158 = arith.constant dense<0.000000e+00> : vector<1x64xf32>
    %233 = tpu.matmul %230, %232, %cst_158 {dimension_numbers = #tpu.dot_dimension_numbers<[1], [0], [0], [1], [0, 0, 1, 1], [], []>} : vector<1x77xbf16>, vector<77x64xbf16>, vector<1x64xf32> -> vector<1x64xf32>
    %234 = arith.addf %229, %233 : vector<1x64xf32>
    %235 = vector.extract_strided_slice %213 {offsets = [4, 0], sizes = [1, 77], strides = [1, 1]} : vector<16x77xbf16> to vector<1x77xbf16>
    %c4_159 = arith.constant 4 : index
    %c0_160 = arith.constant 0 : index
    %c0_161 = arith.constant 0 : index
    %236 = vector.load %arg6[%c4_159, %c0_160, %c0_161] : memref<16x77x64xbf16, #tpu.memory_space<vmem>>, vector<1x77x64xbf16>
    %237 = vector.shape_cast %236 : vector<1x77x64xbf16> to vector<77x64xbf16>
    %cst_162 = arith.constant dense<0.000000e+00> : vector<1x64xf32>
    %238 = tpu.matmul %235, %237, %cst_162 {dimension_numbers = #tpu.dot_dimension_numbers<[1], [0], [0], [1], [0, 0, 1, 1], [], []>} : vector<1x77xbf16>, vector<77x64xbf16>, vector<1x64xf32> -> vector<1x64xf32>
    %239 = arith.addf %234, %238 : vector<1x64xf32>
    %240 = vector.extract_strided_slice %213 {offsets = [5, 0], sizes = [1, 77], strides = [1, 1]} : vector<16x77xbf16> to vector<1x77xbf16>
    %c5_163 = arith.constant 5 : index
    %c0_164 = arith.constant 0 : index
    %c0_165 = arith.constant 0 : index
    %241 = vector.load %arg6[%c5_163, %c0_164, %c0_165] : memref<16x77x64xbf16, #tpu.memory_space<vmem>>, vector<1x77x64xbf16>
    %242 = vector.shape_cast %241 : vector<1x77x64xbf16> to vector<77x64xbf16>
    %cst_166 = arith.constant dense<0.000000e+00> : vector<1x64xf32>
    %243 = tpu.matmul %240, %242, %cst_166 {dimension_numbers = #tpu.dot_dimension_numbers<[1], [0], [0], [1], [0, 0, 1, 1], [], []>} : vector<1x77xbf16>, vector<77x64xbf16>, vector<1x64xf32> -> vector<1x64xf32>
    %244 = arith.addf %239, %243 : vector<1x64xf32>
    %245 = vector.extract_strided_slice %213 {offsets = [6, 0], sizes = [1, 77], strides = [1, 1]} : vector<16x77xbf16> to vector<1x77xbf16>
    %c6_167 = arith.constant 6 : index
    %c0_168 = arith.constant 0 : index
    %c0_169 = arith.constant 0 : index
    %246 = vector.load %arg6[%c6_167, %c0_168, %c0_169] : memref<16x77x64xbf16, #tpu.memory_space<vmem>>, vector<1x77x64xbf16>
    %247 = vector.shape_cast %246 : vector<1x77x64xbf16> to vector<77x64xbf16>
    %cst_170 = arith.constant dense<0.000000e+00> : vector<1x64xf32>
    %248 = tpu.matmul %245, %247, %cst_170 {dimension_numbers = #tpu.dot_dimension_numbers<[1], [0], [0], [1], [0, 0, 1, 1], [], []>} : vector<1x77xbf16>, vector<77x64xbf16>, vector<1x64xf32> -> vector<1x64xf32>
    %249 = arith.addf %244, %248 : vector<1x64xf32>
    %250 = vector.extract_strided_slice %213 {offsets = [7, 0], sizes = [1, 77], strides = [1, 1]} : vector<16x77xbf16> to vector<1x77xbf16>
    %c7_171 = arith.constant 7 : index
    %c0_172 = arith.constant 0 : index
    %c0_173 = arith.constant 0 : index
    %251 = vector.load %arg6[%c7_171, %c0_172, %c0_173] : memref<16x77x64xbf16, #tpu.memory_space<vmem>>, vector<1x77x64xbf16>
    %252 = vector.shape_cast %251 : vector<1x77x64xbf16> to vector<77x64xbf16>
    %cst_174 = arith.constant dense<0.000000e+00> : vector<1x64xf32>
    %253 = tpu.matmul %250, %252, %cst_174 {dimension_numbers = #tpu.dot_dimension_numbers<[1], [0], [0], [1], [0, 0, 1, 1], [], []>} : vector<1x77xbf16>, vector<77x64xbf16>, vector<1x64xf32> -> vector<1x64xf32>
    %254 = arith.addf %249, %253 : vector<1x64xf32>
    %255 = vector.extract_strided_slice %213 {offsets = [8, 0], sizes = [1, 77], strides = [1, 1]} : vector<16x77xbf16> to vector<1x77xbf16>
    %c8_175 = arith.constant 8 : index
    %c0_176 = arith.constant 0 : index
    %c0_177 = arith.constant 0 : index
    %256 = vector.load %arg6[%c8_175, %c0_176, %c0_177] : memref<16x77x64xbf16, #tpu.memory_space<vmem>>, vector<1x77x64xbf16>
    %257 = vector.shape_cast %256 : vector<1x77x64xbf16> to vector<77x64xbf16>
    %cst_178 = arith.constant dense<0.000000e+00> : vector<1x64xf32>
    %258 = tpu.matmul %255, %257, %cst_178 {dimension_numbers = #tpu.dot_dimension_numbers<[1], [0], [0], [1], [0, 0, 1, 1], [], []>} : vector<1x77xbf16>, vector<77x64xbf16>, vector<1x64xf32> -> vector<1x64xf32>
    %259 = arith.addf %254, %258 : vector<1x64xf32>
    %260 = vector.extract_strided_slice %213 {offsets = [9, 0], sizes = [1, 77], strides = [1, 1]} : vector<16x77xbf16> to vector<1x77xbf16>
    %c9_179 = arith.constant 9 : index
    %c0_180 = arith.constant 0 : index
    %c0_181 = arith.constant 0 : index
    %261 = vector.load %arg6[%c9_179, %c0_180, %c0_181] : memref<16x77x64xbf16, #tpu.memory_space<vmem>>, vector<1x77x64xbf16>
    %262 = vector.shape_cast %261 : vector<1x77x64xbf16> to vector<77x64xbf16>
    %cst_182 = arith.constant dense<0.000000e+00> : vector<1x64xf32>
    %263 = tpu.matmul %260, %262, %cst_182 {dimension_numbers = #tpu.dot_dimension_numbers<[1], [0], [0], [1], [0, 0, 1, 1], [], []>} : vector<1x77xbf16>, vector<77x64xbf16>, vector<1x64xf32> -> vector<1x64xf32>
    %264 = arith.addf %259, %263 : vector<1x64xf32>
    %265 = vector.extract_strided_slice %213 {offsets = [10, 0], sizes = [1, 77], strides = [1, 1]} : vector<16x77xbf16> to vector<1x77xbf16>
    %c10_183 = arith.constant 10 : index
    %c0_184 = arith.constant 0 : index
    %c0_185 = arith.constant 0 : index
    %266 = vector.load %arg6[%c10_183, %c0_184, %c0_185] : memref<16x77x64xbf16, #tpu.memory_space<vmem>>, vector<1x77x64xbf16>
    %267 = vector.shape_cast %266 : vector<1x77x64xbf16> to vector<77x64xbf16>
    %cst_186 = arith.constant dense<0.000000e+00> : vector<1x64xf32>
    %268 = tpu.matmul %265, %267, %cst_186 {dimension_numbers = #tpu.dot_dimension_numbers<[1], [0], [0], [1], [0, 0, 1, 1], [], []>} : vector<1x77xbf16>, vector<77x64xbf16>, vector<1x64xf32> -> vector<1x64xf32>
    %269 = arith.addf %264, %268 : vector<1x64xf32>
    %270 = vector.extract_strided_slice %213 {offsets = [11, 0], sizes = [1, 77], strides = [1, 1]} : vector<16x77xbf16> to vector<1x77xbf16>
    %c11_187 = arith.constant 11 : index
    %c0_188 = arith.constant 0 : index
    %c0_189 = arith.constant 0 : index
    %271 = vector.load %arg6[%c11_187, %c0_188, %c0_189] : memref<16x77x64xbf16, #tpu.memory_space<vmem>>, vector<1x77x64xbf16>
    %272 = vector.shape_cast %271 : vector<1x77x64xbf16> to vector<77x64xbf16>
    %cst_190 = arith.constant dense<0.000000e+00> : vector<1x64xf32>
    %273 = tpu.matmul %270, %272, %cst_190 {dimension_numbers = #tpu.dot_dimension_numbers<[1], [0], [0], [1], [0, 0, 1, 1], [], []>} : vector<1x77xbf16>, vector<77x64xbf16>, vector<1x64xf32> -> vector<1x64xf32>
    %274 = arith.addf %269, %273 : vector<1x64xf32>
    %275 = vector.extract_strided_slice %213 {offsets = [12, 0], sizes = [1, 77], strides = [1, 1]} : vector<16x77xbf16> to vector<1x77xbf16>
    %c12_191 = arith.constant 12 : index
    %c0_192 = arith.constant 0 : index
    %c0_193 = arith.constant 0 : index
    %276 = vector.load %arg6[%c12_191, %c0_192, %c0_193] : memref<16x77x64xbf16, #tpu.memory_space<vmem>>, vector<1x77x64xbf16>
    %277 = vector.shape_cast %276 : vector<1x77x64xbf16> to vector<77x64xbf16>
    %cst_194 = arith.constant dense<0.000000e+00> : vector<1x64xf32>
    %278 = tpu.matmul %275, %277, %cst_194 {dimension_numbers = #tpu.dot_dimension_numbers<[1], [0], [0], [1], [0, 0, 1, 1], [], []>} : vector<1x77xbf16>, vector<77x64xbf16>, vector<1x64xf32> -> vector<1x64xf32>
    %279 = arith.addf %274, %278 : vector<1x64xf32>
    %280 = vector.extract_strided_slice %213 {offsets = [13, 0], sizes = [1, 77], strides = [1, 1]} : vector<16x77xbf16> to vector<1x77xbf16>
    %c13_195 = arith.constant 13 : index
    %c0_196 = arith.constant 0 : index
    %c0_197 = arith.constant 0 : index
    %281 = vector.load %arg6[%c13_195, %c0_196, %c0_197] : memref<16x77x64xbf16, #tpu.memory_space<vmem>>, vector<1x77x64xbf16>
    %282 = vector.shape_cast %281 : vector<1x77x64xbf16> to vector<77x64xbf16>
    %cst_198 = arith.constant dense<0.000000e+00> : vector<1x64xf32>
    %283 = tpu.matmul %280, %282, %cst_198 {dimension_numbers = #tpu.dot_dimension_numbers<[1], [0], [0], [1], [0, 0, 1, 1], [], []>} : vector<1x77xbf16>, vector<77x64xbf16>, vector<1x64xf32> -> vector<1x64xf32>
    %284 = arith.addf %279, %283 : vector<1x64xf32>
    %285 = vector.extract_strided_slice %213 {offsets = [14, 0], sizes = [1, 77], strides = [1, 1]} : vector<16x77xbf16> to vector<1x77xbf16>
    %c14_199 = arith.constant 14 : index
    %c0_200 = arith.constant 0 : index
    %c0_201 = arith.constant 0 : index
    %286 = vector.load %arg6[%c14_199, %c0_200, %c0_201] : memref<16x77x64xbf16, #tpu.memory_space<vmem>>, vector<1x77x64xbf16>
    %287 = vector.shape_cast %286 : vector<1x77x64xbf16> to vector<77x64xbf16>
    %cst_202 = arith.constant dense<0.000000e+00> : vector<1x64xf32>
    %288 = tpu.matmul %285, %287, %cst_202 {dimension_numbers = #tpu.dot_dimension_numbers<[1], [0], [0], [1], [0, 0, 1, 1], [], []>} : vector<1x77xbf16>, vector<77x64xbf16>, vector<1x64xf32> -> vector<1x64xf32>
    %289 = arith.addf %284, %288 : vector<1x64xf32>
    %290 = vector.extract_strided_slice %213 {offsets = [15, 0], sizes = [1, 77], strides = [1, 1]} : vector<16x77xbf16> to vector<1x77xbf16>
    %c15_203 = arith.constant 15 : index
    %c0_204 = arith.constant 0 : index
    %c0_205 = arith.constant 0 : index
    %291 = vector.load %arg6[%c15_203, %c0_204, %c0_205] : memref<16x77x64xbf16, #tpu.memory_space<vmem>>, vector<1x77x64xbf16>
    %292 = vector.shape_cast %291 : vector<1x77x64xbf16> to vector<77x64xbf16>
    %cst_206 = arith.constant dense<0.000000e+00> : vector<1x64xf32>
    %293 = tpu.matmul %290, %292, %cst_206 {dimension_numbers = #tpu.dot_dimension_numbers<[1], [0], [0], [1], [0, 0, 1, 1], [], []>} : vector<1x77xbf16>, vector<77x64xbf16>, vector<1x64xf32> -> vector<1x64xf32>
    %294 = arith.addf %289, %293 : vector<1x64xf32>
    %c0_207 = arith.constant 0 : index
    %c0_208 = arith.constant 0 : index
    %295 = vector.load %arg7[%c0_207, %c0_208] : memref<1x64xf32, #tpu.memory_space<vmem>>, vector<1x64xf32>
    %296 = arith.addf %294, %295 : vector<1x64xf32>
    %cst_209 = arith.constant 0.000000e+00 : f32
    %297 = vector.broadcast %cst_209 : f32 to vector<1x64xf32>
    %298 = arith.cmpf ogt, %296, %297 : vector<1x64xf32>
    %cst_210 = arith.constant 0.00999999977 : f32
    %299 = vector.broadcast %cst_210 : f32 to vector<1x64xf32>
    %300 = arith.mulf %299, %296 : vector<1x64xf32>
    %301 = arith.select %298, %296, %300 : vector<1x64xi1>, vector<1x64xf32>
    %c0_211 = arith.constant 0 : index
    %c0_212 = arith.constant 0 : index
    %302 = vector.load %arg8[%c0_211, %c0_212] : memref<1x64xf32, #tpu.memory_space<vmem>>, vector<1x64xf32>
    %303 = arith.mulf %301, %302 : vector<1x64xf32>
    %cst_213 = arith.constant dense<0.000000e+00> : vector<1xf32>
    %304 = vector.multi_reduction <add>, %303, %cst_213 [1] : vector<1x64xf32> to vector<1xf32>
    %305 = vector.shape_cast %304 : vector<1xf32> to vector<1x1xf32>
    %c0_214 = arith.constant 0 : index
    %c0_215 = arith.constant 0 : index
    %306 = vector.load %arg9[%c0_214, %c0_215] : memref<1x1xf32, #tpu.memory_space<vmem>>, vector<1x1xf32>
    %307 = arith.addf %305, %306 : vector<1x1xf32>
    %c1_i32 = arith.constant 1 : i32
    %308 = vector.broadcast %c1_i32 : i32 to vector<1x128xi32>
    %309 = arith.cmpi eq, %111, %308 : vector<1x128xi32>
    %310 = vector.shape_cast %307 : vector<1x1xf32> to vector<1x1xf32>
    %311 = vector.broadcast %310 : vector<1x1xf32> to vector<1x128xf32>
    %312 = arith.select %309, %311, %212 : vector<1x128xi1>, vector<1x128xf32>
    %c0_216 = arith.constant 0 : index
    %c0_217 = arith.constant 0 : index
    %313 = vector.load %arg10[%c0_216, %c0_217] : memref<1x128xf32, #tpu.memory_space<vmem>>, vector<1x128xf32>
    tpu.vector_store %arg10[%c0_216, %c0_217], %312 {strides = array<i32>} : memref<1x128xf32, #tpu.memory_space<vmem>>, vector<1x128xf32>,
    return
  }
  func.func @transform_0(%arg0: i32) -> (i32, i32) {
    %c0_i32 = arith.constant 0 : i32
    %c0_i32_0 = arith.constant 0 : i32
    return %c0_i32, %arg0 : i32, i32
  }
  func.func @transform_1(%arg0: i32) -> (i32, i32, i32) {
    %c0_i32 = arith.constant 0 : i32
    %c0_i32_0 = arith.constant 0 : i32
    %c0_i32_1 = arith.constant 0 : i32
    %c0_i32_2 = arith.constant 0 : i32
    return %c0_i32, %c0_i32_0, %c0_i32_1 : i32, i32, i32
  }
  func.func @transform_2(%arg0: i32) -> (i32, i32) {
    %c0_i32 = arith.constant 0 : i32
    %c0_i32_0 = arith.constant 0 : i32
    %c0_i32_1 = arith.constant 0 : i32
    return %c0_i32, %c0_i32_0 : i32, i32
  }
  func.func @transform_3(%arg0: i32) -> (i32, i32, i32) {
    %c0_i32 = arith.constant 0 : i32
    %c0_i32_0 = arith.constant 0 : i32
    %c0_i32_1 = arith.constant 0 : i32
    %c0_i32_2 = arith.constant 0 : i32
    return %c0_i32, %c0_i32_0, %c0_i32_1 : i32, i32, i32
  }
  func.func @transform_4(%arg0: i32) -> (i32, i32) {
    %c0_i32 = arith.constant 0 : i32
    %c0_i32_0 = arith.constant 0 : i32
    %c0_i32_1 = arith.constant 0 : i32
    return %c0_i32, %c0_i32_0 : i32, i32
  }
  func.func @transform_5(%arg0: i32) -> (i32, i32, i32) {
    %c0_i32 = arith.constant 0 : i32
    %c0_i32_0 = arith.constant 0 : i32
    %c0_i32_1 = arith.constant 0 : i32
    %c0_i32_2 = arith.constant 0 : i32
    return %c0_i32, %c0_i32_0, %c0_i32_1 : i32, i32, i32
  }
  func.func @transform_6(%arg0: i32) -> (i32, i32) {
    %c0_i32 = arith.constant 0 : i32
    %c0_i32_0 = arith.constant 0 : i32
    %c0_i32_1 = arith.constant 0 : i32
    return %c0_i32, %c0_i32_0 : i32, i32
  }
  func.func @transform_7(%arg0: i32) -> (i32, i32) {
    %c0_i32 = arith.constant 0 : i32
    %c0_i32_0 = arith.constant 0 : i32
    %c0_i32_1 = arith.constant 0 : i32
    return %c0_i32, %c0_i32_0 : i32, i32
  }
  func.func @transform_8(%arg0: i32) -> (i32, i32) {
    %c0_i32 = arith.constant 0 : i32
    %c0_i32_0 = arith.constant 0 : i32
    %c0_i32_1 = arith.constant 0 : i32
    return %c0_i32, %c0_i32_0 : i32, i32
  }
  func.func @transform_9(%arg0: i32) -> (i32, i32) {
    %c0_i32 = arith.constant 0 : i32
    %c0_i32_0 = arith.constant 0 : i32
    return %c0_i32, %arg0 : i32, i32
  }
}

</mosaic_0001>

<llo_original>
// kernel: net_forward.3
$region0: #{net_forward.3}
  #allocation0 [shape = 'u32[]', space=smem, size = 0x4, offset = 0x4, fixed_abs, tag = 'smem constant byte address 0x4 - core index']
  #allocation1 [shape = 'u32[72,128]{1,0:T(1,128)}', space=vmem, size = 0x9000, scoped, tag = 'internal scratch']
  %s0 = inlined_call_operand.vmem [shape: bf16[32,196], index: 0, kind: input, shape index: {}]
  %s1 = inlined_call_operand.vmem [shape: f32[32,1], index: 1, kind: input, shape index: {}]
  %s2 = inlined_call_operand.vmem [shape: bf16[196,2704], index: 2, kind: input, shape index: {}]
  %s3 = inlined_call_operand.vmem [shape: bf16[32,2704], index: 3, kind: output, shape index: {}]
  %s4 = sld [smem:[#allocation0]]
  $region93: #{net_forward.3} parent=0
    _
  %s6 = ssub.s32 1, %s4
  %s7 = scalar_select 0, %s6, %s4
  $region1: #{net_forward.3} parent=0
    #allocation2 [shape = 'u8[1126400]{0}', space=vmem, size = 0x113000, scoped, tag = 'input window, operand 2']
    #allocation3 [shape = 'u8[180224]{0}', space=vmem, size = 0x2c000, scoped, tag = 'output window, operand 0']
    loop: start=0, step=1, limit=4
    $region2: #{net_forward.3} parent=1 // loop_pre_header
      _
    $region3: #{net_forward.3} parent=1 // loop_header
      %s9 = sphi 0, %s13
      %p10 = scmp.ge.s32.totalorder %s9, 4
      %s17 = sphi 0, %s17
      %s19 = sphi 0, %s17
      %s20 = sphi 0, %s19
      %s34 = sphi 0, %s20
      %s38 = sphi 0, %s38
      %s40 = sphi 0, %s38
      %s41 = sphi 0, %s40
      %s55 = sphi 0, %s41
      %s61 = sphi 0, %s63
      %s64 = sphi 0, %s61
      %s65 = sphi 0, %s64
      %s81 = sphi 0, %s65
      %s87 = sphi 0, %s89
      %s90 = sphi 0, %s87
      %s91 = sphi 0, %s90
      %s107 = sphi 0, %s91
    $region4: #{net_forward.3} parent=1 // loop_header_branch
      %12 = sbr.rel (%p10) target = $region8
    $region5: #{net_forward.3} parent=1 // loop_body
      %s14 = ssub.s32 %s9, 1
      %s15 = ssub.s32 %s9, 2
      %s16 = sadd.s32 %s9, 1
      %s18 = sadd.s32 %s17, 1
      %p21 = scmp.eq.s32.totalorder %s9, 1
      %p22 = scmp.ne.s32.totalorder %s17, %s19
      %p23 = scmp.eq.s32.totalorder %s9, 0
      %p24 = por %p22, %p23
      %p25 = scmp.ne.s32.totalorder %s17, %s19
      %p26 = scmp.eq.s32.totalorder %s14, 1
      %p27 = por %p25, %p26
      %p28 = scmp.ne.s32.totalorder %s19, %s20
      %p29 = scmp.eq.s32.totalorder %s14, 0
      %p30 = por %p28, %p29
      %p31 = scmp.ne.s32.totalorder %s19, %s20
      %p32 = scmp.eq.s32.totalorder %s15, 1
      %p33 = por %p31, %p32
      %p35 = scmp.ne.s32.totalorder %s20, %s34
      %p36 = scmp.eq.s32.totalorder %s15, 0
      %p37 = por %p35, %p36
      %s39 = sadd.s32 %s38, 1
      %p42 = scmp.eq.s32.totalorder %s9, 1
      %p43 = scmp.ne.s32.totalorder %s38, %s40
      %p44 = scmp.eq.s32.totalorder %s9, 0
      %p45 = por %p43, %p44
      %p46 = scmp.ne.s32.totalorder %s38, %s40
      %p47 = scmp.eq.s32.totalorder %s14, 1
      %p48 = por %p46, %p47
      %p49 = scmp.ne.s32.totalorder %s40, %s41
      %p50 = scmp.eq.s32.totalorder %s14, 0
      %p51 = por %p49, %p50
      %p52 = scmp.ne.s32.totalorder %s40, %s41
      %p53 = scmp.eq.s32.totalorder %s15, 1
      %p54 = por %p52, %p53
      %p56 = scmp.ne.s32.totalorder %s41, %s55
      %p57 = scmp.eq.s32.totalorder %s15, 0
      %p58 = por %p56, %p57
      %s59 = ssub.s32 %s9, %s16
      %p60 = scmp.eq.s32.totalorder %s59, 0
      %s62 = sadd.s32 %s61, 1
      %s63 = scalar_select %p60, %s61, %s62
      %p66 = pneg %p60
      %p67 = scmp.eq.s32.totalorder %s9, 1
      %p68 = por %p66, %p67
      %p69 = scmp.ne.s32.totalorder %s61, %s64
      %p70 = scmp.eq.s32.totalorder %s9, 0
      %p71 = por %p69, %p70
      %p72 = scmp.ne.s32.totalorder %s61, %s64
      %p73 = scmp.eq.s32.totalorder %s14, 1
      %p74 = por %p72, %p73
      %p75 = scmp.ne.s32.totalorder %s64, %s65
      %p76 = scmp.eq.s32.totalorder %s14, 0
      %p77 = por %p75, %p76
      %p78 = scmp.ne.s32.totalorder %s64, %s65
      %p79 = scmp.eq.s32.totalorder %s15, 1
      %p80 = por %p78, %p79
      %p82 = scmp.ne.s32.totalorder %s65, %s81
      %p83 = scmp.eq.s32.totalorder %s15, 0
      %p84 = por %p82, %p83
      %s85 = ssub.s32 %s9, %s16
      %p86 = scmp.eq.s32.totalorder %s85, 0
      %s88 = sadd.s32 %s87, 1
      %s89 = scalar_select %p86, %s87, %s88
      %p92 = pneg %p86
      %p93 = scmp.eq.s32.totalorder %s9, 1
      %p94 = por %p92, %p93
      %p95 = scmp.ne.s32.totalorder %s87, %s90
      %p96 = scmp.eq.s32.totalorder %s9, 0
      %p97 = por %p95, %p96
      %p98 = scmp.ne.s32.totalorder %s87, %s90
      %p99 = scmp.eq.s32.totalorder %s14, 1
      %p100 = por %p98, %p99
      %p101 = scmp.ne.s32.totalorder %s90, %s91
      %p102 = scmp.eq.s32.totalorder %s14, 0
      %p103 = por %p101, %p102
      %p104 = scmp.ne.s32.totalorder %s90, %s91
      %p105 = scmp.eq.s32.totalorder %s15, 1
      %p106 = por %p104, %p105
      %p108 = scmp.ne.s32.totalorder %s91, %s107
      %p109 = scmp.eq.s32.totalorder %s15, 0
      %p110 = por %p108, %p109
      %p111 = scmp.le.s32.totalorder 1, %s9
      %p112 = scmp.lt.s32.totalorder %s9, 3
      %p113 = pnand %p111, %p112
      %p114 = pneg %p113
      // Predicated region
      $region9: #{net_forward.3} parent=5 // pred_check
        _
      $region10: #{net_forward.3} parent=5 // pred_check_branch
        %116 = sbr.rel (%p113) target = $region12
      $region11: #{net_forward.3} parent=5 // pred_region
        %s117 = ssub.s32 %s9, 1
        // Predicated region
        $region13: #{net_forward.3} parent=11 // pred_check
          %p118 = pneg %p30
        $region14: #{net_forward.3} parent=11 // pred_check_branch
          %120 = sbr.rel (%p118) target = $region16
        $region15: #{net_forward.3} parent=11 // pred_region
          _
        $region16: #{net_forward.3} parent=11 // pred_fallthru
          _
        // Predicated region
        $region17: #{net_forward.3} parent=11 // pred_check
          %p121 = pneg %p51
        $region18: #{net_forward.3} parent=11 // pred_check_branch
          %123 = sbr.rel (%p121) target = $region20
        $region19: #{net_forward.3} parent=11 // pred_region
          _
        $region20: #{net_forward.3} parent=11 // pred_fallthru
          _
      $region12: #{net_forward.3} parent=5 // pred_fallthru
        _
      %p124 = scmp.lt.s32.totalorder %s9, 2
      // Predicated region
      $region21: #{net_forward.3} parent=5 // pred_check
        %p125 = pneg %p124
      $region22: #{net_forward.3} parent=5 // pred_check_branch
        %127 = sbr.rel (%p125) target = $region24
      $region23: #{net_forward.3} parent=5 // pred_region
        // Predicated region
        $region25: #{net_forward.3} parent=23 // pred_check
          %p128 = pneg %p71
        $region26: #{net_forward.3} parent=23 // pred_check_branch
          %130 = sbr.rel (%p128) target = $region28
        $region27: #{net_forward.3} parent=23 // pred_region
          %s131 = sand.u32 %s61, 1
          %s132 = sand.u32 %s61, 1
          %s133 = smul.addr %s132, 1100
          %s134 = scalar_lea.vmem [#allocation2], %s133
          %s135 = smul.u32 11, %s9
          %s136 = smul.addr %s135, 4
          %s137 = scalar_lea.vmem %s2, %s136
          // Predicated region
          $region29: #{net_forward.3} parent=27 // pred_check
            _
          $region30: #{net_forward.3} parent=27 // pred_check_branch
            %139 = sbr.rel (0) target = $region32
          $region31: #{net_forward.3} parent=27 // pred_region
            // Predicated region
            $region33: #{net_forward.3} parent=31 // pred_check
              _
            $region34: #{net_forward.3} parent=31 // pred_check_branch
              %141 = sbr.rel (0) target = $region36
            $region35: #{net_forward.3} parent=31 // pred_region
              %s142 = scalar_lea.vmem %s137, 40
              %s143 = scalar_lea.vmem %s134, 40 [#allocation2]
              loop: start=0, step=1, limit=1
              $region37: #{net_forward.3} parent=35 // loop_pre_header
                _
              $region38: #{net_forward.3} parent=35 // loop_header
                %s145 = sphi 0, %s149
                %p146 = scmp.ge.s32.totalorder %s145, 1
                %s150 = sphi %s137, %s137
                %s151 = sphi %s134, %s134
              $region39: #{net_forward.3} parent=35 // loop_header_branch
                %148 = sbr.rel (%p146) target = $region43
              $region40: #{net_forward.3} parent=35 // loop_body
                %v152 = vld [vmem:[%s150] sm:$0xff]
                %153 = vst [vmem:[%s151] sm:$0xff] %v152
                %v154 = vld [vmem:[%s150 + $0x8] sm:$0xff]
                %155 = vst [vmem:[%s151 + $0x8] sm:$0xff] %v154
                %v156 = vld [vmem:[%s150 + $0x10] sm:$0xff]
                %157 = vst [vmem:[%s151 + $0x10] sm:$0xff] %v156
                %v158 = vld [vmem:[%s150 + $0x18] sm:$0xff]
                %159 = vst [vmem:[%s151 + $0x18] sm:$0xff] %v158
                %v160 = vld [vmem:[%s150 + $0x20] sm:$0xff]
                %161 = vst [vmem:[%s151 + $0x20] sm:$0xff] %v160
                %v162 = vld [vmem:[%s150 + $0x58] sm:$0xff]
                %163 = vst [vmem:[%s151 + $0x2c] sm:$0xff] %v162
                %v164 = vld [vmem:[%s150 + $0x60] sm:$0xff]
                %165 = vst [vmem:[%s151 + $0x34] sm:$0xff] %v164
                %v166 = vld [vmem:[%s150 + $0x68] sm:$0xff]
                %167 = vst [vmem:[%s151 + $0x3c] sm:$0xff] %v166
                %v168 = vld [vmem:[%s150 + $0x70] sm:$0xff]
                %169 = vst [vmem:[%s151 + $0x44] sm:$0xff] %v168
                %v170 = vld [vmem:[%s150 + $0x78] sm:$0xff]
                %171 = vst [vmem:[%s151 + $0x4c] sm:$0xff] %v170
                %v172 = vld [vmem:[%s150 + $0xb0] sm:$0xff]
                %173 = vst [vmem:[%s151 + $0x58] sm:$0xff] %v172
                %v174 = vld [vmem:[%s150 + $0xb8] sm:$0xff]
                %175 = vst [vmem:[%s151 + $0x60] sm:$0xff] %v174
                %v176 = vld [vmem:[%s150 + $0xc0] sm:$0xff]
                %177 = vst [vmem:[%s151 + $0x68] sm:$0xff] %v176
                %v178 = vld [vmem:[%s150 + $0xc8] sm:$0xff]
                %179 = vst [vmem:[%s151 + $0x70] sm:$0xff] %v178
                %v180 = vld [vmem:[%s150 + $0xd0] sm:$0xff]
                %181 = vst [vmem:[%s151 + $0x78] sm:$0xff] %v180
                %v182 = vld [vmem:[%s150 + $0x108] sm:$0xff]
                %183 = vst [vmem:[%s151 + $0x84] sm:$0xff] %v182
                %v184 = vld [vmem:[%s150 + $0x110] sm:$0xff]
                %185 = vst [vmem:[%s151 + $0x8c] sm:$0xff] %v184
                %v186 = vld [vmem:[%s150 + $0x118] sm:$0xff]
                %187 = vst [vmem:[%s151 + $0x94] sm:$0xff] %v186
                %v188 = vld [vmem:[%s150 + $0x120] sm:$0xff]
                %189 = vst [vmem:[%s151 + $0x9c] sm:$0xff] %v188
                %v190 = vld [vmem:[%s150 + $0x128] sm:$0xff]
                %191 = vst [vmem:[%s151 + $0xa4] sm:$0xff] %v190
                %v192 = vld [vmem:[%s150 + $0x160] sm:$0xff]
                %193 = vst [vmem:[%s151 + $0xb0] sm:$0xff] %v192
                %v194 = vld [vmem:[%s150 + $0x168] sm:$0xff]
                %195 = vst [vmem:[%s151 + $0xb8] sm:$0xff] %v194
                %v196 = vld [vmem:[%s150 + $0x170] sm:$0xff]
                %197 = vst [vmem:[%s151 + $0xc0] sm:$0xff] %v196
                %v198 = vld [vmem:[%s150 + $0x178] sm:$0xff]
                %199 = vst [vmem:[%s151 + $0xc8] sm:$0xff] %v198
                %v200 = vld [vmem:[%s150 + $0x180] sm:$0xff]
                %201 = vst [vmem:[%s151 + $0xd0] sm:$0xff] %v200
                %v202 = vld [vmem:[%s150 + $0x1b8] sm:$0xff]
                %203 = vst [vmem:[%s151 + $0xdc] sm:$0xff] %v202
                %v204 = vld [vmem:[%s150 + $0x1c0] sm:$0xff]
                %205 = vst [vmem:[%s151 + $0xe4] sm:$0xff] %v204
                %v206 = vld [vmem:[%s150 + $0x1c8] sm:$0xff]
                %207 = vst [vmem:[%s151 + $0xec] sm:$0xff] %v206
                %v208 = vld [vmem:[%s150 + $0x1d0] sm:$0xff]
                %209 = vst [vmem:[%s151 + $0xf4] sm:$0xff] %v208
                %v210 = vld [vmem:[%s150 + $0x1d8] sm:$0xff]
                %211 = vst [vmem:[%s151 + $0xfc] sm:$0xff] %v210
                %v212 = vld [vmem:[%s150 + $0x210] sm:$0xff]
                %213 = vst [vmem:[%s151 + $0x108] sm:$0xff] %v212
                %v214 = vld [vmem:[%s150 + $0x218] sm:$0xff]
                %215 = vst [vmem:[%s151 + $0x110] sm:$0xff] %v214
                %v216 = vld [vmem:[%s150 + $0x220] sm:$0xff]
                %217 = vst [vmem:[%s151 + $0x118] sm:$0xff] %v216
                %v218 = vld [vmem:[%s150 + $0x228] sm:$0xff]
                %219 = vst [vmem:[%s151 + $0x120] sm:$0xff] %v218
                %v220 = vld [vmem:[%s150 + $0x230] sm:$0xff]
                %221 = vst [vmem:[%s151 + $0x128] sm:$0xff] %v220
                %v222 = vld [vmem:[%s150 + $0x268] sm:$0xff]
                %223 = vst [vmem:[%s151 + $0x134] sm:$0xff] %v222
                %v224 = vld [vmem:[%s150 + $0x270] sm:$0xff]
                %225 = vst [vmem:[%s151 + $0x13c] sm:$0xff] %v224
                %v226 = vld [vmem:[%s150 + $0x278] sm:$0xff]
                %227 = vst [vmem:[%s151 + $0x144] sm:$0xff] %v226
                %v228 = vld [vmem:[%s150 + $0x280] sm:$0xff]
                %229 = vst [vmem:[%s151 + $0x14c] sm:$0xff] %v228
                %v230 = vld [vmem:[%s150 + $0x288] sm:$0xff]
                %231 = vst [vmem:[%s151 + $0x154] sm:$0xff] %v230
                %v232 = vld [vmem:[%s150 + $0x2c0] sm:$0xff]
                %233 = vst [vmem:[%s151 + $0x160] sm:$0xff] %v232
                %v234 = vld [vmem:[%s150 + $0x2c8] sm:$0xff]
                %235 = vst [vmem:[%s151 + $0x168] sm:$0xff] %v234
                %v236 = vld [vmem:[%s150 + $0x2d0] sm:$0xff]
                %237 = vst [vmem:[%s151 + $0x170] sm:$0xff] %v236
                %v238 = vld [vmem:[%s150 + $0x2d8] sm:$0xff]
                %239 = vst [vmem:[%s151 + $0x178] sm:$0xff] %v238
                %v240 = vld [vmem:[%s150 + $0x2e0] sm:$0xff]
                %241 = vst [vmem:[%s151 + $0x180] sm:$0xff] %v240
                %v242 = vld [vmem:[%s150 + $0x318] sm:$0xff]
                %243 = vst [vmem:[%s151 + $0x18c] sm:$0xff] %v242
                %v244 = vld [vmem:[%s150 + $0x320] sm:$0xff]
                %245 = vst [vmem:[%s151 + $0x194] sm:$0xff] %v244
                %v246 = vld [vmem:[%s150 + $0x328] sm:$0xff]
                %247 = vst [vmem:[%s151 + $0x19c] sm:$0xff] %v246
                %v248 = vld [vmem:[%s150 + $0x330] sm:$0xff]
                %249 = vst [vmem:[%s151 + $0x1a4] sm:$0xff] %v248
                %v250 = vld [vmem:[%s150 + $0x338] sm:$0xff]
                %251 = vst [vmem:[%s151 + $0x1ac] sm:$0xff] %v250
                %v252 = vld [vmem:[%s150 + $0x370] sm:$0xff]
                %253 = vst [vmem:[%s151 + $0x1b8] sm:$0xff] %v252
                %v254 = vld [vmem:[%s150 + $0x378] sm:$0xff]
                %255 = vst [vmem:[%s151 + $0x1c0] sm:$0xff] %v254
                %v256 = vld [vmem:[%s150 + $0x380] sm:$0xff]
                %257 = vst [vmem:[%s151 + $0x1c8] sm:$0xff] %v256
                %v258 = vld [vmem:[%s150 + $0x388] sm:$0xff]
                %259 = vst [vmem:[%s151 + $0x1d0] sm:$0xff] %v258
                %v260 = vld [vmem:[%s150 + $0x390] sm:$0xff]
                %261 = vst [vmem:[%s151 + $0x1d8] sm:$0xff] %v260
                %v262 = vld [vmem:[%s150 + $0x3c8] sm:$0xff]
                %263 = vst [vmem:[%s151 + $0x1e4] sm:$0xff] %v262
                %v264 = vld [vmem:[%s150 + $0x3d0] sm:$0xff]
                %265 = vst [vmem:[%s151 + $0x1ec] sm:$0xff] %v264
                %v266 = vld [vmem:[%s150 + $0x3d8] sm:$0xff]
                %267 = vst [vmem:[%s151 + $0x1f4] sm:$0xff] %v266
                %v268 = vld [vmem:[%s150 + $0x3e0] sm:$0xff]
                %269 = vst [vmem:[%s151 + $0x1fc] sm:$0xff] %v268
                %v270 = vld [vmem:[%s150 + $0x3e8] sm:$0xff]
                %271 = vst [vmem:[%s151 + $0x204] sm:$0xff] %v270
                %v272 = vld [vmem:[%s150 + $0x420] sm:$0xff]
                %273 = vst [vmem:[%s151 + $0x210] sm:$0xff] %v272
                %v274 = vld [vmem:[%s150 + $0x428] sm:$0xff]
                %275 = vst [vmem:[%s151 + $0x218] sm:$0xff] %v274
                %v276 = vld [vmem:[%s150 + $0x430] sm:$0xff]
                %277 = vst [vmem:[%s151 + $0x220] sm:$0xff] %v276
                %v278 = vld [vmem:[%s150 + $0x438] sm:$0xff]
                %279 = vst [vmem:[%s151 + $0x228] sm:$0xff] %v278
                %v280 = vld [vmem:[%s150 + $0x440] sm:$0xff]
                %281 = vst [vmem:[%s151 + $0x230] sm:$0xff] %v280
                %v282 = vld [vmem:[%s150 + $0x478] sm:$0xff]
                %283 = vst [vmem:[%s151 + $0x23c] sm:$0xff] %v282
                %v284 = vld [vmem:[%s150 + $0x480] sm:$0xff]
                %285 = vst [vmem:[%s151 + $0x244] sm:$0xff] %v284
                %v286 = vld [vmem:[%s150 + $0x488] sm:$0xff]
                %287 = vst [vmem:[%s151 + $0x24c] sm:$0xff] %v286
                %v288 = vld [vmem:[%s150 + $0x490] sm:$0xff]
                %289 = vst [vmem:[%s151 + $0x254] sm:$0xff] %v288
                %v290 = vld [vmem:[%s150 + $0x498] sm:$0xff]
                %291 = vst [vmem:[%s151 + $0x25c] sm:$0xff] %v290
                %v292 = vld [vmem:[%s150 + $0x4d0] sm:$0xff]
                %293 = vst [vmem:[%s151 + $0x268] sm:$0xff] %v292
                %v294 = vld [vmem:[%s150 + $0x4d8] sm:$0xff]
                %295 = vst [vmem:[%s151 + $0x270] sm:$0xff] %v294
                %v296 = vld [vmem:[%s150 + $0x4e0] sm:$0xff]
                %297 = vst [vmem:[%s151 + $0x278] sm:$0xff] %v296
                %v298 = vld [vmem:[%s150 + $0x4e8] sm:$0xff]
                %299 = vst [vmem:[%s151 + $0x280] sm:$0xff] %v298
                %v300 = vld [vmem:[%s150 + $0x4f0] sm:$0xff]
                %301 = vst [vmem:[%s151 + $0x288] sm:$0xff] %v300
                %v302 = vld [vmem:[%s150 + $0x528] sm:$0xff]
                %303 = vst [vmem:[%s151 + $0x294] sm:$0xff] %v302
                %v304 = vld [vmem:[%s150 + $0x530] sm:$0xff]
                %305 = vst [vmem:[%s151 + $0x29c] sm:$0xff] %v304
                %v306 = vld [vmem:[%s150 + $0x538] sm:$0xff]
                %307 = vst [vmem:[%s151 + $0x2a4] sm:$0xff] %v306
                %v308 = vld [vmem:[%s150 + $0x540] sm:$0xff]
                %309 = vst [vmem:[%s151 + $0x2ac] sm:$0xff] %v308
                %v310 = vld [vmem:[%s150 + $0x548] sm:$0xff]
                %311 = vst [vmem:[%s151 + $0x2b4] sm:$0xff] %v310
                %v312 = vld [vmem:[%s150 + $0x580] sm:$0xff]
                %313 = vst [vmem:[%s151 + $0x2c0] sm:$0xff] %v312
                %v314 = vld [vmem:[%s150 + $0x588] sm:$0xff]
                %315 = vst [vmem:[%s151 + $0x2c8] sm:$0xff] %v314
                %v316 = vld [vmem:[%s150 + $0x590] sm:$0xff]
                %317 = vst [vmem:[%s151 + $0x2d0] sm:$0xff] %v316
                %v318 = vld [vmem:[%s150 + $0x598] sm:$0xff]
                %319 = vst [vmem:[%s151 + $0x2d8] sm:$0xff] %v318
                %v320 = vld [vmem:[%s150 + $0x5a0] sm:$0xff]
                %321 = vst [vmem:[%s151 + $0x2e0] sm:$0xff] %v320
                %v322 = vld [vmem:[%s150 + $0x5d8] sm:$0xff]
                %323 = vst [vmem:[%s151 + $0x2ec] sm:$0xff] %v322
                %v324 = vld [vmem:[%s150 + $0x5e0] sm:$0xff]
                %325 = vst [vmem:[%s151 + $0x2f4] sm:$0xff] %v324
                %v326 = vld [vmem:[%s150 + $0x5e8] sm:$0xff]
                %327 = vst [vmem:[%s151 + $0x2fc] sm:$0xff] %v326
                %v328 = vld [vmem:[%s150 + $0x5f0] sm:$0xff]
                %329 = vst [vmem:[%s151 + $0x304] sm:$0xff] %v328
                %v330 = vld [vmem:[%s150 + $0x5f8] sm:$0xff]
                %331 = vst [vmem:[%s151 + $0x30c] sm:$0xff] %v330
                %v332 = vld [vmem:[%s150 + $0x630] sm:$0xff]
                %333 = vst [vmem:[%s151 + $0x318] sm:$0xff] %v332
                %v334 = vld [vmem:[%s150 + $0x638] sm:$0xff]
                %335 = vst [vmem:[%s151 + $0x320] sm:$0xff] %v334
                %v336 = vld [vmem:[%s150 + $0x640] sm:$0xff]
                %337 = vst [vmem:[%s151 + $0x328] sm:$0xff] %v336
                %v338 = vld [vmem:[%s150 + $0x648] sm:$0xff]
                %339 = vst [vmem:[%s151 + $0x330] sm:$0xff] %v338
                %v340 = vld [vmem:[%s150 + $0x650] sm:$0xff]
                %341 = vst [vmem:[%s151 + $0x338] sm:$0xff] %v340
                %v342 = vld [vmem:[%s150 + $0x688] sm:$0xff]
                %343 = vst [vmem:[%s151 + $0x344] sm:$0xff] %v342
                %v344 = vld [vmem:[%s150 + $0x690] sm:$0xff]
                %345 = vst [vmem:[%s151 + $0x34c] sm:$0xff] %v344
                %v346 = vld [vmem:[%s150 + $0x698] sm:$0xff]
                %347 = vst [vmem:[%s151 + $0x354] sm:$0xff] %v346
                %v348 = vld [vmem:[%s150 + $0x6a0] sm:$0xff]
                %349 = vst [vmem:[%s151 + $0x35c] sm:$0xff] %v348
                %v350 = vld [vmem:[%s150 + $0x6a8] sm:$0xff]
                %351 = vst [vmem:[%s151 + $0x364] sm:$0xff] %v350
                %v352 = vld [vmem:[%s150 + $0x6e0] sm:$0xff]
                %353 = vst [vmem:[%s151 + $0x370] sm:$0xff] %v352
                %v354 = vld [vmem:[%s150 + $0x6e8] sm:$0xff]
                %355 = vst [vmem:[%s151 + $0x378] sm:$0xff] %v354
                %v356 = vld [vmem:[%s150 + $0x6f0] sm:$0xff]
                %357 = vst [vmem:[%s151 + $0x380] sm:$0xff] %v356
                %v358 = vld [vmem:[%s150 + $0x6f8] sm:$0xff]
                %359 = vst [vmem:[%s151 + $0x388] sm:$0xff] %v358
                %v360 = vld [vmem:[%s150 + $0x700] sm:$0xff]
                %361 = vst [vmem:[%s151 + $0x390] sm:$0xff] %v360
                %v362 = vld [vmem:[%s150 + $0x738] sm:$0xff]
                %363 = vst [vmem:[%s151 + $0x39c] sm:$0xff] %v362
                %v364 = vld [vmem:[%s150 + $0x740] sm:$0xff]
                %365 = vst [vmem:[%s151 + $0x3a4] sm:$0xff] %v364
                %v366 = vld [vmem:[%s150 + $0x748] sm:$0xff]
                %367 = vst [vmem:[%s151 + $0x3ac] sm:$0xff] %v366
                %v368 = vld [vmem:[%s150 + $0x750] sm:$0xff]
                %369 = vst [vmem:[%s151 + $0x3b4] sm:$0xff] %v368
                %v370 = vld [vmem:[%s150 + $0x758] sm:$0xff]
                %371 = vst [vmem:[%s151 + $0x3bc] sm:$0xff] %v370
                %v372 = vld [vmem:[%s150 + $0x790] sm:$0xff]
                %373 = vst [vmem:[%s151 + $0x3c8] sm:$0xff] %v372
                %v374 = vld [vmem:[%s150 + $0x798] sm:$0xff]
                %375 = vst [vmem:[%s151 + $0x3d0] sm:$0xff] %v374
                %v376 = vld [vmem:[%s150 + $0x7a0] sm:$0xff]
                %377 = vst [vmem:[%s151 + $0x3d8] sm:$0xff] %v376
                %v378 = vld [vmem:[%s150 + $0x7a8] sm:$0xff]
                %379 = vst [vmem:[%s151 + $0x3e0] sm:$0xff] %v378
                %v380 = vld [vmem:[%s150 + $0x7b0] sm:$0xff]
                %381 = vst [vmem:[%s151 + $0x3e8] sm:$0xff] %v380
                %v382 = vld [vmem:[%s150 + $0x7e8] sm:$0xff]
                %383 = vst [vmem:[%s151 + $0x3f4] sm:$0xff] %v382
                %v384 = vld [vmem:[%s150 + $0x7f0] sm:$0xff]
                %385 = vst [vmem:[%s151 + $0x3fc] sm:$0xff] %v384
                %v386 = vld [vmem:[%s150 + $0x7f8] sm:$0xff]
                %387 = vst [vmem:[%s151 + $0x404] sm:$0xff] %v386
                %v388 = vld [vmem:[%s150 + $0x800] sm:$0xff]
                %389 = vst [vmem:[%s151 + $0x40c] sm:$0xff] %v388
                %v390 = vld [vmem:[%s150 + $0x808] sm:$0xff]
                %391 = vst [vmem:[%s151 + $0x414] sm:$0xff] %v390
                %v392 = vld [vmem:[%s150 + $0x840] sm:$0xff]
                %393 = vst [vmem:[%s151 + $0x420] sm:$0xff] %v392
                %v394 = vld [vmem:[%s150 + $0x848] sm:$0xff]
                %395 = vst [vmem:[%s151 + $0x428] sm:$0xff] %v394
                %v396 = vld [vmem:[%s150 + $0x850] sm:$0xff]
                %397 = vst [vmem:[%s151 + $0x430] sm:$0xff] %v396
                %v398 = vld [vmem:[%s150 + $0x858] sm:$0xff]
                %399 = vst [vmem:[%s151 + $0x438] sm:$0xff] %v398
                %v400 = vld [vmem:[%s150 + $0x860] sm:$0xff]
                %401 = vst [vmem:[%s151 + $0x440] sm:$0xff] %v400
              $region41: #{net_forward.3} parent=35 // loop_footer
                %s149 = sadd.s32 1, %s145
              $region42: #{net_forward.3} parent=35 // loop_footer_branch
                %144 = sbr.rel target = $region38
              $region43: #{net_forward.3} parent=35 // loop_exit
                _
              %s403 = ssub.s32 16, 1
              loop: start=0, step=1, limit=1
              $region44: #{net_forward.3} parent=35 // loop_pre_header
                _
              $region45: #{net_forward.3} parent=35 // loop_header
                %s405 = sphi 0, %s409
                %p406 = scmp.ge.s32.totalorder %s405, 1
                %s410 = sphi %s142, %s142
                %s411 = sphi %s143, %s143
              $region46: #{net_forward.3} parent=35 // loop_header_branch
                %408 = sbr.rel (%p406) target = $region50
              $region47: #{net_forward.3} parent=35 // loop_body
                %v412 = vld [vmem:[%s410] sm:%s403]
                %413 = vst [vmem:[%s411] sm:%s403] %v412
                %v414 = vld [vmem:[%s410 + $0x58] sm:%s403]
                %415 = vst [vmem:[%s411 + $0x2c] sm:%s403] %v414
                %v416 = vld [vmem:[%s410 + $0xb0] sm:%s403]
                %417 = vst [vmem:[%s411 + $0x58] sm:%s403] %v416
                %v418 = vld [vmem:[%s410 + $0x108] sm:%s403]
                %419 = vst [vmem:[%s411 + $0x84] sm:%s403] %v418
                %v420 = vld [vmem:[%s410 + $0x160] sm:%s403]
                %421 = vst [vmem:[%s411 + $0xb0] sm:%s403] %v420
                %v422 = vld [vmem:[%s410 + $0x1b8] sm:%s403]
                %423 = vst [vmem:[%s411 + $0xdc] sm:%s403] %v422
                %v424 = vld [vmem:[%s410 + $0x210] sm:%s403]
                %425 = vst [vmem:[%s411 + $0x108] sm:%s403] %v424
                %v426 = vld [vmem:[%s410 + $0x268] sm:%s403]
                %427 = vst [vmem:[%s411 + $0x134] sm:%s403] %v426
                %v428 = vld [vmem:[%s410 + $0x2c0] sm:%s403]
                %429 = vst [vmem:[%s411 + $0x160] sm:%s403] %v428
                %v430 = vld [vmem:[%s410 + $0x318] sm:%s403]
                %431 = vst [vmem:[%s411 + $0x18c] sm:%s403] %v430
                %v432 = vld [vmem:[%s410 + $0x370] sm:%s403]
                %433 = vst [vmem:[%s411 + $0x1b8] sm:%s403] %v432
                %v434 = vld [vmem:[%s410 + $0x3c8] sm:%s403]
                %435 = vst [vmem:[%s411 + $0x1e4] sm:%s403] %v434
                %v436 = vld [vmem:[%s410 + $0x420] sm:%s403]
                %437 = vst [vmem:[%s411 + $0x210] sm:%s403] %v436
                %v438 = vld [vmem:[%s410 + $0x478] sm:%s403]
                %439 = vst [vmem:[%s411 + $0x23c] sm:%s403] %v438
                %v440 = vld [vmem:[%s410 + $0x4d0] sm:%s403]
                %441 = vst [vmem:[%s411 + $0x268] sm:%s403] %v440
                %v442 = vld [vmem:[%s410 + $0x528] sm:%s403]
                %443 = vst [vmem:[%s411 + $0x294] sm:%s403] %v442
                %v444 = vld [vmem:[%s410 + $0x580] sm:%s403]
                %445 = vst [vmem:[%s411 + $0x2c0] sm:%s403] %v444
                %v446 = vld [vmem:[%s410 + $0x5d8] sm:%s403]
                %447 = vst [vmem:[%s411 + $0x2ec] sm:%s403] %v446
                %v448 = vld [vmem:[%s410 + $0x630] sm:%s403]
                %449 = vst [vmem:[%s411 + $0x318] sm:%s403] %v448
                %v450 = vld [vmem:[%s410 + $0x688] sm:%s403]
                %451 = vst [vmem:[%s411 + $0x344] sm:%s403] %v450
                %v452 = vld [vmem:[%s410 + $0x6e0] sm:%s403]
                %453 = vst [vmem:[%s411 + $0x370] sm:%s403] %v452
                %v454 = vld [vmem:[%s410 + $0x738] sm:%s403]
                %455 = vst [vmem:[%s411 + $0x39c] sm:%s403] %v454
                %v456 = vld [vmem:[%s410 + $0x790] sm:%s403]
                %457 = vst [vmem:[%s411 + $0x3c8] sm:%s403] %v456
                %v458 = vld [vmem:[%s410 + $0x7e8] sm:%s403]
                %459 = vst [vmem:[%s411 + $0x3f4] sm:%s403] %v458
                %v460 = vld [vmem:[%s410 + $0x840] sm:%s403]
                %461 = vst [vmem:[%s411 + $0x420] sm:%s403] %v460
              $region48: #{net_forward.3} parent=35 // loop_footer
                %s409 = sadd.s32 1, %s405
              $region49: #{net_forward.3} parent=35 // loop_footer_branch
                %404 = sbr.rel target = $region45
              $region50: #{net_forward.3} parent=35 // loop_exit
                _
            $region36: #{net_forward.3} parent=31 // pred_fallthru
              _
          $region32: #{net_forward.3} parent=27 // pred_fallthru
            _
          %462 = vnop
        $region28: #{net_forward.3} parent=23 // pred_fallthru
          _
      $region24: #{net_forward.3} parent=5 // pred_fallthru
        _
      %p463 = scmp.le.s32.totalorder 1, %s9
      %p464 = scmp.lt.s32.totalorder %s9, 3
      %p465 = pnand %p463, %p464
      %p466 = pneg %p465
      // Predicated region
      $region51: #{net_forward.3} parent=5 // pred_check
        _
      $region52: #{net_forward.3} parent=5 // pred_check_branch
        %468 = sbr.rel (%p465) target = $region54
      $region53: #{net_forward.3} parent=5 // pred_region
        %s469 = ssub.s32 %s9, 1
        %s470 = sand.u32 %s64, 1
        %s471 = sand.u32 %s64, 1
        %s472 = smul.addr %s471, 1100
        %s473 = scalar_lea.vmem [#allocation2], %s472
        // Predicated region
        $region55: #{net_forward.3} parent=53 // pred_check
          %p474 = pneg %p77
        $region56: #{net_forward.3} parent=53 // pred_check_branch
          %476 = sbr.rel (%p474) target = $region58
        $region57: #{net_forward.3} parent=53 // pred_region
          _
        $region58: #{net_forward.3} parent=53 // pred_fallthru
          _
        %p477 = pneg %p30
        %p478 = pneg %p27
        %p479 = pneg %p51
        %p480 = pneg %p48
        %s481 = sand.u32 %s64, 1
        %s482 = sand.u32 %s64, 1
        %s483 = smul.addr %s482, 1100
        %s484 = scalar_lea.vmem [#allocation2], %s483
        %p485 = pneg %p77
        %p486 = pneg %p74
        %p487 = pneg %p103
        %p488 = pneg %p100
        %s489 = sand.u32 %s90, 1
        %s490 = sand.u32 %s90, 1
        %s491 = smul.addr %s490, 176
        %s492 = scalar_lea.vmem [#allocation3], %s491
        %s493 = smul.u32 11, %s14
        %s494 = smul.u32 11, %s14
        %v496 = vld [vmem:[%s0] sm:$0xff]
        %v497 = vld [vmem:[%s0 + $0x8] sm:$0xff]
        %v498 = vld [vmem:[%s0 + $0x10] sm:$0xff]
        %v499 = vld [vmem:[%s0 + $0x18] sm:$0xff]
        %v500 = vld [vmem:[%s473] sm:$0xff]
        %v501 = vld [vmem:[%s473 + $0x8] sm:$0xff]
        %v502 = vld [vmem:[%s473 + $0x10] sm:$0xff]
        %v503 = vld [vmem:[%s473 + $0x18] sm:$0xff]
        %v504 = vld [vmem:[%s473 + $0x20] sm:$0xff]
        %v505 = vld [vmem:[%s473 + $0x28] sm:$0xf]
        %v506 = vld [vmem:[%s473 + $0x2c] sm:$0xff]
        %v507 = vld [vmem:[%s473 + $0x34] sm:$0xff]
        %v508 = vld [vmem:[%s473 + $0x3c] sm:$0xff]
        %v509 = vld [vmem:[%s473 + $0x44] sm:$0xff]
        %v510 = vld [vmem:[%s473 + $0x4c] sm:$0xff]
        %v511 = vld [vmem:[%s473 + $0x54] sm:$0xf]
        %v512 = vld [vmem:[%s473 + $0x58] sm:$0xff]
        %v513 = vld [vmem:[%s473 + $0x60] sm:$0xff]
        %v514 = vld [vmem:[%s473 + $0x68] sm:$0xff]
        %v515 = vld [vmem:[%s473 + $0x70] sm:$0xff]
        %v516 = vld [vmem:[%s473 + $0x78] sm:$0xff]
        %v517 = vld [vmem:[%s473 + $0x80] sm:$0xf]
        %v518 = vld [vmem:[%s473 + $0x84] sm:$0xff]
        %v519 = vld [vmem:[%s473 + $0x8c] sm:$0xff]
        %v520 = vld [vmem:[%s473 + $0x94] sm:$0xff]
        %v521 = vld [vmem:[%s473 + $0x9c] sm:$0xff]
        %v522 = vld [vmem:[%s473 + $0xa4] sm:$0xff]
        %v523 = vld [vmem:[%s473 + $0xac] sm:$0xf]
        %v524 = vld [vmem:[%s473 + $0xb0] sm:$0xff]
        %v525 = vld [vmem:[%s473 + $0xb8] sm:$0xff]
        %v526 = vld [vmem:[%s473 + $0xc0] sm:$0xff]
        %v527 = vld [vmem:[%s473 + $0xc8] sm:$0xff]
        %v528 = vld [vmem:[%s473 + $0xd0] sm:$0xff]
        %v529 = vld [vmem:[%s473 + $0xd8] sm:$0xf]
        %v530 = vld [vmem:[%s473 + $0xdc] sm:$0xff]
        %v531 = vld [vmem:[%s473 + $0xe4] sm:$0xff]
        %v532 = vld [vmem:[%s473 + $0xec] sm:$0xff]
        %v533 = vld [vmem:[%s473 + $0xf4] sm:$0xff]
        %v534 = vld [vmem:[%s473 + $0xfc] sm:$0xff]
        %v535 = vld [vmem:[%s473 + $0x104] sm:$0xf]
        %v536 = vld [vmem:[%s473 + $0x108] sm:$0xff]
        %v537 = vld [vmem:[%s473 + $0x110] sm:$0xff]
        %v538 = vld [vmem:[%s473 + $0x118] sm:$0xff]
        %v539 = vld [vmem:[%s473 + $0x120] sm:$0xff]
        %v540 = vld [vmem:[%s473 + $0x128] sm:$0xff]
        %v541 = vld [vmem:[%s473 + $0x130] sm:$0xf]
        %v542 = vld [vmem:[%s473 + $0x134] sm:$0xff]
        %v543 = vld [vmem:[%s473 + $0x13c] sm:$0xff]
        %v544 = vld [vmem:[%s473 + $0x144] sm:$0xff]
        %v545 = vld [vmem:[%s473 + $0x14c] sm:$0xff]
        %v546 = vld [vmem:[%s473 + $0x154] sm:$0xff]
        %v547 = vld [vmem:[%s473 + $0x15c] sm:$0xf]
        %v548 = vld [vmem:[%s473 + $0x160] sm:$0xff]
        %v549 = vld [vmem:[%s473 + $0x168] sm:$0xff]
        %v550 = vld [vmem:[%s473 + $0x170] sm:$0xff]
        %v551 = vld [vmem:[%s473 + $0x178] sm:$0xff]
        %v552 = vld [vmem:[%s473 + $0x180] sm:$0xff]
        %v553 = vld [vmem:[%s473 + $0x188] sm:$0xf]
        %v554 = vld [vmem:[%s473 + $0x18c] sm:$0xff]
        %v555 = vld [vmem:[%s473 + $0x194] sm:$0xff]
        %v556 = vld [vmem:[%s473 + $0x19c] sm:$0xff]
        %v557 = vld [vmem:[%s473 + $0x1a4] sm:$0xff]
        %v558 = vld [vmem:[%s473 + $0x1ac] sm:$0xff]
        %v559 = vld [vmem:[%s473 + $0x1b4] sm:$0xf]
        %v560 = vld [vmem:[%s473 + $0x1b8] sm:$0xff]
        %v561 = vld [vmem:[%s473 + $0x1c0] sm:$0xff]
        %v562 = vld [vmem:[%s473 + $0x1c8] sm:$0xff]
        %v563 = vld [vmem:[%s473 + $0x1d0] sm:$0xff]
        %v564 = vld [vmem:[%s473 + $0x1d8] sm:$0xff]
        %v565 = vld [vmem:[%s473 + $0x1e0] sm:$0xf]
        %v566 = vld [vmem:[%s473 + $0x1e4] sm:$0xff]
        %v567 = vld [vmem:[%s473 + $0x1ec] sm:$0xff]
        %v568 = vld [vmem:[%s473 + $0x1f4] sm:$0xff]
        %v569 = vld [vmem:[%s473 + $0x1fc] sm:$0xff]
        %v570 = vld [vmem:[%s473 + $0x204] sm:$0xff]
        %v571 = vld [vmem:[%s473 + $0x20c] sm:$0xf]
        %v572 = vld [vmem:[%s473 + $0x210] sm:$0xff]
        %v573 = vld [vmem:[%s473 + $0x218] sm:$0xff]
        %v574 = vld [vmem:[%s473 + $0x220] sm:$0xff]
        %v575 = vld [vmem:[%s473 + $0x228] sm:$0xff]
        %v576 = vld [vmem:[%s473 + $0x230] sm:$0xff]
        %v577 = vld [vmem:[%s473 + $0x238] sm:$0xf]
        %v578 = vld [vmem:[%s473 + $0x23c] sm:$0xff]
        %v579 = vld [vmem:[%s473 + $0x244] sm:$0xff]
        %v580 = vld [vmem:[%s473 + $0x24c] sm:$0xff]
        %v581 = vld [vmem:[%s473 + $0x254] sm:$0xff]
        %v582 = vld [vmem:[%s473 + $0x25c] sm:$0xff]
        %v583 = vld [vmem:[%s473 + $0x264] sm:$0xf]
        %v584 = vld [vmem:[%s473 + $0x268] sm:$0xff]
        %v585 = vld [vmem:[%s473 + $0x270] sm:$0xff]
        %v586 = vld [vmem:[%s473 + $0x278] sm:$0xff]
        %v587 = vld [vmem:[%s473 + $0x280] sm:$0xff]
        %v588 = vld [vmem:[%s473 + $0x288] sm:$0xff]
        %v589 = vld [vmem:[%s473 + $0x290] sm:$0xf]
        %v590 = vld [vmem:[%s473 + $0x294] sm:$0xff]
        %v591 = vld [vmem:[%s473 + $0x29c] sm:$0xff]
        %v592 = vld [vmem:[%s473 + $0x2a4] sm:$0xff]
        %v593 = vld [vmem:[%s473 + $0x2ac] sm:$0xff]
        %v594 = vld [vmem:[%s473 + $0x2b4] sm:$0xff]
        %v595 = vld [vmem:[%s473 + $0x2bc] sm:$0xf]
        %v596 = vld [vmem:[%s473 + $0x2c0] sm:$0xff]
        %v597 = vld [vmem:[%s473 + $0x2c8] sm:$0xff]
        %v598 = vld [vmem:[%s473 + $0x2d0] sm:$0xff]
        %v599 = vld [vmem:[%s473 + $0x2d8] sm:$0xff]
        %v600 = vld [vmem:[%s473 + $0x2e0] sm:$0xff]
        %v601 = vld [vmem:[%s473 + $0x2e8] sm:$0xf]
        %v602 = vld [vmem:[%s473 + $0x2ec] sm:$0xff]
        %v603 = vld [vmem:[%s473 + $0x2f4] sm:$0xff]
        %v604 = vld [vmem:[%s473 + $0x2fc] sm:$0xff]
        %v605 = vld [vmem:[%s473 + $0x304] sm:$0xff]
        %v606 = vld [vmem:[%s473 + $0x30c] sm:$0xff]
        %v607 = vld [vmem:[%s473 + $0x314] sm:$0xf]
        %v608 = vld [vmem:[%s473 + $0x318] sm:$0xff]
        %v609 = vld [vmem:[%s473 + $0x320] sm:$0xff]
        %v610 = vld [vmem:[%s473 + $0x328] sm:$0xff]
        %v611 = vld [vmem:[%s473 + $0x330] sm:$0xff]
        %v612 = vld [vmem:[%s473 + $0x338] sm:$0xff]
        %v613 = vld [vmem:[%s473 + $0x340] sm:$0xf]
        %v614 = vld [vmem:[%s473 + $0x344] sm:$0xff]
        %v615 = vld [vmem:[%s473 + $0x34c] sm:$0xff]
        %v616 = vld [vmem:[%s473 + $0x354] sm:$0xff]
        %v617 = vld [vmem:[%s473 + $0x35c] sm:$0xff]
        %v618 = vld [vmem:[%s473 + $0x364] sm:$0xff]
        %v619 = vld [vmem:[%s473 + $0x36c] sm:$0xf]
        %v620 = vld [vmem:[%s473 + $0x370] sm:$0xff]
        %v621 = vld [vmem:[%s473 + $0x378] sm:$0xff]
        %v622 = vld [vmem:[%s473 + $0x380] sm:$0xff]
        %v623 = vld [vmem:[%s473 + $0x388] sm:$0xff]
        %v624 = vld [vmem:[%s473 + $0x390] sm:$0xff]
        %v625 = vld [vmem:[%s473 + $0x398] sm:$0xf]
        %v626 = vld [vmem:[%s473 + $0x39c] sm:$0xff]
        %v627 = vld [vmem:[%s473 + $0x3a4] sm:$0xff]
        %v628 = vld [vmem:[%s473 + $0x3ac] sm:$0xff]
        %v629 = vld [vmem:[%s473 + $0x3b4] sm:$0xff]
        %v630 = vld [vmem:[%s473 + $0x3bc] sm:$0xff]
        %v631 = vld [vmem:[%s473 + $0x3c4] sm:$0xf]
        %v632 = vld [vmem:[%s473 + $0x3c8] sm:$0xff]
        %v633 = vld [vmem:[%s473 + $0x3d0] sm:$0xff]
        %v634 = vld [vmem:[%s473 + $0x3d8] sm:$0xff]
        %v635 = vld [vmem:[%s473 + $0x3e0] sm:$0xff]
        %v636 = vld [vmem:[%s473 + $0x3e8] sm:$0xff]
        %v637 = vld [vmem:[%s473 + $0x3f0] sm:$0xf]
        %v638 = vld [vmem:[%s473 + $0x3f4] sm:$0xff]
        %v639 = vld [vmem:[%s473 + $0x3fc] sm:$0xff]
        %v640 = vld [vmem:[%s473 + $0x404] sm:$0xff]
        %v641 = vld [vmem:[%s473 + $0x40c] sm:$0xff]
        %v642 = vld [vmem:[%s473 + $0x414] sm:$0xff]
        %v643 = vld [vmem:[%s473 + $0x41c] sm:$0xf]
        %v644 = vld [vmem:[%s473 + $0x420] sm:$0x33]
        %v645 = vld [vmem:[%s473 + $0x428] sm:$0x33]
        %v646 = vld [vmem:[%s473 + $0x430] sm:$0x33]
        %v647 = vld [vmem:[%s473 + $0x438] sm:$0x33]
        %v648 = vld [vmem:[%s473 + $0x440] sm:$0x33]
        %v649 = vld [vmem:[%s473 + $0x448] sm:$0x3]
        %v650 = vld [vmem:[%s1] sm:$0xff]
        %v651 = vld [vmem:[%s1 + $0x8] sm:$0xff]
        %v652 = vld [vmem:[%s1 + $0x10] sm:$0xff]
        %v653 = vld [vmem:[%s1 + $0x18] sm:$0xff]
        %655 = vset.pattern.permute.xlu0 0
        %656 = vperm.xlu0 %655, %v650
        %v657 = vpop.permute.xlu0 %656
        %660 = vset.pattern.permute.xlu0 0
        %661 = vperm.xlu0 %660, %v651
        %v662 = vpop.permute.xlu0 %661
        %665 = vset.pattern.permute.xlu0 0
        %666 = vperm.xlu0 %665, %v652
        %v667 = vpop.permute.xlu0 %666
        %670 = vset.pattern.permute.xlu0 0
        %671 = vperm.xlu0 %670, %v653
        %v672 = vpop.permute.xlu0 %671
        %v678 = vunpack.c.l.b16 %v496
        %v679 = vunpack.c.h.b16 %v496
        %v680 = vunpack.c.l.b16 %v497
        %v681 = vunpack.c.h.b16 %v497
        %v682 = vunpack.c.l.b16 %v498
        %v683 = vunpack.c.h.b16 %v498
        %v684 = vunpack.c.l.b16 %v499
        %v685 = vunpack.c.h.b16 %v499
        %v686 = vpack.c.b16 %v680, %v678
        %v687 = vpack.c.b16 %v681, %v679
        %v688 = vpack.c.b16 %v684, %v682
        %v689 = vpack.c.b16 %v685, %v683
        %v842 = vunpack.c.l.b16 %v500
        %v843 = vunpack.c.h.b16 %v500
        %v844 = vunpack.c.l.b16 %v501
        %v845 = vunpack.c.h.b16 %v501
        %v846 = vunpack.c.l.b16 %v502
        %v847 = vunpack.c.h.b16 %v502
        %v848 = vunpack.c.l.b16 %v503
        %v849 = vunpack.c.h.b16 %v503
        %v850 = vunpack.c.l.b16 %v504
        %v851 = vunpack.c.h.b16 %v504
        %v852 = vunpack.c.l.b16 %v505
        %v853 = vunpack.c.l.b16 %v506
        %v854 = vunpack.c.h.b16 %v506
        %v855 = vunpack.c.l.b16 %v507
        %v856 = vunpack.c.h.b16 %v507
        %v857 = vunpack.c.l.b16 %v508
        %v858 = vunpack.c.h.b16 %v508
        %v859 = vunpack.c.l.b16 %v509
        %v860 = vunpack.c.h.b16 %v509
        %v861 = vunpack.c.l.b16 %v510
        %v862 = vunpack.c.h.b16 %v510
        %v863 = vunpack.c.l.b16 %v511
        %v864 = vunpack.c.l.b16 %v512
        %v865 = vunpack.c.h.b16 %v512
        %v866 = vunpack.c.l.b16 %v513
        %v867 = vunpack.c.h.b16 %v513
        %v868 = vunpack.c.l.b16 %v514
        %v869 = vunpack.c.h.b16 %v514
        %v870 = vunpack.c.l.b16 %v515
        %v871 = vunpack.c.h.b16 %v515
        %v872 = vunpack.c.l.b16 %v516
        %v873 = vunpack.c.h.b16 %v516
        %v874 = vunpack.c.l.b16 %v517
        %v875 = vunpack.c.l.b16 %v518
        %v876 = vunpack.c.h.b16 %v518
        %v877 = vunpack.c.l.b16 %v519
        %v878 = vunpack.c.h.b16 %v519
        %v879 = vunpack.c.l.b16 %v520
        %v880 = vunpack.c.h.b16 %v520
        %v881 = vunpack.c.l.b16 %v521
        %v882 = vunpack.c.h.b16 %v521
        %v883 = vunpack.c.l.b16 %v522
        %v884 = vunpack.c.h.b16 %v522
        %v885 = vunpack.c.l.b16 %v523
        %v886 = vunpack.c.l.b16 %v524
        %v887 = vunpack.c.h.b16 %v524
        %v888 = vunpack.c.l.b16 %v525
        %v889 = vunpack.c.h.b16 %v525
        %v890 = vunpack.c.l.b16 %v526
        %v891 = vunpack.c.h.b16 %v526
        %v892 = vunpack.c.l.b16 %v527
        %v893 = vunpack.c.h.b16 %v527
        %v894 = vunpack.c.l.b16 %v528
        %v895 = vunpack.c.h.b16 %v528
        %v896 = vunpack.c.l.b16 %v529
        %v897 = vunpack.c.l.b16 %v530
        %v898 = vunpack.c.h.b16 %v530
        %v899 = vunpack.c.l.b16 %v531
        %v900 = vunpack.c.h.b16 %v531
        %v901 = vunpack.c.l.b16 %v532
        %v902 = vunpack.c.h.b16 %v532
        %v903 = vunpack.c.l.b16 %v533
        %v904 = vunpack.c.h.b16 %v533
        %v905 = vunpack.c.l.b16 %v534
        %v906 = vunpack.c.h.b16 %v534
        %v907 = vunpack.c.l.b16 %v535
        %v908 = vunpack.c.l.b16 %v536
        %v909 = vunpack.c.h.b16 %v536
        %v910 = vunpack.c.l.b16 %v537
        %v911 = vunpack.c.h.b16 %v537
        %v912 = vunpack.c.l.b16 %v538
        %v913 = vunpack.c.h.b16 %v538
        %v914 = vunpack.c.l.b16 %v539
        %v915 = vunpack.c.h.b16 %v539
        %v916 = vunpack.c.l.b16 %v540
        %v917 = vunpack.c.h.b16 %v540
        %v918 = vunpack.c.l.b16 %v541
        %v919 = vunpack.c.l.b16 %v542
        %v920 = vunpack.c.h.b16 %v542
        %v921 = vunpack.c.l.b16 %v543
        %v922 = vunpack.c.h.b16 %v543
        %v923 = vunpack.c.l.b16 %v544
        %v924 = vunpack.c.h.b16 %v544
        %v925 = vunpack.c.l.b16 %v545
        %v926 = vunpack.c.h.b16 %v545
        %v927 = vunpack.c.l.b16 %v546
        %v928 = vunpack.c.h.b16 %v546
        %v929 = vunpack.c.l.b16 %v547
        %v930 = vunpack.c.l.b16 %v548
        %v931 = vunpack.c.h.b16 %v548
        %v932 = vunpack.c.l.b16 %v549
        %v933 = vunpack.c.h.b16 %v549
        %v934 = vunpack.c.l.b16 %v550
        %v935 = vunpack.c.h.b16 %v550
        %v936 = vunpack.c.l.b16 %v551
        %v937 = vunpack.c.h.b16 %v551
        %v938 = vunpack.c.l.b16 %v552
        %v939 = vunpack.c.h.b16 %v552
        %v940 = vunpack.c.l.b16 %v553
        %v941 = vunpack.c.l.b16 %v554
        %v942 = vunpack.c.h.b16 %v554
        %v943 = vunpack.c.l.b16 %v555
        %v944 = vunpack.c.h.b16 %v555
        %v945 = vunpack.c.l.b16 %v556
        %v946 = vunpack.c.h.b16 %v556
        %v947 = vunpack.c.l.b16 %v557
        %v948 = vunpack.c.h.b16 %v557
        %v949 = vunpack.c.l.b16 %v558
        %v950 = vunpack.c.h.b16 %v558
        %v951 = vunpack.c.l.b16 %v559
        %v952 = vunpack.c.l.b16 %v560
        %v953 = vunpack.c.h.b16 %v560
        %v954 = vunpack.c.l.b16 %v561
        %v955 = vunpack.c.h.b16 %v561
        %v956 = vunpack.c.l.b16 %v562
        %v957 = vunpack.c.h.b16 %v562
        %v958 = vunpack.c.l.b16 %v563
        %v959 = vunpack.c.h.b16 %v563
        %v960 = vunpack.c.l.b16 %v564
        %v961 = vunpack.c.h.b16 %v564
        %v962 = vunpack.c.l.b16 %v565
        %v963 = vunpack.c.l.b16 %v566
        %v964 = vunpack.c.h.b16 %v566
        %v965 = vunpack.c.l.b16 %v567
        %v966 = vunpack.c.h.b16 %v567
        %v967 = vunpack.c.l.b16 %v568
        %v968 = vunpack.c.h.b16 %v568
        %v969 = vunpack.c.l.b16 %v569
        %v970 = vunpack.c.h.b16 %v569
        %v971 = vunpack.c.l.b16 %v570
        %v972 = vunpack.c.h.b16 %v570
        %v973 = vunpack.c.l.b16 %v571
        %v974 = vunpack.c.l.b16 %v572
        %v975 = vunpack.c.h.b16 %v572
        %v976 = vunpack.c.l.b16 %v573
        %v977 = vunpack.c.h.b16 %v573
        %v978 = vunpack.c.l.b16 %v574
        %v979 = vunpack.c.h.b16 %v574
        %v980 = vunpack.c.l.b16 %v575
        %v981 = vunpack.c.h.b16 %v575
        %v982 = vunpack.c.l.b16 %v576
        %v983 = vunpack.c.h.b16 %v576
        %v984 = vunpack.c.l.b16 %v577
        %v985 = vunpack.c.l.b16 %v578
        %v986 = vunpack.c.h.b16 %v578
        %v987 = vunpack.c.l.b16 %v579
        %v988 = vunpack.c.h.b16 %v579
        %v989 = vunpack.c.l.b16 %v580
        %v990 = vunpack.c.h.b16 %v580
        %v991 = vunpack.c.l.b16 %v581
        %v992 = vunpack.c.h.b16 %v581
        %v993 = vunpack.c.l.b16 %v582
        %v994 = vunpack.c.h.b16 %v582
        %v995 = vunpack.c.l.b16 %v583
        %v996 = vunpack.c.l.b16 %v584
        %v997 = vunpack.c.h.b16 %v584
        %v998 = vunpack.c.l.b16 %v585
        %v999 = vunpack.c.h.b16 %v585
        %v1000 = vunpack.c.l.b16 %v586
        %v1001 = vunpack.c.h.b16 %v586
        %v1002 = vunpack.c.l.b16 %v587
        %v1003 = vunpack.c.h.b16 %v587
        %v1004 = vunpack.c.l.b16 %v588
        %v1005 = vunpack.c.h.b16 %v588
        %v1006 = vunpack.c.l.b16 %v589
        %v1007 = vunpack.c.l.b16 %v590
        %v1008 = vunpack.c.h.b16 %v590
        %v1009 = vunpack.c.l.b16 %v591
        %v1010 = vunpack.c.h.b16 %v591
        %v1011 = vunpack.c.l.b16 %v592
        %v1012 = vunpack.c.h.b16 %v592
        %v1013 = vunpack.c.l.b16 %v593
        %v1014 = vunpack.c.h.b16 %v593
        %v1015 = vunpack.c.l.b16 %v594
        %v1016 = vunpack.c.h.b16 %v594
        %v1017 = vunpack.c.l.b16 %v595
        %v1018 = vunpack.c.l.b16 %v596
        %v1019 = vunpack.c.h.b16 %v596
        %v1020 = vunpack.c.l.b16 %v597
        %v1021 = vunpack.c.h.b16 %v597
        %v1022 = vunpack.c.l.b16 %v598
        %v1023 = vunpack.c.h.b16 %v598
        %v1024 = vunpack.c.l.b16 %v599
        %v1025 = vunpack.c.h.b16 %v599
        %v1026 = vunpack.c.l.b16 %v600
        %v1027 = vunpack.c.h.b16 %v600
        %v1028 = vunpack.c.l.b16 %v601
        %v1029 = vunpack.c.l.b16 %v602
        %v1030 = vunpack.c.h.b16 %v602
        %v1031 = vunpack.c.l.b16 %v603
        %v1032 = vunpack.c.h.b16 %v603
        %v1033 = vunpack.c.l.b16 %v604
        %v1034 = vunpack.c.h.b16 %v604
        %v1035 = vunpack.c.l.b16 %v605
        %v1036 = vunpack.c.h.b16 %v605
        %v1037 = vunpack.c.l.b16 %v606
        %v1038 = vunpack.c.h.b16 %v606
        %v1039 = vunpack.c.l.b16 %v607
        %v1040 = vunpack.c.l.b16 %v608
        %v1041 = vunpack.c.h.b16 %v608
        %v1042 = vunpack.c.l.b16 %v609
        %v1043 = vunpack.c.h.b16 %v609
        %v1044 = vunpack.c.l.b16 %v610
        %v1045 = vunpack.c.h.b16 %v610
        %v1046 = vunpack.c.l.b16 %v611
        %v1047 = vunpack.c.h.b16 %v611
        %v1048 = vunpack.c.l.b16 %v612
        %v1049 = vunpack.c.h.b16 %v612
        %v1050 = vunpack.c.l.b16 %v613
        %v1051 = vunpack.c.l.b16 %v614
        %v1052 = vunpack.c.h.b16 %v614
        %v1053 = vunpack.c.l.b16 %v615
        %v1054 = vunpack.c.h.b16 %v615
        %v1055 = vunpack.c.l.b16 %v616
        %v1056 = vunpack.c.h.b16 %v616
        %v1057 = vunpack.c.l.b16 %v617
        %v1058 = vunpack.c.h.b16 %v617
        %v1059 = vunpack.c.l.b16 %v618
        %v1060 = vunpack.c.h.b16 %v618
        %v1061 = vunpack.c.l.b16 %v619
        %v1062 = vunpack.c.l.b16 %v620
        %v1063 = vunpack.c.h.b16 %v620
        %v1064 = vunpack.c.l.b16 %v621
        %v1065 = vunpack.c.h.b16 %v621
        %v1066 = vunpack.c.l.b16 %v622
        %v1067 = vunpack.c.h.b16 %v622
        %v1068 = vunpack.c.l.b16 %v623
        %v1069 = vunpack.c.h.b16 %v623
        %v1070 = vunpack.c.l.b16 %v624
        %v1071 = vunpack.c.h.b16 %v624
        %v1072 = vunpack.c.l.b16 %v625
        %v1073 = vunpack.c.l.b16 %v626
        %v1074 = vunpack.c.h.b16 %v626
        %v1075 = vunpack.c.l.b16 %v627
        %v1076 = vunpack.c.h.b16 %v627
        %v1077 = vunpack.c.l.b16 %v628
        %v1078 = vunpack.c.h.b16 %v628
        %v1079 = vunpack.c.l.b16 %v629
        %v1080 = vunpack.c.h.b16 %v629
        %v1081 = vunpack.c.l.b16 %v630
        %v1082 = vunpack.c.h.b16 %v630
        %v1083 = vunpack.c.l.b16 %v631
        %v1084 = vunpack.c.l.b16 %v632
        %v1085 = vunpack.c.h.b16 %v632
        %v1086 = vunpack.c.l.b16 %v633
        %v1087 = vunpack.c.h.b16 %v633
        %v1088 = vunpack.c.l.b16 %v634
        %v1089 = vunpack.c.h.b16 %v634
        %v1090 = vunpack.c.l.b16 %v635
        %v1091 = vunpack.c.h.b16 %v635
        %v1092 = vunpack.c.l.b16 %v636
        %v1093 = vunpack.c.h.b16 %v636
        %v1094 = vunpack.c.l.b16 %v637
        %v1095 = vunpack.c.l.b16 %v638
        %v1096 = vunpack.c.h.b16 %v638
        %v1097 = vunpack.c.l.b16 %v639
        %v1098 = vunpack.c.h.b16 %v639
        %v1099 = vunpack.c.l.b16 %v640
        %v1100 = vunpack.c.h.b16 %v640
        %v1101 = vunpack.c.l.b16 %v641
        %v1102 = vunpack.c.h.b16 %v641
        %v1103 = vunpack.c.l.b16 %v642
        %v1104 = vunpack.c.h.b16 %v642
        %v1105 = vunpack.c.l.b16 %v643
        %v1106 = vunpack.c.l.b16 %v644
        %v1107 = vunpack.c.h.b16 %v644
        %v1108 = vunpack.c.l.b16 %v645
        %v1109 = vunpack.c.h.b16 %v645
        %v1110 = vunpack.c.l.b16 %v646
        %v1111 = vunpack.c.h.b16 %v646
        %v1112 = vunpack.c.l.b16 %v647
        %v1113 = vunpack.c.h.b16 %v647
        %v1114 = vunpack.c.l.b16 %v648
        %v1115 = vunpack.c.h.b16 %v648
        %v1116 = vunpack.c.l.b16 %v649
        %v1117 = vpack.c.b16 %v853, %v842
        %v1118 = vpack.c.b16 %v854, %v843
        %v1119 = vpack.c.b16 %v855, %v844
        %v1120 = vpack.c.b16 %v856, %v845
        %v1121 = vpack.c.b16 %v857, %v846
        %v1122 = vpack.c.b16 %v858, %v847
        %v1123 = vpack.c.b16 %v859, %v848
        %v1124 = vpack.c.b16 %v860, %v849
        %v1125 = vpack.c.b16 %v861, %v850
        %v1126 = vpack.c.b16 %v862, %v851
        %v1127 = vpack.c.b16 %v863, %v852
        %v1128 = vpack.c.b16 %v875, %v864
        %v1129 = vpack.c.b16 %v876, %v865
        %v1130 = vpack.c.b16 %v877, %v866
        %v1131 = vpack.c.b16 %v878, %v867
        %v1132 = vpack.c.b16 %v879, %v868
        %v1133 = vpack.c.b16 %v880, %v869
        %v1134 = vpack.c.b16 %v881, %v870
        %v1135 = vpack.c.b16 %v882, %v871
        %v1136 = vpack.c.b16 %v883, %v872
        %v1137 = vpack.c.b16 %v884, %v873
        %v1138 = vpack.c.b16 %v885, %v874
        %v1139 = vpack.c.b16 %v897, %v886
        %v1140 = vpack.c.b16 %v898, %v887
        %v1141 = vpack.c.b16 %v899, %v888
        %v1142 = vpack.c.b16 %v900, %v889
        %v1143 = vpack.c.b16 %v901, %v890
        %v1144 = vpack.c.b16 %v902, %v891
        %v1145 = vpack.c.b16 %v903, %v892
        %v1146 = vpack.c.b16 %v904, %v893
        %v1147 = vpack.c.b16 %v905, %v894
        %v1148 = vpack.c.b16 %v906, %v895
        %v1149 = vpack.c.b16 %v907, %v896
        %v1150 = vpack.c.b16 %v919, %v908
        %v1151 = vpack.c.b16 %v920, %v909
        %v1152 = vpack.c.b16 %v921, %v910
        %v1153 = vpack.c.b16 %v922, %v911
        %v1154 = vpack.c.b16 %v923, %v912
        %v1155 = vpack.c.b16 %v924, %v913
        %v1156 = vpack.c.b16 %v925, %v914
        %v1157 = vpack.c.b16 %v926, %v915
        %v1158 = vpack.c.b16 %v927, %v916
        %v1159 = vpack.c.b16 %v928, %v917
        %v1160 = vpack.c.b16 %v929, %v918
        %v1161 = vpack.c.b16 %v941, %v930
        %v1162 = vpack.c.b16 %v942, %v931
        %v1163 = vpack.c.b16 %v943, %v932
        %v1164 = vpack.c.b16 %v944, %v933
        %v1165 = vpack.c.b16 %v945, %v934
        %v1166 = vpack.c.b16 %v946, %v935
        %v1167 = vpack.c.b16 %v947, %v936
        %v1168 = vpack.c.b16 %v948, %v937
        %v1169 = vpack.c.b16 %v949, %v938
        %v1170 = vpack.c.b16 %v950, %v939
        %v1171 = vpack.c.b16 %v951, %v940
        %v1172 = vpack.c.b16 %v963, %v952
        %v1173 = vpack.c.b16 %v964, %v953
        %v1174 = vpack.c.b16 %v965, %v954
        %v1175 = vpack.c.b16 %v966, %v955
        %v1176 = vpack.c.b16 %v967, %v956
        %v1177 = vpack.c.b16 %v968, %v957
        %v1178 = vpack.c.b16 %v969, %v958
        %v1179 = vpack.c.b16 %v970, %v959
        %v1180 = vpack.c.b16 %v971, %v960
        %v1181 = vpack.c.b16 %v972, %v961
        %v1182 = vpack.c.b16 %v973, %v962
        %v1183 = vpack.c.b16 %v985, %v974
        %v1184 = vpack.c.b16 %v986, %v975
        %v1185 = vpack.c.b16 %v987, %v976
        %v1186 = vpack.c.b16 %v988, %v977
        %v1187 = vpack.c.b16 %v989, %v978
        %v1188 = vpack.c.b16 %v990, %v979
        %v1189 = vpack.c.b16 %v991, %v980
        %v1190 = vpack.c.b16 %v992, %v981
        %v1191 = vpack.c.b16 %v993, %v982
        %v1192 = vpack.c.b16 %v994, %v983
        %v1193 = vpack.c.b16 %v995, %v984
        %v1194 = vpack.c.b16 %v1007, %v996
        %v1195 = vpack.c.b16 %v1008, %v997
        %v1196 = vpack.c.b16 %v1009, %v998
        %v1197 = vpack.c.b16 %v1010, %v999
        %v1198 = vpack.c.b16 %v1011, %v1000
        %v1199 = vpack.c.b16 %v1012, %v1001
        %v1200 = vpack.c.b16 %v1013, %v1002
        %v1201 = vpack.c.b16 %v1014, %v1003
        %v1202 = vpack.c.b16 %v1015, %v1004
        %v1203 = vpack.c.b16 %v1016, %v1005
        %v1204 = vpack.c.b16 %v1017, %v1006
        %v1205 = vpack.c.b16 %v1029, %v1018
        %v1206 = vpack.c.b16 %v1030, %v1019
        %v1207 = vpack.c.b16 %v1031, %v1020
        %v1208 = vpack.c.b16 %v1032, %v1021
        %v1209 = vpack.c.b16 %v1033, %v1022
        %v1210 = vpack.c.b16 %v1034, %v1023
        %v1211 = vpack.c.b16 %v1035, %v1024
        %v1212 = vpack.c.b16 %v1036, %v1025
        %v1213 = vpack.c.b16 %v1037, %v1026
        %v1214 = vpack.c.b16 %v1038, %v1027
        %v1215 = vpack.c.b16 %v1039, %v1028
        %v1216 = vpack.c.b16 %v1051, %v1040
        %v1217 = vpack.c.b16 %v1052, %v1041
        %v1218 = vpack.c.b16 %v1053, %v1042
        %v1219 = vpack.c.b16 %v1054, %v1043
        %v1220 = vpack.c.b16 %v1055, %v1044
        %v1221 = vpack.c.b16 %v1056, %v1045
        %v1222 = vpack.c.b16 %v1057, %v1046
        %v1223 = vpack.c.b16 %v1058, %v1047
        %v1224 = vpack.c.b16 %v1059, %v1048
        %v1225 = vpack.c.b16 %v1060, %v1049
        %v1226 = vpack.c.b16 %v1061, %v1050
        %v1227 = vpack.c.b16 %v1073, %v1062
        %v1228 = vpack.c.b16 %v1074, %v1063
        %v1229 = vpack.c.b16 %v1075, %v1064
        %v1230 = vpack.c.b16 %v1076, %v1065
        %v1231 = vpack.c.b16 %v1077, %v1066
        %v1232 = vpack.c.b16 %v1078, %v1067
        %v1233 = vpack.c.b16 %v1079, %v1068
        %v1234 = vpack.c.b16 %v1080, %v1069
        %v1235 = vpack.c.b16 %v1081, %v1070
        %v1236 = vpack.c.b16 %v1082, %v1071
        %v1237 = vpack.c.b16 %v1083, %v1072
        %v1238 = vpack.c.b16 %v1095, %v1084
        %v1239 = vpack.c.b16 %v1096, %v1085
        %v1240 = vpack.c.b16 %v1097, %v1086
        %v1241 = vpack.c.b16 %v1098, %v1087
        %v1242 = vpack.c.b16 %v1099, %v1088
        %v1243 = vpack.c.b16 %v1100, %v1089
        %v1244 = vpack.c.b16 %v1101, %v1090
        %v1245 = vpack.c.b16 %v1102, %v1091
        %v1246 = vpack.c.b16 %v1103, %v1092
        %v1247 = vpack.c.b16 %v1104, %v1093
        %v1248 = vpack.c.b16 %v1105, %v1094
        %v1249 = vpack.c.b16 %v1106, %v1106
        %v1250 = vpack.c.b16 %v1107, %v1107
        %v1251 = vpack.c.b16 %v1108, %v1108
        %v1252 = vpack.c.b16 %v1109, %v1109
        %v1253 = vpack.c.b16 %v1110, %v1110
        %v1254 = vpack.c.b16 %v1111, %v1111
        %v1255 = vpack.c.b16 %v1112, %v1112
        %v1256 = vpack.c.b16 %v1113, %v1113
        %v1257 = vpack.c.b16 %v1114, %v1114
        %v1258 = vpack.c.b16 %v1115, %v1115
        %v1259 = vpack.c.b16 %v1116, %v1116
        %vm1392 = vcmask 556032
        %v1394 = vsel %vm1392, %v687, 0
        %v1397 = vsel %vm1392, %v689, 0
        %vm1399 = vcmask 1041408
        %v1401 = vsel %vm1399, %v1249, 0
        %v1404 = vsel %vm1399, %v1250, 0
        %v1407 = vsel %vm1399, %v1251, 0
        %v1410 = vsel %vm1399, %v1252, 0
        %v1413 = vsel %vm1399, %v1253, 0
        %v1416 = vsel %vm1399, %v1254, 0
        %v1419 = vsel %vm1399, %v1255, 0
        %v1422 = vsel %vm1399, %v1256, 0
        %v1425 = vsel %vm1399, %v1257, 0
        %v1428 = vsel %vm1399, %v1258, 0
        %v1431 = vsel %vm1399, %v1259, 0
        %1433 = vmatpush.bf16.msra.mxu0 %v1194
        %1434 = vmatpush.bf16.msra.mxu0 %v1183
        %1435 = vmatpush.bf16.msra.mxu0 %v1172
        %1436 = vmatpush.bf16.msra.mxu0 %v1161
        %1437 = vmatpush.bf16.msra.mxu0 %v1150
        %1438 = vmatpush.bf16.msra.mxu0 %v1139
        %1439 = vmatpush.bf16.msra.mxu0 %v1128
        %1440 = vmatpush.bf16.msra.mxu0 %v1117
        %1441 = vmatmul.bf16.gmra.mxu0 %v686
        %v1442 = vpop.f32.mrf.mxu0
        %v1443 = vadd.f32 %v657, %v1442
        %v1444 = vpop.f32.mrf.mxu0
        %v1445 = vadd.f32 %v662, %v1444
        %1446 = vmatmul.bf16.gmra.mxu0 %v688
        %v1447 = vpop.f32.mrf.mxu0
        %v1448 = vadd.f32 %v667, %v1447
        %v1449 = vpop.f32.mrf.mxu0
        %v1450 = vadd.f32 %v672, %v1449
        %1451 = vdwg.mxu0
        %1452 = vmatpush.bf16.msra.mxu0 0
        %1453 = vmatpush.bf16.msra.mxu0 0
        %1454 = vmatpush.bf16.msra.mxu0 0
        %1455 = vmatpush.bf16.msra.mxu0 %v1401
        %1456 = vmatpush.bf16.msra.mxu0 %v1238
        %1457 = vmatpush.bf16.msra.mxu0 %v1227
        %1458 = vmatpush.bf16.msra.mxu0 %v1216
        %1459 = vmatpush.bf16.msra.mxu0 %v1205
        %1460 = vmatmul.bf16.gmra.mxu0 %v1394
        %v1461 = vpop.f32.mrf.mxu0
        %v1462 = vadd.f32 %v1443, %v1461
        %v1463 = vpop.f32.mrf.mxu0
        %v1464 = vadd.f32 %v1445, %v1463
        %1465 = vmatmul.bf16.gmra.mxu0 %v1397
        %v1466 = vpop.f32.mrf.mxu0
        %v1467 = vadd.f32 %v1448, %v1466
        %v1468 = vpop.f32.mrf.mxu0
        %v1469 = vadd.f32 %v1450, %v1468
        %1470 = vdwg.mxu0
        %1471 = vmatpush.bf16.msra.mxu0 %v1195
        %1472 = vmatpush.bf16.msra.mxu0 %v1184
        %1473 = vmatpush.bf16.msra.mxu0 %v1173
        %1474 = vmatpush.bf16.msra.mxu0 %v1162
        %1475 = vmatpush.bf16.msra.mxu0 %v1151
        %1476 = vmatpush.bf16.msra.mxu0 %v1140
        %1477 = vmatpush.bf16.msra.mxu0 %v1129
        %1478 = vmatpush.bf16.msra.mxu0 %v1118
        %1479 = vmatmul.bf16.gmra.mxu0 %v686
        %v1480 = vpop.f32.mrf.mxu0
        %v1481 = vadd.f32 %v657, %v1480
        %v1482 = vpop.f32.mrf.mxu0
        %v1483 = vadd.f32 %v662, %v1482
        %1484 = vmatmul.bf16.gmra.mxu0 %v688
        %v1485 = vpop.f32.mrf.mxu0
        %v1486 = vadd.f32 %v667, %v1485
        %v1487 = vpop.f32.mrf.mxu0
        %v1488 = vadd.f32 %v672, %v1487
        %1489 = vdwg.mxu0
        %1490 = vmatpush.bf16.msra.mxu0 0
        %1491 = vmatpush.bf16.msra.mxu0 0
        %1492 = vmatpush.bf16.msra.mxu0 0
        %1493 = vmatpush.bf16.msra.mxu0 %v1404
        %1494 = vmatpush.bf16.msra.mxu0 %v1239
        %1495 = vmatpush.bf16.msra.mxu0 %v1228
        %1496 = vmatpush.bf16.msra.mxu0 %v1217
        %1497 = vmatpush.bf16.msra.mxu0 %v1206
        %1498 = vmatmul.bf16.gmra.mxu0 %v1394
        %v1499 = vpop.f32.mrf.mxu0
        %v1500 = vadd.f32 %v1481, %v1499
        %v1501 = vpop.f32.mrf.mxu0
        %v1502 = vadd.f32 %v1483, %v1501
        %1503 = vmatmul.bf16.gmra.mxu0 %v1397
        %v1504 = vpop.f32.mrf.mxu0
        %v1505 = vadd.f32 %v1486, %v1504
        %v1506 = vpop.f32.mrf.mxu0
        %v1507 = vadd.f32 %v1488, %v1506
        %1508 = vdwg.mxu0
        %1509 = vmatpush.bf16.msra.mxu0 %v1196
        %1510 = vmatpush.bf16.msra.mxu0 %v1185
        %1511 = vmatpush.bf16.msra.mxu0 %v1174
        %1512 = vmatpush.bf16.msra.mxu0 %v1163
        %1513 = vmatpush.bf16.msra.mxu0 %v1152
        %1514 = vmatpush.bf16.msra.mxu0 %v1141
        %1515 = vmatpush.bf16.msra.mxu0 %v1130
        %1516 = vmatpush.bf16.msra.mxu0 %v1119
        %1517 = vmatmul.bf16.gmra.mxu0 %v686
        %v1518 = vpop.f32.mrf.mxu0
        %v1519 = vadd.f32 %v657, %v1518
        %v1520 = vpop.f32.mrf.mxu0
        %v1521 = vadd.f32 %v662, %v1520
        %1522 = vmatmul.bf16.gmra.mxu0 %v688
        %v1523 = vpop.f32.mrf.mxu0
        %v1524 = vadd.f32 %v667, %v1523
        %v1525 = vpop.f32.mrf.mxu0
        %v1526 = vadd.f32 %v672, %v1525
        %1527 = vdwg.mxu0
        %1528 = vmatpush.bf16.msra.mxu0 0
        %1529 = vmatpush.bf16.msra.mxu0 0
        %1530 = vmatpush.bf16.msra.mxu0 0
        %1531 = vmatpush.bf16.msra.mxu0 %v1407
        %1532 = vmatpush.bf16.msra.mxu0 %v1240
        %1533 = vmatpush.bf16.msra.mxu0 %v1229
        %1534 = vmatpush.bf16.msra.mxu0 %v1218
        %1535 = vmatpush.bf16.msra.mxu0 %v1207
        %1536 = vmatmul.bf16.gmra.mxu0 %v1394
        %v1537 = vpop.f32.mrf.mxu0
        %v1538 = vadd.f32 %v1519, %v1537
        %v1539 = vpop.f32.mrf.mxu0
        %v1540 = vadd.f32 %v1521, %v1539
        %1541 = vmatmul.bf16.gmra.mxu0 %v1397
        %v1542 = vpop.f32.mrf.mxu0
        %v1543 = vadd.f32 %v1524, %v1542
        %v1544 = vpop.f32.mrf.mxu0
        %v1545 = vadd.f32 %v1526, %v1544
        %1546 = vdwg.mxu0
        %1547 = vmatpush.bf16.msra.mxu0 %v1197
        %1548 = vmatpush.bf16.msra.mxu0 %v1186
        %1549 = vmatpush.bf16.msra.mxu0 %v1175
        %1550 = vmatpush.bf16.msra.mxu0 %v1164
        %1551 = vmatpush.bf16.msra.mxu0 %v1153
        %1552 = vmatpush.bf16.msra.mxu0 %v1142
        %1553 = vmatpush.bf16.msra.mxu0 %v1131
        %1554 = vmatpush.bf16.msra.mxu0 %v1120
        %1555 = vmatmul.bf16.gmra.mxu0 %v686
        %v1556 = vpop.f32.mrf.mxu0
        %v1557 = vadd.f32 %v657, %v1556
        %v1558 = vpop.f32.mrf.mxu0
        %v1559 = vadd.f32 %v662, %v1558
        %1560 = vmatmul.bf16.gmra.mxu0 %v688
        %v1561 = vpop.f32.mrf.mxu0
        %v1562 = vadd.f32 %v667, %v1561
        %v1563 = vpop.f32.mrf.mxu0
        %v1564 = vadd.f32 %v672, %v1563
        %1565 = vdwg.mxu0
        %1566 = vmatpush.bf16.msra.mxu0 0
        %1567 = vmatpush.bf16.msra.mxu0 0
        %1568 = vmatpush.bf16.msra.mxu0 0
        %1569 = vmatpush.bf16.msra.mxu0 %v1410
        %1570 = vmatpush.bf16.msra.mxu0 %v1241
        %1571 = vmatpush.bf16.msra.mxu0 %v1230
        %1572 = vmatpush.bf16.msra.mxu0 %v1219
        %1573 = vmatpush.bf16.msra.mxu0 %v1208
        %1574 = vmatmul.bf16.gmra.mxu0 %v1394
        %v1575 = vpop.f32.mrf.mxu0
        %v1576 = vadd.f32 %v1557, %v1575
        %v1577 = vpop.f32.mrf.mxu0
        %v1578 = vadd.f32 %v1559, %v1577
        %1579 = vmatmul.bf16.gmra.mxu0 %v1397
        %v1580 = vpop.f32.mrf.mxu0
        %v1581 = vadd.f32 %v1562, %v1580
        %v1582 = vpop.f32.mrf.mxu0
        %v1583 = vadd.f32 %v1564, %v1582
        %1584 = vdwg.mxu0
        %1585 = vmatpush.bf16.msra.mxu0 %v1198
        %1586 = vmatpush.bf16.msra.mxu0 %v1187
        %1587 = vmatpush.bf16.msra.mxu0 %v1176
        %1588 = vmatpush.bf16.msra.mxu0 %v1165
        %1589 = vmatpush.bf16.msra.mxu0 %v1154
        %1590 = vmatpush.bf16.msra.mxu0 %v1143
        %1591 = vmatpush.bf16.msra.mxu0 %v1132
        %1592 = vmatpush.bf16.msra.mxu0 %v1121
        %1593 = vmatmul.bf16.gmra.mxu0 %v686
        %v1594 = vpop.f32.mrf.mxu0
        %v1595 = vadd.f32 %v657, %v1594
        %v1596 = vpop.f32.mrf.mxu0
        %v1597 = vadd.f32 %v662, %v1596
        %1598 = vmatmul.bf16.gmra.mxu0 %v688
        %v1599 = vpop.f32.mrf.mxu0
        %v1600 = vadd.f32 %v667, %v1599
        %v1601 = vpop.f32.mrf.mxu0
        %v1602 = vadd.f32 %v672, %v1601
        %1603 = vdwg.mxu0
        %1604 = vmatpush.bf16.msra.mxu0 0
        %1605 = vmatpush.bf16.msra.mxu0 0
        %1606 = vmatpush.bf16.msra.mxu0 0
        %1607 = vmatpush.bf16.msra.mxu0 %v1413
        %1608 = vmatpush.bf16.msra.mxu0 %v1242
        %1609 = vmatpush.bf16.msra.mxu0 %v1231
        %1610 = vmatpush.bf16.msra.mxu0 %v1220
        %1611 = vmatpush.bf16.msra.mxu0 %v1209
        %1612 = vmatmul.bf16.gmra.mxu0 %v1394
        %v1613 = vpop.f32.mrf.mxu0
        %v1614 = vadd.f32 %v1595, %v1613
        %v1615 = vpop.f32.mrf.mxu0
        %v1616 = vadd.f32 %v1597, %v1615
        %1617 = vmatmul.bf16.gmra.mxu0 %v1397
        %v1618 = vpop.f32.mrf.mxu0
        %v1619 = vadd.f32 %v1600, %v1618
        %v1620 = vpop.f32.mrf.mxu0
        %v1621 = vadd.f32 %v1602, %v1620
        %1622 = vdwg.mxu0
        %1623 = vmatpush.bf16.msra.mxu0 %v1199
        %1624 = vmatpush.bf16.msra.mxu0 %v1188
        %1625 = vmatpush.bf16.msra.mxu0 %v1177
        %1626 = vmatpush.bf16.msra.mxu0 %v1166
        %1627 = vmatpush.bf16.msra.mxu0 %v1155
        %1628 = vmatpush.bf16.msra.mxu0 %v1144
        %1629 = vmatpush.bf16.msra.mxu0 %v1133
        %1630 = vmatpush.bf16.msra.mxu0 %v1122
        %1631 = vmatmul.bf16.gmra.mxu0 %v686
        %v1632 = vpop.f32.mrf.mxu0
        %v1633 = vadd.f32 %v657, %v1632
        %v1634 = vpop.f32.mrf.mxu0
        %v1635 = vadd.f32 %v662, %v1634
        %1636 = vmatmul.bf16.gmra.mxu0 %v688
        %v1637 = vpop.f32.mrf.mxu0
        %v1638 = vadd.f32 %v667, %v1637
        %v1639 = vpop.f32.mrf.mxu0
        %v1640 = vadd.f32 %v672, %v1639
        %1641 = vdwg.mxu0
        %1642 = vmatpush.bf16.msra.mxu0 0
        %1643 = vmatpush.bf16.msra.mxu0 0
        %1644 = vmatpush.bf16.msra.mxu0 0
        %1645 = vmatpush.bf16.msra.mxu0 %v1416
        %1646 = vmatpush.bf16.msra.mxu0 %v1243
        %1647 = vmatpush.bf16.msra.mxu0 %v1232
        %1648 = vmatpush.bf16.msra.mxu0 %v1221
        %1649 = vmatpush.bf16.msra.mxu0 %v1210
        %1650 = vmatmul.bf16.gmra.mxu0 %v1394
        %v1651 = vpop.f32.mrf.mxu0
        %v1652 = vadd.f32 %v1633, %v1651
        %v1653 = vpop.f32.mrf.mxu0
        %v1654 = vadd.f32 %v1635, %v1653
        %1655 = vmatmul.bf16.gmra.mxu0 %v1397
        %v1656 = vpop.f32.mrf.mxu0
        %v1657 = vadd.f32 %v1638, %v1656
        %v1658 = vpop.f32.mrf.mxu0
        %v1659 = vadd.f32 %v1640, %v1658
        %1660 = vdwg.mxu0
        %1661 = vmatpush.bf16.msra.mxu0 %v1200
        %1662 = vmatpush.bf16.msra.mxu0 %v1189
        %1663 = vmatpush.bf16.msra.mxu0 %v1178
        %1664 = vmatpush.bf16.msra.mxu0 %v1167
        %1665 = vmatpush.bf16.msra.mxu0 %v1156
        %1666 = vmatpush.bf16.msra.mxu0 %v1145
        %1667 = vmatpush.bf16.msra.mxu0 %v1134
        %1668 = vmatpush.bf16.msra.mxu0 %v1123
        %1669 = vmatmul.bf16.gmra.mxu0 %v686
        %v1670 = vpop.f32.mrf.mxu0
        %v1671 = vadd.f32 %v657, %v1670
        %v1672 = vpop.f32.mrf.mxu0
        %v1673 = vadd.f32 %v662, %v1672
        %1674 = vmatmul.bf16.gmra.mxu0 %v688
        %v1675 = vpop.f32.mrf.mxu0
        %v1676 = vadd.f32 %v667, %v1675
        %v1677 = vpop.f32.mrf.mxu0
        %v1678 = vadd.f32 %v672, %v1677
        %1679 = vdwg.mxu0
        %1680 = vmatpush.bf16.msra.mxu0 0
        %1681 = vmatpush.bf16.msra.mxu0 0
        %1682 = vmatpush.bf16.msra.mxu0 0
        %1683 = vmatpush.bf16.msra.mxu0 %v1419
        %1684 = vmatpush.bf16.msra.mxu0 %v1244
        %1685 = vmatpush.bf16.msra.mxu0 %v1233
        %1686 = vmatpush.bf16.msra.mxu0 %v1222
        %1687 = vmatpush.bf16.msra.mxu0 %v1211
        %1688 = vmatmul.bf16.gmra.mxu0 %v1394
        %v1689 = vpop.f32.mrf.mxu0
        %v1690 = vadd.f32 %v1671, %v1689
        %v1691 = vpop.f32.mrf.mxu0
        %v1692 = vadd.f32 %v1673, %v1691
        %1693 = vmatmul.bf16.gmra.mxu0 %v1397
        %v1694 = vpop.f32.mrf.mxu0
        %v1695 = vadd.f32 %v1676, %v1694
        %v1696 = vpop.f32.mrf.mxu0
        %v1697 = vadd.f32 %v1678, %v1696
        %1698 = vdwg.mxu0
        %1699 = vmatpush.bf16.msra.mxu0 %v1201
        %1700 = vmatpush.bf16.msra.mxu0 %v1190
        %1701 = vmatpush.bf16.msra.mxu0 %v1179
        %1702 = vmatpush.bf16.msra.mxu0 %v1168
        %1703 = vmatpush.bf16.msra.mxu0 %v1157
        %1704 = vmatpush.bf16.msra.mxu0 %v1146
        %1705 = vmatpush.bf16.msra.mxu0 %v1135
        %1706 = vmatpush.bf16.msra.mxu0 %v1124
        %1707 = vmatmul.bf16.gmra.mxu0 %v686
        %v1708 = vpop.f32.mrf.mxu0
        %v1709 = vadd.f32 %v657, %v1708
        %v1710 = vpop.f32.mrf.mxu0
        %v1711 = vadd.f32 %v662, %v1710
        %1712 = vmatmul.bf16.gmra.mxu0 %v688
        %v1713 = vpop.f32.mrf.mxu0
        %v1714 = vadd.f32 %v667, %v1713
        %v1715 = vpop.f32.mrf.mxu0
        %v1716 = vadd.f32 %v672, %v1715
        %1717 = vdwg.mxu0
        %1718 = vmatpush.bf16.msra.mxu0 0
        %1719 = vmatpush.bf16.msra.mxu0 0
        %1720 = vmatpush.bf16.msra.mxu0 0
        %1721 = vmatpush.bf16.msra.mxu0 %v1422
        %1722 = vmatpush.bf16.msra.mxu0 %v1245
        %1723 = vmatpush.bf16.msra.mxu0 %v1234
        %1724 = vmatpush.bf16.msra.mxu0 %v1223
        %1725 = vmatpush.bf16.msra.mxu0 %v1212
        %1726 = vmatmul.bf16.gmra.mxu0 %v1394
        %v1727 = vpop.f32.mrf.mxu0
        %v1728 = vadd.f32 %v1709, %v1727
        %v1729 = vpop.f32.mrf.mxu0
        %v1730 = vadd.f32 %v1711, %v1729
        %1731 = vmatmul.bf16.gmra.mxu0 %v1397
        %v1732 = vpop.f32.mrf.mxu0
        %v1733 = vadd.f32 %v1714, %v1732
        %v1734 = vpop.f32.mrf.mxu0
        %v1735 = vadd.f32 %v1716, %v1734
        %1736 = vdwg.mxu0
        %1737 = vmatpush.bf16.msra.mxu0 %v1202
        %1738 = vmatpush.bf16.msra.mxu0 %v1191
        %1739 = vmatpush.bf16.msra.mxu0 %v1180
        %1740 = vmatpush.bf16.msra.mxu0 %v1169
        %1741 = vmatpush.bf16.msra.mxu0 %v1158
        %1742 = vmatpush.bf16.msra.mxu0 %v1147
        %1743 = vmatpush.bf16.msra.mxu0 %v1136
        %1744 = vmatpush.bf16.msra.mxu0 %v1125
        %1745 = vmatmul.bf16.gmra.mxu0 %v686
        %v1746 = vpop.f32.mrf.mxu0
        %v1747 = vadd.f32 %v657, %v1746
        %v1748 = vpop.f32.mrf.mxu0
        %v1749 = vadd.f32 %v662, %v1748
        %1750 = vmatmul.bf16.gmra.mxu0 %v688
        %v1751 = vpop.f32.mrf.mxu0
        %v1752 = vadd.f32 %v667, %v1751
        %v1753 = vpop.f32.mrf.mxu0
        %v1754 = vadd.f32 %v672, %v1753
        %1755 = vdwg.mxu0
        %1756 = vmatpush.bf16.msra.mxu0 0
        %1757 = vmatpush.bf16.msra.mxu0 0
        %1758 = vmatpush.bf16.msra.mxu0 0
        %1759 = vmatpush.bf16.msra.mxu0 %v1425
        %1760 = vmatpush.bf16.msra.mxu0 %v1246
        %1761 = vmatpush.bf16.msra.mxu0 %v1235
        %1762 = vmatpush.bf16.msra.mxu0 %v1224
        %1763 = vmatpush.bf16.msra.mxu0 %v1213
        %1764 = vmatmul.bf16.gmra.mxu0 %v1394
        %v1765 = vpop.f32.mrf.mxu0
        %v1766 = vadd.f32 %v1747, %v1765
        %v1767 = vpop.f32.mrf.mxu0
        %v1768 = vadd.f32 %v1749, %v1767
        %1769 = vmatmul.bf16.gmra.mxu0 %v1397
        %v1770 = vpop.f32.mrf.mxu0
        %v1771 = vadd.f32 %v1752, %v1770
        %v1772 = vpop.f32.mrf.mxu0
        %v1773 = vadd.f32 %v1754, %v1772
        %1774 = vdwg.mxu0
        %1775 = vmatpush.bf16.msra.mxu0 %v1203
        %1776 = vmatpush.bf16.msra.mxu0 %v1192
        %1777 = vmatpush.bf16.msra.mxu0 %v1181
        %1778 = vmatpush.bf16.msra.mxu0 %v1170
        %1779 = vmatpush.bf16.msra.mxu0 %v1159
        %1780 = vmatpush.bf16.msra.mxu0 %v1148
        %1781 = vmatpush.bf16.msra.mxu0 %v1137
        %1782 = vmatpush.bf16.msra.mxu0 %v1126
        %1783 = vmatmul.bf16.gmra.mxu0 %v686
        %v1784 = vpop.f32.mrf.mxu0
        %v1785 = vadd.f32 %v657, %v1784
        %v1786 = vpop.f32.mrf.mxu0
        %v1787 = vadd.f32 %v662, %v1786
        %1788 = vmatmul.bf16.gmra.mxu0 %v688
        %v1789 = vpop.f32.mrf.mxu0
        %v1790 = vadd.f32 %v667, %v1789
        %v1791 = vpop.f32.mrf.mxu0
        %v1792 = vadd.f32 %v672, %v1791
        %1793 = vdwg.mxu0
        %1794 = vmatpush.bf16.msra.mxu0 0
        %1795 = vmatpush.bf16.msra.mxu0 0
        %1796 = vmatpush.bf16.msra.mxu0 0
        %1797 = vmatpush.bf16.msra.mxu0 %v1428
        %1798 = vmatpush.bf16.msra.mxu0 %v1247
        %1799 = vmatpush.bf16.msra.mxu0 %v1236
        %1800 = vmatpush.bf16.msra.mxu0 %v1225
        %1801 = vmatpush.bf16.msra.mxu0 %v1214
        %1802 = vmatmul.bf16.gmra.mxu0 %v1394
        %v1803 = vpop.f32.mrf.mxu0
        %v1804 = vadd.f32 %v1785, %v1803
        %v1805 = vpop.f32.mrf.mxu0
        %v1806 = vadd.f32 %v1787, %v1805
        %1807 = vmatmul.bf16.gmra.mxu0 %v1397
        %v1808 = vpop.f32.mrf.mxu0
        %v1809 = vadd.f32 %v1790, %v1808
        %v1810 = vpop.f32.mrf.mxu0
        %v1811 = vadd.f32 %v1792, %v1810
        %1812 = vdwg.mxu0
        %1813 = vmatpush.bf16.msra.mxu0 %v1204
        %1814 = vmatpush.bf16.msra.mxu0 %v1193
        %1815 = vmatpush.bf16.msra.mxu0 %v1182
        %1816 = vmatpush.bf16.msra.mxu0 %v1171
        %1817 = vmatpush.bf16.msra.mxu0 %v1160
        %1818 = vmatpush.bf16.msra.mxu0 %v1149
        %1819 = vmatpush.bf16.msra.mxu0 %v1138
        %1820 = vmatpush.bf16.msra.mxu0 %v1127
        %1821 = vmatmul.bf16.gmra.mxu0 %v686
        %v1822 = vpop.f32.mrf.mxu0
        %v1823 = vadd.f32 %v657, %v1822
        %v1824 = vpop.f32.mrf.mxu0
        %v1825 = vadd.f32 %v662, %v1824
        %1826 = vmatmul.bf16.gmra.mxu0 %v688
        %v1827 = vpop.f32.mrf.mxu0
        %v1828 = vadd.f32 %v667, %v1827
        %v1829 = vpop.f32.mrf.mxu0
        %v1830 = vadd.f32 %v672, %v1829
        %1831 = vdwg.mxu0
        %1832 = vmatpush.bf16.msra.mxu0 0
        %1833 = vmatpush.bf16.msra.mxu0 0
        %1834 = vmatpush.bf16.msra.mxu0 0
        %1835 = vmatpush.bf16.msra.mxu0 %v1431
        %1836 = vmatpush.bf16.msra.mxu0 %v1248
        %1837 = vmatpush.bf16.msra.mxu0 %v1237
        %1838 = vmatpush.bf16.msra.mxu0 %v1226
        %1839 = vmatpush.bf16.msra.mxu0 %v1215
        %1840 = vmatmul.bf16.gmra.mxu0 %v1394
        %v1841 = vpop.f32.mrf.mxu0
        %v1842 = vadd.f32 %v1823, %v1841
        %v1843 = vpop.f32.mrf.mxu0
        %v1844 = vadd.f32 %v1825, %v1843
        %1845 = vmatmul.bf16.gmra.mxu0 %v1397
        %v1846 = vpop.f32.mrf.mxu0
        %v1847 = vadd.f32 %v1828, %v1846
        %v1848 = vpop.f32.mrf.mxu0
        %v1849 = vadd.f32 %v1830, %v1848
        %1850 = vdwg.mxu0
        %vm1851 = vcmp.gt.f32.partialorder %v1462, 0.0
        %vm1852 = vcmp.gt.f32.partialorder %v1500, 0.0
        %vm1853 = vcmp.gt.f32.partialorder %v1538, 0.0
        %vm1854 = vcmp.gt.f32.partialorder %v1576, 0.0
        %vm1855 = vcmp.gt.f32.partialorder %v1614, 0.0
        %vm1856 = vcmp.gt.f32.partialorder %v1652, 0.0
        %vm1857 = vcmp.gt.f32.partialorder %v1690, 0.0
        %vm1858 = vcmp.gt.f32.partialorder %v1728, 0.0
        %vm1859 = vcmp.gt.f32.partialorder %v1766, 0.0
        %vm1860 = vcmp.gt.f32.partialorder %v1804, 0.0
        %vm1861 = vcmp.gt.f32.partialorder %v1842, 0.0
        %vm1862 = vcmp.gt.f32.partialorder %v1464, 0.0
        %vm1863 = vcmp.gt.f32.partialorder %v1502, 0.0
        %vm1864 = vcmp.gt.f32.partialorder %v1540, 0.0
        %vm1865 = vcmp.gt.f32.partialorder %v1578, 0.0
        %vm1866 = vcmp.gt.f32.partialorder %v1616, 0.0
        %vm1867 = vcmp.gt.f32.partialorder %v1654, 0.0
        %vm1868 = vcmp.gt.f32.partialorder %v1692, 0.0
        %vm1869 = vcmp.gt.f32.partialorder %v1730, 0.0
        %vm1870 = vcmp.gt.f32.partialorder %v1768, 0.0
        %vm1871 = vcmp.gt.f32.partialorder %v1806, 0.0
        %vm1872 = vcmp.gt.f32.partialorder %v1844, 0.0
        %vm1873 = vcmp.gt.f32.partialorder %v1467, 0.0
        %vm1874 = vcmp.gt.f32.partialorder %v1505, 0.0
        %vm1875 = vcmp.gt.f32.partialorder %v1543, 0.0
        %vm1876 = vcmp.gt.f32.partialorder %v1581, 0.0
        %vm1877 = vcmp.gt.f32.partialorder %v1619, 0.0
        %vm1878 = vcmp.gt.f32.partialorder %v1657, 0.0
        %vm1879 = vcmp.gt.f32.partialorder %v1695, 0.0
        %vm1880 = vcmp.gt.f32.partialorder %v1733, 0.0
        %vm1881 = vcmp.gt.f32.partialorder %v1771, 0.0
        %vm1882 = vcmp.gt.f32.partialorder %v1809, 0.0
        %vm1883 = vcmp.gt.f32.partialorder %v1847, 0.0
        %vm1884 = vcmp.gt.f32.partialorder %v1469, 0.0
        %vm1885 = vcmp.gt.f32.partialorder %v1507, 0.0
        %vm1886 = vcmp.gt.f32.partialorder %v1545, 0.0
        %vm1887 = vcmp.gt.f32.partialorder %v1583, 0.0
        %vm1888 = vcmp.gt.f32.partialorder %v1621, 0.0
        %vm1889 = vcmp.gt.f32.partialorder %v1659, 0.0
        %vm1890 = vcmp.gt.f32.partialorder %v1697, 0.0
        %vm1891 = vcmp.gt.f32.partialorder %v1735, 0.0
        %vm1892 = vcmp.gt.f32.partialorder %v1773, 0.0
        %vm1893 = vcmp.gt.f32.partialorder %v1811, 0.0
        %vm1894 = vcmp.gt.f32.partialorder %v1849, 0.0
        %v1895 = vmul.f32 %v1462, 0.01
        %v1896 = vmul.f32 %v1500, 0.01
        %v1897 = vmul.f32 %v1538, 0.01
        %v1898 = vmul.f32 %v1576, 0.01
        %v1899 = vmul.f32 %v1614, 0.01
        %v1900 = vmul.f32 %v1652, 0.01
        %v1901 = vmul.f32 %v1690, 0.01
        %v1902 = vmul.f32 %v1728, 0.01
        %v1903 = vmul.f32 %v1766, 0.01
        %v1904 = vmul.f32 %v1804, 0.01
        %v1905 = vmul.f32 %v1842, 0.01
        %v1906 = vmul.f32 %v1464, 0.01
        %v1907 = vmul.f32 %v1502, 0.01
        %v1908 = vmul.f32 %v1540, 0.01
        %v1909 = vmul.f32 %v1578, 0.01
        %v1910 = vmul.f32 %v1616, 0.01
        %v1911 = vmul.f32 %v1654, 0.01
        %v1912 = vmul.f32 %v1692, 0.01
        %v1913 = vmul.f32 %v1730, 0.01
        %v1914 = vmul.f32 %v1768, 0.01
        %v1915 = vmul.f32 %v1806, 0.01
        %v1916 = vmul.f32 %v1844, 0.01
        %v1917 = vmul.f32 %v1467, 0.01
        %v1918 = vmul.f32 %v1505, 0.01
        %v1919 = vmul.f32 %v1543, 0.01
        %v1920 = vmul.f32 %v1581, 0.01
        %v1921 = vmul.f32 %v1619, 0.01
        %v1922 = vmul.f32 %v1657, 0.01
        %v1923 = vmul.f32 %v1695, 0.01
        %v1924 = vmul.f32 %v1733, 0.01
        %v1925 = vmul.f32 %v1771, 0.01
        %v1926 = vmul.f32 %v1809, 0.01
        %v1927 = vmul.f32 %v1847, 0.01
        %v1928 = vmul.f32 %v1469, 0.01
        %v1929 = vmul.f32 %v1507, 0.01
        %v1930 = vmul.f32 %v1545, 0.01
        %v1931 = vmul.f32 %v1583, 0.01
        %v1932 = vmul.f32 %v1621, 0.01
        %v1933 = vmul.f32 %v1659, 0.01
        %v1934 = vmul.f32 %v1697, 0.01
        %v1935 = vmul.f32 %v1735, 0.01
        %v1936 = vmul.f32 %v1773, 0.01
        %v1937 = vmul.f32 %v1811, 0.01
        %v1938 = vmul.f32 %v1849, 0.01
        %v1939 = vsel %vm1851, %v1462, %v1895
        %v1940 = vsel %vm1852, %v1500, %v1896
        %v1941 = vsel %vm1853, %v1538, %v1897
        %v1942 = vsel %vm1854, %v1576, %v1898
        %v1943 = vsel %vm1855, %v1614, %v1899
        %v1944 = vsel %vm1856, %v1652, %v1900
        %v1945 = vsel %vm1857, %v1690, %v1901
        %v1946 = vsel %vm1858, %v1728, %v1902
        %v1947 = vsel %vm1859, %v1766, %v1903
        %v1948 = vsel %vm1860, %v1804, %v1904
        %v1949 = vsel %vm1861, %v1842, %v1905
        %v1950 = vsel %vm1862, %v1464, %v1906
        %v1951 = vsel %vm1863, %v1502, %v1907
        %v1952 = vsel %vm1864, %v1540, %v1908
        %v1953 = vsel %vm1865, %v1578, %v1909
        %v1954 = vsel %vm1866, %v1616, %v1910
        %v1955 = vsel %vm1867, %v1654, %v1911
        %v1956 = vsel %vm1868, %v1692, %v1912
        %v1957 = vsel %vm1869, %v1730, %v1913
        %v1958 = vsel %vm1870, %v1768, %v1914
        %v1959 = vsel %vm1871, %v1806, %v1915
        %v1960 = vsel %vm1872, %v1844, %v1916
        %v1961 = vsel %vm1873, %v1467, %v1917
        %v1962 = vsel %vm1874, %v1505, %v1918
        %v1963 = vsel %vm1875, %v1543, %v1919
        %v1964 = vsel %vm1876, %v1581, %v1920
        %v1965 = vsel %vm1877, %v1619, %v1921
        %v1966 = vsel %vm1878, %v1657, %v1922
        %v1967 = vsel %vm1879, %v1695, %v1923
        %v1968 = vsel %vm1880, %v1733, %v1924
        %v1969 = vsel %vm1881, %v1771, %v1925
        %v1970 = vsel %vm1882, %v1809, %v1926
        %v1971 = vsel %vm1883, %v1847, %v1927
        %v1972 = vsel %vm1884, %v1469, %v1928
        %v1973 = vsel %vm1885, %v1507, %v1929
        %v1974 = vsel %vm1886, %v1545, %v1930
        %v1975 = vsel %vm1887, %v1583, %v1931
        %v1976 = vsel %vm1888, %v1621, %v1932
        %v1977 = vsel %vm1889, %v1659, %v1933
        %v1978 = vsel %vm1890, %v1697, %v1934
        %v1979 = vsel %vm1891, %v1735, %v1935
        %v1980 = vsel %vm1892, %v1773, %v1936
        %v1981 = vsel %vm1893, %v1811, %v1937
        %v1982 = vsel %vm1894, %v1849, %v1938
        %v1983 = vpack.c.bf16 %v1940, %v1939
        %v1984 = vpack.c.bf16 %v1942, %v1941
        %v1985 = vpack.c.bf16 %v1944, %v1943
        %v1986 = vpack.c.bf16 %v1946, %v1945
        %v1987 = vpack.c.bf16 %v1948, %v1947
        %v1988 = vpack.c.bf16 %v1949, %v1949
        %v1989 = vpack.c.bf16 %v1951, %v1950
        %v1990 = vpack.c.bf16 %v1953, %v1952
        %v1991 = vpack.c.bf16 %v1955, %v1954
        %v1992 = vpack.c.bf16 %v1957, %v1956
        %v1993 = vpack.c.bf16 %v1959, %v1958
        %v1994 = vpack.c.bf16 %v1960, %v1960
        %v1995 = vpack.c.bf16 %v1962, %v1961
        %v1996 = vpack.c.bf16 %v1964, %v1963
        %v1997 = vpack.c.bf16 %v1966, %v1965
        %v1998 = vpack.c.bf16 %v1968, %v1967
        %v1999 = vpack.c.bf16 %v1970, %v1969
        %v2000 = vpack.c.bf16 %v1971, %v1971
        %v2001 = vpack.c.bf16 %v1973, %v1972
        %v2002 = vpack.c.bf16 %v1975, %v1974
        %v2003 = vpack.c.bf16 %v1977, %v1976
        %v2004 = vpack.c.bf16 %v1979, %v1978
        %v2005 = vpack.c.bf16 %v1981, %v1980
        %v2006 = vpack.c.bf16 %v1982, %v1982
        %2007 = vst [vmem:[%s492] sm:$0xff] %v1983
        %2008 = vst [vmem:[%s492 + $0x8] sm:$0xff] %v1984
        %2009 = vst [vmem:[%s492 + $0x10] sm:$0xff] %v1985
        %2010 = vst [vmem:[%s492 + $0x18] sm:$0xff] %v1986
        %2011 = vst [vmem:[%s492 + $0x20] sm:$0xff] %v1987
        %2012 = vst [vmem:[%s492 + $0x28] sm:$0xf] %v1988
        %2013 = vst [vmem:[%s492 + $0x2c] sm:$0xff] %v1989
        %2014 = vst [vmem:[%s492 + $0x34] sm:$0xff] %v1990
        %2015 = vst [vmem:[%s492 + $0x3c] sm:$0xff] %v1991
        %2016 = vst [vmem:[%s492 + $0x44] sm:$0xff] %v1992
        %2017 = vst [vmem:[%s492 + $0x4c] sm:$0xff] %v1993
        %2018 = vst [vmem:[%s492 + $0x54] sm:$0xf] %v1994
        %2019 = vst [vmem:[%s492 + $0x58] sm:$0xff] %v1995
        %2020 = vst [vmem:[%s492 + $0x60] sm:$0xff] %v1996
        %2021 = vst [vmem:[%s492 + $0x68] sm:$0xff] %v1997
        %2022 = vst [vmem:[%s492 + $0x70] sm:$0xff] %v1998
        %2023 = vst [vmem:[%s492 + $0x78] sm:$0xff] %v1999
        %2024 = vst [vmem:[%s492 + $0x80] sm:$0xf] %v2000
        %2025 = vst [vmem:[%s492 + $0x84] sm:$0xff] %v2001
        %2026 = vst [vmem:[%s492 + $0x8c] sm:$0xff] %v2002
        %2027 = vst [vmem:[%s492 + $0x94] sm:$0xff] %v2003
        %2028 = vst [vmem:[%s492 + $0x9c] sm:$0xff] %v2004
        %2029 = vst [vmem:[%s492 + $0xa4] sm:$0xff] %v2005
        %2030 = vst [vmem:[%s492 + $0xac] sm:$0xf] %v2006
        %s2031 = sand.u32 %s90, 1
        %s2032 = sand.u32 %s90, 1
        %s2033 = smul.addr %s2032, 176
        %s2034 = scalar_lea.vmem [#allocation3], %s2033
        // Predicated region
        $region59: #{net_forward.3} parent=53 // pred_check
          %p2035 = pneg %p100
        $region60: #{net_forward.3} parent=53 // pred_check_branch
          %2037 = sbr.rel (%p2035) target = $region62
        $region61: #{net_forward.3} parent=53 // pred_region
          %s2038 = smul.u32 11, %s14
          %s2039 = smul.addr %s2038, 4
          %s2040 = scalar_lea.vmem %s3, %s2039
          // Predicated region
          $region63: #{net_forward.3} parent=61 // pred_check
            _
          $region64: #{net_forward.3} parent=61 // pred_check_branch
            %2042 = sbr.rel (0) target = $region66
          $region65: #{net_forward.3} parent=61 // pred_region
            // Predicated region
            $region67: #{net_forward.3} parent=65 // pred_check
              _
            $region68: #{net_forward.3} parent=65 // pred_check_branch
              %2044 = sbr.rel (0) target = $region70
            $region69: #{net_forward.3} parent=65 // pred_region
              %s2045 = scalar_lea.vmem %s2034, 40 [#allocation3]
              %s2046 = scalar_lea.vmem %s2040, 40
              loop: start=0, step=1, limit=1
              $region71: #{net_forward.3} parent=69 // loop_pre_header
                _
              $region72: #{net_forward.3} parent=69 // loop_header
                %s2048 = sphi 0, %s2052
                %p2049 = scmp.ge.s32.totalorder %s2048, 1
                %s2053 = sphi %s2034, %s2034
                %s2054 = sphi %s2040, %s2040
              $region73: #{net_forward.3} parent=69 // loop_header_branch
                %2051 = sbr.rel (%p2049) target = $region77
              $region74: #{net_forward.3} parent=69 // loop_body
                %v2055 = vld [vmem:[%s2053] sm:$0xff]
                %2056 = vst [vmem:[%s2054] sm:$0xff] %v2055
                %v2057 = vld [vmem:[%s2053 + $0x8] sm:$0xff]
                %2058 = vst [vmem:[%s2054 + $0x8] sm:$0xff] %v2057
                %v2059 = vld [vmem:[%s2053 + $0x10] sm:$0xff]
                %2060 = vst [vmem:[%s2054 + $0x10] sm:$0xff] %v2059
                %v2061 = vld [vmem:[%s2053 + $0x18] sm:$0xff]
                %2062 = vst [vmem:[%s2054 + $0x18] sm:$0xff] %v2061
                %v2063 = vld [vmem:[%s2053 + $0x20] sm:$0xff]
                %2064 = vst [vmem:[%s2054 + $0x20] sm:$0xff] %v2063
                %v2065 = vld [vmem:[%s2053 + $0x2c] sm:$0xff]
                %2066 = vst [vmem:[%s2054 + $0x58] sm:$0xff] %v2065
                %v2067 = vld [vmem:[%s2053 + $0x34] sm:$0xff]
                %2068 = vst [vmem:[%s2054 + $0x60] sm:$0xff] %v2067
                %v2069 = vld [vmem:[%s2053 + $0x3c] sm:$0xff]
                %2070 = vst [vmem:[%s2054 + $0x68] sm:$0xff] %v2069
                %v2071 = vld [vmem:[%s2053 + $0x44] sm:$0xff]
                %2072 = vst [vmem:[%s2054 + $0x70] sm:$0xff] %v2071
                %v2073 = vld [vmem:[%s2053 + $0x4c] sm:$0xff]
                %2074 = vst [vmem:[%s2054 + $0x78] sm:$0xff] %v2073
                %v2075 = vld [vmem:[%s2053 + $0x58] sm:$0xff]
                %2076 = vst [vmem:[%s2054 + $0xb0] sm:$0xff] %v2075
                %v2077 = vld [vmem:[%s2053 + $0x60] sm:$0xff]
                %2078 = vst [vmem:[%s2054 + $0xb8] sm:$0xff] %v2077
                %v2079 = vld [vmem:[%s2053 + $0x68] sm:$0xff]
                %2080 = vst [vmem:[%s2054 + $0xc0] sm:$0xff] %v2079
                %v2081 = vld [vmem:[%s2053 + $0x70] sm:$0xff]
                %2082 = vst [vmem:[%s2054 + $0xc8] sm:$0xff] %v2081
                %v2083 = vld [vmem:[%s2053 + $0x78] sm:$0xff]
                %2084 = vst [vmem:[%s2054 + $0xd0] sm:$0xff] %v2083
                %v2085 = vld [vmem:[%s2053 + $0x84] sm:$0xff]
                %2086 = vst [vmem:[%s2054 + $0x108] sm:$0xff] %v2085
                %v2087 = vld [vmem:[%s2053 + $0x8c] sm:$0xff]
                %2088 = vst [vmem:[%s2054 + $0x110] sm:$0xff] %v2087
                %v2089 = vld [vmem:[%s2053 + $0x94] sm:$0xff]
                %2090 = vst [vmem:[%s2054 + $0x118] sm:$0xff] %v2089
                %v2091 = vld [vmem:[%s2053 + $0x9c] sm:$0xff]
                %2092 = vst [vmem:[%s2054 + $0x120] sm:$0xff] %v2091
                %v2093 = vld [vmem:[%s2053 + $0xa4] sm:$0xff]
                %2094 = vst [vmem:[%s2054 + $0x128] sm:$0xff] %v2093
              $region75: #{net_forward.3} parent=69 // loop_footer
                %s2052 = sadd.s32 1, %s2048
              $region76: #{net_forward.3} parent=69 // loop_footer_branch
                %2047 = sbr.rel target = $region72
              $region77: #{net_forward.3} parent=69 // loop_exit
                _
              %s2096 = ssub.s32 16, 1
              loop: start=0, step=1, limit=1
              $region78: #{net_forward.3} parent=69 // loop_pre_header
                _
              $region79: #{net_forward.3} parent=69 // loop_header
                %s2098 = sphi 0, %s2102
                %p2099 = scmp.ge.s32.totalorder %s2098, 1
                %s2103 = sphi %s2045, %s2045
                %s2104 = sphi %s2046, %s2046
              $region80: #{net_forward.3} parent=69 // loop_header_branch
                %2101 = sbr.rel (%p2099) target = $region84
              $region81: #{net_forward.3} parent=69 // loop_body
                %v2105 = vld [vmem:[%s2103] sm:%s2096]
                %2106 = vst [vmem:[%s2104] sm:%s2096] %v2105
                %v2107 = vld [vmem:[%s2103 + $0x2c] sm:%s2096]
                %2108 = vst [vmem:[%s2104 + $0x58] sm:%s2096] %v2107
                %v2109 = vld [vmem:[%s2103 + $0x58] sm:%s2096]
                %2110 = vst [vmem:[%s2104 + $0xb0] sm:%s2096] %v2109
                %v2111 = vld [vmem:[%s2103 + $0x84] sm:%s2096]
                %2112 = vst [vmem:[%s2104 + $0x108] sm:%s2096] %v2111
              $region82: #{net_forward.3} parent=69 // loop_footer
                %s2102 = sadd.s32 1, %s2098
              $region83: #{net_forward.3} parent=69 // loop_footer_branch
                %2097 = sbr.rel target = $region79
              $region84: #{net_forward.3} parent=69 // loop_exit
                _
            $region70: #{net_forward.3} parent=65 // pred_fallthru
              _
          $region66: #{net_forward.3} parent=61 // pred_fallthru
            _
          %2113 = vnop
        $region62: #{net_forward.3} parent=53 // pred_fallthru
          _
      $region54: #{net_forward.3} parent=5 // pred_fallthru
        _
      %p2114 = scmp.le.s32.totalorder 2, %s9
      // Predicated region
      $region85: #{net_forward.3} parent=5 // pred_check
        %p2115 = pneg %p2114
      $region86: #{net_forward.3} parent=5 // pred_check_branch
        %2117 = sbr.rel (%p2115) target = $region88
      $region87: #{net_forward.3} parent=5 // pred_region
        %s2118 = ssub.s32 %s9, 2
        // Predicated region
        $region89: #{net_forward.3} parent=87 // pred_check
          %p2119 = pneg %p106
        $region90: #{net_forward.3} parent=87 // pred_check_branch
          %2121 = sbr.rel (%p2119) target = $region92
        $region91: #{net_forward.3} parent=87 // pred_region
          %s2122 = sand.u32 %s91, 1
          %s2123 = sand.u32 %s91, 1
          %s2124 = smul.addr %s2123, 176
          %s2125 = scalar_lea.vmem [#allocation3], %s2124
        $region92: #{net_forward.3} parent=87 // pred_fallthru
          _
      $region88: #{net_forward.3} parent=5 // pred_fallthru
        _
    $region6: #{net_forward.3} parent=1 // loop_footer
      %s13 = sadd.s32 1, %s9
    $region7: #{net_forward.3} parent=1 // loop_footer_branch
      %8 = sbr.rel target = $region3
    $region8: #{net_forward.3} parent=1 // loop_exit
      _

// kernel: net_forward.4
$region0: #{net_forward.4}
  #allocation0 [shape = 'u32[]', space=smem, size = 0x4, offset = 0x4, fixed_abs, tag = 'smem constant byte address 0x4 - core index']
  #allocation1 [shape = 'u32[72,128]{1,0:T(1,128)}', space=vmem, size = 0x9000, scoped, tag = 'internal scratch']
  %s0 = inlined_call_operand.vmem [shape: bf16[16,800], index: 0, kind: input, shape index: {}]
  %s1 = inlined_call_operand.vmem [shape: f32[16,1], index: 1, kind: input, shape index: {}]
  %s2 = inlined_call_operand.vmem [shape: bf16[800,512], index: 2, kind: input, shape index: {}]
  %s3 = inlined_call_operand.vmem [shape: bf16[16,512], index: 3, kind: output, shape index: {}]
  %s4 = sld [smem:[#allocation0]]
  $region117: #{net_forward.4} parent=0
    _
  %s6 = ssub.s32 1, %s4
  %s7 = scalar_select 0, %s6, %s4
  $region1: #{net_forward.4} parent=0
    #allocation2 [shape = 'u8[819200]{0}', space=vmem, size = 0xc8000, scoped, tag = 'input window, operand 2']
    #allocation3 [shape = 'u8[16384]{0}', space=vmem, size = 0x4000, scoped, tag = 'output window, operand 0']
    loop: start=0, step=1, limit=4
    $region2: #{net_forward.4} parent=1 // loop_pre_header
      _
    $region3: #{net_forward.4} parent=1 // loop_header
      %s9 = sphi 0, %s13
      %p10 = scmp.ge.s32.totalorder %s9, 4
      %s17 = sphi 0, %s17
      %s19 = sphi 0, %s17
      %s20 = sphi 0, %s19
      %s34 = sphi 0, %s20
      %s38 = sphi 0, %s38
      %s40 = sphi 0, %s38
      %s41 = sphi 0, %s40
      %s55 = sphi 0, %s41
      %s61 = sphi 0, %s63
      %s64 = sphi 0, %s61
      %s65 = sphi 0, %s64
      %s81 = sphi 0, %s65
      %s87 = sphi 0, %s89
      %s90 = sphi 0, %s87
      %s91 = sphi 0, %s90
      %s107 = sphi 0, %s91
    $region4: #{net_forward.4} parent=1 // loop_header_branch
      %12 = sbr.rel (%p10) target = $region8
    $region5: #{net_forward.4} parent=1 // loop_body
      %s14 = ssub.s32 %s9, 1
      %s15 = ssub.s32 %s9, 2
      %s16 = sadd.s32 %s9, 1
      %s18 = sadd.s32 %s17, 1
      %p21 = scmp.eq.s32.totalorder %s9, 1
      %p22 = scmp.ne.s32.totalorder %s17, %s19
      %p23 = scmp.eq.s32.totalorder %s9, 0
      %p24 = por %p22, %p23
      %p25 = scmp.ne.s32.totalorder %s17, %s19
      %p26 = scmp.eq.s32.totalorder %s14, 1
      %p27 = por %p25, %p26
      %p28 = scmp.ne.s32.totalorder %s19, %s20
      %p29 = scmp.eq.s32.totalorder %s14, 0
      %p30 = por %p28, %p29
      %p31 = scmp.ne.s32.totalorder %s19, %s20
      %p32 = scmp.eq.s32.totalorder %s15, 1
      %p33 = por %p31, %p32
      %p35 = scmp.ne.s32.totalorder %s20, %s34
      %p36 = scmp.eq.s32.totalorder %s15, 0
      %p37 = por %p35, %p36
      %s39 = sadd.s32 %s38, 1
      %p42 = scmp.eq.s32.totalorder %s9, 1
      %p43 = scmp.ne.s32.totalorder %s38, %s40
      %p44 = scmp.eq.s32.totalorder %s9, 0
      %p45 = por %p43, %p44
      %p46 = scmp.ne.s32.totalorder %s38, %s40
      %p47 = scmp.eq.s32.totalorder %s14, 1
      %p48 = por %p46, %p47
      %p49 = scmp.ne.s32.totalorder %s40, %s41
      %p50 = scmp.eq.s32.totalorder %s14, 0
      %p51 = por %p49, %p50
      %p52 = scmp.ne.s32.totalorder %s40, %s41
      %p53 = scmp.eq.s32.totalorder %s15, 1
      %p54 = por %p52, %p53
      %p56 = scmp.ne.s32.totalorder %s41, %s55
      %p57 = scmp.eq.s32.totalorder %s15, 0
      %p58 = por %p56, %p57
      %s59 = ssub.s32 %s9, %s16
      %p60 = scmp.eq.s32.totalorder %s59, 0
      %s62 = sadd.s32 %s61, 1
      %s63 = scalar_select %p60, %s61, %s62
      %p66 = pneg %p60
      %p67 = scmp.eq.s32.totalorder %s9, 1
      %p68 = por %p66, %p67
      %p69 = scmp.ne.s32.totalorder %s61, %s64
      %p70 = scmp.eq.s32.totalorder %s9, 0
      %p71 = por %p69, %p70
      %p72 = scmp.ne.s32.totalorder %s61, %s64
      %p73 = scmp.eq.s32.totalorder %s14, 1
      %p74 = por %p72, %p73
      %p75 = scmp.ne.s32.totalorder %s64, %s65
      %p76 = scmp.eq.s32.totalorder %s14, 0
      %p77 = por %p75, %p76
      %p78 = scmp.ne.s32.totalorder %s64, %s65
      %p79 = scmp.eq.s32.totalorder %s15, 1
      %p80 = por %p78, %p79
      %p82 = scmp.ne.s32.totalorder %s65, %s81
      %p83 = scmp.eq.s32.totalorder %s15, 0
      %p84 = por %p82, %p83
      %s85 = ssub.s32 %s9, %s16
      %p86 = scmp.eq.s32.totalorder %s85, 0
      %s88 = sadd.s32 %s87, 1
      %s89 = scalar_select %p86, %s87, %s88
      %p92 = pneg %p86
      %p93 = scmp.eq.s32.totalorder %s9, 1
      %p94 = por %p92, %p93
      %p95 = scmp.ne.s32.totalorder %s87, %s90
      %p96 = scmp.eq.s32.totalorder %s9, 0
      %p97 = por %p95, %p96
      %p98 = scmp.ne.s32.totalorder %s87, %s90
      %p99 = scmp.eq.s32.totalorder %s14, 1
      %p100 = por %p98, %p99
      %p101 = scmp.ne.s32.totalorder %s90, %s91
      %p102 = scmp.eq.s32.totalorder %s14, 0
      %p103 = por %p101, %p102
      %p104 = scmp.ne.s32.totalorder %s90, %s91
      %p105 = scmp.eq.s32.totalorder %s15, 1
      %p106 = por %p104, %p105
      %p108 = scmp.ne.s32.totalorder %s91, %s107
      %p109 = scmp.eq.s32.totalorder %s15, 0
      %p110 = por %p108, %p109
      %p111 = scmp.le.s32.totalorder 1, %s9
      %p112 = scmp.lt.s32.totalorder %s9, 3
      %p113 = pnand %p111, %p112
      %p114 = pneg %p113
      // Predicated region
      $region9: #{net_forward.4} parent=5 // pred_check
        _
      $region10: #{net_forward.4} parent=5 // pred_check_branch
        %116 = sbr.rel (%p113) target = $region12
      $region11: #{net_forward.4} parent=5 // pred_region
        %s117 = ssub.s32 %s9, 1
        // Predicated region
        $region13: #{net_forward.4} parent=11 // pred_check
          %p118 = pneg %p30
        $region14: #{net_forward.4} parent=11 // pred_check_branch
          %120 = sbr.rel (%p118) target = $region16
        $region15: #{net_forward.4} parent=11 // pred_region
          _
        $region16: #{net_forward.4} parent=11 // pred_fallthru
          _
        // Predicated region
        $region17: #{net_forward.4} parent=11 // pred_check
          %p121 = pneg %p51
        $region18: #{net_forward.4} parent=11 // pred_check_branch
          %123 = sbr.rel (%p121) target = $region20
        $region19: #{net_forward.4} parent=11 // pred_region
          _
        $region20: #{net_forward.4} parent=11 // pred_fallthru
          _
      $region12: #{net_forward.4} parent=5 // pred_fallthru
        _
      %p124 = scmp.lt.s32.totalorder %s9, 2
      // Predicated region
      $region21: #{net_forward.4} parent=5 // pred_check
        %p125 = pneg %p124
      $region22: #{net_forward.4} parent=5 // pred_check_branch
        %127 = sbr.rel (%p125) target = $region24
      $region23: #{net_forward.4} parent=5 // pred_region
        // Predicated region
        $region25: #{net_forward.4} parent=23 // pred_check
          %p128 = pneg %p71
        $region26: #{net_forward.4} parent=23 // pred_check_branch
          %130 = sbr.rel (%p128) target = $region28
        $region27: #{net_forward.4} parent=23 // pred_region
          %s131 = sand.u32 %s61, 1
          %s132 = sand.u32 %s61, 1
          %s133 = smul.addr %s132, 800
          %s134 = scalar_lea.vmem [#allocation2], %s133
          %s135 = smul.u32 2, %s9
          %s136 = smul.addr %s135, 4
          %s137 = scalar_lea.vmem %s2, %s136
          // Predicated region
          $region29: #{net_forward.4} parent=27 // pred_check
            _
          $region30: #{net_forward.4} parent=27 // pred_check_branch
            %139 = sbr.rel (0) target = $region32
          $region31: #{net_forward.4} parent=27 // pred_region
            // Predicated region
            $region33: #{net_forward.4} parent=31 // pred_check
              _
            $region34: #{net_forward.4} parent=31 // pred_check_branch
              %141 = sbr.rel (0) target = $region36
            $region35: #{net_forward.4} parent=31 // pred_region
              // Predicated region
              $region48: #{net_forward.4} parent=35 // pred_check
                _
              $region49: #{net_forward.4} parent=35 // pred_check_branch
                %355 = sbr.rel (0) target = $region51
              $region50: #{net_forward.4} parent=35 // pred_region
                loop: start=0, step=1, limit=1
                $region52: #{net_forward.4} parent=50 // loop_pre_header
                  _
                $region53: #{net_forward.4} parent=50 // loop_header
                  %s357 = sphi 0, %s361
                  %p358 = scmp.ge.s32.totalorder %s357, 1
                  %s362 = sphi %s137, %s137
                  %s363 = sphi %s134, %s134
                $region54: #{net_forward.4} parent=50 // loop_header_branch
                  %360 = sbr.rel (%p358) target = $region58
                $region55: #{net_forward.4} parent=50 // loop_body
                  %v364 = vld [vmem:[%s362] sm:$0xff]
                  %365 = vst [vmem:[%s363] sm:$0xff] %v364
                  %v366 = vld [vmem:[%s362 + $0x10] sm:$0xff]
                  %367 = vst [vmem:[%s363 + $0x8] sm:$0xff] %v366
                  %v368 = vld [vmem:[%s362 + $0x20] sm:$0xff]
                  %369 = vst [vmem:[%s363 + $0x10] sm:$0xff] %v368
                  %v370 = vld [vmem:[%s362 + $0x30] sm:$0xff]
                  %371 = vst [vmem:[%s363 + $0x18] sm:$0xff] %v370
                  %v372 = vld [vmem:[%s362 + $0x40] sm:$0xff]
                  %373 = vst [vmem:[%s363 + $0x20] sm:$0xff] %v372
                  %v374 = vld [vmem:[%s362 + $0x50] sm:$0xff]
                  %375 = vst [vmem:[%s363 + $0x28] sm:$0xff] %v374
                  %v376 = vld [vmem:[%s362 + $0x60] sm:$0xff]
                  %377 = vst [vmem:[%s363 + $0x30] sm:$0xff] %v376
                  %v378 = vld [vmem:[%s362 + $0x70] sm:$0xff]
                  %379 = vst [vmem:[%s363 + $0x38] sm:$0xff] %v378
                  %v380 = vld [vmem:[%s362 + $0x80] sm:$0xff]
                  %381 = vst [vmem:[%s363 + $0x40] sm:$0xff] %v380
                  %v382 = vld [vmem:[%s362 + $0x90] sm:$0xff]
                  %383 = vst [vmem:[%s363 + $0x48] sm:$0xff] %v382
                  %v384 = vld [vmem:[%s362 + $0xa0] sm:$0xff]
                  %385 = vst [vmem:[%s363 + $0x50] sm:$0xff] %v384
                  %v386 = vld [vmem:[%s362 + $0xb0] sm:$0xff]
                  %387 = vst [vmem:[%s363 + $0x58] sm:$0xff] %v386
                  %v388 = vld [vmem:[%s362 + $0xc0] sm:$0xff]
                  %389 = vst [vmem:[%s363 + $0x60] sm:$0xff] %v388
                  %v390 = vld [vmem:[%s362 + $0xd0] sm:$0xff]
                  %391 = vst [vmem:[%s363 + $0x68] sm:$0xff] %v390
                  %v392 = vld [vmem:[%s362 + $0xe0] sm:$0xff]
                  %393 = vst [vmem:[%s363 + $0x70] sm:$0xff] %v392
                  %v394 = vld [vmem:[%s362 + $0xf0] sm:$0xff]
                  %395 = vst [vmem:[%s363 + $0x78] sm:$0xff] %v394
                  %v396 = vld [vmem:[%s362 + $0x100] sm:$0xff]
                  %397 = vst [vmem:[%s363 + $0x80] sm:$0xff] %v396
                  %v398 = vld [vmem:[%s362 + $0x110] sm:$0xff]
                  %399 = vst [vmem:[%s363 + $0x88] sm:$0xff] %v398
                  %v400 = vld [vmem:[%s362 + $0x120] sm:$0xff]
                  %401 = vst [vmem:[%s363 + $0x90] sm:$0xff] %v400
                  %v402 = vld [vmem:[%s362 + $0x130] sm:$0xff]
                  %403 = vst [vmem:[%s363 + $0x98] sm:$0xff] %v402
                  %v404 = vld [vmem:[%s362 + $0x140] sm:$0xff]
                  %405 = vst [vmem:[%s363 + $0xa0] sm:$0xff] %v404
                  %v406 = vld [vmem:[%s362 + $0x150] sm:$0xff]
                  %407 = vst [vmem:[%s363 + $0xa8] sm:$0xff] %v406
                  %v408 = vld [vmem:[%s362 + $0x160] sm:$0xff]
                  %409 = vst [vmem:[%s363 + $0xb0] sm:$0xff] %v408
                  %v410 = vld [vmem:[%s362 + $0x170] sm:$0xff]
                  %411 = vst [vmem:[%s363 + $0xb8] sm:$0xff] %v410
                  %v412 = vld [vmem:[%s362 + $0x180] sm:$0xff]
                  %413 = vst [vmem:[%s363 + $0xc0] sm:$0xff] %v412
                  %v414 = vld [vmem:[%s362 + $0x190] sm:$0xff]
                  %415 = vst [vmem:[%s363 + $0xc8] sm:$0xff] %v414
                  %v416 = vld [vmem:[%s362 + $0x1a0] sm:$0xff]
                  %417 = vst [vmem:[%s363 + $0xd0] sm:$0xff] %v416
                  %v418 = vld [vmem:[%s362 + $0x1b0] sm:$0xff]
                  %419 = vst [vmem:[%s363 + $0xd8] sm:$0xff] %v418
                  %v420 = vld [vmem:[%s362 + $0x1c0] sm:$0xff]
                  %421 = vst [vmem:[%s363 + $0xe0] sm:$0xff] %v420
                  %v422 = vld [vmem:[%s362 + $0x1d0] sm:$0xff]
                  %423 = vst [vmem:[%s363 + $0xe8] sm:$0xff] %v422
                  %v424 = vld [vmem:[%s362 + $0x1e0] sm:$0xff]
                  %425 = vst [vmem:[%s363 + $0xf0] sm:$0xff] %v424
                  %v426 = vld [vmem:[%s362 + $0x1f0] sm:$0xff]
                  %427 = vst [vmem:[%s363 + $0xf8] sm:$0xff] %v426
                  %v428 = vld [vmem:[%s362 + $0x200] sm:$0xff]
                  %429 = vst [vmem:[%s363 + $0x100] sm:$0xff] %v428
                  %v430 = vld [vmem:[%s362 + $0x210] sm:$0xff]
                  %431 = vst [vmem:[%s363 + $0x108] sm:$0xff] %v430
                  %v432 = vld [vmem:[%s362 + $0x220] sm:$0xff]
                  %433 = vst [vmem:[%s363 + $0x110] sm:$0xff] %v432
                  %v434 = vld [vmem:[%s362 + $0x230] sm:$0xff]
                  %435 = vst [vmem:[%s363 + $0x118] sm:$0xff] %v434
                  %v436 = vld [vmem:[%s362 + $0x240] sm:$0xff]
                  %437 = vst [vmem:[%s363 + $0x120] sm:$0xff] %v436
                  %v438 = vld [vmem:[%s362 + $0x250] sm:$0xff]
                  %439 = vst [vmem:[%s363 + $0x128] sm:$0xff] %v438
                  %v440 = vld [vmem:[%s362 + $0x260] sm:$0xff]
                  %441 = vst [vmem:[%s363 + $0x130] sm:$0xff] %v440
                  %v442 = vld [vmem:[%s362 + $0x270] sm:$0xff]
                  %443 = vst [vmem:[%s363 + $0x138] sm:$0xff] %v442
                  %v444 = vld [vmem:[%s362 + $0x280] sm:$0xff]
                  %445 = vst [vmem:[%s363 + $0x140] sm:$0xff] %v444
                  %v446 = vld [vmem:[%s362 + $0x290] sm:$0xff]
                  %447 = vst [vmem:[%s363 + $0x148] sm:$0xff] %v446
                  %v448 = vld [vmem:[%s362 + $0x2a0] sm:$0xff]
                  %449 = vst [vmem:[%s363 + $0x150] sm:$0xff] %v448
                  %v450 = vld [vmem:[%s362 + $0x2b0] sm:$0xff]
                  %451 = vst [vmem:[%s363 + $0x158] sm:$0xff] %v450
                  %v452 = vld [vmem:[%s362 + $0x2c0] sm:$0xff]
                  %453 = vst [vmem:[%s363 + $0x160] sm:$0xff] %v452
                  %v454 = vld [vmem:[%s362 + $0x2d0] sm:$0xff]
                  %455 = vst [vmem:[%s363 + $0x168] sm:$0xff] %v454
                  %v456 = vld [vmem:[%s362 + $0x2e0] sm:$0xff]
                  %457 = vst [vmem:[%s363 + $0x170] sm:$0xff] %v456
                  %v458 = vld [vmem:[%s362 + $0x2f0] sm:$0xff]
                  %459 = vst [vmem:[%s363 + $0x178] sm:$0xff] %v458
                  %v460 = vld [vmem:[%s362 + $0x300] sm:$0xff]
                  %461 = vst [vmem:[%s363 + $0x180] sm:$0xff] %v460
                  %v462 = vld [vmem:[%s362 + $0x310] sm:$0xff]
                  %463 = vst [vmem:[%s363 + $0x188] sm:$0xff] %v462
                  %v464 = vld [vmem:[%s362 + $0x320] sm:$0xff]
                  %465 = vst [vmem:[%s363 + $0x190] sm:$0xff] %v464
                  %v466 = vld [vmem:[%s362 + $0x330] sm:$0xff]
                  %467 = vst [vmem:[%s363 + $0x198] sm:$0xff] %v466
                  %v468 = vld [vmem:[%s362 + $0x340] sm:$0xff]
                  %469 = vst [vmem:[%s363 + $0x1a0] sm:$0xff] %v468
                  %v470 = vld [vmem:[%s362 + $0x350] sm:$0xff]
                  %471 = vst [vmem:[%s363 + $0x1a8] sm:$0xff] %v470
                  %v472 = vld [vmem:[%s362 + $0x360] sm:$0xff]
                  %473 = vst [vmem:[%s363 + $0x1b0] sm:$0xff] %v472
                  %v474 = vld [vmem:[%s362 + $0x370] sm:$0xff]
                  %475 = vst [vmem:[%s363 + $0x1b8] sm:$0xff] %v474
                  %v476 = vld [vmem:[%s362 + $0x380] sm:$0xff]
                  %477 = vst [vmem:[%s363 + $0x1c0] sm:$0xff] %v476
                  %v478 = vld [vmem:[%s362 + $0x390] sm:$0xff]
                  %479 = vst [vmem:[%s363 + $0x1c8] sm:$0xff] %v478
                  %v480 = vld [vmem:[%s362 + $0x3a0] sm:$0xff]
                  %481 = vst [vmem:[%s363 + $0x1d0] sm:$0xff] %v480
                  %v482 = vld [vmem:[%s362 + $0x3b0] sm:$0xff]
                  %483 = vst [vmem:[%s363 + $0x1d8] sm:$0xff] %v482
                  %v484 = vld [vmem:[%s362 + $0x3c0] sm:$0xff]
                  %485 = vst [vmem:[%s363 + $0x1e0] sm:$0xff] %v484
                  %v486 = vld [vmem:[%s362 + $0x3d0] sm:$0xff]
                  %487 = vst [vmem:[%s363 + $0x1e8] sm:$0xff] %v486
                  %v488 = vld [vmem:[%s362 + $0x3e0] sm:$0xff]
                  %489 = vst [vmem:[%s363 + $0x1f0] sm:$0xff] %v488
                  %v490 = vld [vmem:[%s362 + $0x3f0] sm:$0xff]
                  %491 = vst [vmem:[%s363 + $0x1f8] sm:$0xff] %v490
                  %v492 = vld [vmem:[%s362 + $0x400] sm:$0xff]
                  %493 = vst [vmem:[%s363 + $0x200] sm:$0xff] %v492
                  %v494 = vld [vmem:[%s362 + $0x410] sm:$0xff]
                  %495 = vst [vmem:[%s363 + $0x208] sm:$0xff] %v494
                  %v496 = vld [vmem:[%s362 + $0x420] sm:$0xff]
                  %497 = vst [vmem:[%s363 + $0x210] sm:$0xff] %v496
                  %v498 = vld [vmem:[%s362 + $0x430] sm:$0xff]
                  %499 = vst [vmem:[%s363 + $0x218] sm:$0xff] %v498
                  %v500 = vld [vmem:[%s362 + $0x440] sm:$0xff]
                  %501 = vst [vmem:[%s363 + $0x220] sm:$0xff] %v500
                  %v502 = vld [vmem:[%s362 + $0x450] sm:$0xff]
                  %503 = vst [vmem:[%s363 + $0x228] sm:$0xff] %v502
                  %v504 = vld [vmem:[%s362 + $0x460] sm:$0xff]
                  %505 = vst [vmem:[%s363 + $0x230] sm:$0xff] %v504
                  %v506 = vld [vmem:[%s362 + $0x470] sm:$0xff]
                  %507 = vst [vmem:[%s363 + $0x238] sm:$0xff] %v506
                  %v508 = vld [vmem:[%s362 + $0x480] sm:$0xff]
                  %509 = vst [vmem:[%s363 + $0x240] sm:$0xff] %v508
                  %v510 = vld [vmem:[%s362 + $0x490] sm:$0xff]
                  %511 = vst [vmem:[%s363 + $0x248] sm:$0xff] %v510
                  %v512 = vld [vmem:[%s362 + $0x4a0] sm:$0xff]
                  %513 = vst [vmem:[%s363 + $0x250] sm:$0xff] %v512
                  %v514 = vld [vmem:[%s362 + $0x4b0] sm:$0xff]
                  %515 = vst [vmem:[%s363 + $0x258] sm:$0xff] %v514
                  %v516 = vld [vmem:[%s362 + $0x4c0] sm:$0xff]
                  %517 = vst [vmem:[%s363 + $0x260] sm:$0xff] %v516
                  %v518 = vld [vmem:[%s362 + $0x4d0] sm:$0xff]
                  %519 = vst [vmem:[%s363 + $0x268] sm:$0xff] %v518
                  %v520 = vld [vmem:[%s362 + $0x4e0] sm:$0xff]
                  %521 = vst [vmem:[%s363 + $0x270] sm:$0xff] %v520
                  %v522 = vld [vmem:[%s362 + $0x4f0] sm:$0xff]
                  %523 = vst [vmem:[%s363 + $0x278] sm:$0xff] %v522
                  %v524 = vld [vmem:[%s362 + $0x500] sm:$0xff]
                  %525 = vst [vmem:[%s363 + $0x280] sm:$0xff] %v524
                  %v526 = vld [vmem:[%s362 + $0x510] sm:$0xff]
                  %527 = vst [vmem:[%s363 + $0x288] sm:$0xff] %v526
                  %v528 = vld [vmem:[%s362 + $0x520] sm:$0xff]
                  %529 = vst [vmem:[%s363 + $0x290] sm:$0xff] %v528
                  %v530 = vld [vmem:[%s362 + $0x530] sm:$0xff]
                  %531 = vst [vmem:[%s363 + $0x298] sm:$0xff] %v530
                  %v532 = vld [vmem:[%s362 + $0x540] sm:$0xff]
                  %533 = vst [vmem:[%s363 + $0x2a0] sm:$0xff] %v532
                  %v534 = vld [vmem:[%s362 + $0x550] sm:$0xff]
                  %535 = vst [vmem:[%s363 + $0x2a8] sm:$0xff] %v534
                  %v536 = vld [vmem:[%s362 + $0x560] sm:$0xff]
                  %537 = vst [vmem:[%s363 + $0x2b0] sm:$0xff] %v536
                  %v538 = vld [vmem:[%s362 + $0x570] sm:$0xff]
                  %539 = vst [vmem:[%s363 + $0x2b8] sm:$0xff] %v538
                  %v540 = vld [vmem:[%s362 + $0x580] sm:$0xff]
                  %541 = vst [vmem:[%s363 + $0x2c0] sm:$0xff] %v540
                  %v542 = vld [vmem:[%s362 + $0x590] sm:$0xff]
                  %543 = vst [vmem:[%s363 + $0x2c8] sm:$0xff] %v542
                  %v544 = vld [vmem:[%s362 + $0x5a0] sm:$0xff]
                  %545 = vst [vmem:[%s363 + $0x2d0] sm:$0xff] %v544
                  %v546 = vld [vmem:[%s362 + $0x5b0] sm:$0xff]
                  %547 = vst [vmem:[%s363 + $0x2d8] sm:$0xff] %v546
                  %v548 = vld [vmem:[%s362 + $0x5c0] sm:$0xff]
                  %549 = vst [vmem:[%s363 + $0x2e0] sm:$0xff] %v548
                  %v550 = vld [vmem:[%s362 + $0x5d0] sm:$0xff]
                  %551 = vst [vmem:[%s363 + $0x2e8] sm:$0xff] %v550
                  %v552 = vld [vmem:[%s362 + $0x5e0] sm:$0xff]
                  %553 = vst [vmem:[%s363 + $0x2f0] sm:$0xff] %v552
                  %v554 = vld [vmem:[%s362 + $0x5f0] sm:$0xff]
                  %555 = vst [vmem:[%s363 + $0x2f8] sm:$0xff] %v554
                  %v556 = vld [vmem:[%s362 + $0x600] sm:$0xff]
                  %557 = vst [vmem:[%s363 + $0x300] sm:$0xff] %v556
                  %v558 = vld [vmem:[%s362 + $0x610] sm:$0xff]
                  %559 = vst [vmem:[%s363 + $0x308] sm:$0xff] %v558
                  %v560 = vld [vmem:[%s362 + $0x620] sm:$0xff]
                  %561 = vst [vmem:[%s363 + $0x310] sm:$0xff] %v560
                  %v562 = vld [vmem:[%s362 + $0x630] sm:$0xff]
                  %563 = vst [vmem:[%s363 + $0x318] sm:$0xff] %v562
                $region56: #{net_forward.4} parent=50 // loop_footer
                  %s361 = sadd.s32 1, %s357
                $region57: #{net_forward.4} parent=50 // loop_footer_branch
                  %356 = sbr.rel target = $region53
                $region58: #{net_forward.4} parent=50 // loop_exit
                  _
              $region51: #{net_forward.4} parent=35 // pred_fallthru
                _
              // Predicated region
              $region59: #{net_forward.4} parent=35 // pred_check
                _
              $region60: #{net_forward.4} parent=35 // pred_check_branch
                %565 = sbr.rel target = $region62
              $region61: #{net_forward.4} parent=35 // pred_region
                _
              $region62: #{net_forward.4} parent=35 // pred_fallthru
                _
            $region36: #{net_forward.4} parent=31 // pred_fallthru
              _
            // Predicated region
            $region37: #{net_forward.4} parent=31 // pred_check
              _
            $region38: #{net_forward.4} parent=31 // pred_check_branch
              %143 = sbr.rel target = $region40
            $region39: #{net_forward.4} parent=31 // pred_region
              %s145 = ssub.s32 256, 1
              loop: start=0, step=1, limit=1
              $region41: #{net_forward.4} parent=39 // loop_pre_header
                _
              $region42: #{net_forward.4} parent=39 // loop_header
                %s147 = sphi 0, %s151
                %p148 = scmp.ge.s32.totalorder %s147, 1
                %s152 = sphi %s137, %s137
                %s153 = sphi %s134, %s134
              $region43: #{net_forward.4} parent=39 // loop_header_branch
                %150 = sbr.rel (%p148) target = $region47
              $region44: #{net_forward.4} parent=39 // loop_body
                %v154 = vld [vmem:[%s152] sm:%s145]
                %155 = vst [vmem:[%s153] sm:%s145] %v154
                %v156 = vld [vmem:[%s152 + $0x10] sm:%s145]
                %157 = vst [vmem:[%s153 + $0x8] sm:%s145] %v156
                %v158 = vld [vmem:[%s152 + $0x20] sm:%s145]
                %159 = vst [vmem:[%s153 + $0x10] sm:%s145] %v158
                %v160 = vld [vmem:[%s152 + $0x30] sm:%s145]
                %161 = vst [vmem:[%s153 + $0x18] sm:%s145] %v160
                %v162 = vld [vmem:[%s152 + $0x40] sm:%s145]
                %163 = vst [vmem:[%s153 + $0x20] sm:%s145] %v162
                %v164 = vld [vmem:[%s152 + $0x50] sm:%s145]
                %165 = vst [vmem:[%s153 + $0x28] sm:%s145] %v164
                %v166 = vld [vmem:[%s152 + $0x60] sm:%s145]
                %167 = vst [vmem:[%s153 + $0x30] sm:%s145] %v166
                %v168 = vld [vmem:[%s152 + $0x70] sm:%s145]
                %169 = vst [vmem:[%s153 + $0x38] sm:%s145] %v168
                %v170 = vld [vmem:[%s152 + $0x80] sm:%s145]
                %171 = vst [vmem:[%s153 + $0x40] sm:%s145] %v170
                %v172 = vld [vmem:[%s152 + $0x90] sm:%s145]
                %173 = vst [vmem:[%s153 + $0x48] sm:%s145] %v172
                %v174 = vld [vmem:[%s152 + $0xa0] sm:%s145]
                %175 = vst [vmem:[%s153 + $0x50] sm:%s145] %v174
                %v176 = vld [vmem:[%s152 + $0xb0] sm:%s145]
                %177 = vst [vmem:[%s153 + $0x58] sm:%s145] %v176
                %v178 = vld [vmem:[%s152 + $0xc0] sm:%s145]
                %179 = vst [vmem:[%s153 + $0x60] sm:%s145] %v178
                %v180 = vld [vmem:[%s152 + $0xd0] sm:%s145]
                %181 = vst [vmem:[%s153 + $0x68] sm:%s145] %v180
                %v182 = vld [vmem:[%s152 + $0xe0] sm:%s145]
                %183 = vst [vmem:[%s153 + $0x70] sm:%s145] %v182
                %v184 = vld [vmem:[%s152 + $0xf0] sm:%s145]
                %185 = vst [vmem:[%s153 + $0x78] sm:%s145] %v184
                %v186 = vld [vmem:[%s152 + $0x100] sm:%s145]
                %187 = vst [vmem:[%s153 + $0x80] sm:%s145] %v186
                %v188 = vld [vmem:[%s152 + $0x110] sm:%s145]
                %189 = vst [vmem:[%s153 + $0x88] sm:%s145] %v188
                %v190 = vld [vmem:[%s152 + $0x120] sm:%s145]
                %191 = vst [vmem:[%s153 + $0x90] sm:%s145] %v190
                %v192 = vld [vmem:[%s152 + $0x130] sm:%s145]
                %193 = vst [vmem:[%s153 + $0x98] sm:%s145] %v192
                %v194 = vld [vmem:[%s152 + $0x140] sm:%s145]
                %195 = vst [vmem:[%s153 + $0xa0] sm:%s145] %v194
                %v196 = vld [vmem:[%s152 + $0x150] sm:%s145]
                %197 = vst [vmem:[%s153 + $0xa8] sm:%s145] %v196
                %v198 = vld [vmem:[%s152 + $0x160] sm:%s145]
                %199 = vst [vmem:[%s153 + $0xb0] sm:%s145] %v198
                %v200 = vld [vmem:[%s152 + $0x170] sm:%s145]
                %201 = vst [vmem:[%s153 + $0xb8] sm:%s145] %v200
                %v202 = vld [vmem:[%s152 + $0x180] sm:%s145]
                %203 = vst [vmem:[%s153 + $0xc0] sm:%s145] %v202
                %v204 = vld [vmem:[%s152 + $0x190] sm:%s145]
                %205 = vst [vmem:[%s153 + $0xc8] sm:%s145] %v204
                %v206 = vld [vmem:[%s152 + $0x1a0] sm:%s145]
                %207 = vst [vmem:[%s153 + $0xd0] sm:%s145] %v206
                %v208 = vld [vmem:[%s152 + $0x1b0] sm:%s145]
                %209 = vst [vmem:[%s153 + $0xd8] sm:%s145] %v208
                %v210 = vld [vmem:[%s152 + $0x1c0] sm:%s145]
                %211 = vst [vmem:[%s153 + $0xe0] sm:%s145] %v210
                %v212 = vld [vmem:[%s152 + $0x1d0] sm:%s145]
                %213 = vst [vmem:[%s153 + $0xe8] sm:%s145] %v212
                %v214 = vld [vmem:[%s152 + $0x1e0] sm:%s145]
                %215 = vst [vmem:[%s153 + $0xf0] sm:%s145] %v214
                %v216 = vld [vmem:[%s152 + $0x1f0] sm:%s145]
                %217 = vst [vmem:[%s153 + $0xf8] sm:%s145] %v216
                %v218 = vld [vmem:[%s152 + $0x200] sm:%s145]
                %219 = vst [vmem:[%s153 + $0x100] sm:%s145] %v218
                %v220 = vld [vmem:[%s152 + $0x210] sm:%s145]
                %221 = vst [vmem:[%s153 + $0x108] sm:%s145] %v220
                %v222 = vld [vmem:[%s152 + $0x220] sm:%s145]
                %223 = vst [vmem:[%s153 + $0x110] sm:%s145] %v222
                %v224 = vld [vmem:[%s152 + $0x230] sm:%s145]
                %225 = vst [vmem:[%s153 + $0x118] sm:%s145] %v224
                %v226 = vld [vmem:[%s152 + $0x240] sm:%s145]
                %227 = vst [vmem:[%s153 + $0x120] sm:%s145] %v226
                %v228 = vld [vmem:[%s152 + $0x250] sm:%s145]
                %229 = vst [vmem:[%s153 + $0x128] sm:%s145] %v228
                %v230 = vld [vmem:[%s152 + $0x260] sm:%s145]
                %231 = vst [vmem:[%s153 + $0x130] sm:%s145] %v230
                %v232 = vld [vmem:[%s152 + $0x270] sm:%s145]
                %233 = vst [vmem:[%s153 + $0x138] sm:%s145] %v232
                %v234 = vld [vmem:[%s152 + $0x280] sm:%s145]
                %235 = vst [vmem:[%s153 + $0x140] sm:%s145] %v234
                %v236 = vld [vmem:[%s152 + $0x290] sm:%s145]
                %237 = vst [vmem:[%s153 + $0x148] sm:%s145] %v236
                %v238 = vld [vmem:[%s152 + $0x2a0] sm:%s145]
                %239 = vst [vmem:[%s153 + $0x150] sm:%s145] %v238
                %v240 = vld [vmem:[%s152 + $0x2b0] sm:%s145]
                %241 = vst [vmem:[%s153 + $0x158] sm:%s145] %v240
                %v242 = vld [vmem:[%s152 + $0x2c0] sm:%s145]
                %243 = vst [vmem:[%s153 + $0x160] sm:%s145] %v242
                %v244 = vld [vmem:[%s152 + $0x2d0] sm:%s145]
                %245 = vst [vmem:[%s153 + $0x168] sm:%s145] %v244
                %v246 = vld [vmem:[%s152 + $0x2e0] sm:%s145]
                %247 = vst [vmem:[%s153 + $0x170] sm:%s145] %v246
                %v248 = vld [vmem:[%s152 + $0x2f0] sm:%s145]
                %249 = vst [vmem:[%s153 + $0x178] sm:%s145] %v248
                %v250 = vld [vmem:[%s152 + $0x300] sm:%s145]
                %251 = vst [vmem:[%s153 + $0x180] sm:%s145] %v250
                %v252 = vld [vmem:[%s152 + $0x310] sm:%s145]
                %253 = vst [vmem:[%s153 + $0x188] sm:%s145] %v252
                %v254 = vld [vmem:[%s152 + $0x320] sm:%s145]
                %255 = vst [vmem:[%s153 + $0x190] sm:%s145] %v254
                %v256 = vld [vmem:[%s152 + $0x330] sm:%s145]
                %257 = vst [vmem:[%s153 + $0x198] sm:%s145] %v256
                %v258 = vld [vmem:[%s152 + $0x340] sm:%s145]
                %259 = vst [vmem:[%s153 + $0x1a0] sm:%s145] %v258
                %v260 = vld [vmem:[%s152 + $0x350] sm:%s145]
                %261 = vst [vmem:[%s153 + $0x1a8] sm:%s145] %v260
                %v262 = vld [vmem:[%s152 + $0x360] sm:%s145]
                %263 = vst [vmem:[%s153 + $0x1b0] sm:%s145] %v262
                %v264 = vld [vmem:[%s152 + $0x370] sm:%s145]
                %265 = vst [vmem:[%s153 + $0x1b8] sm:%s145] %v264
                %v266 = vld [vmem:[%s152 + $0x380] sm:%s145]
                %267 = vst [vmem:[%s153 + $0x1c0] sm:%s145] %v266
                %v268 = vld [vmem:[%s152 + $0x390] sm:%s145]
                %269 = vst [vmem:[%s153 + $0x1c8] sm:%s145] %v268
                %v270 = vld [vmem:[%s152 + $0x3a0] sm:%s145]
                %271 = vst [vmem:[%s153 + $0x1d0] sm:%s145] %v270
                %v272 = vld [vmem:[%s152 + $0x3b0] sm:%s145]
                %273 = vst [vmem:[%s153 + $0x1d8] sm:%s145] %v272
                %v274 = vld [vmem:[%s152 + $0x3c0] sm:%s145]
                %275 = vst [vmem:[%s153 + $0x1e0] sm:%s145] %v274
                %v276 = vld [vmem:[%s152 + $0x3d0] sm:%s145]
                %277 = vst [vmem:[%s153 + $0x1e8] sm:%s145] %v276
                %v278 = vld [vmem:[%s152 + $0x3e0] sm:%s145]
                %279 = vst [vmem:[%s153 + $0x1f0] sm:%s145] %v278
                %v280 = vld [vmem:[%s152 + $0x3f0] sm:%s145]
                %281 = vst [vmem:[%s153 + $0x1f8] sm:%s145] %v280
                %v282 = vld [vmem:[%s152 + $0x400] sm:%s145]
                %283 = vst [vmem:[%s153 + $0x200] sm:%s145] %v282
                %v284 = vld [vmem:[%s152 + $0x410] sm:%s145]
                %285 = vst [vmem:[%s153 + $0x208] sm:%s145] %v284
                %v286 = vld [vmem:[%s152 + $0x420] sm:%s145]
                %287 = vst [vmem:[%s153 + $0x210] sm:%s145] %v286
                %v288 = vld [vmem:[%s152 + $0x430] sm:%s145]
                %289 = vst [vmem:[%s153 + $0x218] sm:%s145] %v288
                %v290 = vld [vmem:[%s152 + $0x440] sm:%s145]
                %291 = vst [vmem:[%s153 + $0x220] sm:%s145] %v290
                %v292 = vld [vmem:[%s152 + $0x450] sm:%s145]
                %293 = vst [vmem:[%s153 + $0x228] sm:%s145] %v292
                %v294 = vld [vmem:[%s152 + $0x460] sm:%s145]
                %295 = vst [vmem:[%s153 + $0x230] sm:%s145] %v294
                %v296 = vld [vmem:[%s152 + $0x470] sm:%s145]
                %297 = vst [vmem:[%s153 + $0x238] sm:%s145] %v296
                %v298 = vld [vmem:[%s152 + $0x480] sm:%s145]
                %299 = vst [vmem:[%s153 + $0x240] sm:%s145] %v298
                %v300 = vld [vmem:[%s152 + $0x490] sm:%s145]
                %301 = vst [vmem:[%s153 + $0x248] sm:%s145] %v300
                %v302 = vld [vmem:[%s152 + $0x4a0] sm:%s145]
                %303 = vst [vmem:[%s153 + $0x250] sm:%s145] %v302
                %v304 = vld [vmem:[%s152 + $0x4b0] sm:%s145]
                %305 = vst [vmem:[%s153 + $0x258] sm:%s145] %v304
                %v306 = vld [vmem:[%s152 + $0x4c0] sm:%s145]
                %307 = vst [vmem:[%s153 + $0x260] sm:%s145] %v306
                %v308 = vld [vmem:[%s152 + $0x4d0] sm:%s145]
                %309 = vst [vmem:[%s153 + $0x268] sm:%s145] %v308
                %v310 = vld [vmem:[%s152 + $0x4e0] sm:%s145]
                %311 = vst [vmem:[%s153 + $0x270] sm:%s145] %v310
                %v312 = vld [vmem:[%s152 + $0x4f0] sm:%s145]
                %313 = vst [vmem:[%s153 + $0x278] sm:%s145] %v312
                %v314 = vld [vmem:[%s152 + $0x500] sm:%s145]
                %315 = vst [vmem:[%s153 + $0x280] sm:%s145] %v314
                %v316 = vld [vmem:[%s152 + $0x510] sm:%s145]
                %317 = vst [vmem:[%s153 + $0x288] sm:%s145] %v316
                %v318 = vld [vmem:[%s152 + $0x520] sm:%s145]
                %319 = vst [vmem:[%s153 + $0x290] sm:%s145] %v318
                %v320 = vld [vmem:[%s152 + $0x530] sm:%s145]
                %321 = vst [vmem:[%s153 + $0x298] sm:%s145] %v320
                %v322 = vld [vmem:[%s152 + $0x540] sm:%s145]
                %323 = vst [vmem:[%s153 + $0x2a0] sm:%s145] %v322
                %v324 = vld [vmem:[%s152 + $0x550] sm:%s145]
                %325 = vst [vmem:[%s153 + $0x2a8] sm:%s145] %v324
                %v326 = vld [vmem:[%s152 + $0x560] sm:%s145]
                %327 = vst [vmem:[%s153 + $0x2b0] sm:%s145] %v326
                %v328 = vld [vmem:[%s152 + $0x570] sm:%s145]
                %329 = vst [vmem:[%s153 + $0x2b8] sm:%s145] %v328
                %v330 = vld [vmem:[%s152 + $0x580] sm:%s145]
                %331 = vst [vmem:[%s153 + $0x2c0] sm:%s145] %v330
                %v332 = vld [vmem:[%s152 + $0x590] sm:%s145]
                %333 = vst [vmem:[%s153 + $0x2c8] sm:%s145] %v332
                %v334 = vld [vmem:[%s152 + $0x5a0] sm:%s145]
                %335 = vst [vmem:[%s153 + $0x2d0] sm:%s145] %v334
                %v336 = vld [vmem:[%s152 + $0x5b0] sm:%s145]
                %337 = vst [vmem:[%s153 + $0x2d8] sm:%s145] %v336
                %v338 = vld [vmem:[%s152 + $0x5c0] sm:%s145]
                %339 = vst [vmem:[%s153 + $0x2e0] sm:%s145] %v338
                %v340 = vld [vmem:[%s152 + $0x5d0] sm:%s145]
                %341 = vst [vmem:[%s153 + $0x2e8] sm:%s145] %v340
                %v342 = vld [vmem:[%s152 + $0x5e0] sm:%s145]
                %343 = vst [vmem:[%s153 + $0x2f0] sm:%s145] %v342
                %v344 = vld [vmem:[%s152 + $0x5f0] sm:%s145]
                %345 = vst [vmem:[%s153 + $0x2f8] sm:%s145] %v344
                %v346 = vld [vmem:[%s152 + $0x600] sm:%s145]
                %347 = vst [vmem:[%s153 + $0x300] sm:%s145] %v346
                %v348 = vld [vmem:[%s152 + $0x610] sm:%s145]
                %349 = vst [vmem:[%s153 + $0x308] sm:%s145] %v348
                %v350 = vld [vmem:[%s152 + $0x620] sm:%s145]
                %351 = vst [vmem:[%s153 + $0x310] sm:%s145] %v350
                %v352 = vld [vmem:[%s152 + $0x630] sm:%s145]
                %353 = vst [vmem:[%s153 + $0x318] sm:%s145] %v352
              $region45: #{net_forward.4} parent=39 // loop_footer
                %s151 = sadd.s32 1, %s147
              $region46: #{net_forward.4} parent=39 // loop_footer_branch
                %146 = sbr.rel target = $region42
              $region47: #{net_forward.4} parent=39 // loop_exit
                _
            $region40: #{net_forward.4} parent=31 // pred_fallthru
              _
          $region32: #{net_forward.4} parent=27 // pred_fallthru
            _
          %566 = vnop
        $region28: #{net_forward.4} parent=23 // pred_fallthru
          _
      $region24: #{net_forward.4} parent=5 // pred_fallthru
        _
      %p567 = scmp.le.s32.totalorder 1, %s9
      %p568 = scmp.lt.s32.totalorder %s9, 3
      %p569 = pnand %p567, %p568
      %p570 = pneg %p569
      // Predicated region
      $region63: #{net_forward.4} parent=5 // pred_check
        _
      $region64: #{net_forward.4} parent=5 // pred_check_branch
        %572 = sbr.rel (%p569) target = $region66
      $region65: #{net_forward.4} parent=5 // pred_region
        %s573 = ssub.s32 %s9, 1
        %s574 = sand.u32 %s64, 1
        %s575 = sand.u32 %s64, 1
        %s576 = smul.addr %s575, 800
        %s577 = scalar_lea.vmem [#allocation2], %s576
        // Predicated region
        $region67: #{net_forward.4} parent=65 // pred_check
          %p578 = pneg %p77
        $region68: #{net_forward.4} parent=65 // pred_check_branch
          %580 = sbr.rel (%p578) target = $region70
        $region69: #{net_forward.4} parent=65 // pred_region
          _
        $region70: #{net_forward.4} parent=65 // pred_fallthru
          _
        %p581 = pneg %p30
        %p582 = pneg %p27
        %p583 = pneg %p51
        %p584 = pneg %p48
        %s585 = sand.u32 %s64, 1
        %s586 = sand.u32 %s64, 1
        %s587 = smul.addr %s586, 800
        %s588 = scalar_lea.vmem [#allocation2], %s587
        %p589 = pneg %p77
        %p590 = pneg %p74
        %p591 = pneg %p103
        %p592 = pneg %p100
        %s593 = sand.u32 %s90, 1
        %s594 = sand.u32 %s90, 1
        %s595 = smul.addr %s594, 16
        %s596 = scalar_lea.vmem [#allocation3], %s595
        %s597 = smul.u32 2, %s14
        %s598 = smul.u32 2, %s14
        %v600 = vld [vmem:[%s0] sm:$0xff]
        %v601 = vld [vmem:[%s0 + $0x8] sm:$0xff]
        %v602 = vld [vmem:[%s0 + $0x10] sm:$0xff]
        %v603 = vld [vmem:[%s0 + $0x18] sm:$0xf]
        %v604 = vld [vmem:[%s0 + $0x1c] sm:$0xff]
        %v605 = vld [vmem:[%s0 + $0x24] sm:$0xff]
        %v606 = vld [vmem:[%s0 + $0x2c] sm:$0xff]
        %v607 = vld [vmem:[%s0 + $0x34] sm:$0xf]
        %v608 = vld [vmem:[%s577] sm:$0xff]
        %v609 = vld [vmem:[%s577 + $0x8] sm:$0xff]
        %v610 = vld [vmem:[%s577 + $0x10] sm:$0xff]
        %v611 = vld [vmem:[%s577 + $0x18] sm:$0xff]
        %v612 = vld [vmem:[%s577 + $0x20] sm:$0xff]
        %v613 = vld [vmem:[%s577 + $0x28] sm:$0xff]
        %v614 = vld [vmem:[%s577 + $0x30] sm:$0xff]
        %v615 = vld [vmem:[%s577 + $0x38] sm:$0xff]
        %v616 = vld [vmem:[%s577 + $0x40] sm:$0xff]
        %v617 = vld [vmem:[%s577 + $0x48] sm:$0xff]
        %v618 = vld [vmem:[%s577 + $0x50] sm:$0xff]
        %v619 = vld [vmem:[%s577 + $0x58] sm:$0xff]
        %v620 = vld [vmem:[%s577 + $0x60] sm:$0xff]
        %v621 = vld [vmem:[%s577 + $0x68] sm:$0xff]
        %v622 = vld [vmem:[%s577 + $0x70] sm:$0xff]
        %v623 = vld [vmem:[%s577 + $0x78] sm:$0xff]
        %v624 = vld [vmem:[%s577 + $0x80] sm:$0xff]
        %v625 = vld [vmem:[%s577 + $0x88] sm:$0xff]
        %v626 = vld [vmem:[%s577 + $0x90] sm:$0xff]
        %v627 = vld [vmem:[%s577 + $0x98] sm:$0xff]
        %v628 = vld [vmem:[%s577 + $0xa0] sm:$0xff]
        %v629 = vld [vmem:[%s577 + $0xa8] sm:$0xff]
        %v630 = vld [vmem:[%s577 + $0xb0] sm:$0xff]
        %v631 = vld [vmem:[%s577 + $0xb8] sm:$0xff]
        %v632 = vld [vmem:[%s577 + $0xc0] sm:$0xff]
        %v633 = vld [vmem:[%s577 + $0xc8] sm:$0xff]
        %v634 = vld [vmem:[%s577 + $0xd0] sm:$0xff]
        %v635 = vld [vmem:[%s577 + $0xd8] sm:$0xff]
        %v636 = vld [vmem:[%s577 + $0xe0] sm:$0xff]
        %v637 = vld [vmem:[%s577 + $0xe8] sm:$0xff]
        %v638 = vld [vmem:[%s577 + $0xf0] sm:$0xff]
        %v639 = vld [vmem:[%s577 + $0xf8] sm:$0xff]
        %v640 = vld [vmem:[%s577 + $0x100] sm:$0xff]
        %v641 = vld [vmem:[%s577 + $0x108] sm:$0xff]
        %v642 = vld [vmem:[%s577 + $0x110] sm:$0xff]
        %v643 = vld [vmem:[%s577 + $0x118] sm:$0xff]
        %v644 = vld [vmem:[%s577 + $0x120] sm:$0xff]
        %v645 = vld [vmem:[%s577 + $0x128] sm:$0xff]
        %v646 = vld [vmem:[%s577 + $0x130] sm:$0xff]
        %v647 = vld [vmem:[%s577 + $0x138] sm:$0xff]
        %v648 = vld [vmem:[%s577 + $0x140] sm:$0xff]
        %v649 = vld [vmem:[%s577 + $0x148] sm:$0xff]
        %v650 = vld [vmem:[%s577 + $0x150] sm:$0xff]
        %v651 = vld [vmem:[%s577 + $0x158] sm:$0xff]
        %v652 = vld [vmem:[%s577 + $0x160] sm:$0xff]
        %v653 = vld [vmem:[%s577 + $0x168] sm:$0xff]
        %v654 = vld [vmem:[%s577 + $0x170] sm:$0xff]
        %v655 = vld [vmem:[%s577 + $0x178] sm:$0xff]
        %v656 = vld [vmem:[%s577 + $0x180] sm:$0xff]
        %v657 = vld [vmem:[%s577 + $0x188] sm:$0xff]
        %v658 = vld [vmem:[%s577 + $0x190] sm:$0xff]
        %v659 = vld [vmem:[%s577 + $0x198] sm:$0xff]
        %v660 = vld [vmem:[%s577 + $0x1a0] sm:$0xff]
        %v661 = vld [vmem:[%s577 + $0x1a8] sm:$0xff]
        %v662 = vld [vmem:[%s577 + $0x1b0] sm:$0xff]
        %v663 = vld [vmem:[%s577 + $0x1b8] sm:$0xff]
        %v664 = vld [vmem:[%s577 + $0x1c0] sm:$0xff]
        %v665 = vld [vmem:[%s577 + $0x1c8] sm:$0xff]
        %v666 = vld [vmem:[%s577 + $0x1d0] sm:$0xff]
        %v667 = vld [vmem:[%s577 + $0x1d8] sm:$0xff]
        %v668 = vld [vmem:[%s577 + $0x1e0] sm:$0xff]
        %v669 = vld [vmem:[%s577 + $0x1e8] sm:$0xff]
        %v670 = vld [vmem:[%s577 + $0x1f0] sm:$0xff]
        %v671 = vld [vmem:[%s577 + $0x1f8] sm:$0xff]
        %v672 = vld [vmem:[%s577 + $0x200] sm:$0xff]
        %v673 = vld [vmem:[%s577 + $0x208] sm:$0xff]
        %v674 = vld [vmem:[%s577 + $0x210] sm:$0xff]
        %v675 = vld [vmem:[%s577 + $0x218] sm:$0xff]
        %v676 = vld [vmem:[%s577 + $0x220] sm:$0xff]
        %v677 = vld [vmem:[%s577 + $0x228] sm:$0xff]
        %v678 = vld [vmem:[%s577 + $0x230] sm:$0xff]
        %v679 = vld [vmem:[%s577 + $0x238] sm:$0xff]
        %v680 = vld [vmem:[%s577 + $0x240] sm:$0xff]
        %v681 = vld [vmem:[%s577 + $0x248] sm:$0xff]
        %v682 = vld [vmem:[%s577 + $0x250] sm:$0xff]
        %v683 = vld [vmem:[%s577 + $0x258] sm:$0xff]
        %v684 = vld [vmem:[%s577 + $0x260] sm:$0xff]
        %v685 = vld [vmem:[%s577 + $0x268] sm:$0xff]
        %v686 = vld [vmem:[%s577 + $0x270] sm:$0xff]
        %v687 = vld [vmem:[%s577 + $0x278] sm:$0xff]
        %v688 = vld [vmem:[%s577 + $0x280] sm:$0xff]
        %v689 = vld [vmem:[%s577 + $0x288] sm:$0xff]
        %v690 = vld [vmem:[%s577 + $0x290] sm:$0xff]
        %v691 = vld [vmem:[%s577 + $0x298] sm:$0xff]
        %v692 = vld [vmem:[%s577 + $0x2a0] sm:$0xff]
        %v693 = vld [vmem:[%s577 + $0x2a8] sm:$0xff]
        %v694 = vld [vmem:[%s577 + $0x2b0] sm:$0xff]
        %v695 = vld [vmem:[%s577 + $0x2b8] sm:$0xff]
        %v696 = vld [vmem:[%s577 + $0x2c0] sm:$0xff]
        %v697 = vld [vmem:[%s577 + $0x2c8] sm:$0xff]
        %v698 = vld [vmem:[%s577 + $0x2d0] sm:$0xff]
        %v699 = vld [vmem:[%s577 + $0x2d8] sm:$0xff]
        %v700 = vld [vmem:[%s577 + $0x2e0] sm:$0xff]
        %v701 = vld [vmem:[%s577 + $0x2e8] sm:$0xff]
        %v702 = vld [vmem:[%s577 + $0x2f0] sm:$0xff]
        %v703 = vld [vmem:[%s577 + $0x2f8] sm:$0xff]
        %v704 = vld [vmem:[%s577 + $0x300] sm:$0xff]
        %v705 = vld [vmem:[%s577 + $0x308] sm:$0xff]
        %v706 = vld [vmem:[%s577 + $0x310] sm:$0xff]
        %v707 = vld [vmem:[%s577 + $0x318] sm:$0xff]
        %v708 = vld [vmem:[%s1] sm:$0xff]
        %v709 = vld [vmem:[%s1 + $0x8] sm:$0xff]
        %711 = vset.pattern.permute.xlu0 0
        %712 = vperm.xlu0 %711, %v708
        %v713 = vpop.permute.xlu0 %712
        %716 = vset.pattern.permute.xlu0 0
        %717 = vperm.xlu0 %716, %v709
        %v718 = vpop.permute.xlu0 %717
        %v728 = vunpack.c.l.b16 %v600
        %v729 = vunpack.c.h.b16 %v600
        %v730 = vunpack.c.l.b16 %v601
        %v731 = vunpack.c.h.b16 %v601
        %v732 = vunpack.c.l.b16 %v602
        %v733 = vunpack.c.h.b16 %v602
        %v734 = vunpack.c.l.b16 %v603
        %v735 = vunpack.c.l.b16 %v604
        %v736 = vunpack.c.h.b16 %v604
        %v737 = vunpack.c.l.b16 %v605
        %v738 = vunpack.c.h.b16 %v605
        %v739 = vunpack.c.l.b16 %v606
        %v740 = vunpack.c.h.b16 %v606
        %v741 = vunpack.c.l.b16 %v607
        %v742 = vpack.c.b16 %v735, %v728
        %v743 = vpack.c.b16 %v736, %v729
        %v744 = vpack.c.b16 %v737, %v730
        %v745 = vpack.c.b16 %v738, %v731
        %v746 = vpack.c.b16 %v739, %v732
        %v747 = vpack.c.b16 %v740, %v733
        %v748 = vpack.c.b16 %v741, %v734
        %v855 = vunpack.c.l.b16 %v608
        %v856 = vunpack.c.h.b16 %v608
        %v857 = vunpack.c.l.b16 %v609
        %v858 = vunpack.c.h.b16 %v609
        %v859 = vunpack.c.l.b16 %v610
        %v860 = vunpack.c.h.b16 %v610
        %v861 = vunpack.c.l.b16 %v611
        %v862 = vunpack.c.h.b16 %v611
        %v863 = vunpack.c.l.b16 %v612
        %v864 = vunpack.c.h.b16 %v612
        %v865 = vunpack.c.l.b16 %v613
        %v866 = vunpack.c.h.b16 %v613
        %v867 = vunpack.c.l.b16 %v614
        %v868 = vunpack.c.h.b16 %v614
        %v869 = vunpack.c.l.b16 %v615
        %v870 = vunpack.c.h.b16 %v615
        %v871 = vunpack.c.l.b16 %v616
        %v872 = vunpack.c.h.b16 %v616
        %v873 = vunpack.c.l.b16 %v617
        %v874 = vunpack.c.h.b16 %v617
        %v875 = vunpack.c.l.b16 %v618
        %v876 = vunpack.c.h.b16 %v618
        %v877 = vunpack.c.l.b16 %v619
        %v878 = vunpack.c.h.b16 %v619
        %v879 = vunpack.c.l.b16 %v620
        %v880 = vunpack.c.h.b16 %v620
        %v881 = vunpack.c.l.b16 %v621
        %v882 = vunpack.c.h.b16 %v621
        %v883 = vunpack.c.l.b16 %v622
        %v884 = vunpack.c.h.b16 %v622
        %v885 = vunpack.c.l.b16 %v623
        %v886 = vunpack.c.h.b16 %v623
        %v887 = vunpack.c.l.b16 %v624
        %v888 = vunpack.c.h.b16 %v624
        %v889 = vunpack.c.l.b16 %v625
        %v890 = vunpack.c.h.b16 %v625
        %v891 = vunpack.c.l.b16 %v626
        %v892 = vunpack.c.h.b16 %v626
        %v893 = vunpack.c.l.b16 %v627
        %v894 = vunpack.c.h.b16 %v627
        %v895 = vunpack.c.l.b16 %v628
        %v896 = vunpack.c.h.b16 %v628
        %v897 = vunpack.c.l.b16 %v629
        %v898 = vunpack.c.h.b16 %v629
        %v899 = vunpack.c.l.b16 %v630
        %v900 = vunpack.c.h.b16 %v630
        %v901 = vunpack.c.l.b16 %v631
        %v902 = vunpack.c.h.b16 %v631
        %v903 = vunpack.c.l.b16 %v632
        %v904 = vunpack.c.h.b16 %v632
        %v905 = vunpack.c.l.b16 %v633
        %v906 = vunpack.c.h.b16 %v633
        %v907 = vunpack.c.l.b16 %v634
        %v908 = vunpack.c.h.b16 %v634
        %v909 = vunpack.c.l.b16 %v635
        %v910 = vunpack.c.h.b16 %v635
        %v911 = vunpack.c.l.b16 %v636
        %v912 = vunpack.c.h.b16 %v636
        %v913 = vunpack.c.l.b16 %v637
        %v914 = vunpack.c.h.b16 %v637
        %v915 = vunpack.c.l.b16 %v638
        %v916 = vunpack.c.h.b16 %v638
        %v917 = vunpack.c.l.b16 %v639
        %v918 = vunpack.c.h.b16 %v639
        %v919 = vunpack.c.l.b16 %v640
        %v920 = vunpack.c.h.b16 %v640
        %v921 = vunpack.c.l.b16 %v641
        %v922 = vunpack.c.h.b16 %v641
        %v923 = vunpack.c.l.b16 %v642
        %v924 = vunpack.c.h.b16 %v642
        %v925 = vunpack.c.l.b16 %v643
        %v926 = vunpack.c.h.b16 %v643
        %v927 = vunpack.c.l.b16 %v644
        %v928 = vunpack.c.h.b16 %v644
        %v929 = vunpack.c.l.b16 %v645
        %v930 = vunpack.c.h.b16 %v645
        %v931 = vunpack.c.l.b16 %v646
        %v932 = vunpack.c.h.b16 %v646
        %v933 = vunpack.c.l.b16 %v647
        %v934 = vunpack.c.h.b16 %v647
        %v935 = vunpack.c.l.b16 %v648
        %v936 = vunpack.c.h.b16 %v648
        %v937 = vunpack.c.l.b16 %v649
        %v938 = vunpack.c.h.b16 %v649
        %v939 = vunpack.c.l.b16 %v650
        %v940 = vunpack.c.h.b16 %v650
        %v941 = vunpack.c.l.b16 %v651
        %v942 = vunpack.c.h.b16 %v651
        %v943 = vunpack.c.l.b16 %v652
        %v944 = vunpack.c.h.b16 %v652
        %v945 = vunpack.c.l.b16 %v653
        %v946 = vunpack.c.h.b16 %v653
        %v947 = vunpack.c.l.b16 %v654
        %v948 = vunpack.c.h.b16 %v654
        %v949 = vunpack.c.l.b16 %v655
        %v950 = vunpack.c.h.b16 %v655
        %v951 = vunpack.c.l.b16 %v656
        %v952 = vunpack.c.h.b16 %v656
        %v953 = vunpack.c.l.b16 %v657
        %v954 = vunpack.c.h.b16 %v657
        %v955 = vunpack.c.l.b16 %v658
        %v956 = vunpack.c.h.b16 %v658
        %v957 = vunpack.c.l.b16 %v659
        %v958 = vunpack.c.h.b16 %v659
        %v959 = vunpack.c.l.b16 %v660
        %v960 = vunpack.c.h.b16 %v660
        %v961 = vunpack.c.l.b16 %v661
        %v962 = vunpack.c.h.b16 %v661
        %v963 = vunpack.c.l.b16 %v662
        %v964 = vunpack.c.h.b16 %v662
        %v965 = vunpack.c.l.b16 %v663
        %v966 = vunpack.c.h.b16 %v663
        %v967 = vunpack.c.l.b16 %v664
        %v968 = vunpack.c.h.b16 %v664
        %v969 = vunpack.c.l.b16 %v665
        %v970 = vunpack.c.h.b16 %v665
        %v971 = vunpack.c.l.b16 %v666
        %v972 = vunpack.c.h.b16 %v666
        %v973 = vunpack.c.l.b16 %v667
        %v974 = vunpack.c.h.b16 %v667
        %v975 = vunpack.c.l.b16 %v668
        %v976 = vunpack.c.h.b16 %v668
        %v977 = vunpack.c.l.b16 %v669
        %v978 = vunpack.c.h.b16 %v669
        %v979 = vunpack.c.l.b16 %v670
        %v980 = vunpack.c.h.b16 %v670
        %v981 = vunpack.c.l.b16 %v671
        %v982 = vunpack.c.h.b16 %v671
        %v983 = vunpack.c.l.b16 %v672
        %v984 = vunpack.c.h.b16 %v672
        %v985 = vunpack.c.l.b16 %v673
        %v986 = vunpack.c.h.b16 %v673
        %v987 = vunpack.c.l.b16 %v674
        %v988 = vunpack.c.h.b16 %v674
        %v989 = vunpack.c.l.b16 %v675
        %v990 = vunpack.c.h.b16 %v675
        %v991 = vunpack.c.l.b16 %v676
        %v992 = vunpack.c.h.b16 %v676
        %v993 = vunpack.c.l.b16 %v677
        %v994 = vunpack.c.h.b16 %v677
        %v995 = vunpack.c.l.b16 %v678
        %v996 = vunpack.c.h.b16 %v678
        %v997 = vunpack.c.l.b16 %v679
        %v998 = vunpack.c.h.b16 %v679
        %v999 = vunpack.c.l.b16 %v680
        %v1000 = vunpack.c.h.b16 %v680
        %v1001 = vunpack.c.l.b16 %v681
        %v1002 = vunpack.c.h.b16 %v681
        %v1003 = vunpack.c.l.b16 %v682
        %v1004 = vunpack.c.h.b16 %v682
        %v1005 = vunpack.c.l.b16 %v683
        %v1006 = vunpack.c.h.b16 %v683
        %v1007 = vunpack.c.l.b16 %v684
        %v1008 = vunpack.c.h.b16 %v684
        %v1009 = vunpack.c.l.b16 %v685
        %v1010 = vunpack.c.h.b16 %v685
        %v1011 = vunpack.c.l.b16 %v686
        %v1012 = vunpack.c.h.b16 %v686
        %v1013 = vunpack.c.l.b16 %v687
        %v1014 = vunpack.c.h.b16 %v687
        %v1015 = vunpack.c.l.b16 %v688
        %v1016 = vunpack.c.h.b16 %v688
        %v1017 = vunpack.c.l.b16 %v689
        %v1018 = vunpack.c.h.b16 %v689
        %v1019 = vunpack.c.l.b16 %v690
        %v1020 = vunpack.c.h.b16 %v690
        %v1021 = vunpack.c.l.b16 %v691
        %v1022 = vunpack.c.h.b16 %v691
        %v1023 = vunpack.c.l.b16 %v692
        %v1024 = vunpack.c.h.b16 %v692
        %v1025 = vunpack.c.l.b16 %v693
        %v1026 = vunpack.c.h.b16 %v693
        %v1027 = vunpack.c.l.b16 %v694
        %v1028 = vunpack.c.h.b16 %v694
        %v1029 = vunpack.c.l.b16 %v695
        %v1030 = vunpack.c.h.b16 %v695
        %v1031 = vunpack.c.l.b16 %v696
        %v1032 = vunpack.c.h.b16 %v696
        %v1033 = vunpack.c.l.b16 %v697
        %v1034 = vunpack.c.h.b16 %v697
        %v1035 = vunpack.c.l.b16 %v698
        %v1036 = vunpack.c.h.b16 %v698
        %v1037 = vunpack.c.l.b16 %v699
        %v1038 = vunpack.c.h.b16 %v699
        %v1039 = vunpack.c.l.b16 %v700
        %v1040 = vunpack.c.h.b16 %v700
        %v1041 = vunpack.c.l.b16 %v701
        %v1042 = vunpack.c.h.b16 %v701
        %v1043 = vunpack.c.l.b16 %v702
        %v1044 = vunpack.c.h.b16 %v702
        %v1045 = vunpack.c.l.b16 %v703
        %v1046 = vunpack.c.h.b16 %v703
        %v1047 = vunpack.c.l.b16 %v704
        %v1048 = vunpack.c.h.b16 %v704
        %v1049 = vunpack.c.l.b16 %v705
        %v1050 = vunpack.c.h.b16 %v705
        %v1051 = vunpack.c.l.b16 %v706
        %v1052 = vunpack.c.h.b16 %v706
        %v1053 = vunpack.c.l.b16 %v707
        %v1054 = vunpack.c.h.b16 %v707
        %v1055 = vpack.c.b16 %v857, %v855
        %v1056 = vpack.c.b16 %v858, %v856
        %v1057 = vpack.c.b16 %v861, %v859
        %v1058 = vpack.c.b16 %v862, %v860
        %v1059 = vpack.c.b16 %v865, %v863
        %v1060 = vpack.c.b16 %v866, %v864
        %v1061 = vpack.c.b16 %v869, %v867
        %v1062 = vpack.c.b16 %v870, %v868
        %v1063 = vpack.c.b16 %v873, %v871
        %v1064 = vpack.c.b16 %v874, %v872
        %v1065 = vpack.c.b16 %v877, %v875
        %v1066 = vpack.c.b16 %v878, %v876
        %v1067 = vpack.c.b16 %v881, %v879
        %v1068 = vpack.c.b16 %v882, %v880
        %v1069 = vpack.c.b16 %v885, %v883
        %v1070 = vpack.c.b16 %v886, %v884
        %v1071 = vpack.c.b16 %v889, %v887
        %v1072 = vpack.c.b16 %v890, %v888
        %v1073 = vpack.c.b16 %v893, %v891
        %v1074 = vpack.c.b16 %v894, %v892
        %v1075 = vpack.c.b16 %v897, %v895
        %v1076 = vpack.c.b16 %v898, %v896
        %v1077 = vpack.c.b16 %v901, %v899
        %v1078 = vpack.c.b16 %v902, %v900
        %v1079 = vpack.c.b16 %v905, %v903
        %v1080 = vpack.c.b16 %v906, %v904
        %v1081 = vpack.c.b16 %v909, %v907
        %v1082 = vpack.c.b16 %v910, %v908
        %v1083 = vpack.c.b16 %v913, %v911
        %v1084 = vpack.c.b16 %v914, %v912
        %v1085 = vpack.c.b16 %v917, %v915
        %v1086 = vpack.c.b16 %v918, %v916
        %v1087 = vpack.c.b16 %v921, %v919
        %v1088 = vpack.c.b16 %v922, %v920
        %v1089 = vpack.c.b16 %v925, %v923
        %v1090 = vpack.c.b16 %v926, %v924
        %v1091 = vpack.c.b16 %v929, %v927
        %v1092 = vpack.c.b16 %v930, %v928
        %v1093 = vpack.c.b16 %v933, %v931
        %v1094 = vpack.c.b16 %v934, %v932
        %v1095 = vpack.c.b16 %v937, %v935
        %v1096 = vpack.c.b16 %v938, %v936
        %v1097 = vpack.c.b16 %v941, %v939
        %v1098 = vpack.c.b16 %v942, %v940
        %v1099 = vpack.c.b16 %v945, %v943
        %v1100 = vpack.c.b16 %v946, %v944
        %v1101 = vpack.c.b16 %v949, %v947
        %v1102 = vpack.c.b16 %v950, %v948
        %v1103 = vpack.c.b16 %v953, %v951
        %v1104 = vpack.c.b16 %v954, %v952
        %v1105 = vpack.c.b16 %v957, %v955
        %v1106 = vpack.c.b16 %v958, %v956
        %v1107 = vpack.c.b16 %v961, %v959
        %v1108 = vpack.c.b16 %v962, %v960
        %v1109 = vpack.c.b16 %v965, %v963
        %v1110 = vpack.c.b16 %v966, %v964
        %v1111 = vpack.c.b16 %v969, %v967
        %v1112 = vpack.c.b16 %v970, %v968
        %v1113 = vpack.c.b16 %v973, %v971
        %v1114 = vpack.c.b16 %v974, %v972
        %v1115 = vpack.c.b16 %v977, %v975
        %v1116 = vpack.c.b16 %v978, %v976
        %v1117 = vpack.c.b16 %v981, %v979
        %v1118 = vpack.c.b16 %v982, %v980
        %v1119 = vpack.c.b16 %v985, %v983
        %v1120 = vpack.c.b16 %v986, %v984
        %v1121 = vpack.c.b16 %v989, %v987
        %v1122 = vpack.c.b16 %v990, %v988
        %v1123 = vpack.c.b16 %v993, %v991
        %v1124 = vpack.c.b16 %v994, %v992
        %v1125 = vpack.c.b16 %v997, %v995
        %v1126 = vpack.c.b16 %v998, %v996
        %v1127 = vpack.c.b16 %v1001, %v999
        %v1128 = vpack.c.b16 %v1002, %v1000
        %v1129 = vpack.c.b16 %v1005, %v1003
        %v1130 = vpack.c.b16 %v1006, %v1004
        %v1131 = vpack.c.b16 %v1009, %v1007
        %v1132 = vpack.c.b16 %v1010, %v1008
        %v1133 = vpack.c.b16 %v1013, %v1011
        %v1134 = vpack.c.b16 %v1014, %v1012
        %v1135 = vpack.c.b16 %v1017, %v1015
        %v1136 = vpack.c.b16 %v1018, %v1016
        %v1137 = vpack.c.b16 %v1021, %v1019
        %v1138 = vpack.c.b16 %v1022, %v1020
        %v1139 = vpack.c.b16 %v1025, %v1023
        %v1140 = vpack.c.b16 %v1026, %v1024
        %v1141 = vpack.c.b16 %v1029, %v1027
        %v1142 = vpack.c.b16 %v1030, %v1028
        %v1143 = vpack.c.b16 %v1033, %v1031
        %v1144 = vpack.c.b16 %v1034, %v1032
        %v1145 = vpack.c.b16 %v1037, %v1035
        %v1146 = vpack.c.b16 %v1038, %v1036
        %v1147 = vpack.c.b16 %v1041, %v1039
        %v1148 = vpack.c.b16 %v1042, %v1040
        %v1149 = vpack.c.b16 %v1045, %v1043
        %v1150 = vpack.c.b16 %v1046, %v1044
        %v1151 = vpack.c.b16 %v1049, %v1047
        %v1152 = vpack.c.b16 %v1050, %v1048
        %v1153 = vpack.c.b16 %v1053, %v1051
        %v1154 = vpack.c.b16 %v1054, %v1052
        %vm1255 = vcmask 261120
        %v1257 = vsel %vm1255, %v748, 0
        %1259 = vmatpush.bf16.msra.mxu0 %v1069
        %1260 = vmatpush.bf16.msra.mxu0 %v1067
        %1261 = vmatpush.bf16.msra.mxu0 %v1065
        %1262 = vmatpush.bf16.msra.mxu0 %v1063
        %1263 = vmatpush.bf16.msra.mxu0 %v1061
        %1264 = vmatpush.bf16.msra.mxu0 %v1059
        %1265 = vmatpush.bf16.msra.mxu0 %v1057
        %1266 = vmatpush.bf16.msra.mxu0 %v1055
        %1267 = vmatmul.bf16.gmra.mxu0 %v742
        %v1268 = vpop.f32.mrf.mxu0
        %v1269 = vadd.f32 %v713, %v1268
        %v1270 = vpop.f32.mrf.mxu0
        %v1271 = vadd.f32 %v718, %v1270
        %1272 = vdwg.mxu0
        %1273 = vmatpush.bf16.msra.mxu0 %v1085
        %1274 = vmatpush.bf16.msra.mxu0 %v1083
        %1275 = vmatpush.bf16.msra.mxu0 %v1081
        %1276 = vmatpush.bf16.msra.mxu0 %v1079
        %1277 = vmatpush.bf16.msra.mxu0 %v1077
        %1278 = vmatpush.bf16.msra.mxu0 %v1075
        %1279 = vmatpush.bf16.msra.mxu0 %v1073
        %1280 = vmatpush.bf16.msra.mxu0 %v1071
        %1281 = vmatmul.bf16.gmra.mxu0 %v743
        %v1282 = vpop.f32.mrf.mxu0
        %v1283 = vadd.f32 %v1269, %v1282
        %v1284 = vpop.f32.mrf.mxu0
        %v1285 = vadd.f32 %v1271, %v1284
        %1286 = vdwg.mxu0
        %1287 = vmatpush.bf16.msra.mxu0 %v1101
        %1288 = vmatpush.bf16.msra.mxu0 %v1099
        %1289 = vmatpush.bf16.msra.mxu0 %v1097
        %1290 = vmatpush.bf16.msra.mxu0 %v1095
        %1291 = vmatpush.bf16.msra.mxu0 %v1093
        %1292 = vmatpush.bf16.msra.mxu0 %v1091
        %1293 = vmatpush.bf16.msra.mxu0 %v1089
        %1294 = vmatpush.bf16.msra.mxu0 %v1087
        %1295 = vmatmul.bf16.gmra.mxu0 %v744
        %v1296 = vpop.f32.mrf.mxu0
        %v1297 = vadd.f32 %v1283, %v1296
        %v1298 = vpop.f32.mrf.mxu0
        %v1299 = vadd.f32 %v1285, %v1298
        %1300 = vdwg.mxu0
        %1301 = vmatpush.bf16.msra.mxu0 %v1117
        %1302 = vmatpush.bf16.msra.mxu0 %v1115
        %1303 = vmatpush.bf16.msra.mxu0 %v1113
        %1304 = vmatpush.bf16.msra.mxu0 %v1111
        %1305 = vmatpush.bf16.msra.mxu0 %v1109
        %1306 = vmatpush.bf16.msra.mxu0 %v1107
        %1307 = vmatpush.bf16.msra.mxu0 %v1105
        %1308 = vmatpush.bf16.msra.mxu0 %v1103
        %1309 = vmatmul.bf16.gmra.mxu0 %v745
        %v1310 = vpop.f32.mrf.mxu0
        %v1311 = vadd.f32 %v1297, %v1310
        %v1312 = vpop.f32.mrf.mxu0
        %v1313 = vadd.f32 %v1299, %v1312
        %1314 = vdwg.mxu0
        %1315 = vmatpush.bf16.msra.mxu0 %v1133
        %1316 = vmatpush.bf16.msra.mxu0 %v1131
        %1317 = vmatpush.bf16.msra.mxu0 %v1129
        %1318 = vmatpush.bf16.msra.mxu0 %v1127
        %1319 = vmatpush.bf16.msra.mxu0 %v1125
        %1320 = vmatpush.bf16.msra.mxu0 %v1123
        %1321 = vmatpush.bf16.msra.mxu0 %v1121
        %1322 = vmatpush.bf16.msra.mxu0 %v1119
        %1323 = vmatmul.bf16.gmra.mxu0 %v746
        %v1324 = vpop.f32.mrf.mxu0
        %v1325 = vadd.f32 %v1311, %v1324
        %v1326 = vpop.f32.mrf.mxu0
        %v1327 = vadd.f32 %v1313, %v1326
        %1328 = vdwg.mxu0
        %1329 = vmatpush.bf16.msra.mxu0 %v1149
        %1330 = vmatpush.bf16.msra.mxu0 %v1147
        %1331 = vmatpush.bf16.msra.mxu0 %v1145
        %1332 = vmatpush.bf16.msra.mxu0 %v1143
        %1333 = vmatpush.bf16.msra.mxu0 %v1141
        %1334 = vmatpush.bf16.msra.mxu0 %v1139
        %1335 = vmatpush.bf16.msra.mxu0 %v1137
        %1336 = vmatpush.bf16.msra.mxu0 %v1135
        %1337 = vmatmul.bf16.gmra.mxu0 %v747
        %v1338 = vpop.f32.mrf.mxu0
        %v1339 = vadd.f32 %v1325, %v1338
        %v1340 = vpop.f32.mrf.mxu0
        %v1341 = vadd.f32 %v1327, %v1340
        %1342 = vdwg.mxu0
        %1343 = vmatpush.bf16.msra.mxu0 0
        %1344 = vmatpush.bf16.msra.mxu0 0
        %1345 = vmatpush.bf16.msra.mxu0 0
        %1346 = vmatpush.bf16.msra.mxu0 0
        %1347 = vmatpush.bf16.msra.mxu0 0
        %1348 = vmatpush.bf16.msra.mxu0 0
        %1349 = vmatpush.bf16.msra.mxu0 %v1153
        %1350 = vmatpush.bf16.msra.mxu0 %v1151
        %1351 = vmatmul.bf16.gmra.mxu0 %v1257
        %v1352 = vpop.f32.mrf.mxu0
        %v1353 = vadd.f32 %v1339, %v1352
        %v1354 = vpop.f32.mrf.mxu0
        %v1355 = vadd.f32 %v1341, %v1354
        %1356 = vdwg.mxu0
        %1357 = vmatpush.bf16.msra.mxu0 %v1070
        %1358 = vmatpush.bf16.msra.mxu0 %v1068
        %1359 = vmatpush.bf16.msra.mxu0 %v1066
        %1360 = vmatpush.bf16.msra.mxu0 %v1064
        %1361 = vmatpush.bf16.msra.mxu0 %v1062
        %1362 = vmatpush.bf16.msra.mxu0 %v1060
        %1363 = vmatpush.bf16.msra.mxu0 %v1058
        %1364 = vmatpush.bf16.msra.mxu0 %v1056
        %1365 = vmatmul.bf16.gmra.mxu0 %v742
        %v1366 = vpop.f32.mrf.mxu0
        %v1367 = vadd.f32 %v713, %v1366
        %v1368 = vpop.f32.mrf.mxu0
        %v1369 = vadd.f32 %v718, %v1368
        %1370 = vdwg.mxu0
        %1371 = vmatpush.bf16.msra.mxu0 %v1086
        %1372 = vmatpush.bf16.msra.mxu0 %v1084
        %1373 = vmatpush.bf16.msra.mxu0 %v1082
        %1374 = vmatpush.bf16.msra.mxu0 %v1080
        %1375 = vmatpush.bf16.msra.mxu0 %v1078
        %1376 = vmatpush.bf16.msra.mxu0 %v1076
        %1377 = vmatpush.bf16.msra.mxu0 %v1074
        %1378 = vmatpush.bf16.msra.mxu0 %v1072
        %1379 = vmatmul.bf16.gmra.mxu0 %v743
        %v1380 = vpop.f32.mrf.mxu0
        %v1381 = vadd.f32 %v1367, %v1380
        %v1382 = vpop.f32.mrf.mxu0
        %v1383 = vadd.f32 %v1369, %v1382
        %1384 = vdwg.mxu0
        %1385 = vmatpush.bf16.msra.mxu0 %v1102
        %1386 = vmatpush.bf16.msra.mxu0 %v1100
        %1387 = vmatpush.bf16.msra.mxu0 %v1098
        %1388 = vmatpush.bf16.msra.mxu0 %v1096
        %1389 = vmatpush.bf16.msra.mxu0 %v1094
        %1390 = vmatpush.bf16.msra.mxu0 %v1092
        %1391 = vmatpush.bf16.msra.mxu0 %v1090
        %1392 = vmatpush.bf16.msra.mxu0 %v1088
        %1393 = vmatmul.bf16.gmra.mxu0 %v744
        %v1394 = vpop.f32.mrf.mxu0
        %v1395 = vadd.f32 %v1381, %v1394
        %v1396 = vpop.f32.mrf.mxu0
        %v1397 = vadd.f32 %v1383, %v1396
        %1398 = vdwg.mxu0
        %1399 = vmatpush.bf16.msra.mxu0 %v1118
        %1400 = vmatpush.bf16.msra.mxu0 %v1116
        %1401 = vmatpush.bf16.msra.mxu0 %v1114
        %1402 = vmatpush.bf16.msra.mxu0 %v1112
        %1403 = vmatpush.bf16.msra.mxu0 %v1110
        %1404 = vmatpush.bf16.msra.mxu0 %v1108
        %1405 = vmatpush.bf16.msra.mxu0 %v1106
        %1406 = vmatpush.bf16.msra.mxu0 %v1104
        %1407 = vmatmul.bf16.gmra.mxu0 %v745
        %v1408 = vpop.f32.mrf.mxu0
        %v1409 = vadd.f32 %v1395, %v1408
        %v1410 = vpop.f32.mrf.mxu0
        %v1411 = vadd.f32 %v1397, %v1410
        %1412 = vdwg.mxu0
        %1413 = vmatpush.bf16.msra.mxu0 %v1134
        %1414 = vmatpush.bf16.msra.mxu0 %v1132
        %1415 = vmatpush.bf16.msra.mxu0 %v1130
        %1416 = vmatpush.bf16.msra.mxu0 %v1128
        %1417 = vmatpush.bf16.msra.mxu0 %v1126
        %1418 = vmatpush.bf16.msra.mxu0 %v1124
        %1419 = vmatpush.bf16.msra.mxu0 %v1122
        %1420 = vmatpush.bf16.msra.mxu0 %v1120
        %1421 = vmatmul.bf16.gmra.mxu0 %v746
        %v1422 = vpop.f32.mrf.mxu0
        %v1423 = vadd.f32 %v1409, %v1422
        %v1424 = vpop.f32.mrf.mxu0
        %v1425 = vadd.f32 %v1411, %v1424
        %1426 = vdwg.mxu0
        %1427 = vmatpush.bf16.msra.mxu0 %v1150
        %1428 = vmatpush.bf16.msra.mxu0 %v1148
        %1429 = vmatpush.bf16.msra.mxu0 %v1146
        %1430 = vmatpush.bf16.msra.mxu0 %v1144
        %1431 = vmatpush.bf16.msra.mxu0 %v1142
        %1432 = vmatpush.bf16.msra.mxu0 %v1140
        %1433 = vmatpush.bf16.msra.mxu0 %v1138
        %1434 = vmatpush.bf16.msra.mxu0 %v1136
        %1435 = vmatmul.bf16.gmra.mxu0 %v747
        %v1436 = vpop.f32.mrf.mxu0
        %v1437 = vadd.f32 %v1423, %v1436
        %v1438 = vpop.f32.mrf.mxu0
        %v1439 = vadd.f32 %v1425, %v1438
        %1440 = vdwg.mxu0
        %1441 = vmatpush.bf16.msra.mxu0 0
        %1442 = vmatpush.bf16.msra.mxu0 0
        %1443 = vmatpush.bf16.msra.mxu0 0
        %1444 = vmatpush.bf16.msra.mxu0 0
        %1445 = vmatpush.bf16.msra.mxu0 0
        %1446 = vmatpush.bf16.msra.mxu0 0
        %1447 = vmatpush.bf16.msra.mxu0 %v1154
        %1448 = vmatpush.bf16.msra.mxu0 %v1152
        %1449 = vmatmul.bf16.gmra.mxu0 %v1257
        %v1450 = vpop.f32.mrf.mxu0
        %v1451 = vadd.f32 %v1437, %v1450
        %v1452 = vpop.f32.mrf.mxu0
        %v1453 = vadd.f32 %v1439, %v1452
        %1454 = vdwg.mxu0
        %vm1455 = vcmp.gt.f32.partialorder %v1353, 0.0
        %vm1456 = vcmp.gt.f32.partialorder %v1451, 0.0
        %vm1457 = vcmp.gt.f32.partialorder %v1355, 0.0
        %vm1458 = vcmp.gt.f32.partialorder %v1453, 0.0
        %v1459 = vmul.f32 %v1353, 0.01
        %v1460 = vmul.f32 %v1451, 0.01
        %v1461 = vmul.f32 %v1355, 0.01
        %v1462 = vmul.f32 %v1453, 0.01
        %v1463 = vsel %vm1455, %v1353, %v1459
        %v1464 = vsel %vm1456, %v1451, %v1460
        %v1465 = vsel %vm1457, %v1355, %v1461
        %v1466 = vsel %vm1458, %v1453, %v1462
        %v1467 = vpack.c.bf16 %v1464, %v1463
        %v1468 = vpack.c.bf16 %v1466, %v1465
        %1469 = vst [vmem:[%s596] sm:$0xff] %v1467
        %1470 = vst [vmem:[%s596 + $0x8] sm:$0xff] %v1468
        %s1471 = sand.u32 %s90, 1
        %s1472 = sand.u32 %s90, 1
        %s1473 = smul.addr %s1472, 16
        %s1474 = scalar_lea.vmem [#allocation3], %s1473
        // Predicated region
        $region71: #{net_forward.4} parent=65 // pred_check
          %p1475 = pneg %p100
        $region72: #{net_forward.4} parent=65 // pred_check_branch
          %1477 = sbr.rel (%p1475) target = $region74
        $region73: #{net_forward.4} parent=65 // pred_region
          %s1478 = smul.u32 2, %s14
          %s1479 = smul.addr %s1478, 4
          %s1480 = scalar_lea.vmem %s3, %s1479
          // Predicated region
          $region75: #{net_forward.4} parent=73 // pred_check
            _
          $region76: #{net_forward.4} parent=73 // pred_check_branch
            %1482 = sbr.rel (0) target = $region78
          $region77: #{net_forward.4} parent=73 // pred_region
            // Predicated region
            $region79: #{net_forward.4} parent=77 // pred_check
              _
            $region80: #{net_forward.4} parent=77 // pred_check_branch
              %1484 = sbr.rel (0) target = $region82
            $region81: #{net_forward.4} parent=77 // pred_region
              // Predicated region
              $region94: #{net_forward.4} parent=81 // pred_check
                _
              $region95: #{net_forward.4} parent=81 // pred_check_branch
                %1502 = sbr.rel (0) target = $region97
              $region96: #{net_forward.4} parent=81 // pred_region
                loop: start=0, step=1, limit=1
                $region98: #{net_forward.4} parent=96 // loop_pre_header
                  _
                $region99: #{net_forward.4} parent=96 // loop_header
                  %s1504 = sphi 0, %s1508
                  %p1505 = scmp.ge.s32.totalorder %s1504, 1
                  %s1509 = sphi %s1474, %s1474
                  %s1510 = sphi %s1480, %s1480
                $region100: #{net_forward.4} parent=96 // loop_header_branch
                  %1507 = sbr.rel (%p1505) target = $region104
                $region101: #{net_forward.4} parent=96 // loop_body
                  %v1511 = vld [vmem:[%s1509] sm:$0xff]
                  %1512 = vst [vmem:[%s1510] sm:$0xff] %v1511
                  %v1513 = vld [vmem:[%s1509 + $0x8] sm:$0xff]
                  %1514 = vst [vmem:[%s1510 + $0x10] sm:$0xff] %v1513
                $region102: #{net_forward.4} parent=96 // loop_footer
                  %s1508 = sadd.s32 1, %s1504
                $region103: #{net_forward.4} parent=96 // loop_footer_branch
                  %1503 = sbr.rel target = $region99
                $region104: #{net_forward.4} parent=96 // loop_exit
                  _
              $region97: #{net_forward.4} parent=81 // pred_fallthru
                _
              // Predicated region
              $region105: #{net_forward.4} parent=81 // pred_check
                _
              $region106: #{net_forward.4} parent=81 // pred_check_branch
                %1516 = sbr.rel target = $region108
              $region107: #{net_forward.4} parent=81 // pred_region
                _
              $region108: #{net_forward.4} parent=81 // pred_fallthru
                _
            $region82: #{net_forward.4} parent=77 // pred_fallthru
              _
            // Predicated region
            $region83: #{net_forward.4} parent=77 // pred_check
              _
            $region84: #{net_forward.4} parent=77 // pred_check_branch
              %1486 = sbr.rel target = $region86
            $region85: #{net_forward.4} parent=77 // pred_region
              %s1488 = ssub.s32 256, 1
              loop: start=0, step=1, limit=1
              $region87: #{net_forward.4} parent=85 // loop_pre_header
                _
              $region88: #{net_forward.4} parent=85 // loop_header
                %s1490 = sphi 0, %s1494
                %p1491 = scmp.ge.s32.totalorder %s1490, 1
                %s1495 = sphi %s1474, %s1474
                %s1496 = sphi %s1480, %s1480
              $region89: #{net_forward.4} parent=85 // loop_header_branch
                %1493 = sbr.rel (%p1491) target = $region93
              $region90: #{net_forward.4} parent=85 // loop_body
                %v1497 = vld [vmem:[%s1495] sm:%s1488]
                %1498 = vst [vmem:[%s1496] sm:%s1488] %v1497
                %v1499 = vld [vmem:[%s1495 + $0x8] sm:%s1488]
                %1500 = vst [vmem:[%s1496 + $0x10] sm:%s1488] %v1499
              $region91: #{net_forward.4} parent=85 // loop_footer
                %s1494 = sadd.s32 1, %s1490
              $region92: #{net_forward.4} parent=85 // loop_footer_branch
                %1489 = sbr.rel target = $region88
              $region93: #{net_forward.4} parent=85 // loop_exit
                _
            $region86: #{net_forward.4} parent=77 // pred_fallthru
              _
          $region78: #{net_forward.4} parent=73 // pred_fallthru
            _
          %1517 = vnop
        $region74: #{net_forward.4} parent=65 // pred_fallthru
          _
      $region66: #{net_forward.4} parent=5 // pred_fallthru
        _
      %p1518 = scmp.le.s32.totalorder 2, %s9
      // Predicated region
      $region109: #{net_forward.4} parent=5 // pred_check
        %p1519 = pneg %p1518
      $region110: #{net_forward.4} parent=5 // pred_check_branch
        %1521 = sbr.rel (%p1519) target = $region112
      $region111: #{net_forward.4} parent=5 // pred_region
        %s1522 = ssub.s32 %s9, 2
        // Predicated region
        $region113: #{net_forward.4} parent=111 // pred_check
          %p1523 = pneg %p106
        $region114: #{net_forward.4} parent=111 // pred_check_branch
          %1525 = sbr.rel (%p1523) target = $region116
        $region115: #{net_forward.4} parent=111 // pred_region
          %s1526 = sand.u32 %s91, 1
          %s1527 = sand.u32 %s91, 1
          %s1528 = smul.addr %s1527, 16
          %s1529 = scalar_lea.vmem [#allocation3], %s1528
        $region116: #{net_forward.4} parent=111 // pred_fallthru
          _
      $region112: #{net_forward.4} parent=5 // pred_fallthru
        _
    $region6: #{net_forward.4} parent=1 // loop_footer
      %s13 = sadd.s32 1, %s9
    $region7: #{net_forward.4} parent=1 // loop_footer_branch
      %8 = sbr.rel target = $region3
    $region8: #{net_forward.4} parent=1 // loop_exit
      _

// kernel: net_forward.5
$region0: #{net_forward.5}
  #allocation0 [shape = 'u32[]', space=smem, size = 0x4, offset = 0x4, fixed_abs, tag = 'smem constant byte address 0x4 - core index']
  #allocation1 [shape = 'u32[72,128]{1,0:T(1,128)}', space=vmem, size = 0x9000, scoped, tag = 'internal scratch']
  #allocation2 [shape = 'f32[1,1]{1,0:T(1,128)S(1)}', space=vmem, size = 0x200, scoped, tag = 'scoped memory for net_forward.5']
  %s0 = inlined_call_operand.vmem [shape: bf16[16,512], index: 0, kind: input, shape index: {}]
  %s1 = inlined_call_operand.vmem [shape: bf16[9,16,16], index: 1, kind: input, shape index: {}]
  %s2 = inlined_call_operand.vmem [shape: f32[16,1], index: 2, kind: input, shape index: {}]
  %s3 = inlined_call_operand.vmem [shape: bf16[9,16,16], index: 3, kind: input, shape index: {}]
  %s4 = inlined_call_operand.vmem [shape: f32[16,1], index: 4, kind: input, shape index: {}]
  %s5 = inlined_call_operand.vmem [shape: bf16[16,77,64], index: 5, kind: input, shape index: {}]
  %s6 = inlined_call_operand.vmem [shape: f32[1,64], index: 6, kind: input, shape index: {}]
  %s7 = inlined_call_operand.vmem [shape: f32[1,64], index: 7, kind: input, shape index: {}]
  %s8 = inlined_call_operand.<no memory space> [shape: f32[1,1], index: 8, kind: input, shape index: {}]
  %s9 = inlined_call_operand.vmem [shape: f32[1,256], index: 9, kind: output, shape index: {}]
  %s10 = sld [smem:[#allocation0]]
  $region107: #{net_forward.5} parent=0
    _
  %s12 = ssub.s32 1, %s10
  %s13 = scalar_select 0, %s12, %s10
  %v14 = vstv %s8
  %15 = vst [vmem:[#allocation2] sm:$0x1] %v14
  $region1: #{net_forward.5} parent=0
    #allocation3 [shape = 'u8[16384]{0}', space=vmem, size = 0x4000, scoped, tag = 'input window, operand 0']
    loop: start=0, step=1, limit=4
    $region2: #{net_forward.5} parent=1 // loop_pre_header
      _
    $region3: #{net_forward.5} parent=1 // loop_header
      %s17 = sphi 0, %s21
      %p18 = scmp.ge.s32.totalorder %s17, 4
      %s27 = sphi 0, %s29
      %s30 = sphi 0, %s27
      %s31 = sphi 0, %s30
      %s47 = sphi 0, %s31
      %s51 = sphi 0, %s51
      %s53 = sphi 0, %s51
      %s54 = sphi 0, %s53
      %s68 = sphi 0, %s54
      %s72 = sphi 0, %s72
      %s74 = sphi 0, %s72
      %s75 = sphi 0, %s74
      %s89 = sphi 0, %s75
      %s93 = sphi 0, %s93
      %s95 = sphi 0, %s93
      %s96 = sphi 0, %s95
      %s110 = sphi 0, %s96
      %s114 = sphi 0, %s114
      %s116 = sphi 0, %s114
      %s117 = sphi 0, %s116
      %s131 = sphi 0, %s117
      %s135 = sphi 0, %s135
      %s137 = sphi 0, %s135
      %s138 = sphi 0, %s137
      %s152 = sphi 0, %s138
      %s156 = sphi 0, %s156
      %s158 = sphi 0, %s156
      %s159 = sphi 0, %s158
      %s173 = sphi 0, %s159
      %s177 = sphi 0, %s177
      %s179 = sphi 0, %s177
      %s180 = sphi 0, %s179
      %s194 = sphi 0, %s180
      %s198 = sphi 0, %s198
      %s200 = sphi 0, %s198
      %s201 = sphi 0, %s200
      %s215 = sphi 0, %s201
      %s221 = sphi 0, %s223
      %s224 = sphi 0, %s221
      %s225 = sphi 0, %s224
      %s241 = sphi 0, %s225
    $region4: #{net_forward.5} parent=1 // loop_header_branch
      %20 = sbr.rel (%p18) target = $region8
    $region5: #{net_forward.5} parent=1 // loop_body
      %s22 = ssub.s32 %s17, 1
      %s23 = ssub.s32 %s17, 2
      %s24 = sadd.s32 %s17, 1
      %s25 = ssub.s32 %s17, %s24
      %p26 = scmp.eq.s32.totalorder %s25, 0
      %s28 = sadd.s32 %s27, 1
      %s29 = scalar_select %p26, %s27, %s28
      %p32 = pneg %p26
      %p33 = scmp.eq.s32.totalorder %s17, 1
      %p34 = por %p32, %p33
      %p35 = scmp.ne.s32.totalorder %s27, %s30
      %p36 = scmp.eq.s32.totalorder %s17, 0
      %p37 = por %p35, %p36
      %p38 = scmp.ne.s32.totalorder %s27, %s30
      %p39 = scmp.eq.s32.totalorder %s22, 1
      %p40 = por %p38, %p39
      %p41 = scmp.ne.s32.totalorder %s30, %s31
      %p42 = scmp.eq.s32.totalorder %s22, 0
      %p43 = por %p41, %p42
      %p44 = scmp.ne.s32.totalorder %s30, %s31
      %p45 = scmp.eq.s32.totalorder %s23, 1
      %p46 = por %p44, %p45
      %p48 = scmp.ne.s32.totalorder %s31, %s47
      %p49 = scmp.eq.s32.totalorder %s23, 0
      %p50 = por %p48, %p49
      %s52 = sadd.s32 %s51, 1
      %p55 = scmp.eq.s32.totalorder %s17, 1
      %p56 = scmp.ne.s32.totalorder %s51, %s53
      %p57 = scmp.eq.s32.totalorder %s17, 0
      %p58 = por %p56, %p57
      %p59 = scmp.ne.s32.totalorder %s51, %s53
      %p60 = scmp.eq.s32.totalorder %s22, 1
      %p61 = por %p59, %p60
      %p62 = scmp.ne.s32.totalorder %s53, %s54
      %p63 = scmp.eq.s32.totalorder %s22, 0
      %p64 = por %p62, %p63
      %p65 = scmp.ne.s32.totalorder %s53, %s54
      %p66 = scmp.eq.s32.totalorder %s23, 1
      %p67 = por %p65, %p66
      %p69 = scmp.ne.s32.totalorder %s54, %s68
      %p70 = scmp.eq.s32.totalorder %s23, 0
      %p71 = por %p69, %p70
      %s73 = sadd.s32 %s72, 1
      %p76 = scmp.eq.s32.totalorder %s17, 1
      %p77 = scmp.ne.s32.totalorder %s72, %s74
      %p78 = scmp.eq.s32.totalorder %s17, 0
      %p79 = por %p77, %p78
      %p80 = scmp.ne.s32.totalorder %s72, %s74
      %p81 = scmp.eq.s32.totalorder %s22, 1
      %p82 = por %p80, %p81
      %p83 = scmp.ne.s32.totalorder %s74, %s75
      %p84 = scmp.eq.s32.totalorder %s22, 0
      %p85 = por %p83, %p84
      %p86 = scmp.ne.s32.totalorder %s74, %s75
      %p87 = scmp.eq.s32.totalorder %s23, 1
      %p88 = por %p86, %p87
      %p90 = scmp.ne.s32.totalorder %s75, %s89
      %p91 = scmp.eq.s32.totalorder %s23, 0
      %p92 = por %p90, %p91
      %s94 = sadd.s32 %s93, 1
      %p97 = scmp.eq.s32.totalorder %s17, 1
      %p98 = scmp.ne.s32.totalorder %s93, %s95
      %p99 = scmp.eq.s32.totalorder %s17, 0
      %p100 = por %p98, %p99
      %p101 = scmp.ne.s32.totalorder %s93, %s95
      %p102 = scmp.eq.s32.totalorder %s22, 1
      %p103 = por %p101, %p102
      %p104 = scmp.ne.s32.totalorder %s95, %s96
      %p105 = scmp.eq.s32.totalorder %s22, 0
      %p106 = por %p104, %p105
      %p107 = scmp.ne.s32.totalorder %s95, %s96
      %p108 = scmp.eq.s32.totalorder %s23, 1
      %p109 = por %p107, %p108
      %p111 = scmp.ne.s32.totalorder %s96, %s110
      %p112 = scmp.eq.s32.totalorder %s23, 0
      %p113 = por %p111, %p112
      %s115 = sadd.s32 %s114, 1
      %p118 = scmp.eq.s32.totalorder %s17, 1
      %p119 = scmp.ne.s32.totalorder %s114, %s116
      %p120 = scmp.eq.s32.totalorder %s17, 0
      %p121 = por %p119, %p120
      %p122 = scmp.ne.s32.totalorder %s114, %s116
      %p123 = scmp.eq.s32.totalorder %s22, 1
      %p124 = por %p122, %p123
      %p125 = scmp.ne.s32.totalorder %s116, %s117
      %p126 = scmp.eq.s32.totalorder %s22, 0
      %p127 = por %p125, %p126
      %p128 = scmp.ne.s32.totalorder %s116, %s117
      %p129 = scmp.eq.s32.totalorder %s23, 1
      %p130 = por %p128, %p129
      %p132 = scmp.ne.s32.totalorder %s117, %s131
      %p133 = scmp.eq.s32.totalorder %s23, 0
      %p134 = por %p132, %p133
      %s136 = sadd.s32 %s135, 1
      %p139 = scmp.eq.s32.totalorder %s17, 1
      %p140 = scmp.ne.s32.totalorder %s135, %s137
      %p141 = scmp.eq.s32.totalorder %s17, 0
      %p142 = por %p140, %p141
      %p143 = scmp.ne.s32.totalorder %s135, %s137
      %p144 = scmp.eq.s32.totalorder %s22, 1
      %p145 = por %p143, %p144
      %p146 = scmp.ne.s32.totalorder %s137, %s138
      %p147 = scmp.eq.s32.totalorder %s22, 0
      %p148 = por %p146, %p147
      %p149 = scmp.ne.s32.totalorder %s137, %s138
      %p150 = scmp.eq.s32.totalorder %s23, 1
      %p151 = por %p149, %p150
      %p153 = scmp.ne.s32.totalorder %s138, %s152
      %p154 = scmp.eq.s32.totalorder %s23, 0
      %p155 = por %p153, %p154
      %s157 = sadd.s32 %s156, 1
      %p160 = scmp.eq.s32.totalorder %s17, 1
      %p161 = scmp.ne.s32.totalorder %s156, %s158
      %p162 = scmp.eq.s32.totalorder %s17, 0
      %p163 = por %p161, %p162
      %p164 = scmp.ne.s32.totalorder %s156, %s158
      %p165 = scmp.eq.s32.totalorder %s22, 1
      %p166 = por %p164, %p165
      %p167 = scmp.ne.s32.totalorder %s158, %s159
      %p168 = scmp.eq.s32.totalorder %s22, 0
      %p169 = por %p167, %p168
      %p170 = scmp.ne.s32.totalorder %s158, %s159
      %p171 = scmp.eq.s32.totalorder %s23, 1
      %p172 = por %p170, %p171
      %p174 = scmp.ne.s32.totalorder %s159, %s173
      %p175 = scmp.eq.s32.totalorder %s23, 0
      %p176 = por %p174, %p175
      %s178 = sadd.s32 %s177, 1
      %p181 = scmp.eq.s32.totalorder %s17, 1
      %p182 = scmp.ne.s32.totalorder %s177, %s179
      %p183 = scmp.eq.s32.totalorder %s17, 0
      %p184 = por %p182, %p183
      %p185 = scmp.ne.s32.totalorder %s177, %s179
      %p186 = scmp.eq.s32.totalorder %s22, 1
      %p187 = por %p185, %p186
      %p188 = scmp.ne.s32.totalorder %s179, %s180
      %p189 = scmp.eq.s32.totalorder %s22, 0
      %p190 = por %p188, %p189
      %p191 = scmp.ne.s32.totalorder %s179, %s180
      %p192 = scmp.eq.s32.totalorder %s23, 1
      %p193 = por %p191, %p192
      %p195 = scmp.ne.s32.totalorder %s180, %s194
      %p196 = scmp.eq.s32.totalorder %s23, 0
      %p197 = por %p195, %p196
      %s199 = sadd.s32 %s198, 1
      %p202 = scmp.eq.s32.totalorder %s17, 1
      %p203 = scmp.ne.s32.totalorder %s198, %s200
      %p204 = scmp.eq.s32.totalorder %s17, 0
      %p205 = por %p203, %p204
      %p206 = scmp.ne.s32.totalorder %s198, %s200
      %p207 = scmp.eq.s32.totalorder %s22, 1
      %p208 = por %p206, %p207
      %p209 = scmp.ne.s32.totalorder %s200, %s201
      %p210 = scmp.eq.s32.totalorder %s22, 0
      %p211 = por %p209, %p210
      %p212 = scmp.ne.s32.totalorder %s200, %s201
      %p213 = scmp.eq.s32.totalorder %s23, 1
      %p214 = por %p212, %p213
      %p216 = scmp.ne.s32.totalorder %s201, %s215
      %p217 = scmp.eq.s32.totalorder %s23, 0
      %p218 = por %p216, %p217
      %s219 = ssub.s32 %s17, %s24
      %p220 = scmp.eq.s32.totalorder %s219, 0
      %s222 = sadd.s32 %s221, 1
      %s223 = scalar_select %p220, %s221, %s222
      %p226 = pneg %p220
      %p227 = scmp.eq.s32.totalorder %s17, 1
      %p228 = por %p226, %p227
      %p229 = scmp.ne.s32.totalorder %s221, %s224
      %p230 = scmp.eq.s32.totalorder %s17, 0
      %p231 = por %p229, %p230
      %p232 = scmp.ne.s32.totalorder %s221, %s224
      %p233 = scmp.eq.s32.totalorder %s22, 1
      %p234 = por %p232, %p233
      %p235 = scmp.ne.s32.totalorder %s224, %s225
      %p236 = scmp.eq.s32.totalorder %s22, 0
      %p237 = por %p235, %p236
      %p238 = scmp.ne.s32.totalorder %s224, %s225
      %p239 = scmp.eq.s32.totalorder %s23, 1
      %p240 = por %p238, %p239
      %p242 = scmp.ne.s32.totalorder %s225, %s241
      %p243 = scmp.eq.s32.totalorder %s23, 0
      %p244 = por %p242, %p243
      %p245 = scmp.le.s32.totalorder 1, %s17
      %p246 = scmp.lt.s32.totalorder %s17, 3
      %p247 = pnand %p245, %p246
      %p248 = pneg %p247
      // Predicated region
      $region9: #{net_forward.5} parent=5 // pred_check
        _
      $region10: #{net_forward.5} parent=5 // pred_check_branch
        %250 = sbr.rel (%p247) target = $region12
      $region11: #{net_forward.5} parent=5 // pred_region
        %s251 = ssub.s32 %s17, 1
        // Predicated region
        $region13: #{net_forward.5} parent=11 // pred_check
          %p252 = pneg %p64
        $region14: #{net_forward.5} parent=11 // pred_check_branch
          %254 = sbr.rel (%p252) target = $region16
        $region15: #{net_forward.5} parent=11 // pred_region
          _
        $region16: #{net_forward.5} parent=11 // pred_fallthru
          _
        // Predicated region
        $region17: #{net_forward.5} parent=11 // pred_check
          %p255 = pneg %p85
        $region18: #{net_forward.5} parent=11 // pred_check_branch
          %257 = sbr.rel (%p255) target = $region20
        $region19: #{net_forward.5} parent=11 // pred_region
          _
        $region20: #{net_forward.5} parent=11 // pred_fallthru
          _
        // Predicated region
        $region21: #{net_forward.5} parent=11 // pred_check
          %p258 = pneg %p106
        $region22: #{net_forward.5} parent=11 // pred_check_branch
          %260 = sbr.rel (%p258) target = $region24
        $region23: #{net_forward.5} parent=11 // pred_region
          _
        $region24: #{net_forward.5} parent=11 // pred_fallthru
          _
        // Predicated region
        $region25: #{net_forward.5} parent=11 // pred_check
          %p261 = pneg %p127
        $region26: #{net_forward.5} parent=11 // pred_check_branch
          %263 = sbr.rel (%p261) target = $region28
        $region27: #{net_forward.5} parent=11 // pred_region
          _
        $region28: #{net_forward.5} parent=11 // pred_fallthru
          _
        // Predicated region
        $region29: #{net_forward.5} parent=11 // pred_check
          %p264 = pneg %p148
        $region30: #{net_forward.5} parent=11 // pred_check_branch
          %266 = sbr.rel (%p264) target = $region32
        $region31: #{net_forward.5} parent=11 // pred_region
          _
        $region32: #{net_forward.5} parent=11 // pred_fallthru
          _
        // Predicated region
        $region33: #{net_forward.5} parent=11 // pred_check
          %p267 = pneg %p169
        $region34: #{net_forward.5} parent=11 // pred_check_branch
          %269 = sbr.rel (%p267) target = $region36
        $region35: #{net_forward.5} parent=11 // pred_region
          _
        $region36: #{net_forward.5} parent=11 // pred_fallthru
          _
        // Predicated region
        $region37: #{net_forward.5} parent=11 // pred_check
          %p270 = pneg %p190
        $region38: #{net_forward.5} parent=11 // pred_check_branch
          %272 = sbr.rel (%p270) target = $region40
        $region39: #{net_forward.5} parent=11 // pred_region
          _
        $region40: #{net_forward.5} parent=11 // pred_fallthru
          _
        // Predicated region
        $region41: #{net_forward.5} parent=11 // pred_check
          %p273 = pneg %p211
        $region42: #{net_forward.5} parent=11 // pred_check_branch
          %275 = sbr.rel (%p273) target = $region44
        $region43: #{net_forward.5} parent=11 // pred_region
          _
        $region44: #{net_forward.5} parent=11 // pred_fallthru
          _
      $region12: #{net_forward.5} parent=5 // pred_fallthru
        _
      %p276 = scmp.lt.s32.totalorder %s17, 2
      // Predicated region
      $region45: #{net_forward.5} parent=5 // pred_check
        %p277 = pneg %p276
      $region46: #{net_forward.5} parent=5 // pred_check_branch
        %279 = sbr.rel (%p277) target = $region48
      $region47: #{net_forward.5} parent=5 // pred_region
        // Predicated region
        $region49: #{net_forward.5} parent=47 // pred_check
          %p280 = pneg %p37
        $region50: #{net_forward.5} parent=47 // pred_check_branch
          %282 = sbr.rel (%p280) target = $region52
        $region51: #{net_forward.5} parent=47 // pred_region
          %s283 = sand.u32 %s27, 1
          %s284 = sand.u32 %s27, 1
          %s285 = smul.addr %s284, 16
          %s286 = scalar_lea.vmem [#allocation3], %s285
          %s287 = smul.u32 2, %s17
          %s288 = smul.addr %s287, 4
          %s289 = scalar_lea.vmem %s0, %s288
          // Predicated region
          $region53: #{net_forward.5} parent=51 // pred_check
            _
          $region54: #{net_forward.5} parent=51 // pred_check_branch
            %291 = sbr.rel (0) target = $region56
          $region55: #{net_forward.5} parent=51 // pred_region
            // Predicated region
            $region57: #{net_forward.5} parent=55 // pred_check
              _
            $region58: #{net_forward.5} parent=55 // pred_check_branch
              %293 = sbr.rel (0) target = $region60
            $region59: #{net_forward.5} parent=55 // pred_region
              // Predicated region
              $region72: #{net_forward.5} parent=59 // pred_check
                _
              $region73: #{net_forward.5} parent=59 // pred_check_branch
                %311 = sbr.rel (0) target = $region75
              $region74: #{net_forward.5} parent=59 // pred_region
                loop: start=0, step=1, limit=1
                $region76: #{net_forward.5} parent=74 // loop_pre_header
                  _
                $region77: #{net_forward.5} parent=74 // loop_header
                  %s313 = sphi 0, %s317
                  %p314 = scmp.ge.s32.totalorder %s313, 1
                  %s318 = sphi %s289, %s289
                  %s319 = sphi %s286, %s286
                $region78: #{net_forward.5} parent=74 // loop_header_branch
                  %316 = sbr.rel (%p314) target = $region82
                $region79: #{net_forward.5} parent=74 // loop_body
                  %v320 = vld [vmem:[%s318] sm:$0xff]
                  %321 = vst [vmem:[%s319] sm:$0xff] %v320
                  %v322 = vld [vmem:[%s318 + $0x10] sm:$0xff]
                  %323 = vst [vmem:[%s319 + $0x8] sm:$0xff] %v322
                $region80: #{net_forward.5} parent=74 // loop_footer
                  %s317 = sadd.s32 1, %s313
                $region81: #{net_forward.5} parent=74 // loop_footer_branch
                  %312 = sbr.rel target = $region77
                $region82: #{net_forward.5} parent=74 // loop_exit
                  _
              $region75: #{net_forward.5} parent=59 // pred_fallthru
                _
              // Predicated region
              $region83: #{net_forward.5} parent=59 // pred_check
                _
              $region84: #{net_forward.5} parent=59 // pred_check_branch
                %325 = sbr.rel target = $region86
              $region85: #{net_forward.5} parent=59 // pred_region
                _
              $region86: #{net_forward.5} parent=59 // pred_fallthru
                _
            $region60: #{net_forward.5} parent=55 // pred_fallthru
              _
            // Predicated region
            $region61: #{net_forward.5} parent=55 // pred_check
              _
            $region62: #{net_forward.5} parent=55 // pred_check_branch
              %295 = sbr.rel target = $region64
            $region63: #{net_forward.5} parent=55 // pred_region
              %s297 = ssub.s32 256, 1
              loop: start=0, step=1, limit=1
              $region65: #{net_forward.5} parent=63 // loop_pre_header
                _
              $region66: #{net_forward.5} parent=63 // loop_header
                %s299 = sphi 0, %s303
                %p300 = scmp.ge.s32.totalorder %s299, 1
                %s304 = sphi %s289, %s289
                %s305 = sphi %s286, %s286
              $region67: #{net_forward.5} parent=63 // loop_header_branch
                %302 = sbr.rel (%p300) target = $region71
              $region68: #{net_forward.5} parent=63 // loop_body
                %v306 = vld [vmem:[%s304] sm:%s297]
                %307 = vst [vmem:[%s305] sm:%s297] %v306
                %v308 = vld [vmem:[%s304 + $0x10] sm:%s297]
                %309 = vst [vmem:[%s305 + $0x8] sm:%s297] %v308
              $region69: #{net_forward.5} parent=63 // loop_footer
                %s303 = sadd.s32 1, %s299
              $region70: #{net_forward.5} parent=63 // loop_footer_branch
                %298 = sbr.rel target = $region66
              $region71: #{net_forward.5} parent=63 // loop_exit
                _
            $region64: #{net_forward.5} parent=55 // pred_fallthru
              _
          $region56: #{net_forward.5} parent=51 // pred_fallthru
            _
          %326 = vnop
        $region52: #{net_forward.5} parent=47 // pred_fallthru
          _
      $region48: #{net_forward.5} parent=5 // pred_fallthru
        _
      %p327 = scmp.le.s32.totalorder 1, %s17
      %p328 = scmp.lt.s32.totalorder %s17, 3
      %p329 = pnand %p327, %p328
      %p330 = pneg %p329
      // Predicated region
      $region87: #{net_forward.5} parent=5 // pred_check
        _
      $region88: #{net_forward.5} parent=5 // pred_check_branch
        %332 = sbr.rel (%p329) target = $region90
      $region89: #{net_forward.5} parent=5 // pred_region
        %s333 = ssub.s32 %s17, 1
        %s334 = sand.u32 %s30, 1
        %s335 = sand.u32 %s30, 1
        %s336 = smul.addr %s335, 16
        %s337 = scalar_lea.vmem [#allocation3], %s336
        // Predicated region
        $region91: #{net_forward.5} parent=89 // pred_check
          %p338 = pneg %p43
        $region92: #{net_forward.5} parent=89 // pred_check_branch
          %340 = sbr.rel (%p338) target = $region94
        $region93: #{net_forward.5} parent=89 // pred_region
          _
        $region94: #{net_forward.5} parent=89 // pred_fallthru
          _
        %s341 = sand.u32 %s30, 1
        %s342 = sand.u32 %s30, 1
        %s343 = smul.addr %s342, 16
        %s344 = scalar_lea.vmem [#allocation3], %s343
        %p345 = pneg %p43
        %p346 = pneg %p40
        %p347 = pneg %p64
        %p348 = pneg %p61
        %p349 = pneg %p85
        %p350 = pneg %p82
        %p351 = pneg %p106
        %p352 = pneg %p103
        %p353 = pneg %p127
        %p354 = pneg %p124
        %p355 = pneg %p148
        %p356 = pneg %p145
        %p357 = pneg %p169
        %p358 = pneg %p166
        %p359 = pneg %p190
        %p360 = pneg %p187
        %p361 = pneg %p211
        %p362 = pneg %p208
        %p363 = pneg %p237
        %p364 = pneg %p234
        %p365 = scmp.lt.s32.totalorder %s22, 1
        %s366 = scalar_select %p365, %s22, 1
        %s367 = scalar_lea.vmem %s9, %s366
        %s368 = smul.u32 2, %s22
        %p369 = scmp.lt.s32.totalorder %s22, 1
        %s370 = scalar_select %p369, %s22, 1
        %s371 = scalar_lea.vmem %s9, %s370
        %v373 = vld [vmem:[%s337] sm:$0xff]
        %v374 = vld [vmem:[%s337 + $0x8] sm:$0xff]
        %v375 = vld [vmem:[%s1] sm:$0xf]
        %v376 = vld [vmem:[%s1 + $0x4] sm:$0xf]
        %s377 = scalar_lea.vmem %s1, 8
        %v378 = vld [vmem:[%s377] sm:$0xf]
        %v379 = vld [vmem:[%s377 + $0x4] sm:$0xf]
        %v382 = vunpack.c.l.b16 %v378
        %v383 = vunpack.c.l.b16 %v379
        %v384 = vpack.c.b16 %v383, %v382
        %v387 = vunpack.c.l.b16 %v373
        %v388 = vunpack.c.h.b16 %v373
        %v389 = vunpack.c.l.b16 %v374
        %v390 = vunpack.c.h.b16 %v374
        %v391 = vpack.c.b16 %v389, %v387
        %v392 = vpack.c.b16 %v390, %v388
        %393 = vrot.lane.b32.xlu0 %v391, 127
        %v394 = vpop.permute.xlu0 %393
        %395 = vrot.lane.b32.xlu0 %v392, 127
        %v396 = vpop.permute.xlu0 %395
        %vm397 = vcmask 1039360
        %v398 = vsel %vm397, %v394, %v396
        %vm401 = vcmask 130048
        %v403 = vsel %vm401, %v384, 0
        %405 = vmatpush.bf16.msra.mxu0 0
        %406 = vmatpush.bf16.msra.mxu0 0
        %407 = vmatpush.bf16.msra.mxu0 0
        %408 = vmatpush.bf16.msra.mxu0 0
        %409 = vmatpush.bf16.msra.mxu0 0
        %410 = vmatpush.bf16.msra.mxu0 0
        %411 = vmatpush.bf16.msra.mxu0 0
        %412 = vmatpush.bf16.msra.mxu0 %v398
        %413 = vmatmul.bf16.gmra.mxu0 %v403
        %v414 = vpop.f32.mrf.mxu0
        %v415 = vadd.f32 0.0, %v414
        %v416 = vpop.f32.mrf.mxu0
        %v417 = vadd.f32 0.0, %v416
        %418 = vdwg.mxu0
        %419 = vmatpush.bf16.msra.mxu0 0
        %420 = vmatpush.bf16.msra.mxu0 0
        %421 = vmatpush.bf16.msra.mxu0 0
        %422 = vmatpush.bf16.msra.mxu0 0
        %423 = vmatpush.bf16.msra.mxu0 0
        %424 = vmatpush.bf16.msra.mxu0 0
        %425 = vmatpush.bf16.msra.mxu0 0
        %426 = vmatpush.bf16.msra.mxu0 %v396
        %427 = vmatmul.bf16.gmra.mxu0 %v403
        %v428 = vpop.f32.mrf.mxu0
        %v429 = vadd.f32 0.0, %v428
        %v430 = vpop.f32.mrf.mxu0
        %v431 = vadd.f32 0.0, %v430
        %432 = vdwg.mxu0
        %v435 = vunpack.c.l.b16 %v375
        %v436 = vunpack.c.l.b16 %v376
        %v437 = vpack.c.b16 %v436, %v435
        %v441 = vsel %vm401, %v437, 0
        %443 = vmatpush.bf16.msra.mxu0 0
        %444 = vmatpush.bf16.msra.mxu0 0
        %445 = vmatpush.bf16.msra.mxu0 0
        %446 = vmatpush.bf16.msra.mxu0 0
        %447 = vmatpush.bf16.msra.mxu0 0
        %448 = vmatpush.bf16.msra.mxu0 0
        %449 = vmatpush.bf16.msra.mxu0 0
        %450 = vmatpush.bf16.msra.mxu0 %v391
        %451 = vmatmul.bf16.gmra.mxu0 %v441
        %v452 = vpop.f32.mrf.mxu0
        %v453 = vadd.f32 %v415, %v452
        %v454 = vpop.f32.mrf.mxu0
        %v455 = vadd.f32 %v417, %v454
        %456 = vdwg.mxu0
        %457 = vmatpush.bf16.msra.mxu0 0
        %458 = vmatpush.bf16.msra.mxu0 0
        %459 = vmatpush.bf16.msra.mxu0 0
        %460 = vmatpush.bf16.msra.mxu0 0
        %461 = vmatpush.bf16.msra.mxu0 0
        %462 = vmatpush.bf16.msra.mxu0 0
        %463 = vmatpush.bf16.msra.mxu0 0
        %464 = vmatpush.bf16.msra.mxu0 %v392
        %465 = vmatmul.bf16.gmra.mxu0 %v441
        %v466 = vpop.f32.mrf.mxu0
        %v467 = vadd.f32 %v429, %v466
        %v468 = vpop.f32.mrf.mxu0
        %v469 = vadd.f32 %v431, %v468
        %470 = vdwg.mxu0
        %s471 = scalar_lea.vmem %s1, 16
        %v472 = vld [vmem:[%s471] sm:$0xf]
        %v473 = vld [vmem:[%s471 + $0x4] sm:$0xf]
        %v476 = vunpack.c.l.b16 %v472
        %v477 = vunpack.c.l.b16 %v473
        %v478 = vpack.c.b16 %v477, %v476
        %479 = vrot.lane.b32.xlu0 %v391, 126
        %v480 = vpop.permute.xlu0 %479
        %481 = vrot.lane.b32.xlu0 %v392, 126
        %v482 = vpop.permute.xlu0 %481
        %vm483 = vcmask 1031168
        %v484 = vsel %vm483, %v480, %v482
        %v488 = vsel %vm401, %v478, 0
        %490 = vmatpush.bf16.msra.mxu0 0
        %491 = vmatpush.bf16.msra.mxu0 0
        %492 = vmatpush.bf16.msra.mxu0 0
        %493 = vmatpush.bf16.msra.mxu0 0
        %494 = vmatpush.bf16.msra.mxu0 0
        %495 = vmatpush.bf16.msra.mxu0 0
        %496 = vmatpush.bf16.msra.mxu0 0
        %497 = vmatpush.bf16.msra.mxu0 %v484
        %498 = vmatmul.bf16.gmra.mxu0 %v488
        %v499 = vpop.f32.mrf.mxu0
        %v500 = vadd.f32 0.0, %v499
        %v501 = vpop.f32.mrf.mxu0
        %v502 = vadd.f32 0.0, %v501
        %503 = vdwg.mxu0
        %504 = vmatpush.bf16.msra.mxu0 0
        %505 = vmatpush.bf16.msra.mxu0 0
        %506 = vmatpush.bf16.msra.mxu0 0
        %507 = vmatpush.bf16.msra.mxu0 0
        %508 = vmatpush.bf16.msra.mxu0 0
        %509 = vmatpush.bf16.msra.mxu0 0
        %510 = vmatpush.bf16.msra.mxu0 0
        %511 = vmatpush.bf16.msra.mxu0 %v482
        %512 = vmatmul.bf16.gmra.mxu0 %v488
        %v513 = vpop.f32.mrf.mxu0
        %v514 = vadd.f32 0.0, %v513
        %v515 = vpop.f32.mrf.mxu0
        %v516 = vadd.f32 0.0, %v515
        %517 = vdwg.mxu0
        %v518 = vadd.f32 %v453, %v500
        %v519 = vadd.f32 %v467, %v514
        %v520 = vadd.f32 %v455, %v502
        %v521 = vadd.f32 %v469, %v516
        %s522 = scalar_lea.vmem %s1, 24
        %v523 = vld [vmem:[%s522] sm:$0xf]
        %v524 = vld [vmem:[%s522 + $0x4] sm:$0xf]
        %v527 = vunpack.c.l.b16 %v523
        %v528 = vunpack.c.l.b16 %v524
        %v529 = vpack.c.b16 %v528, %v527
        %530 = vrot.lane.b32.xlu0 %v391, 117
        %v531 = vpop.permute.xlu0 %530
        %532 = vrot.lane.b32.xlu0 %v392, 117
        %v533 = vpop.permute.xlu0 %532
        %vm534 = vcmask 957440
        %v535 = vsel %vm534, %v531, %v533
        %v539 = vsel %vm401, %v529, 0
        %541 = vmatpush.bf16.msra.mxu0 0
        %542 = vmatpush.bf16.msra.mxu0 0
        %543 = vmatpush.bf16.msra.mxu0 0
        %544 = vmatpush.bf16.msra.mxu0 0
        %545 = vmatpush.bf16.msra.mxu0 0
        %546 = vmatpush.bf16.msra.mxu0 0
        %547 = vmatpush.bf16.msra.mxu0 0
        %548 = vmatpush.bf16.msra.mxu0 %v535
        %549 = vmatmul.bf16.gmra.mxu0 %v539
        %v550 = vpop.f32.mrf.mxu0
        %v551 = vadd.f32 0.0, %v550
        %v552 = vpop.f32.mrf.mxu0
        %v553 = vadd.f32 0.0, %v552
        %554 = vdwg.mxu0
        %555 = vmatpush.bf16.msra.mxu0 0
        %556 = vmatpush.bf16.msra.mxu0 0
        %557 = vmatpush.bf16.msra.mxu0 0
        %558 = vmatpush.bf16.msra.mxu0 0
        %559 = vmatpush.bf16.msra.mxu0 0
        %560 = vmatpush.bf16.msra.mxu0 0
        %561 = vmatpush.bf16.msra.mxu0 0
        %562 = vmatpush.bf16.msra.mxu0 %v533
        %563 = vmatmul.bf16.gmra.mxu0 %v539
        %v564 = vpop.f32.mrf.mxu0
        %v565 = vadd.f32 0.0, %v564
        %v566 = vpop.f32.mrf.mxu0
        %v567 = vadd.f32 0.0, %v566
        %568 = vdwg.mxu0
        %v569 = vadd.f32 %v518, %v551
        %v570 = vadd.f32 %v519, %v565
        %v571 = vadd.f32 %v520, %v553
        %v572 = vadd.f32 %v521, %v567
        %s573 = scalar_lea.vmem %s1, 32
        %v574 = vld [vmem:[%s573] sm:$0xf]
        %v575 = vld [vmem:[%s573 + $0x4] sm:$0xf]
        %v578 = vunpack.c.l.b16 %v574
        %v579 = vunpack.c.l.b16 %v575
        %v580 = vpack.c.b16 %v579, %v578
        %581 = vrot.lane.b32.xlu0 %v391, 116
        %v582 = vpop.permute.xlu0 %581
        %583 = vrot.lane.b32.xlu0 %v392, 116
        %v584 = vpop.permute.xlu0 %583
        %vm585 = vcmask 949248
        %v586 = vsel %vm585, %v582, %v584
        %v590 = vsel %vm401, %v580, 0
        %592 = vmatpush.bf16.msra.mxu0 0
        %593 = vmatpush.bf16.msra.mxu0 0
        %594 = vmatpush.bf16.msra.mxu0 0
        %595 = vmatpush.bf16.msra.mxu0 0
        %596 = vmatpush.bf16.msra.mxu0 0
        %597 = vmatpush.bf16.msra.mxu0 0
        %598 = vmatpush.bf16.msra.mxu0 0
        %599 = vmatpush.bf16.msra.mxu0 %v586
        %600 = vmatmul.bf16.gmra.mxu0 %v590
        %v601 = vpop.f32.mrf.mxu0
        %v602 = vadd.f32 0.0, %v601
        %v603 = vpop.f32.mrf.mxu0
        %v604 = vadd.f32 0.0, %v603
        %605 = vdwg.mxu0
        %606 = vmatpush.bf16.msra.mxu0 0
        %607 = vmatpush.bf16.msra.mxu0 0
        %608 = vmatpush.bf16.msra.mxu0 0
        %609 = vmatpush.bf16.msra.mxu0 0
        %610 = vmatpush.bf16.msra.mxu0 0
        %611 = vmatpush.bf16.msra.mxu0 0
        %612 = vmatpush.bf16.msra.mxu0 0
        %613 = vmatpush.bf16.msra.mxu0 %v584
        %614 = vmatmul.bf16.gmra.mxu0 %v590
        %v615 = vpop.f32.mrf.mxu0
        %v616 = vadd.f32 0.0, %v615
        %v617 = vpop.f32.mrf.mxu0
        %v618 = vadd.f32 0.0, %v617
        %619 = vdwg.mxu0
        %v620 = vadd.f32 %v569, %v602
        %v621 = vadd.f32 %v570, %v616
        %v622 = vadd.f32 %v571, %v604
        %v623 = vadd.f32 %v572, %v618
        %s624 = scalar_lea.vmem %s1, 40
        %v625 = vld [vmem:[%s624] sm:$0xf]
        %v626 = vld [vmem:[%s624 + $0x4] sm:$0xf]
        %v629 = vunpack.c.l.b16 %v625
        %v630 = vunpack.c.l.b16 %v626
        %v631 = vpack.c.b16 %v630, %v629
        %632 = vrot.lane.b32.xlu0 %v391, 115
        %v633 = vpop.permute.xlu0 %632
        %634 = vrot.lane.b32.xlu0 %v392, 115
        %v635 = vpop.permute.xlu0 %634
        %vm636 = vcmask 941056
        %v637 = vsel %vm636, %v633, %v635
        %v641 = vsel %vm401, %v631, 0
        %643 = vmatpush.bf16.msra.mxu0 0
        %644 = vmatpush.bf16.msra.mxu0 0
        %645 = vmatpush.bf16.msra.mxu0 0
        %646 = vmatpush.bf16.msra.mxu0 0
        %647 = vmatpush.bf16.msra.mxu0 0
        %648 = vmatpush.bf16.msra.mxu0 0
        %649 = vmatpush.bf16.msra.mxu0 0
        %650 = vmatpush.bf16.msra.mxu0 %v637
        %651 = vmatmul.bf16.gmra.mxu0 %v641
        %v652 = vpop.f32.mrf.mxu0
        %v653 = vadd.f32 0.0, %v652
        %v654 = vpop.f32.mrf.mxu0
        %v655 = vadd.f32 0.0, %v654
        %656 = vdwg.mxu0
        %657 = vmatpush.bf16.msra.mxu0 0
        %658 = vmatpush.bf16.msra.mxu0 0
        %659 = vmatpush.bf16.msra.mxu0 0
        %660 = vmatpush.bf16.msra.mxu0 0
        %661 = vmatpush.bf16.msra.mxu0 0
        %662 = vmatpush.bf16.msra.mxu0 0
        %663 = vmatpush.bf16.msra.mxu0 0
        %664 = vmatpush.bf16.msra.mxu0 %v635
        %665 = vmatmul.bf16.gmra.mxu0 %v641
        %v666 = vpop.f32.mrf.mxu0
        %v667 = vadd.f32 0.0, %v666
        %v668 = vpop.f32.mrf.mxu0
        %v669 = vadd.f32 0.0, %v668
        %670 = vdwg.mxu0
        %v671 = vadd.f32 %v620, %v653
        %v672 = vadd.f32 %v621, %v667
        %v673 = vadd.f32 %v622, %v655
        %v674 = vadd.f32 %v623, %v669
        %s675 = scalar_lea.vmem %s1, 48
        %v676 = vld [vmem:[%s675] sm:$0xf]
        %v677 = vld [vmem:[%s675 + $0x4] sm:$0xf]
        %v680 = vunpack.c.l.b16 %v676
        %v681 = vunpack.c.l.b16 %v677
        %v682 = vpack.c.b16 %v681, %v680
        %683 = vrot.lane.b32.xlu0 %v391, 106
        %v684 = vpop.permute.xlu0 %683
        %685 = vrot.lane.b32.xlu0 %v392, 106
        %v686 = vpop.permute.xlu0 %685
        %vm687 = vcmask 867328
        %v688 = vsel %vm687, %v684, %v686
        %v692 = vsel %vm401, %v682, 0
        %694 = vmatpush.bf16.msra.mxu0 0
        %695 = vmatpush.bf16.msra.mxu0 0
        %696 = vmatpush.bf16.msra.mxu0 0
        %697 = vmatpush.bf16.msra.mxu0 0
        %698 = vmatpush.bf16.msra.mxu0 0
        %699 = vmatpush.bf16.msra.mxu0 0
        %700 = vmatpush.bf16.msra.mxu0 0
        %701 = vmatpush.bf16.msra.mxu0 %v688
        %702 = vmatmul.bf16.gmra.mxu0 %v692
        %v703 = vpop.f32.mrf.mxu0
        %v704 = vadd.f32 0.0, %v703
        %v705 = vpop.f32.mrf.mxu0
        %v706 = vadd.f32 0.0, %v705
        %707 = vdwg.mxu0
        %708 = vmatpush.bf16.msra.mxu0 0
        %709 = vmatpush.bf16.msra.mxu0 0
        %710 = vmatpush.bf16.msra.mxu0 0
        %711 = vmatpush.bf16.msra.mxu0 0
        %712 = vmatpush.bf16.msra.mxu0 0
        %713 = vmatpush.bf16.msra.mxu0 0
        %714 = vmatpush.bf16.msra.mxu0 0
        %715 = vmatpush.bf16.msra.mxu0 %v686
        %716 = vmatmul.bf16.gmra.mxu0 %v692
        %v717 = vpop.f32.mrf.mxu0
        %v718 = vadd.f32 0.0, %v717
        %v719 = vpop.f32.mrf.mxu0
        %v720 = vadd.f32 0.0, %v719
        %721 = vdwg.mxu0
        %v722 = vadd.f32 %v671, %v704
        %v723 = vadd.f32 %v672, %v718
        %v724 = vadd.f32 %v673, %v706
        %v725 = vadd.f32 %v674, %v720
        %s726 = scalar_lea.vmem %s1, 56
        %v727 = vld [vmem:[%s726] sm:$0xf]
        %v728 = vld [vmem:[%s726 + $0x4] sm:$0xf]
        %v731 = vunpack.c.l.b16 %v727
        %v732 = vunpack.c.l.b16 %v728
        %v733 = vpack.c.b16 %v732, %v731
        %734 = vrot.lane.b32.xlu0 %v391, 105
        %v735 = vpop.permute.xlu0 %734
        %736 = vrot.lane.b32.xlu0 %v392, 105
        %v737 = vpop.permute.xlu0 %736
        %vm738 = vcmask 859136
        %v739 = vsel %vm738, %v735, %v737
        %v743 = vsel %vm401, %v733, 0
        %745 = vmatpush.bf16.msra.mxu0 0
        %746 = vmatpush.bf16.msra.mxu0 0
        %747 = vmatpush.bf16.msra.mxu0 0
        %748 = vmatpush.bf16.msra.mxu0 0
        %749 = vmatpush.bf16.msra.mxu0 0
        %750 = vmatpush.bf16.msra.mxu0 0
        %751 = vmatpush.bf16.msra.mxu0 0
        %752 = vmatpush.bf16.msra.mxu0 %v739
        %753 = vmatmul.bf16.gmra.mxu0 %v743
        %v754 = vpop.f32.mrf.mxu0
        %v755 = vadd.f32 0.0, %v754
        %v756 = vpop.f32.mrf.mxu0
        %v757 = vadd.f32 0.0, %v756
        %758 = vdwg.mxu0
        %759 = vmatpush.bf16.msra.mxu0 0
        %760 = vmatpush.bf16.msra.mxu0 0
        %761 = vmatpush.bf16.msra.mxu0 0
        %762 = vmatpush.bf16.msra.mxu0 0
        %763 = vmatpush.bf16.msra.mxu0 0
        %764 = vmatpush.bf16.msra.mxu0 0
        %765 = vmatpush.bf16.msra.mxu0 0
        %766 = vmatpush.bf16.msra.mxu0 %v737
        %767 = vmatmul.bf16.gmra.mxu0 %v743
        %v768 = vpop.f32.mrf.mxu0
        %v769 = vadd.f32 0.0, %v768
        %v770 = vpop.f32.mrf.mxu0
        %v771 = vadd.f32 0.0, %v770
        %772 = vdwg.mxu0
        %v773 = vadd.f32 %v722, %v755
        %v774 = vadd.f32 %v723, %v769
        %v775 = vadd.f32 %v724, %v757
        %v776 = vadd.f32 %v725, %v771
        %s777 = scalar_lea.vmem %s1, 64
        %v778 = vld [vmem:[%s777] sm:$0xf]
        %v779 = vld [vmem:[%s777 + $0x4] sm:$0xf]
        %v782 = vunpack.c.l.b16 %v778
        %v783 = vunpack.c.l.b16 %v779
        %v784 = vpack.c.b16 %v783, %v782
        %785 = vrot.lane.b32.xlu0 %v391, 104
        %v786 = vpop.permute.xlu0 %785
        %787 = vrot.lane.b32.xlu0 %v392, 104
        %v788 = vpop.permute.xlu0 %787
        %vm789 = vcmask 850944
        %v790 = vsel %vm789, %v786, %v788
        %v794 = vsel %vm401, %v784, 0
        %796 = vmatpush.bf16.msra.mxu0 0
        %797 = vmatpush.bf16.msra.mxu0 0
        %798 = vmatpush.bf16.msra.mxu0 0
        %799 = vmatpush.bf16.msra.mxu0 0
        %800 = vmatpush.bf16.msra.mxu0 0
        %801 = vmatpush.bf16.msra.mxu0 0
        %802 = vmatpush.bf16.msra.mxu0 0
        %803 = vmatpush.bf16.msra.mxu0 %v790
        %804 = vmatmul.bf16.gmra.mxu0 %v794
        %v805 = vpop.f32.mrf.mxu0
        %v806 = vadd.f32 0.0, %v805
        %v807 = vpop.f32.mrf.mxu0
        %v808 = vadd.f32 0.0, %v807
        %809 = vdwg.mxu0
        %810 = vmatpush.bf16.msra.mxu0 0
        %811 = vmatpush.bf16.msra.mxu0 0
        %812 = vmatpush.bf16.msra.mxu0 0
        %813 = vmatpush.bf16.msra.mxu0 0
        %814 = vmatpush.bf16.msra.mxu0 0
        %815 = vmatpush.bf16.msra.mxu0 0
        %816 = vmatpush.bf16.msra.mxu0 0
        %817 = vmatpush.bf16.msra.mxu0 %v788
        %818 = vmatmul.bf16.gmra.mxu0 %v794
        %v819 = vpop.f32.mrf.mxu0
        %v820 = vadd.f32 0.0, %v819
        %v821 = vpop.f32.mrf.mxu0
        %v822 = vadd.f32 0.0, %v821
        %823 = vdwg.mxu0
        %v824 = vadd.f32 %v773, %v806
        %v825 = vadd.f32 %v774, %v820
        %v826 = vadd.f32 %v775, %v808
        %v827 = vadd.f32 %v776, %v822
        %v828 = vld [vmem:[%s2] sm:$0xff]
        %v829 = vld [vmem:[%s2 + $0x8] sm:$0xff]
        %831 = vset.pattern.permute.xlu0 0
        %832 = vperm.xlu0 %831, %v828
        %v833 = vpop.permute.xlu0 %832
        %836 = vset.pattern.permute.xlu0 0
        %837 = vperm.xlu0 %836, %v829
        %v838 = vpop.permute.xlu0 %837
        %v840 = vadd.f32 %v824, %v833
        %v841 = vadd.f32 %v825, %v833
        %v842 = vadd.f32 %v826, %v838
        %v843 = vadd.f32 %v827, %v838
        %vm844 = vcmp.gt.f32.partialorder %v840, 0.0
        %vm845 = vcmp.gt.f32.partialorder %v841, 0.0
        %vm846 = vcmp.gt.f32.partialorder %v842, 0.0
        %vm847 = vcmp.gt.f32.partialorder %v843, 0.0
        %v848 = vmul.f32 %v840, 0.01
        %v849 = vmul.f32 %v841, 0.01
        %v850 = vmul.f32 %v842, 0.01
        %v851 = vmul.f32 %v843, 0.01
        %v852 = vsel %vm844, %v840, %v848
        %v853 = vsel %vm845, %v841, %v849
        %v854 = vsel %vm846, %v842, %v850
        %v855 = vsel %vm847, %v843, %v851
        %v856 = vpack.c.bf16 %v853, %v852
        %v857 = vpack.c.bf16 %v855, %v854
        %v858 = vld [vmem:[%s3] sm:$0xf]
        %v859 = vld [vmem:[%s3 + $0x4] sm:$0xf]
        %s860 = scalar_lea.vmem %s3, 8
        %v861 = vld [vmem:[%s860] sm:$0xf]
        %v862 = vld [vmem:[%s860 + $0x4] sm:$0xf]
        %v865 = vunpack.c.l.b16 %v861
        %v866 = vunpack.c.l.b16 %v862
        %v867 = vpack.c.b16 %v866, %v865
        %v870 = vunpack.c.l.b16 %v856
        %v871 = vunpack.c.h.b16 %v856
        %v872 = vunpack.c.l.b16 %v857
        %v873 = vunpack.c.h.b16 %v857
        %v874 = vpack.c.b16 %v872, %v870
        %v875 = vpack.c.b16 %v873, %v871
        %876 = vrot.lane.b32.xlu0 %v874, 127
        %v877 = vpop.permute.xlu0 %876
        %878 = vrot.lane.b32.xlu0 %v875, 127
        %v879 = vpop.permute.xlu0 %878
        %v880 = vsel %vm397, %v877, %v879
        %v884 = vsel %vm401, %v867, 0
        %886 = vmatpush.bf16.msra.mxu0 0
        %887 = vmatpush.bf16.msra.mxu0 0
        %888 = vmatpush.bf16.msra.mxu0 0
        %889 = vmatpush.bf16.msra.mxu0 0
        %890 = vmatpush.bf16.msra.mxu0 0
        %891 = vmatpush.bf16.msra.mxu0 0
        %892 = vmatpush.bf16.msra.mxu0 0
        %893 = vmatpush.bf16.msra.mxu0 %v880
        %894 = vmatmul.bf16.gmra.mxu0 %v884
        %v895 = vpop.f32.mrf.mxu0
        %v896 = vadd.f32 0.0, %v895
        %v897 = vpop.f32.mrf.mxu0
        %v898 = vadd.f32 0.0, %v897
        %899 = vdwg.mxu0
        %900 = vmatpush.bf16.msra.mxu0 0
        %901 = vmatpush.bf16.msra.mxu0 0
        %902 = vmatpush.bf16.msra.mxu0 0
        %903 = vmatpush.bf16.msra.mxu0 0
        %904 = vmatpush.bf16.msra.mxu0 0
        %905 = vmatpush.bf16.msra.mxu0 0
        %906 = vmatpush.bf16.msra.mxu0 0
        %907 = vmatpush.bf16.msra.mxu0 %v879
        %908 = vmatmul.bf16.gmra.mxu0 %v884
        %v909 = vpop.f32.mrf.mxu0
        %v910 = vadd.f32 0.0, %v909
        %v911 = vpop.f32.mrf.mxu0
        %v912 = vadd.f32 0.0, %v911
        %913 = vdwg.mxu0
        %v916 = vunpack.c.l.b16 %v858
        %v917 = vunpack.c.l.b16 %v859
        %v918 = vpack.c.b16 %v917, %v916
        %v922 = vsel %vm401, %v918, 0
        %924 = vmatpush.bf16.msra.mxu0 0
        %925 = vmatpush.bf16.msra.mxu0 0
        %926 = vmatpush.bf16.msra.mxu0 0
        %927 = vmatpush.bf16.msra.mxu0 0
        %928 = vmatpush.bf16.msra.mxu0 0
        %929 = vmatpush.bf16.msra.mxu0 0
        %930 = vmatpush.bf16.msra.mxu0 0
        %931 = vmatpush.bf16.msra.mxu0 %v874
        %932 = vmatmul.bf16.gmra.mxu0 %v922
        %v933 = vpop.f32.mrf.mxu0
        %v934 = vadd.f32 %v896, %v933
        %v935 = vpop.f32.mrf.mxu0
        %v936 = vadd.f32 %v898, %v935
        %937 = vdwg.mxu0
        %938 = vmatpush.bf16.msra.mxu0 0
        %939 = vmatpush.bf16.msra.mxu0 0
        %940 = vmatpush.bf16.msra.mxu0 0
        %941 = vmatpush.bf16.msra.mxu0 0
        %942 = vmatpush.bf16.msra.mxu0 0
        %943 = vmatpush.bf16.msra.mxu0 0
        %944 = vmatpush.bf16.msra.mxu0 0
        %945 = vmatpush.bf16.msra.mxu0 %v875
        %946 = vmatmul.bf16.gmra.mxu0 %v922
        %v947 = vpop.f32.mrf.mxu0
        %v948 = vadd.f32 %v910, %v947
        %v949 = vpop.f32.mrf.mxu0
        %v950 = vadd.f32 %v912, %v949
        %951 = vdwg.mxu0
        %s952 = scalar_lea.vmem %s3, 16
        %v953 = vld [vmem:[%s952] sm:$0xf]
        %v954 = vld [vmem:[%s952 + $0x4] sm:$0xf]
        %v957 = vunpack.c.l.b16 %v953
        %v958 = vunpack.c.l.b16 %v954
        %v959 = vpack.c.b16 %v958, %v957
        %960 = vrot.lane.b32.xlu0 %v874, 126
        %v961 = vpop.permute.xlu0 %960
        %962 = vrot.lane.b32.xlu0 %v875, 126
        %v963 = vpop.permute.xlu0 %962
        %v964 = vsel %vm483, %v961, %v963
        %v968 = vsel %vm401, %v959, 0
        %970 = vmatpush.bf16.msra.mxu0 0
        %971 = vmatpush.bf16.msra.mxu0 0
        %972 = vmatpush.bf16.msra.mxu0 0
        %973 = vmatpush.bf16.msra.mxu0 0
        %974 = vmatpush.bf16.msra.mxu0 0
        %975 = vmatpush.bf16.msra.mxu0 0
        %976 = vmatpush.bf16.msra.mxu0 0
        %977 = vmatpush.bf16.msra.mxu0 %v964
        %978 = vmatmul.bf16.gmra.mxu0 %v968
        %v979 = vpop.f32.mrf.mxu0
        %v980 = vadd.f32 0.0, %v979
        %v981 = vpop.f32.mrf.mxu0
        %v982 = vadd.f32 0.0, %v981
        %983 = vdwg.mxu0
        %984 = vmatpush.bf16.msra.mxu0 0
        %985 = vmatpush.bf16.msra.mxu0 0
        %986 = vmatpush.bf16.msra.mxu0 0
        %987 = vmatpush.bf16.msra.mxu0 0
        %988 = vmatpush.bf16.msra.mxu0 0
        %989 = vmatpush.bf16.msra.mxu0 0
        %990 = vmatpush.bf16.msra.mxu0 0
        %991 = vmatpush.bf16.msra.mxu0 %v963
        %992 = vmatmul.bf16.gmra.mxu0 %v968
        %v993 = vpop.f32.mrf.mxu0
        %v994 = vadd.f32 0.0, %v993
        %v995 = vpop.f32.mrf.mxu0
        %v996 = vadd.f32 0.0, %v995
        %997 = vdwg.mxu0
        %v998 = vadd.f32 %v934, %v980
        %v999 = vadd.f32 %v948, %v994
        %v1000 = vadd.f32 %v936, %v982
        %v1001 = vadd.f32 %v950, %v996
        %s1002 = scalar_lea.vmem %s3, 24
        %v1003 = vld [vmem:[%s1002] sm:$0xf]
        %v1004 = vld [vmem:[%s1002 + $0x4] sm:$0xf]
        %v1007 = vunpack.c.l.b16 %v1003
        %v1008 = vunpack.c.l.b16 %v1004
        %v1009 = vpack.c.b16 %v1008, %v1007
        %1010 = vrot.lane.b32.xlu0 %v874, 117
        %v1011 = vpop.permute.xlu0 %1010
        %1012 = vrot.lane.b32.xlu0 %v875, 117
        %v1013 = vpop.permute.xlu0 %1012
        %v1014 = vsel %vm534, %v1011, %v1013
        %v1018 = vsel %vm401, %v1009, 0
        %1020 = vmatpush.bf16.msra.mxu0 0
        %1021 = vmatpush.bf16.msra.mxu0 0
        %1022 = vmatpush.bf16.msra.mxu0 0
        %1023 = vmatpush.bf16.msra.mxu0 0
        %1024 = vmatpush.bf16.msra.mxu0 0
        %1025 = vmatpush.bf16.msra.mxu0 0
        %1026 = vmatpush.bf16.msra.mxu0 0
        %1027 = vmatpush.bf16.msra.mxu0 %v1014
        %1028 = vmatmul.bf16.gmra.mxu0 %v1018
        %v1029 = vpop.f32.mrf.mxu0
        %v1030 = vadd.f32 0.0, %v1029
        %v1031 = vpop.f32.mrf.mxu0
        %v1032 = vadd.f32 0.0, %v1031
        %1033 = vdwg.mxu0
        %1034 = vmatpush.bf16.msra.mxu0 0
        %1035 = vmatpush.bf16.msra.mxu0 0
        %1036 = vmatpush.bf16.msra.mxu0 0
        %1037 = vmatpush.bf16.msra.mxu0 0
        %1038 = vmatpush.bf16.msra.mxu0 0
        %1039 = vmatpush.bf16.msra.mxu0 0
        %1040 = vmatpush.bf16.msra.mxu0 0
        %1041 = vmatpush.bf16.msra.mxu0 %v1013
        %1042 = vmatmul.bf16.gmra.mxu0 %v1018
        %v1043 = vpop.f32.mrf.mxu0
        %v1044 = vadd.f32 0.0, %v1043
        %v1045 = vpop.f32.mrf.mxu0
        %v1046 = vadd.f32 0.0, %v1045
        %1047 = vdwg.mxu0
        %v1048 = vadd.f32 %v998, %v1030
        %v1049 = vadd.f32 %v999, %v1044
        %v1050 = vadd.f32 %v1000, %v1032
        %v1051 = vadd.f32 %v1001, %v1046
        %s1052 = scalar_lea.vmem %s3, 32
        %v1053 = vld [vmem:[%s1052] sm:$0xf]
        %v1054 = vld [vmem:[%s1052 + $0x4] sm:$0xf]
        %v1057 = vunpack.c.l.b16 %v1053
        %v1058 = vunpack.c.l.b16 %v1054
        %v1059 = vpack.c.b16 %v1058, %v1057
        %1060 = vrot.lane.b32.xlu0 %v874, 116
        %v1061 = vpop.permute.xlu0 %1060
        %1062 = vrot.lane.b32.xlu0 %v875, 116
        %v1063 = vpop.permute.xlu0 %1062
        %v1064 = vsel %vm585, %v1061, %v1063
        %v1068 = vsel %vm401, %v1059, 0
        %1070 = vmatpush.bf16.msra.mxu0 0
        %1071 = vmatpush.bf16.msra.mxu0 0
        %1072 = vmatpush.bf16.msra.mxu0 0
        %1073 = vmatpush.bf16.msra.mxu0 0
        %1074 = vmatpush.bf16.msra.mxu0 0
        %1075 = vmatpush.bf16.msra.mxu0 0
        %1076 = vmatpush.bf16.msra.mxu0 0
        %1077 = vmatpush.bf16.msra.mxu0 %v1064
        %1078 = vmatmul.bf16.gmra.mxu0 %v1068
        %v1079 = vpop.f32.mrf.mxu0
        %v1080 = vadd.f32 0.0, %v1079
        %v1081 = vpop.f32.mrf.mxu0
        %v1082 = vadd.f32 0.0, %v1081
        %1083 = vdwg.mxu0
        %1084 = vmatpush.bf16.msra.mxu0 0
        %1085 = vmatpush.bf16.msra.mxu0 0
        %1086 = vmatpush.bf16.msra.mxu0 0
        %1087 = vmatpush.bf16.msra.mxu0 0
        %1088 = vmatpush.bf16.msra.mxu0 0
        %1089 = vmatpush.bf16.msra.mxu0 0
        %1090 = vmatpush.bf16.msra.mxu0 0
        %1091 = vmatpush.bf16.msra.mxu0 %v1063
        %1092 = vmatmul.bf16.gmra.mxu0 %v1068
        %v1093 = vpop.f32.mrf.mxu0
        %v1094 = vadd.f32 0.0, %v1093
        %v1095 = vpop.f32.mrf.mxu0
        %v1096 = vadd.f32 0.0, %v1095
        %1097 = vdwg.mxu0
        %v1098 = vadd.f32 %v1048, %v1080
        %v1099 = vadd.f32 %v1049, %v1094
        %v1100 = vadd.f32 %v1050, %v1082
        %v1101 = vadd.f32 %v1051, %v1096
        %s1102 = scalar_lea.vmem %s3, 40
        %v1103 = vld [vmem:[%s1102] sm:$0xf]
        %v1104 = vld [vmem:[%s1102 + $0x4] sm:$0xf]
        %v1107 = vunpack.c.l.b16 %v1103
        %v1108 = vunpack.c.l.b16 %v1104
        %v1109 = vpack.c.b16 %v1108, %v1107
        %1110 = vrot.lane.b32.xlu0 %v874, 115
        %v1111 = vpop.permute.xlu0 %1110
        %1112 = vrot.lane.b32.xlu0 %v875, 115
        %v1113 = vpop.permute.xlu0 %1112
        %v1114 = vsel %vm636, %v1111, %v1113
        %v1118 = vsel %vm401, %v1109, 0
        %1120 = vmatpush.bf16.msra.mxu0 0
        %1121 = vmatpush.bf16.msra.mxu0 0
        %1122 = vmatpush.bf16.msra.mxu0 0
        %1123 = vmatpush.bf16.msra.mxu0 0
        %1124 = vmatpush.bf16.msra.mxu0 0
        %1125 = vmatpush.bf16.msra.mxu0 0
        %1126 = vmatpush.bf16.msra.mxu0 0
        %1127 = vmatpush.bf16.msra.mxu0 %v1114
        %1128 = vmatmul.bf16.gmra.mxu0 %v1118
        %v1129 = vpop.f32.mrf.mxu0
        %v1130 = vadd.f32 0.0, %v1129
        %v1131 = vpop.f32.mrf.mxu0
        %v1132 = vadd.f32 0.0, %v1131
        %1133 = vdwg.mxu0
        %1134 = vmatpush.bf16.msra.mxu0 0
        %1135 = vmatpush.bf16.msra.mxu0 0
        %1136 = vmatpush.bf16.msra.mxu0 0
        %1137 = vmatpush.bf16.msra.mxu0 0
        %1138 = vmatpush.bf16.msra.mxu0 0
        %1139 = vmatpush.bf16.msra.mxu0 0
        %1140 = vmatpush.bf16.msra.mxu0 0
        %1141 = vmatpush.bf16.msra.mxu0 %v1113
        %1142 = vmatmul.bf16.gmra.mxu0 %v1118
        %v1143 = vpop.f32.mrf.mxu0
        %v1144 = vadd.f32 0.0, %v1143
        %v1145 = vpop.f32.mrf.mxu0
        %v1146 = vadd.f32 0.0, %v1145
        %1147 = vdwg.mxu0
        %v1148 = vadd.f32 %v1098, %v1130
        %v1149 = vadd.f32 %v1099, %v1144
        %v1150 = vadd.f32 %v1100, %v1132
        %v1151 = vadd.f32 %v1101, %v1146
        %s1152 = scalar_lea.vmem %s3, 48
        %v1153 = vld [vmem:[%s1152] sm:$0xf]
        %v1154 = vld [vmem:[%s1152 + $0x4] sm:$0xf]
        %v1157 = vunpack.c.l.b16 %v1153
        %v1158 = vunpack.c.l.b16 %v1154
        %v1159 = vpack.c.b16 %v1158, %v1157
        %1160 = vrot.lane.b32.xlu0 %v874, 106
        %v1161 = vpop.permute.xlu0 %1160
        %1162 = vrot.lane.b32.xlu0 %v875, 106
        %v1163 = vpop.permute.xlu0 %1162
        %v1164 = vsel %vm687, %v1161, %v1163
        %v1168 = vsel %vm401, %v1159, 0
        %1170 = vmatpush.bf16.msra.mxu0 0
        %1171 = vmatpush.bf16.msra.mxu0 0
        %1172 = vmatpush.bf16.msra.mxu0 0
        %1173 = vmatpush.bf16.msra.mxu0 0
        %1174 = vmatpush.bf16.msra.mxu0 0
        %1175 = vmatpush.bf16.msra.mxu0 0
        %1176 = vmatpush.bf16.msra.mxu0 0
        %1177 = vmatpush.bf16.msra.mxu0 %v1164
        %1178 = vmatmul.bf16.gmra.mxu0 %v1168
        %v1179 = vpop.f32.mrf.mxu0
        %v1180 = vadd.f32 0.0, %v1179
        %v1181 = vpop.f32.mrf.mxu0
        %v1182 = vadd.f32 0.0, %v1181
        %1183 = vdwg.mxu0
        %1184 = vmatpush.bf16.msra.mxu0 0
        %1185 = vmatpush.bf16.msra.mxu0 0
        %1186 = vmatpush.bf16.msra.mxu0 0
        %1187 = vmatpush.bf16.msra.mxu0 0
        %1188 = vmatpush.bf16.msra.mxu0 0
        %1189 = vmatpush.bf16.msra.mxu0 0
        %1190 = vmatpush.bf16.msra.mxu0 0
        %1191 = vmatpush.bf16.msra.mxu0 %v1163
        %1192 = vmatmul.bf16.gmra.mxu0 %v1168
        %v1193 = vpop.f32.mrf.mxu0
        %v1194 = vadd.f32 0.0, %v1193
        %v1195 = vpop.f32.mrf.mxu0
        %v1196 = vadd.f32 0.0, %v1195
        %1197 = vdwg.mxu0
        %v1198 = vadd.f32 %v1148, %v1180
        %v1199 = vadd.f32 %v1149, %v1194
        %v1200 = vadd.f32 %v1150, %v1182
        %v1201 = vadd.f32 %v1151, %v1196
        %s1202 = scalar_lea.vmem %s3, 56
        %v1203 = vld [vmem:[%s1202] sm:$0xf]
        %v1204 = vld [vmem:[%s1202 + $0x4] sm:$0xf]
        %v1207 = vunpack.c.l.b16 %v1203
        %v1208 = vunpack.c.l.b16 %v1204
        %v1209 = vpack.c.b16 %v1208, %v1207
        %1210 = vrot.lane.b32.xlu0 %v874, 105
        %v1211 = vpop.permute.xlu0 %1210
        %1212 = vrot.lane.b32.xlu0 %v875, 105
        %v1213 = vpop.permute.xlu0 %1212
        %v1214 = vsel %vm738, %v1211, %v1213
        %v1218 = vsel %vm401, %v1209, 0
        %1220 = vmatpush.bf16.msra.mxu0 0
        %1221 = vmatpush.bf16.msra.mxu0 0
        %1222 = vmatpush.bf16.msra.mxu0 0
        %1223 = vmatpush.bf16.msra.mxu0 0
        %1224 = vmatpush.bf16.msra.mxu0 0
        %1225 = vmatpush.bf16.msra.mxu0 0
        %1226 = vmatpush.bf16.msra.mxu0 0
        %1227 = vmatpush.bf16.msra.mxu0 %v1214
        %1228 = vmatmul.bf16.gmra.mxu0 %v1218
        %v1229 = vpop.f32.mrf.mxu0
        %v1230 = vadd.f32 0.0, %v1229
        %v1231 = vpop.f32.mrf.mxu0
        %v1232 = vadd.f32 0.0, %v1231
        %1233 = vdwg.mxu0
        %1234 = vmatpush.bf16.msra.mxu0 0
        %1235 = vmatpush.bf16.msra.mxu0 0
        %1236 = vmatpush.bf16.msra.mxu0 0
        %1237 = vmatpush.bf16.msra.mxu0 0
        %1238 = vmatpush.bf16.msra.mxu0 0
        %1239 = vmatpush.bf16.msra.mxu0 0
        %1240 = vmatpush.bf16.msra.mxu0 0
        %1241 = vmatpush.bf16.msra.mxu0 %v1213
        %1242 = vmatmul.bf16.gmra.mxu0 %v1218
        %v1243 = vpop.f32.mrf.mxu0
        %v1244 = vadd.f32 0.0, %v1243
        %v1245 = vpop.f32.mrf.mxu0
        %v1246 = vadd.f32 0.0, %v1245
        %1247 = vdwg.mxu0
        %v1248 = vadd.f32 %v1198, %v1230
        %v1249 = vadd.f32 %v1199, %v1244
        %v1250 = vadd.f32 %v1200, %v1232
        %v1251 = vadd.f32 %v1201, %v1246
        %s1252 = scalar_lea.vmem %s3, 64
        %v1253 = vld [vmem:[%s1252] sm:$0xf]
        %v1254 = vld [vmem:[%s1252 + $0x4] sm:$0xf]
        %v1257 = vunpack.c.l.b16 %v1253
        %v1258 = vunpack.c.l.b16 %v1254
        %v1259 = vpack.c.b16 %v1258, %v1257
        %1260 = vrot.lane.b32.xlu0 %v874, 104
        %v1261 = vpop.permute.xlu0 %1260
        %1262 = vrot.lane.b32.xlu0 %v875, 104
        %v1263 = vpop.permute.xlu0 %1262
        %v1264 = vsel %vm789, %v1261, %v1263
        %v1268 = vsel %vm401, %v1259, 0
        %1270 = vmatpush.bf16.msra.mxu0 0
        %1271 = vmatpush.bf16.msra.mxu0 0
        %1272 = vmatpush.bf16.msra.mxu0 0
        %1273 = vmatpush.bf16.msra.mxu0 0
        %1274 = vmatpush.bf16.msra.mxu0 0
        %1275 = vmatpush.bf16.msra.mxu0 0
        %1276 = vmatpush.bf16.msra.mxu0 0
        %1277 = vmatpush.bf16.msra.mxu0 %v1264
        %1278 = vmatmul.bf16.gmra.mxu0 %v1268
        %v1279 = vpop.f32.mrf.mxu0
        %v1280 = vadd.f32 0.0, %v1279
        %v1281 = vpop.f32.mrf.mxu0
        %v1282 = vadd.f32 0.0, %v1281
        %1283 = vdwg.mxu0
        %1284 = vmatpush.bf16.msra.mxu0 0
        %1285 = vmatpush.bf16.msra.mxu0 0
        %1286 = vmatpush.bf16.msra.mxu0 0
        %1287 = vmatpush.bf16.msra.mxu0 0
        %1288 = vmatpush.bf16.msra.mxu0 0
        %1289 = vmatpush.bf16.msra.mxu0 0
        %1290 = vmatpush.bf16.msra.mxu0 0
        %1291 = vmatpush.bf16.msra.mxu0 %v1263
        %1292 = vmatmul.bf16.gmra.mxu0 %v1268
        %v1293 = vpop.f32.mrf.mxu0
        %v1294 = vadd.f32 0.0, %v1293
        %v1295 = vpop.f32.mrf.mxu0
        %v1296 = vadd.f32 0.0, %v1295
        %1297 = vdwg.mxu0
        %v1298 = vadd.f32 %v1248, %v1280
        %v1299 = vadd.f32 %v1249, %v1294
        %v1300 = vadd.f32 %v1250, %v1282
        %v1301 = vadd.f32 %v1251, %v1296
        %v1302 = vld [vmem:[%s4] sm:$0xff]
        %v1303 = vld [vmem:[%s4 + $0x8] sm:$0xff]
        %1305 = vset.pattern.permute.xlu0 0
        %1306 = vperm.xlu0 %1305, %v1302
        %v1307 = vpop.permute.xlu0 %1306
        %1310 = vset.pattern.permute.xlu0 0
        %1311 = vperm.xlu0 %1310, %v1303
        %v1312 = vpop.permute.xlu0 %1311
        %v1314 = vadd.f32 %v1298, %v1307
        %v1315 = vadd.f32 %v1299, %v1307
        %v1316 = vadd.f32 %v1300, %v1312
        %v1317 = vadd.f32 %v1301, %v1312
        %vm1318 = vcmp.gt.f32.partialorder %v1314, 0.0
        %vm1319 = vcmp.gt.f32.partialorder %v1315, 0.0
        %vm1320 = vcmp.gt.f32.partialorder %v1316, 0.0
        %vm1321 = vcmp.gt.f32.partialorder %v1317, 0.0
        %v1322 = vmul.f32 %v1314, 0.01
        %v1323 = vmul.f32 %v1315, 0.01
        %v1324 = vmul.f32 %v1316, 0.01
        %v1325 = vmul.f32 %v1317, 0.01
        %v1326 = vsel %vm1318, %v1314, %v1322
        %v1327 = vsel %vm1319, %v1315, %v1323
        %v1328 = vsel %vm1320, %v1316, %v1324
        %v1329 = vsel %vm1321, %v1317, %v1325
        %v1330 = vpack.c.bf16 %v1327, %v1326
        %v1331 = vpack.c.bf16 %v1329, %v1328
        %v1332 = vlaneseq
        %v1333 = vand.u32 %v1332, 127
        %v1334 = vld [vmem:[%s5] sm:$0xf]
        %v1335 = vld [vmem:[%s5 + $0x4] sm:$0xf]
        %v1336 = vld [vmem:[%s5 + $0x8] sm:$0xf]
        %v1337 = vld [vmem:[%s5 + $0xc] sm:$0xf]
        %v1338 = vld [vmem:[%s5 + $0x10] sm:$0xf]
        %v1339 = vld [vmem:[%s5 + $0x14] sm:$0xf]
        %v1340 = vld [vmem:[%s5 + $0x18] sm:$0xf]
        %v1341 = vld [vmem:[%s5 + $0x1c] sm:$0xf]
        %v1342 = vld [vmem:[%s5 + $0x20] sm:$0xf]
        %v1343 = vld [vmem:[%s5 + $0x24] sm:$0x7]
        %s1344 = scalar_lea.vmem %s5, 40
        %v1345 = vld [vmem:[%s1344] sm:$0xf]
        %v1346 = vld [vmem:[%s1344 + $0x4] sm:$0xf]
        %v1347 = vld [vmem:[%s1344 + $0x8] sm:$0xf]
        %v1348 = vld [vmem:[%s1344 + $0xc] sm:$0xf]
        %v1349 = vld [vmem:[%s1344 + $0x10] sm:$0xf]
        %v1350 = vld [vmem:[%s1344 + $0x14] sm:$0xf]
        %v1351 = vld [vmem:[%s1344 + $0x18] sm:$0xf]
        %v1352 = vld [vmem:[%s1344 + $0x1c] sm:$0xf]
        %v1353 = vld [vmem:[%s1344 + $0x20] sm:$0xf]
        %v1354 = vld [vmem:[%s1344 + $0x24] sm:$0x7]
        %v1356 = vunpack.c.l.b16 %v1330
        %v1357 = vpack.c.b16 %v1356, %v1356
        %v1359 = vshrl.u32 %v1357, 16
        %v1371 = vunpack.c.l.b16 %v1345
        %v1372 = vunpack.c.l.b16 %v1346
        %v1373 = vunpack.c.l.b16 %v1347
        %v1374 = vunpack.c.l.b16 %v1348
        %v1375 = vunpack.c.l.b16 %v1349
        %v1376 = vunpack.c.l.b16 %v1350
        %v1377 = vunpack.c.l.b16 %v1351
        %v1378 = vunpack.c.l.b16 %v1352
        %v1379 = vunpack.c.l.b16 %v1353
        %v1380 = vunpack.c.l.b16 %v1354
        %v1381 = vpack.c.b16 %v1372, %v1371
        %v1382 = vpack.c.b16 %v1374, %v1373
        %v1383 = vpack.c.b16 %v1376, %v1375
        %v1384 = vpack.c.b16 %v1378, %v1377
        %v1385 = vpack.c.b16 %v1380, %v1379
        %vm1390 = vcmask 629760
        %v1392 = vsel %vm1390, %v1359, 0
        %vm1394 = vcmask 1045504
        %vm1395 = vcmask 1046528
        %v1396 = vsel %vm1394, 4294967295, 65535
        %v1397 = vsel %vm1395, %v1396, 0
        %v1399 = vand.u32 %v1385, %v1397
        %1401 = vmatpush.bf16.msra.mxu0 0
        %1402 = vmatpush.bf16.msra.mxu0 0
        %1403 = vmatpush.bf16.msra.mxu0 0
        %1404 = vmatpush.bf16.msra.mxu0 %v1399
        %1405 = vmatpush.bf16.msra.mxu0 %v1384
        %1406 = vmatpush.bf16.msra.mxu0 %v1383
        %1407 = vmatpush.bf16.msra.mxu0 %v1382
        %1408 = vmatpush.bf16.msra.mxu0 %v1381
        %1409 = vmatmul.bf16.gmra.mxu0 %v1392
        %v1410 = vpop.f32.mrf.mxu0
        %v1411 = vadd.f32 0.0, %v1410
        %v1412 = vpop.f32.mrf.mxu0
        %1413 = vdwg.mxu0
        %v1424 = vunpack.c.l.b16 %v1334
        %v1425 = vunpack.c.l.b16 %v1335
        %v1426 = vunpack.c.l.b16 %v1336
        %v1427 = vunpack.c.l.b16 %v1337
        %v1428 = vunpack.c.l.b16 %v1338
        %v1429 = vunpack.c.l.b16 %v1339
        %v1430 = vunpack.c.l.b16 %v1340
        %v1431 = vunpack.c.l.b16 %v1341
        %v1432 = vunpack.c.l.b16 %v1342
        %v1433 = vunpack.c.l.b16 %v1343
        %v1434 = vpack.c.b16 %v1425, %v1424
        %v1435 = vpack.c.b16 %v1427, %v1426
        %v1436 = vpack.c.b16 %v1429, %v1428
        %v1437 = vpack.c.b16 %v1431, %v1430
        %v1438 = vpack.c.b16 %v1433, %v1432
        %v1444 = vsel %vm1390, %v1330, 0
        %v1447 = vand.u32 %v1438, %v1397
        %1449 = vmatpush.bf16.msra.mxu0 0
        %1450 = vmatpush.bf16.msra.mxu0 0
        %1451 = vmatpush.bf16.msra.mxu0 0
        %1452 = vmatpush.bf16.msra.mxu0 %v1447
        %1453 = vmatpush.bf16.msra.mxu0 %v1437
        %1454 = vmatpush.bf16.msra.mxu0 %v1436
        %1455 = vmatpush.bf16.msra.mxu0 %v1435
        %1456 = vmatpush.bf16.msra.mxu0 %v1434
        %1457 = vmatmul.bf16.gmra.mxu0 %v1444
        %v1458 = vpop.f32.mrf.mxu0
        %v1459 = vadd.f32 %v1411, %v1458
        %v1460 = vpop.f32.mrf.mxu0
        %1461 = vdwg.mxu0
        %s1462 = scalar_lea.vmem %s5, 80
        %v1463 = vld [vmem:[%s1462] sm:$0xf]
        %v1464 = vld [vmem:[%s1462 + $0x4] sm:$0xf]
        %v1465 = vld [vmem:[%s1462 + $0x8] sm:$0xf]
        %v1466 = vld [vmem:[%s1462 + $0xc] sm:$0xf]
        %v1467 = vld [vmem:[%s1462 + $0x10] sm:$0xf]
        %v1468 = vld [vmem:[%s1462 + $0x14] sm:$0xf]
        %v1469 = vld [vmem:[%s1462 + $0x18] sm:$0xf]
        %v1470 = vld [vmem:[%s1462 + $0x1c] sm:$0xf]
        %v1471 = vld [vmem:[%s1462 + $0x20] sm:$0xf]
        %v1472 = vld [vmem:[%s1462 + $0x24] sm:$0x7]
        %v1473 = vrot.slane %v1357, 1
        %v1484 = vunpack.c.l.b16 %v1463
        %v1485 = vunpack.c.l.b16 %v1464
        %v1486 = vunpack.c.l.b16 %v1465
        %v1487 = vunpack.c.l.b16 %v1466
        %v1488 = vunpack.c.l.b16 %v1467
        %v1489 = vunpack.c.l.b16 %v1468
        %v1490 = vunpack.c.l.b16 %v1469
        %v1491 = vunpack.c.l.b16 %v1470
        %v1492 = vunpack.c.l.b16 %v1471
        %v1493 = vunpack.c.l.b16 %v1472
        %v1494 = vpack.c.b16 %v1485, %v1484
        %v1495 = vpack.c.b16 %v1487, %v1486
        %v1496 = vpack.c.b16 %v1489, %v1488
        %v1497 = vpack.c.b16 %v1491, %v1490
        %v1498 = vpack.c.b16 %v1493, %v1492
        %v1504 = vsel %vm1390, %v1473, 0
        %v1507 = vand.u32 %v1498, %v1397
        %1509 = vmatpush.bf16.msra.mxu0 0
        %1510 = vmatpush.bf16.msra.mxu0 0
        %1511 = vmatpush.bf16.msra.mxu0 0
        %1512 = vmatpush.bf16.msra.mxu0 %v1507
        %1513 = vmatpush.bf16.msra.mxu0 %v1497
        %1514 = vmatpush.bf16.msra.mxu0 %v1496
        %1515 = vmatpush.bf16.msra.mxu0 %v1495
        %1516 = vmatpush.bf16.msra.mxu0 %v1494
        %1517 = vmatmul.bf16.gmra.mxu0 %v1504
        %v1518 = vpop.f32.mrf.mxu0
        %v1519 = vadd.f32 0.0, %v1518
        %v1520 = vpop.f32.mrf.mxu0
        %1521 = vdwg.mxu0
        %v1522 = vadd.f32 %v1459, %v1519
        %s1523 = scalar_lea.vmem %s5, 120
        %v1524 = vld [vmem:[%s1523] sm:$0xf]
        %v1525 = vld [vmem:[%s1523 + $0x4] sm:$0xf]
        %v1526 = vld [vmem:[%s1523 + $0x8] sm:$0xf]
        %v1527 = vld [vmem:[%s1523 + $0xc] sm:$0xf]
        %v1528 = vld [vmem:[%s1523 + $0x10] sm:$0xf]
        %v1529 = vld [vmem:[%s1523 + $0x14] sm:$0xf]
        %v1530 = vld [vmem:[%s1523 + $0x18] sm:$0xf]
        %v1531 = vld [vmem:[%s1523 + $0x1c] sm:$0xf]
        %v1532 = vld [vmem:[%s1523 + $0x20] sm:$0xf]
        %v1533 = vld [vmem:[%s1523 + $0x24] sm:$0x7]
        %v1534 = vrot.slane %v1359, 1
        %v1545 = vunpack.c.l.b16 %v1524
        %v1546 = vunpack.c.l.b16 %v1525
        %v1547 = vunpack.c.l.b16 %v1526
        %v1548 = vunpack.c.l.b16 %v1527
        %v1549 = vunpack.c.l.b16 %v1528
        %v1550 = vunpack.c.l.b16 %v1529
        %v1551 = vunpack.c.l.b16 %v1530
        %v1552 = vunpack.c.l.b16 %v1531
        %v1553 = vunpack.c.l.b16 %v1532
        %v1554 = vunpack.c.l.b16 %v1533
        %v1555 = vpack.c.b16 %v1546, %v1545
        %v1556 = vpack.c.b16 %v1548, %v1547
        %v1557 = vpack.c.b16 %v1550, %v1549
        %v1558 = vpack.c.b16 %v1552, %v1551
        %v1559 = vpack.c.b16 %v1554, %v1553
        %v1565 = vsel %vm1390, %v1534, 0
        %v1568 = vand.u32 %v1559, %v1397
        %1570 = vmatpush.bf16.msra.mxu0 0
        %1571 = vmatpush.bf16.msra.mxu0 0
        %1572 = vmatpush.bf16.msra.mxu0 0
        %1573 = vmatpush.bf16.msra.mxu0 %v1568
        %1574 = vmatpush.bf16.msra.mxu0 %v1558
        %1575 = vmatpush.bf16.msra.mxu0 %v1557
        %1576 = vmatpush.bf16.msra.mxu0 %v1556
        %1577 = vmatpush.bf16.msra.mxu0 %v1555
        %1578 = vmatmul.bf16.gmra.mxu0 %v1565
        %v1579 = vpop.f32.mrf.mxu0
        %v1580 = vadd.f32 0.0, %v1579
        %v1581 = vpop.f32.mrf.mxu0
        %1582 = vdwg.mxu0
        %v1583 = vadd.f32 %v1522, %v1580
        %s1584 = scalar_lea.vmem %s5, 160
        %v1585 = vld [vmem:[%s1584] sm:$0xf]
        %v1586 = vld [vmem:[%s1584 + $0x4] sm:$0xf]
        %v1587 = vld [vmem:[%s1584 + $0x8] sm:$0xf]
        %v1588 = vld [vmem:[%s1584 + $0xc] sm:$0xf]
        %v1589 = vld [vmem:[%s1584 + $0x10] sm:$0xf]
        %v1590 = vld [vmem:[%s1584 + $0x14] sm:$0xf]
        %v1591 = vld [vmem:[%s1584 + $0x18] sm:$0xf]
        %v1592 = vld [vmem:[%s1584 + $0x1c] sm:$0xf]
        %v1593 = vld [vmem:[%s1584 + $0x20] sm:$0xf]
        %v1594 = vld [vmem:[%s1584 + $0x24] sm:$0x7]
        %v1595 = vrot.slane %v1357, 2
        %v1606 = vunpack.c.l.b16 %v1585
        %v1607 = vunpack.c.l.b16 %v1586
        %v1608 = vunpack.c.l.b16 %v1587
        %v1609 = vunpack.c.l.b16 %v1588
        %v1610 = vunpack.c.l.b16 %v1589
        %v1611 = vunpack.c.l.b16 %v1590
        %v1612 = vunpack.c.l.b16 %v1591
        %v1613 = vunpack.c.l.b16 %v1592
        %v1614 = vunpack.c.l.b16 %v1593
        %v1615 = vunpack.c.l.b16 %v1594
        %v1616 = vpack.c.b16 %v1607, %v1606
        %v1617 = vpack.c.b16 %v1609, %v1608
        %v1618 = vpack.c.b16 %v1611, %v1610
        %v1619 = vpack.c.b16 %v1613, %v1612
        %v1620 = vpack.c.b16 %v1615, %v1614
        %v1626 = vsel %vm1390, %v1595, 0
        %v1629 = vand.u32 %v1620, %v1397
        %1631 = vmatpush.bf16.msra.mxu0 0
        %1632 = vmatpush.bf16.msra.mxu0 0
        %1633 = vmatpush.bf16.msra.mxu0 0
        %1634 = vmatpush.bf16.msra.mxu0 %v1629
        %1635 = vmatpush.bf16.msra.mxu0 %v1619
        %1636 = vmatpush.bf16.msra.mxu0 %v1618
        %1637 = vmatpush.bf16.msra.mxu0 %v1617
        %1638 = vmatpush.bf16.msra.mxu0 %v1616
        %1639 = vmatmul.bf16.gmra.mxu0 %v1626
        %v1640 = vpop.f32.mrf.mxu0
        %v1641 = vadd.f32 0.0, %v1640
        %v1642 = vpop.f32.mrf.mxu0
        %1643 = vdwg.mxu0
        %v1644 = vadd.f32 %v1583, %v1641
        %s1645 = scalar_lea.vmem %s5, 200
        %v1646 = vld [vmem:[%s1645] sm:$0xf]
        %v1647 = vld [vmem:[%s1645 + $0x4] sm:$0xf]
        %v1648 = vld [vmem:[%s1645 + $0x8] sm:$0xf]
        %v1649 = vld [vmem:[%s1645 + $0xc] sm:$0xf]
        %v1650 = vld [vmem:[%s1645 + $0x10] sm:$0xf]
        %v1651 = vld [vmem:[%s1645 + $0x14] sm:$0xf]
        %v1652 = vld [vmem:[%s1645 + $0x18] sm:$0xf]
        %v1653 = vld [vmem:[%s1645 + $0x1c] sm:$0xf]
        %v1654 = vld [vmem:[%s1645 + $0x20] sm:$0xf]
        %v1655 = vld [vmem:[%s1645 + $0x24] sm:$0x7]
        %v1656 = vrot.slane %v1359, 2
        %v1667 = vunpack.c.l.b16 %v1646
        %v1668 = vunpack.c.l.b16 %v1647
        %v1669 = vunpack.c.l.b16 %v1648
        %v1670 = vunpack.c.l.b16 %v1649
        %v1671 = vunpack.c.l.b16 %v1650
        %v1672 = vunpack.c.l.b16 %v1651
        %v1673 = vunpack.c.l.b16 %v1652
        %v1674 = vunpack.c.l.b16 %v1653
        %v1675 = vunpack.c.l.b16 %v1654
        %v1676 = vunpack.c.l.b16 %v1655
        %v1677 = vpack.c.b16 %v1668, %v1667
        %v1678 = vpack.c.b16 %v1670, %v1669
        %v1679 = vpack.c.b16 %v1672, %v1671
        %v1680 = vpack.c.b16 %v1674, %v1673
        %v1681 = vpack.c.b16 %v1676, %v1675
        %v1687 = vsel %vm1390, %v1656, 0
        %v1690 = vand.u32 %v1681, %v1397
        %1692 = vmatpush.bf16.msra.mxu0 0
        %1693 = vmatpush.bf16.msra.mxu0 0
        %1694 = vmatpush.bf16.msra.mxu0 0
        %1695 = vmatpush.bf16.msra.mxu0 %v1690
        %1696 = vmatpush.bf16.msra.mxu0 %v1680
        %1697 = vmatpush.bf16.msra.mxu0 %v1679
        %1698 = vmatpush.bf16.msra.mxu0 %v1678
        %1699 = vmatpush.bf16.msra.mxu0 %v1677
        %1700 = vmatmul.bf16.gmra.mxu0 %v1687
        %v1701 = vpop.f32.mrf.mxu0
        %v1702 = vadd.f32 0.0, %v1701
        %v1703 = vpop.f32.mrf.mxu0
        %1704 = vdwg.mxu0
        %v1705 = vadd.f32 %v1644, %v1702
        %s1706 = scalar_lea.vmem %s5, 240
        %v1707 = vld [vmem:[%s1706] sm:$0xf]
        %v1708 = vld [vmem:[%s1706 + $0x4] sm:$0xf]
        %v1709 = vld [vmem:[%s1706 + $0x8] sm:$0xf]
        %v1710 = vld [vmem:[%s1706 + $0xc] sm:$0xf]
        %v1711 = vld [vmem:[%s1706 + $0x10] sm:$0xf]
        %v1712 = vld [vmem:[%s1706 + $0x14] sm:$0xf]
        %v1713 = vld [vmem:[%s1706 + $0x18] sm:$0xf]
        %v1714 = vld [vmem:[%s1706 + $0x1c] sm:$0xf]
        %v1715 = vld [vmem:[%s1706 + $0x20] sm:$0xf]
        %v1716 = vld [vmem:[%s1706 + $0x24] sm:$0x7]
        %v1717 = vrot.slane %v1357, 3
        %v1728 = vunpack.c.l.b16 %v1707
        %v1729 = vunpack.c.l.b16 %v1708
        %v1730 = vunpack.c.l.b16 %v1709
        %v1731 = vunpack.c.l.b16 %v1710
        %v1732 = vunpack.c.l.b16 %v1711
        %v1733 = vunpack.c.l.b16 %v1712
        %v1734 = vunpack.c.l.b16 %v1713
        %v1735 = vunpack.c.l.b16 %v1714
        %v1736 = vunpack.c.l.b16 %v1715
        %v1737 = vunpack.c.l.b16 %v1716
        %v1738 = vpack.c.b16 %v1729, %v1728
        %v1739 = vpack.c.b16 %v1731, %v1730
        %v1740 = vpack.c.b16 %v1733, %v1732
        %v1741 = vpack.c.b16 %v1735, %v1734
        %v1742 = vpack.c.b16 %v1737, %v1736
        %v1748 = vsel %vm1390, %v1717, 0
        %v1751 = vand.u32 %v1742, %v1397
        %1753 = vmatpush.bf16.msra.mxu0 0
        %1754 = vmatpush.bf16.msra.mxu0 0
        %1755 = vmatpush.bf16.msra.mxu0 0
        %1756 = vmatpush.bf16.msra.mxu0 %v1751
        %1757 = vmatpush.bf16.msra.mxu0 %v1741
        %1758 = vmatpush.bf16.msra.mxu0 %v1740
        %1759 = vmatpush.bf16.msra.mxu0 %v1739
        %1760 = vmatpush.bf16.msra.mxu0 %v1738
        %1761 = vmatmul.bf16.gmra.mxu0 %v1748
        %v1762 = vpop.f32.mrf.mxu0
        %v1763 = vadd.f32 0.0, %v1762
        %v1764 = vpop.f32.mrf.mxu0
        %1765 = vdwg.mxu0
        %v1766 = vadd.f32 %v1705, %v1763
        %s1767 = scalar_lea.vmem %s5, 280
        %v1768 = vld [vmem:[%s1767] sm:$0xf]
        %v1769 = vld [vmem:[%s1767 + $0x4] sm:$0xf]
        %v1770 = vld [vmem:[%s1767 + $0x8] sm:$0xf]
        %v1771 = vld [vmem:[%s1767 + $0xc] sm:$0xf]
        %v1772 = vld [vmem:[%s1767 + $0x10] sm:$0xf]
        %v1773 = vld [vmem:[%s1767 + $0x14] sm:$0xf]
        %v1774 = vld [vmem:[%s1767 + $0x18] sm:$0xf]
        %v1775 = vld [vmem:[%s1767 + $0x1c] sm:$0xf]
        %v1776 = vld [vmem:[%s1767 + $0x20] sm:$0xf]
        %v1777 = vld [vmem:[%s1767 + $0x24] sm:$0x7]
        %v1778 = vrot.slane %v1359, 3
        %v1789 = vunpack.c.l.b16 %v1768
        %v1790 = vunpack.c.l.b16 %v1769
        %v1791 = vunpack.c.l.b16 %v1770
        %v1792 = vunpack.c.l.b16 %v1771
        %v1793 = vunpack.c.l.b16 %v1772
        %v1794 = vunpack.c.l.b16 %v1773
        %v1795 = vunpack.c.l.b16 %v1774
        %v1796 = vunpack.c.l.b16 %v1775
        %v1797 = vunpack.c.l.b16 %v1776
        %v1798 = vunpack.c.l.b16 %v1777
        %v1799 = vpack.c.b16 %v1790, %v1789
        %v1800 = vpack.c.b16 %v1792, %v1791
        %v1801 = vpack.c.b16 %v1794, %v1793
        %v1802 = vpack.c.b16 %v1796, %v1795
        %v1803 = vpack.c.b16 %v1798, %v1797
        %v1809 = vsel %vm1390, %v1778, 0
        %v1812 = vand.u32 %v1803, %v1397
        %1814 = vmatpush.bf16.msra.mxu0 0
        %1815 = vmatpush.bf16.msra.mxu0 0
        %1816 = vmatpush.bf16.msra.mxu0 0
        %1817 = vmatpush.bf16.msra.mxu0 %v1812
        %1818 = vmatpush.bf16.msra.mxu0 %v1802
        %1819 = vmatpush.bf16.msra.mxu0 %v1801
        %1820 = vmatpush.bf16.msra.mxu0 %v1800
        %1821 = vmatpush.bf16.msra.mxu0 %v1799
        %1822 = vmatmul.bf16.gmra.mxu0 %v1809
        %v1823 = vpop.f32.mrf.mxu0
        %v1824 = vadd.f32 0.0, %v1823
        %v1825 = vpop.f32.mrf.mxu0
        %1826 = vdwg.mxu0
        %v1827 = vadd.f32 %v1766, %v1824
        %s1828 = scalar_lea.vmem %s5, 320
        %v1829 = vld [vmem:[%s1828] sm:$0xf]
        %v1830 = vld [vmem:[%s1828 + $0x4] sm:$0xf]
        %v1831 = vld [vmem:[%s1828 + $0x8] sm:$0xf]
        %v1832 = vld [vmem:[%s1828 + $0xc] sm:$0xf]
        %v1833 = vld [vmem:[%s1828 + $0x10] sm:$0xf]
        %v1834 = vld [vmem:[%s1828 + $0x14] sm:$0xf]
        %v1835 = vld [vmem:[%s1828 + $0x18] sm:$0xf]
        %v1836 = vld [vmem:[%s1828 + $0x1c] sm:$0xf]
        %v1837 = vld [vmem:[%s1828 + $0x20] sm:$0xf]
        %v1838 = vld [vmem:[%s1828 + $0x24] sm:$0x7]
        %v1849 = vunpack.c.l.b16 %v1829
        %v1850 = vunpack.c.l.b16 %v1830
        %v1851 = vunpack.c.l.b16 %v1831
        %v1852 = vunpack.c.l.b16 %v1832
        %v1853 = vunpack.c.l.b16 %v1833
        %v1854 = vunpack.c.l.b16 %v1834
        %v1855 = vunpack.c.l.b16 %v1835
        %v1856 = vunpack.c.l.b16 %v1836
        %v1857 = vunpack.c.l.b16 %v1837
        %v1858 = vunpack.c.l.b16 %v1838
        %v1859 = vpack.c.b16 %v1850, %v1849
        %v1860 = vpack.c.b16 %v1852, %v1851
        %v1861 = vpack.c.b16 %v1854, %v1853
        %v1862 = vpack.c.b16 %v1856, %v1855
        %v1863 = vpack.c.b16 %v1858, %v1857
        %v1869 = vsel %vm1390, %v1331, 0
        %v1872 = vand.u32 %v1863, %v1397
        %1874 = vmatpush.bf16.msra.mxu0 0
        %1875 = vmatpush.bf16.msra.mxu0 0
        %1876 = vmatpush.bf16.msra.mxu0 0
        %1877 = vmatpush.bf16.msra.mxu0 %v1872
        %1878 = vmatpush.bf16.msra.mxu0 %v1862
        %1879 = vmatpush.bf16.msra.mxu0 %v1861
        %1880 = vmatpush.bf16.msra.mxu0 %v1860
        %1881 = vmatpush.bf16.msra.mxu0 %v1859
        %1882 = vmatmul.bf16.gmra.mxu0 %v1869
        %v1883 = vpop.f32.mrf.mxu0
        %v1884 = vadd.f32 0.0, %v1883
        %v1885 = vpop.f32.mrf.mxu0
        %1886 = vdwg.mxu0
        %v1887 = vadd.f32 %v1827, %v1884
        %s1888 = scalar_lea.vmem %s5, 360
        %v1889 = vld [vmem:[%s1888] sm:$0xf]
        %v1890 = vld [vmem:[%s1888 + $0x4] sm:$0xf]
        %v1891 = vld [vmem:[%s1888 + $0x8] sm:$0xf]
        %v1892 = vld [vmem:[%s1888 + $0xc] sm:$0xf]
        %v1893 = vld [vmem:[%s1888 + $0x10] sm:$0xf]
        %v1894 = vld [vmem:[%s1888 + $0x14] sm:$0xf]
        %v1895 = vld [vmem:[%s1888 + $0x18] sm:$0xf]
        %v1896 = vld [vmem:[%s1888 + $0x1c] sm:$0xf]
        %v1897 = vld [vmem:[%s1888 + $0x20] sm:$0xf]
        %v1898 = vld [vmem:[%s1888 + $0x24] sm:$0x7]
        %v1900 = vunpack.c.l.b16 %v1331
        %v1901 = vpack.c.b16 %v1900, %v1900
        %v1903 = vshrl.u32 %v1901, 16
        %v1915 = vunpack.c.l.b16 %v1889
        %v1916 = vunpack.c.l.b16 %v1890
        %v1917 = vunpack.c.l.b16 %v1891
        %v1918 = vunpack.c.l.b16 %v1892
        %v1919 = vunpack.c.l.b16 %v1893
        %v1920 = vunpack.c.l.b16 %v1894
        %v1921 = vunpack.c.l.b16 %v1895
        %v1922 = vunpack.c.l.b16 %v1896
        %v1923 = vunpack.c.l.b16 %v1897
        %v1924 = vunpack.c.l.b16 %v1898
        %v1925 = vpack.c.b16 %v1916, %v1915
        %v1926 = vpack.c.b16 %v1918, %v1917
        %v1927 = vpack.c.b16 %v1920, %v1919
        %v1928 = vpack.c.b16 %v1922, %v1921
        %v1929 = vpack.c.b16 %v1924, %v1923
        %v1935 = vsel %vm1390, %v1903, 0
        %v1938 = vand.u32 %v1929, %v1397
        %1940 = vmatpush.bf16.msra.mxu0 0
        %1941 = vmatpush.bf16.msra.mxu0 0
        %1942 = vmatpush.bf16.msra.mxu0 0
        %1943 = vmatpush.bf16.msra.mxu0 %v1938
        %1944 = vmatpush.bf16.msra.mxu0 %v1928
        %1945 = vmatpush.bf16.msra.mxu0 %v1927
        %1946 = vmatpush.bf16.msra.mxu0 %v1926
        %1947 = vmatpush.bf16.msra.mxu0 %v1925
        %1948 = vmatmul.bf16.gmra.mxu0 %v1935
        %v1949 = vpop.f32.mrf.mxu0
        %v1950 = vadd.f32 0.0, %v1949
        %v1951 = vpop.f32.mrf.mxu0
        %1952 = vdwg.mxu0
        %v1953 = vadd.f32 %v1887, %v1950
        %s1954 = scalar_lea.vmem %s5, 400
        %v1955 = vld [vmem:[%s1954] sm:$0xf]
        %v1956 = vld [vmem:[%s1954 + $0x4] sm:$0xf]
        %v1957 = vld [vmem:[%s1954 + $0x8] sm:$0xf]
        %v1958 = vld [vmem:[%s1954 + $0xc] sm:$0xf]
        %v1959 = vld [vmem:[%s1954 + $0x10] sm:$0xf]
        %v1960 = vld [vmem:[%s1954 + $0x14] sm:$0xf]
        %v1961 = vld [vmem:[%s1954 + $0x18] sm:$0xf]
        %v1962 = vld [vmem:[%s1954 + $0x1c] sm:$0xf]
        %v1963 = vld [vmem:[%s1954 + $0x20] sm:$0xf]
        %v1964 = vld [vmem:[%s1954 + $0x24] sm:$0x7]
        %v1965 = vrot.slane %v1901, 1
        %v1976 = vunpack.c.l.b16 %v1955
        %v1977 = vunpack.c.l.b16 %v1956
        %v1978 = vunpack.c.l.b16 %v1957
        %v1979 = vunpack.c.l.b16 %v1958
        %v1980 = vunpack.c.l.b16 %v1959
        %v1981 = vunpack.c.l.b16 %v1960
        %v1982 = vunpack.c.l.b16 %v1961
        %v1983 = vunpack.c.l.b16 %v1962
        %v1984 = vunpack.c.l.b16 %v1963
        %v1985 = vunpack.c.l.b16 %v1964
        %v1986 = vpack.c.b16 %v1977, %v1976
        %v1987 = vpack.c.b16 %v1979, %v1978
        %v1988 = vpack.c.b16 %v1981, %v1980
        %v1989 = vpack.c.b16 %v1983, %v1982
        %v1990 = vpack.c.b16 %v1985, %v1984
        %v1996 = vsel %vm1390, %v1965, 0
        %v1999 = vand.u32 %v1990, %v1397
        %2001 = vmatpush.bf16.msra.mxu0 0
        %2002 = vmatpush.bf16.msra.mxu0 0
        %2003 = vmatpush.bf16.msra.mxu0 0
        %2004 = vmatpush.bf16.msra.mxu0 %v1999
        %2005 = vmatpush.bf16.msra.mxu0 %v1989
        %2006 = vmatpush.bf16.msra.mxu0 %v1988
        %2007 = vmatpush.bf16.msra.mxu0 %v1987
        %2008 = vmatpush.bf16.msra.mxu0 %v1986
        %2009 = vmatmul.bf16.gmra.mxu0 %v1996
        %v2010 = vpop.f32.mrf.mxu0
        %v2011 = vadd.f32 0.0, %v2010
        %v2012 = vpop.f32.mrf.mxu0
        %2013 = vdwg.mxu0
        %v2014 = vadd.f32 %v1953, %v2011
        %s2015 = scalar_lea.vmem %s5, 440
        %v2016 = vld [vmem:[%s2015] sm:$0xf]
        %v2017 = vld [vmem:[%s2015 + $0x4] sm:$0xf]
        %v2018 = vld [vmem:[%s2015 + $0x8] sm:$0xf]
        %v2019 = vld [vmem:[%s2015 + $0xc] sm:$0xf]
        %v2020 = vld [vmem:[%s2015 + $0x10] sm:$0xf]
        %v2021 = vld [vmem:[%s2015 + $0x14] sm:$0xf]
        %v2022 = vld [vmem:[%s2015 + $0x18] sm:$0xf]
        %v2023 = vld [vmem:[%s2015 + $0x1c] sm:$0xf]
        %v2024 = vld [vmem:[%s2015 + $0x20] sm:$0xf]
        %v2025 = vld [vmem:[%s2015 + $0x24] sm:$0x7]
        %v2026 = vrot.slane %v1903, 1
        %v2037 = vunpack.c.l.b16 %v2016
        %v2038 = vunpack.c.l.b16 %v2017
        %v2039 = vunpack.c.l.b16 %v2018
        %v2040 = vunpack.c.l.b16 %v2019
        %v2041 = vunpack.c.l.b16 %v2020
        %v2042 = vunpack.c.l.b16 %v2021
        %v2043 = vunpack.c.l.b16 %v2022
        %v2044 = vunpack.c.l.b16 %v2023
        %v2045 = vunpack.c.l.b16 %v2024
        %v2046 = vunpack.c.l.b16 %v2025
        %v2047 = vpack.c.b16 %v2038, %v2037
        %v2048 = vpack.c.b16 %v2040, %v2039
        %v2049 = vpack.c.b16 %v2042, %v2041
        %v2050 = vpack.c.b16 %v2044, %v2043
        %v2051 = vpack.c.b16 %v2046, %v2045
        %v2057 = vsel %vm1390, %v2026, 0
        %v2060 = vand.u32 %v2051, %v1397
        %2062 = vmatpush.bf16.msra.mxu0 0
        %2063 = vmatpush.bf16.msra.mxu0 0
        %2064 = vmatpush.bf16.msra.mxu0 0
        %2065 = vmatpush.bf16.msra.mxu0 %v2060
        %2066 = vmatpush.bf16.msra.mxu0 %v2050
        %2067 = vmatpush.bf16.msra.mxu0 %v2049
        %2068 = vmatpush.bf16.msra.mxu0 %v2048
        %2069 = vmatpush.bf16.msra.mxu0 %v2047
        %2070 = vmatmul.bf16.gmra.mxu0 %v2057
        %v2071 = vpop.f32.mrf.mxu0
        %v2072 = vadd.f32 0.0, %v2071
        %v2073 = vpop.f32.mrf.mxu0
        %2074 = vdwg.mxu0
        %v2075 = vadd.f32 %v2014, %v2072
        %s2076 = scalar_lea.vmem %s5, 480
        %v2077 = vld [vmem:[%s2076] sm:$0xf]
        %v2078 = vld [vmem:[%s2076 + $0x4] sm:$0xf]
        %v2079 = vld [vmem:[%s2076 + $0x8] sm:$0xf]
        %v2080 = vld [vmem:[%s2076 + $0xc] sm:$0xf]
        %v2081 = vld [vmem:[%s2076 + $0x10] sm:$0xf]
        %v2082 = vld [vmem:[%s2076 + $0x14] sm:$0xf]
        %v2083 = vld [vmem:[%s2076 + $0x18] sm:$0xf]
        %v2084 = vld [vmem:[%s2076 + $0x1c] sm:$0xf]
        %v2085 = vld [vmem:[%s2076 + $0x20] sm:$0xf]
        %v2086 = vld [vmem:[%s2076 + $0x24] sm:$0x7]
        %v2087 = vrot.slane %v1901, 2
        %v2098 = vunpack.c.l.b16 %v2077
        %v2099 = vunpack.c.l.b16 %v2078
        %v2100 = vunpack.c.l.b16 %v2079
        %v2101 = vunpack.c.l.b16 %v2080
        %v2102 = vunpack.c.l.b16 %v2081
        %v2103 = vunpack.c.l.b16 %v2082
        %v2104 = vunpack.c.l.b16 %v2083
        %v2105 = vunpack.c.l.b16 %v2084
        %v2106 = vunpack.c.l.b16 %v2085
        %v2107 = vunpack.c.l.b16 %v2086
        %v2108 = vpack.c.b16 %v2099, %v2098
        %v2109 = vpack.c.b16 %v2101, %v2100
        %v2110 = vpack.c.b16 %v2103, %v2102
        %v2111 = vpack.c.b16 %v2105, %v2104
        %v2112 = vpack.c.b16 %v2107, %v2106
        %v2118 = vsel %vm1390, %v2087, 0
        %v2121 = vand.u32 %v2112, %v1397
        %2123 = vmatpush.bf16.msra.mxu0 0
        %2124 = vmatpush.bf16.msra.mxu0 0
        %2125 = vmatpush.bf16.msra.mxu0 0
        %2126 = vmatpush.bf16.msra.mxu0 %v2121
        %2127 = vmatpush.bf16.msra.mxu0 %v2111
        %2128 = vmatpush.bf16.msra.mxu0 %v2110
        %2129 = vmatpush.bf16.msra.mxu0 %v2109
        %2130 = vmatpush.bf16.msra.mxu0 %v2108
        %2131 = vmatmul.bf16.gmra.mxu0 %v2118
        %v2132 = vpop.f32.mrf.mxu0
        %v2133 = vadd.f32 0.0, %v2132
        %v2134 = vpop.f32.mrf.mxu0
        %2135 = vdwg.mxu0
        %v2136 = vadd.f32 %v2075, %v2133
        %s2137 = scalar_lea.vmem %s5, 520
        %v2138 = vld [vmem:[%s2137] sm:$0xf]
        %v2139 = vld [vmem:[%s2137 + $0x4] sm:$0xf]
        %v2140 = vld [vmem:[%s2137 + $0x8] sm:$0xf]
        %v2141 = vld [vmem:[%s2137 + $0xc] sm:$0xf]
        %v2142 = vld [vmem:[%s2137 + $0x10] sm:$0xf]
        %v2143 = vld [vmem:[%s2137 + $0x14] sm:$0xf]
        %v2144 = vld [vmem:[%s2137 + $0x18] sm:$0xf]
        %v2145 = vld [vmem:[%s2137 + $0x1c] sm:$0xf]
        %v2146 = vld [vmem:[%s2137 + $0x20] sm:$0xf]
        %v2147 = vld [vmem:[%s2137 + $0x24] sm:$0x7]
        %v2148 = vrot.slane %v1903, 2
        %v2159 = vunpack.c.l.b16 %v2138
        %v2160 = vunpack.c.l.b16 %v2139
        %v2161 = vunpack.c.l.b16 %v2140
        %v2162 = vunpack.c.l.b16 %v2141
        %v2163 = vunpack.c.l.b16 %v2142
        %v2164 = vunpack.c.l.b16 %v2143
        %v2165 = vunpack.c.l.b16 %v2144
        %v2166 = vunpack.c.l.b16 %v2145
        %v2167 = vunpack.c.l.b16 %v2146
        %v2168 = vunpack.c.l.b16 %v2147
        %v2169 = vpack.c.b16 %v2160, %v2159
        %v2170 = vpack.c.b16 %v2162, %v2161
        %v2171 = vpack.c.b16 %v2164, %v2163
        %v2172 = vpack.c.b16 %v2166, %v2165
        %v2173 = vpack.c.b16 %v2168, %v2167
        %v2179 = vsel %vm1390, %v2148, 0
        %v2182 = vand.u32 %v2173, %v1397
        %2184 = vmatpush.bf16.msra.mxu0 0
        %2185 = vmatpush.bf16.msra.mxu0 0
        %2186 = vmatpush.bf16.msra.mxu0 0
        %2187 = vmatpush.bf16.msra.mxu0 %v2182
        %2188 = vmatpush.bf16.msra.mxu0 %v2172
        %2189 = vmatpush.bf16.msra.mxu0 %v2171
        %2190 = vmatpush.bf16.msra.mxu0 %v2170
        %2191 = vmatpush.bf16.msra.mxu0 %v2169
        %2192 = vmatmul.bf16.gmra.mxu0 %v2179
        %v2193 = vpop.f32.mrf.mxu0
        %v2194 = vadd.f32 0.0, %v2193
        %v2195 = vpop.f32.mrf.mxu0
        %2196 = vdwg.mxu0
        %v2197 = vadd.f32 %v2136, %v2194
        %s2198 = scalar_lea.vmem %s5, 560
        %v2199 = vld [vmem:[%s2198] sm:$0xf]
        %v2200 = vld [vmem:[%s2198 + $0x4] sm:$0xf]
        %v2201 = vld [vmem:[%s2198 + $0x8] sm:$0xf]
        %v2202 = vld [vmem:[%s2198 + $0xc] sm:$0xf]
        %v2203 = vld [vmem:[%s2198 + $0x10] sm:$0xf]
        %v2204 = vld [vmem:[%s2198 + $0x14] sm:$0xf]
        %v2205 = vld [vmem:[%s2198 + $0x18] sm:$0xf]
        %v2206 = vld [vmem:[%s2198 + $0x1c] sm:$0xf]
        %v2207 = vld [vmem:[%s2198 + $0x20] sm:$0xf]
        %v2208 = vld [vmem:[%s2198 + $0x24] sm:$0x7]
        %v2209 = vrot.slane %v1901, 3
        %v2220 = vunpack.c.l.b16 %v2199
        %v2221 = vunpack.c.l.b16 %v2200
        %v2222 = vunpack.c.l.b16 %v2201
        %v2223 = vunpack.c.l.b16 %v2202
        %v2224 = vunpack.c.l.b16 %v2203
        %v2225 = vunpack.c.l.b16 %v2204
        %v2226 = vunpack.c.l.b16 %v2205
        %v2227 = vunpack.c.l.b16 %v2206
        %v2228 = vunpack.c.l.b16 %v2207
        %v2229 = vunpack.c.l.b16 %v2208
        %v2230 = vpack.c.b16 %v2221, %v2220
        %v2231 = vpack.c.b16 %v2223, %v2222
        %v2232 = vpack.c.b16 %v2225, %v2224
        %v2233 = vpack.c.b16 %v2227, %v2226
        %v2234 = vpack.c.b16 %v2229, %v2228
        %v2240 = vsel %vm1390, %v2209, 0
        %v2243 = vand.u32 %v2234, %v1397
        %2245 = vmatpush.bf16.msra.mxu0 0
        %2246 = vmatpush.bf16.msra.mxu0 0
        %2247 = vmatpush.bf16.msra.mxu0 0
        %2248 = vmatpush.bf16.msra.mxu0 %v2243
        %2249 = vmatpush.bf16.msra.mxu0 %v2233
        %2250 = vmatpush.bf16.msra.mxu0 %v2232
        %2251 = vmatpush.bf16.msra.mxu0 %v2231
        %2252 = vmatpush.bf16.msra.mxu0 %v2230
        %2253 = vmatmul.bf16.gmra.mxu0 %v2240
        %v2254 = vpop.f32.mrf.mxu0
        %v2255 = vadd.f32 0.0, %v2254
        %v2256 = vpop.f32.mrf.mxu0
        %2257 = vdwg.mxu0
        %v2258 = vadd.f32 %v2197, %v2255
        %s2259 = scalar_lea.vmem %s5, 600
        %v2260 = vld [vmem:[%s2259] sm:$0xf]
        %v2261 = vld [vmem:[%s2259 + $0x4] sm:$0xf]
        %v2262 = vld [vmem:[%s2259 + $0x8] sm:$0xf]
        %v2263 = vld [vmem:[%s2259 + $0xc] sm:$0xf]
        %v2264 = vld [vmem:[%s2259 + $0x10] sm:$0xf]
        %v2265 = vld [vmem:[%s2259 + $0x14] sm:$0xf]
        %v2266 = vld [vmem:[%s2259 + $0x18] sm:$0xf]
        %v2267 = vld [vmem:[%s2259 + $0x1c] sm:$0xf]
        %v2268 = vld [vmem:[%s2259 + $0x20] sm:$0xf]
        %v2269 = vld [vmem:[%s2259 + $0x24] sm:$0x7]
        %v2270 = vrot.slane %v1903, 3
        %v2281 = vunpack.c.l.b16 %v2260
        %v2282 = vunpack.c.l.b16 %v2261
        %v2283 = vunpack.c.l.b16 %v2262
        %v2284 = vunpack.c.l.b16 %v2263
        %v2285 = vunpack.c.l.b16 %v2264
        %v2286 = vunpack.c.l.b16 %v2265
        %v2287 = vunpack.c.l.b16 %v2266
        %v2288 = vunpack.c.l.b16 %v2267
        %v2289 = vunpack.c.l.b16 %v2268
        %v2290 = vunpack.c.l.b16 %v2269
        %v2291 = vpack.c.b16 %v2282, %v2281
        %v2292 = vpack.c.b16 %v2284, %v2283
        %v2293 = vpack.c.b16 %v2286, %v2285
        %v2294 = vpack.c.b16 %v2288, %v2287
        %v2295 = vpack.c.b16 %v2290, %v2289
        %v2301 = vsel %vm1390, %v2270, 0
        %v2304 = vand.u32 %v2295, %v1397
        %2306 = vmatpush.bf16.msra.mxu0 0
        %2307 = vmatpush.bf16.msra.mxu0 0
        %2308 = vmatpush.bf16.msra.mxu0 0
        %2309 = vmatpush.bf16.msra.mxu0 %v2304
        %2310 = vmatpush.bf16.msra.mxu0 %v2294
        %2311 = vmatpush.bf16.msra.mxu0 %v2293
        %2312 = vmatpush.bf16.msra.mxu0 %v2292
        %2313 = vmatpush.bf16.msra.mxu0 %v2291
        %2314 = vmatmul.bf16.gmra.mxu0 %v2301
        %v2315 = vpop.f32.mrf.mxu0
        %v2316 = vadd.f32 0.0, %v2315
        %v2317 = vpop.f32.mrf.mxu0
        %2318 = vdwg.mxu0
        %v2319 = vadd.f32 %v2258, %v2316
        %v2320 = vld [vmem:[%s6] sm:$0x1]
        %v2321 = vadd.f32 %v2319, %v2320
        %vm2322 = vcmp.gt.f32.partialorder %v2321, 0.0
        %v2323 = vmul.f32 %v2321, 0.01
        %v2324 = vsel %vm2322, %v2321, %v2323
        %v2325 = vld [vmem:[%s7] sm:$0x1]
        %v2326 = vmul.f32 %v2324, %v2325
        %vm2327 = vcmask 516096
        %v2328 = vsel %vm2327, %v2326, 0.0
        %2329 = vadd.xlane.f32.xlu0 %v2328
        %v2330 = vpop.xlane.xlu0 %2329
        %v2331 = vld [vmem:[#allocation2] sm:$0x1]
        %v2332 = vadd.f32 %v2330, %v2331
        %vm2333 = vcmp.eq.s32.totalorder %v1333, 0
        %2335 = vset.pattern.permute.xlu0 0
        %2336 = vperm.xlu0 %2335, %v2332
        %v2337 = vpop.permute.xlu0 %2336
        %v2339 = vsel %vm2333, %v2337, 0.0
        %v2340 = vunpack.c.h.b16 %v1330
        %v2341 = vpack.c.b16 %v2340, %v2340
        %v2343 = vshrl.u32 %v2341, 16
        %v2346 = vsel %vm1390, %v2343, 0
        %2348 = vmatpush.bf16.msra.mxu0 0
        %2349 = vmatpush.bf16.msra.mxu0 0
        %2350 = vmatpush.bf16.msra.mxu0 0
        %2351 = vmatpush.bf16.msra.mxu0 %v1399
        %2352 = vmatpush.bf16.msra.mxu0 %v1384
        %2353 = vmatpush.bf16.msra.mxu0 %v1383
        %2354 = vmatpush.bf16.msra.mxu0 %v1382
        %2355 = vmatpush.bf16.msra.mxu0 %v1381
        %2356 = vmatmul.bf16.gmra.mxu0 %v2346
        %v2357 = vpop.f32.mrf.mxu0
        %v2358 = vadd.f32 0.0, %v2357
        %v2359 = vpop.f32.mrf.mxu0
        %2360 = vdwg.mxu0
        %v2361 = vsel %vm1390, %v2341, 0
        %2363 = vmatpush.bf16.msra.mxu0 0
        %2364 = vmatpush.bf16.msra.mxu0 0
        %2365 = vmatpush.bf16.msra.mxu0 0
        %2366 = vmatpush.bf16.msra.mxu0 %v1447
        %2367 = vmatpush.bf16.msra.mxu0 %v1437
        %2368 = vmatpush.bf16.msra.mxu0 %v1436
        %2369 = vmatpush.bf16.msra.mxu0 %v1435
        %2370 = vmatpush.bf16.msra.mxu0 %v1434
        %2371 = vmatmul.bf16.gmra.mxu0 %v2361
        %v2372 = vpop.f32.mrf.mxu0
        %v2373 = vadd.f32 %v2358, %v2372
        %v2374 = vpop.f32.mrf.mxu0
        %2375 = vdwg.mxu0
        %v2376 = vrot.slane %v2341, 1
        %v2378 = vsel %vm1390, %v2376, 0
        %2380 = vmatpush.bf16.msra.mxu0 0
        %2381 = vmatpush.bf16.msra.mxu0 0
        %2382 = vmatpush.bf16.msra.mxu0 0
        %2383 = vmatpush.bf16.msra.mxu0 %v1507
        %2384 = vmatpush.bf16.msra.mxu0 %v1497
        %2385 = vmatpush.bf16.msra.mxu0 %v1496
        %2386 = vmatpush.bf16.msra.mxu0 %v1495
        %2387 = vmatpush.bf16.msra.mxu0 %v1494
        %2388 = vmatmul.bf16.gmra.mxu0 %v2378
        %v2389 = vpop.f32.mrf.mxu0
        %v2390 = vadd.f32 0.0, %v2389
        %v2391 = vpop.f32.mrf.mxu0
        %2392 = vdwg.mxu0
        %v2393 = vadd.f32 %v2373, %v2390
        %v2394 = vrot.slane %v2343, 1
        %v2396 = vsel %vm1390, %v2394, 0
        %2398 = vmatpush.bf16.msra.mxu0 0
        %2399 = vmatpush.bf16.msra.mxu0 0
        %2400 = vmatpush.bf16.msra.mxu0 0
        %2401 = vmatpush.bf16.msra.mxu0 %v1568
        %2402 = vmatpush.bf16.msra.mxu0 %v1558
        %2403 = vmatpush.bf16.msra.mxu0 %v1557
        %2404 = vmatpush.bf16.msra.mxu0 %v1556
        %2405 = vmatpush.bf16.msra.mxu0 %v1555
        %2406 = vmatmul.bf16.gmra.mxu0 %v2396
        %v2407 = vpop.f32.mrf.mxu0
        %v2408 = vadd.f32 0.0, %v2407
        %v2409 = vpop.f32.mrf.mxu0
        %2410 = vdwg.mxu0
        %v2411 = vadd.f32 %v2393, %v2408
        %v2412 = vrot.slane %v2341, 2
        %v2414 = vsel %vm1390, %v2412, 0
        %2416 = vmatpush.bf16.msra.mxu0 0
        %2417 = vmatpush.bf16.msra.mxu0 0
        %2418 = vmatpush.bf16.msra.mxu0 0
        %2419 = vmatpush.bf16.msra.mxu0 %v1629
        %2420 = vmatpush.bf16.msra.mxu0 %v1619
        %2421 = vmatpush.bf16.msra.mxu0 %v1618
        %2422 = vmatpush.bf16.msra.mxu0 %v1617
        %2423 = vmatpush.bf16.msra.mxu0 %v1616
        %2424 = vmatmul.bf16.gmra.mxu0 %v2414
        %v2425 = vpop.f32.mrf.mxu0
        %v2426 = vadd.f32 0.0, %v2425
        %v2427 = vpop.f32.mrf.mxu0
        %2428 = vdwg.mxu0
        %v2429 = vadd.f32 %v2411, %v2426
        %v2430 = vrot.slane %v2343, 2
        %v2432 = vsel %vm1390, %v2430, 0
        %2434 = vmatpush.bf16.msra.mxu0 0
        %2435 = vmatpush.bf16.msra.mxu0 0
        %2436 = vmatpush.bf16.msra.mxu0 0
        %2437 = vmatpush.bf16.msra.mxu0 %v1690
        %2438 = vmatpush.bf16.msra.mxu0 %v1680
        %2439 = vmatpush.bf16.msra.mxu0 %v1679
        %2440 = vmatpush.bf16.msra.mxu0 %v1678
        %2441 = vmatpush.bf16.msra.mxu0 %v1677
        %2442 = vmatmul.bf16.gmra.mxu0 %v2432
        %v2443 = vpop.f32.mrf.mxu0
        %v2444 = vadd.f32 0.0, %v2443
        %v2445 = vpop.f32.mrf.mxu0
        %2446 = vdwg.mxu0
        %v2447 = vadd.f32 %v2429, %v2444
        %v2448 = vrot.slane %v2341, 3
        %v2450 = vsel %vm1390, %v2448, 0
        %2452 = vmatpush.bf16.msra.mxu0 0
        %2453 = vmatpush.bf16.msra.mxu0 0
        %2454 = vmatpush.bf16.msra.mxu0 0
        %2455 = vmatpush.bf16.msra.mxu0 %v1751
        %2456 = vmatpush.bf16.msra.mxu0 %v1741
        %2457 = vmatpush.bf16.msra.mxu0 %v1740
        %2458 = vmatpush.bf16.msra.mxu0 %v1739
        %2459 = vmatpush.bf16.msra.mxu0 %v1738
        %2460 = vmatmul.bf16.gmra.mxu0 %v2450
        %v2461 = vpop.f32.mrf.mxu0
        %v2462 = vadd.f32 0.0, %v2461
        %v2463 = vpop.f32.mrf.mxu0
        %2464 = vdwg.mxu0
        %v2465 = vadd.f32 %v2447, %v2462
        %v2466 = vrot.slane %v2343, 3
        %v2468 = vsel %vm1390, %v2466, 0
        %2470 = vmatpush.bf16.msra.mxu0 0
        %2471 = vmatpush.bf16.msra.mxu0 0
        %2472 = vmatpush.bf16.msra.mxu0 0
        %2473 = vmatpush.bf16.msra.mxu0 %v1812
        %2474 = vmatpush.bf16.msra.mxu0 %v1802
        %2475 = vmatpush.bf16.msra.mxu0 %v1801
        %2476 = vmatpush.bf16.msra.mxu0 %v1800
        %2477 = vmatpush.bf16.msra.mxu0 %v1799
        %2478 = vmatmul.bf16.gmra.mxu0 %v2468
        %v2479 = vpop.f32.mrf.mxu0
        %v2480 = vadd.f32 0.0, %v2479
        %v2481 = vpop.f32.mrf.mxu0
        %2482 = vdwg.mxu0
        %v2483 = vadd.f32 %v2465, %v2480
        %v2484 = vunpack.c.h.b16 %v1331
        %v2485 = vpack.c.b16 %v2484, %v2484
        %v2487 = vsel %vm1390, %v2485, 0
        %2489 = vmatpush.bf16.msra.mxu0 0
        %2490 = vmatpush.bf16.msra.mxu0 0
        %2491 = vmatpush.bf16.msra.mxu0 0
        %2492 = vmatpush.bf16.msra.mxu0 %v1872
        %2493 = vmatpush.bf16.msra.mxu0 %v1862
        %2494 = vmatpush.bf16.msra.mxu0 %v1861
        %2495 = vmatpush.bf16.msra.mxu0 %v1860
        %2496 = vmatpush.bf16.msra.mxu0 %v1859
        %2497 = vmatmul.bf16.gmra.mxu0 %v2487
        %v2498 = vpop.f32.mrf.mxu0
        %v2499 = vadd.f32 0.0, %v2498
        %v2500 = vpop.f32.mrf.mxu0
        %2501 = vdwg.mxu0
        %v2502 = vadd.f32 %v2483, %v2499
        %v2503 = vshrl.u32 %v2485, 16
        %v2506 = vsel %vm1390, %v2503, 0
        %2508 = vmatpush.bf16.msra.mxu0 0
        %2509 = vmatpush.bf16.msra.mxu0 0
        %2510 = vmatpush.bf16.msra.mxu0 0
        %2511 = vmatpush.bf16.msra.mxu0 %v1938
        %2512 = vmatpush.bf16.msra.mxu0 %v1928
        %2513 = vmatpush.bf16.msra.mxu0 %v1927
        %2514 = vmatpush.bf16.msra.mxu0 %v1926
        %2515 = vmatpush.bf16.msra.mxu0 %v1925
        %2516 = vmatmul.bf16.gmra.mxu0 %v2506
        %v2517 = vpop.f32.mrf.mxu0
        %v2518 = vadd.f32 0.0, %v2517
        %v2519 = vpop.f32.mrf.mxu0
        %2520 = vdwg.mxu0
        %v2521 = vadd.f32 %v2502, %v2518
        %v2522 = vrot.slane %v2485, 1
        %v2524 = vsel %vm1390, %v2522, 0
        %2526 = vmatpush.bf16.msra.mxu0 0
        %2527 = vmatpush.bf16.msra.mxu0 0
        %2528 = vmatpush.bf16.msra.mxu0 0
        %2529 = vmatpush.bf16.msra.mxu0 %v1999
        %2530 = vmatpush.bf16.msra.mxu0 %v1989
        %2531 = vmatpush.bf16.msra.mxu0 %v1988
        %2532 = vmatpush.bf16.msra.mxu0 %v1987
        %2533 = vmatpush.bf16.msra.mxu0 %v1986
        %2534 = vmatmul.bf16.gmra.mxu0 %v2524
        %v2535 = vpop.f32.mrf.mxu0
        %v2536 = vadd.f32 0.0, %v2535
        %v2537 = vpop.f32.mrf.mxu0
        %2538 = vdwg.mxu0
        %v2539 = vadd.f32 %v2521, %v2536
        %v2540 = vrot.slane %v2503, 1
        %v2542 = vsel %vm1390, %v2540, 0
        %2544 = vmatpush.bf16.msra.mxu0 0
        %2545 = vmatpush.bf16.msra.mxu0 0
        %2546 = vmatpush.bf16.msra.mxu0 0
        %2547 = vmatpush.bf16.msra.mxu0 %v2060
        %2548 = vmatpush.bf16.msra.mxu0 %v2050
        %2549 = vmatpush.bf16.msra.mxu0 %v2049
        %2550 = vmatpush.bf16.msra.mxu0 %v2048
        %2551 = vmatpush.bf16.msra.mxu0 %v2047
        %2552 = vmatmul.bf16.gmra.mxu0 %v2542
        %v2553 = vpop.f32.mrf.mxu0
        %v2554 = vadd.f32 0.0, %v2553
        %v2555 = vpop.f32.mrf.mxu0
        %2556 = vdwg.mxu0
        %v2557 = vadd.f32 %v2539, %v2554
        %v2558 = vrot.slane %v2485, 2
        %v2560 = vsel %vm1390, %v2558, 0
        %2562 = vmatpush.bf16.msra.mxu0 0
        %2563 = vmatpush.bf16.msra.mxu0 0
        %2564 = vmatpush.bf16.msra.mxu0 0
        %2565 = vmatpush.bf16.msra.mxu0 %v2121
        %2566 = vmatpush.bf16.msra.mxu0 %v2111
        %2567 = vmatpush.bf16.msra.mxu0 %v2110
        %2568 = vmatpush.bf16.msra.mxu0 %v2109
        %2569 = vmatpush.bf16.msra.mxu0 %v2108
        %2570 = vmatmul.bf16.gmra.mxu0 %v2560
        %v2571 = vpop.f32.mrf.mxu0
        %v2572 = vadd.f32 0.0, %v2571
        %v2573 = vpop.f32.mrf.mxu0
        %2574 = vdwg.mxu0
        %v2575 = vadd.f32 %v2557, %v2572
        %v2576 = vrot.slane %v2503, 2
        %v2578 = vsel %vm1390, %v2576, 0
        %2580 = vmatpush.bf16.msra.mxu0 0
        %2581 = vmatpush.bf16.msra.mxu0 0
        %2582 = vmatpush.bf16.msra.mxu0 0
        %2583 = vmatpush.bf16.msra.mxu0 %v2182
        %2584 = vmatpush.bf16.msra.mxu0 %v2172
        %2585 = vmatpush.bf16.msra.mxu0 %v2171
        %2586 = vmatpush.bf16.msra.mxu0 %v2170
        %2587 = vmatpush.bf16.msra.mxu0 %v2169
        %2588 = vmatmul.bf16.gmra.mxu0 %v2578
        %v2589 = vpop.f32.mrf.mxu0
        %v2590 = vadd.f32 0.0, %v2589
        %v2591 = vpop.f32.mrf.mxu0
        %2592 = vdwg.mxu0
        %v2593 = vadd.f32 %v2575, %v2590
        %v2594 = vrot.slane %v2485, 3
        %v2596 = vsel %vm1390, %v2594, 0
        %2598 = vmatpush.bf16.msra.mxu0 0
        %2599 = vmatpush.bf16.msra.mxu0 0
        %2600 = vmatpush.bf16.msra.mxu0 0
        %2601 = vmatpush.bf16.msra.mxu0 %v2243
        %2602 = vmatpush.bf16.msra.mxu0 %v2233
        %2603 = vmatpush.bf16.msra.mxu0 %v2232
        %2604 = vmatpush.bf16.msra.mxu0 %v2231
        %2605 = vmatpush.bf16.msra.mxu0 %v2230
        %2606 = vmatmul.bf16.gmra.mxu0 %v2596
        %v2607 = vpop.f32.mrf.mxu0
        %v2608 = vadd.f32 0.0, %v2607
        %v2609 = vpop.f32.mrf.mxu0
        %2610 = vdwg.mxu0
        %v2611 = vadd.f32 %v2593, %v2608
        %v2612 = vrot.slane %v2503, 3
        %v2614 = vsel %vm1390, %v2612, 0
        %2616 = vmatpush.bf16.msra.mxu0 0
        %2617 = vmatpush.bf16.msra.mxu0 0
        %2618 = vmatpush.bf16.msra.mxu0 0
        %2619 = vmatpush.bf16.msra.mxu0 %v2304
        %2620 = vmatpush.bf16.msra.mxu0 %v2294
        %2621 = vmatpush.bf16.msra.mxu0 %v2293
        %2622 = vmatpush.bf16.msra.mxu0 %v2292
        %2623 = vmatpush.bf16.msra.mxu0 %v2291
        %2624 = vmatmul.bf16.gmra.mxu0 %v2614
        %v2625 = vpop.f32.mrf.mxu0
        %v2626 = vadd.f32 0.0, %v2625
        %v2627 = vpop.f32.mrf.mxu0
        %2628 = vdwg.mxu0
        %v2629 = vadd.f32 %v2611, %v2626
        %v2630 = vadd.f32 %v2629, %v2320
        %vm2631 = vcmp.gt.f32.partialorder %v2630, 0.0
        %v2632 = vmul.f32 %v2630, 0.01
        %v2633 = vsel %vm2631, %v2630, %v2632
        %v2634 = vmul.f32 %v2633, %v2325
        %v2635 = vsel %vm2327, %v2634, 0.0
        %2636 = vadd.xlane.f32.xlu0 %v2635
        %v2637 = vpop.xlane.xlu0 %2636
        %v2638 = vadd.f32 %v2637, %v2331
        %vm2639 = vcmp.eq.s32.totalorder %v1333, 1
        %2641 = vset.pattern.permute.xlu0 0
        %2642 = vperm.xlu0 %2641, %v2638
        %v2643 = vpop.permute.xlu0 %2642
        %v2645 = vsel %vm2639, %v2643, %v2339
        %2646 = vst [vmem:[%s371] sm:$0x1] %v2645
        %p2647 = scmp.lt.s32.totalorder %s22, 1
        %s2648 = scalar_select %p2647, %s22, 1
        %s2649 = scalar_lea.vmem %s9, %s2648
        // Predicated region
        $region95: #{net_forward.5} parent=89 // pred_check
          %p2650 = pneg %p234
        $region96: #{net_forward.5} parent=89 // pred_check_branch
          %2652 = sbr.rel (%p2650) target = $region98
        $region97: #{net_forward.5} parent=89 // pred_region
          _
        $region98: #{net_forward.5} parent=89 // pred_fallthru
          _
      $region90: #{net_forward.5} parent=5 // pred_fallthru
        _
      %p2653 = scmp.le.s32.totalorder 2, %s17
      // Predicated region
      $region99: #{net_forward.5} parent=5 // pred_check
        %p2654 = pneg %p2653
      $region100: #{net_forward.5} parent=5 // pred_check_branch
        %2656 = sbr.rel (%p2654) target = $region102
      $region101: #{net_forward.5} parent=5 // pred_region
        %s2657 = ssub.s32 %s17, 2
        // Predicated region
        $region103: #{net_forward.5} parent=101 // pred_check
          %p2658 = pneg %p240
        $region104: #{net_forward.5} parent=101 // pred_check_branch
          %2660 = sbr.rel (%p2658) target = $region106
        $region105: #{net_forward.5} parent=101 // pred_region
          %p2661 = scmp.lt.s32.totalorder %s23, 1
          %s2662 = scalar_select %p2661, %s23, 1
          %s2663 = scalar_lea.vmem %s9, %s2662
        $region106: #{net_forward.5} parent=101 // pred_fallthru
          _
      $region102: #{net_forward.5} parent=5 // pred_fallthru
        _
    $region6: #{net_forward.5} parent=1 // loop_footer
      %s21 = sadd.s32 1, %s17
    $region7: #{net_forward.5} parent=1 // loop_footer_branch
      %16 = sbr.rel target = $region3
    $region8: #{net_forward.5} parent=1 // loop_exit
      _

</llo_original>
